<compile_context>
chip_gen: v6e
topology: v6e:2x2x1
jax: 0.10.0
libtpu: 0.0.40
codegen_flags: <defaults>
</compile_context>

<pallas_src>
import functools
import math

import jax
import jax.numpy as jnp
from jax.experimental import pallas as pl
from jax.experimental.pallas import tpu as pltpu


def _round_up(x, m):
    return ((x + m - 1) // m) * m


# ----------------------------------------------------------------------------
# Fused kernel: conv stack + IAM conv + aggregation + fused heads (one batch el.)
# ----------------------------------------------------------------------------
def _instance_branch_kernel(x_ref, *refs, cins, dim, H, W):
    num_convs = len(cins)
    conv_refs = refs[:2 * num_convs]
    iam_w_ref, iam_b_ref, head_w_ref, head_b_ref = \
        refs[2 * num_convs:2 * num_convs + 4]
    iam_out_ref, head_out_ref = refs[2 * num_convs + 4:2 * num_convs + 6]
    pad_ref = refs[2 * num_convs + 6]                       # (H+2, W+2, C_scr) bf16

    HW = H * W
    C_scr = pad_ref.shape[-1]

    # ---- refresh the 1-wide zero halo border (cheap; megacore-safe) --------
    zrow = jnp.zeros((1, W + 2, C_scr), jnp.bfloat16)
    zcol = jnp.zeros((H + 2, 1, C_scr), jnp.bfloat16)
    pad_ref[0:1, :, :] = zrow
    pad_ref[H + 1:H + 2, :, :] = zrow
    pad_ref[:, 0:1, :] = zcol
    pad_ref[:, W + 1:W + 2, :] = zcol

    # ---- seed padded scratch with the bf16 input (cast BEFORE tap work) ----
    x_bf = x_ref[0].astype(jnp.bfloat16)                    # (H, W, Cin)
    pad_ref[1:H + 1, 1:W + 1, 0:cins[0]] = x_bf

    def conv3x3_taps(cin, w_ref):
        """9 shifted (HW, cin) @ (cin, cout) matmuls, f32 accumulation."""
        xp = pad_ref[...]                                   # (H+2, W+2, C_scr) bf16
        if cin != C_scr:
            xp = xp[:, :, 0:cin]
        acc = None
        for dy in range(3):
            for dx in range(3):
                tap = xp[dy:dy + H, dx:dx + W, :].reshape(HW, cin)
                wt = w_ref[(dy * 3 + dx) * cin:(dy * 3 + dx + 1) * cin, :]
                y = jnp.dot(tap, wt, preferred_element_type=jnp.float32)
                acc = y if acc is None else acc + y
        return acc                                          # (HW, cout) f32

    # ---- inst conv stack (3x3 + ReLU); intermediates stay in VMEM ----------
    feat_bf = x_bf.reshape(HW, cins[0])                     # fallback if num_convs==0
    for l in range(num_convs):
        cin = cins[l]
        b = conv_refs[2 * l + 1][...]                       # (1, dim) f32
        y = jnp.maximum(conv3x3_taps(cin, conv_refs[2 * l]) + b, 0.0)   # (HW, dim)
        feat_bf = y.astype(jnp.bfloat16)
        pad_ref[1:H + 1, 1:W + 1, 0:dim] = feat_bf.reshape(H, W, dim)

    # ---- IAM 3x3 conv: accumulate (HW, Np), transpose only the SMALL result
    iam_hwn = conv3x3_taps(dim, iam_w_ref) + iam_b_ref[...]             # (HW, Np) f32
    iam = jnp.transpose(iam_hwn)                                        # (Np, HW)
    iam_out_ref[0] = iam.astype(iam_out_ref.dtype)                      # raw logits

    # ---- sigmoid (EUP) + aggregation; normalize AFTER the matmul -----------
    prob = pl.reciprocal(1.0 + jnp.exp(-iam), approx=True)              # (Np, HW)
    norm = jnp.sum(prob, axis=-1, keepdims=True)                        # (Np, 1)
    inv = pl.reciprocal(jnp.maximum(norm, 1e-6), approx=True)
    inst = jnp.dot(prob.astype(jnp.bfloat16), feat_bf,
                   preferred_element_type=jnp.float32) * inv            # (Np, dim)

    # ---- fused linear heads: [cls_score | mask_kernel | objectness | pad] --
    head = jnp.dot(inst.astype(jnp.bfloat16), head_w_ref[...],
                   preferred_element_type=jnp.float32) + head_b_ref[...]
    head_out_ref[0] = head.astype(head_out_ref.dtype)                   # (Np, Hd_p)


# ----------------------------------------------------------------------------
# Parameter construction (deterministic, mirrors InstanceBranch._init_weights)
# ----------------------------------------------------------------------------
def make_params(key, *, in_channels, dim, num_convs, num_masks,
                kernel_dim, num_classes, dtype=jnp.float32):
    # NOTE: conv weights are stored (kH, kW, Cin, Cout); if loading from
    # PyTorch (Cout, Cin, kH, kW) they must be permuted to this layout first.
    params = {}
    keys = jax.random.split(key, num_convs + 8)
    bias_value = -math.log((1 - 0.01) / 0.01)

    cin = in_channels
    inst_convs = []
    for i in range(num_convs):
        fan_out = dim * 3 * 3
        std = math.sqrt(2.0 / fan_out)
        w = jax.random.normal(keys[i], (3, 3, cin, dim), dtype) * std
        b = jnp.zeros((1, dim), dtype)
        inst_convs.append((w, b))
        cin = dim
    params["inst_convs"] = inst_convs

    params["iam_w"] = jax.random.normal(
        keys[num_convs], (3, 3, dim, num_masks), dtype) * 0.01
    params["iam_b"] = jnp.full((1, num_masks), bias_value, dtype)

    params["cls_w"] = jax.random.normal(
        keys[num_convs + 1], (dim, num_classes), dtype) * 0.01
    params["cls_b"] = jnp.full((1, num_classes), bias_value, dtype)

    params["ker_w"] = jax.random.normal(
        keys[num_convs + 2], (dim, kernel_dim), dtype) * 0.01
    params["ker_b"] = jnp.zeros((1, kernel_dim), dtype)

    bound = 1.0 / math.sqrt(dim)
    params["obj_w"] = jax.random.uniform(
        keys[num_convs + 3], (dim, 1), dtype, minval=-bound, maxval=bound)
    params["obj_b"] = jax.random.uniform(
        keys[num_convs + 4], (1, 1), dtype, minval=-bound, maxval=bound)
    return params


# ----------------------------------------------------------------------------
# Generation-aware VMEM scoped limit
# ----------------------------------------------------------------------------
def _vmem_limit_bytes():
    try:
        cap = int(pltpu.get_tpu_info().vmem_capacity_bytes)
    except Exception:
        cap = 64 * 1024 * 1024   # conservative fallback (v7x per-TC physical)
    return max(32 * 1024 * 1024, min(int(cap * 0.85), 110 * 1024 * 1024))


# ----------------------------------------------------------------------------
# Forward pass wrapper: packs weights once, runs the single fused pallas_call
# ----------------------------------------------------------------------------
def instance_branch_forward(x_nchw, params):
    B, Cin, H, W = x_nchw.shape
    x = jnp.transpose(x_nchw, (0, 2, 3, 1))                 # -> NHWC
    num_convs = len(params["inst_convs"])
    dim = params["inst_convs"][-1][0].shape[-1]
    num_masks = params["iam_w"].shape[-1]
    num_classes = params["cls_w"].shape[-1]
    kernel_dim = params["ker_w"].shape[-1]
    HW = H * W

    n_p = _round_up(num_masks, 8)                           # sublane-aligned masks
    head_dim = num_classes + kernel_dim + 1
    head_dim_p = _round_up(head_dim, 128)                   # lane-dense head store

    # ---- pack weights: tap-major 2-D layout + bf16 matmul operands ---------
    conv_args, cins = [], []
    for (w, b) in params["inst_convs"]:
        cin = w.shape[2]
        cins.append(cin)
        conv_args.append(w.reshape(9 * cin, w.shape[-1]).astype(jnp.bfloat16))
        conv_args.append(b.reshape(1, -1).astype(jnp.float32))

    iam_w = params["iam_w"].reshape(9 * dim, num_masks)
    iam_w = jnp.pad(iam_w, ((0, 0), (0, n_p - num_masks))).astype(jnp.bfloat16)
    iam_b = jnp.pad(params["iam_b"].reshape(1, num_masks),
                    ((0, 0), (0, n_p - num_masks))).astype(jnp.float32)

    head_w = jnp.concatenate(
        [params["cls_w"], params["ker_w"], params["obj_w"]], axis=1)
    head_w = jnp.pad(head_w,
                     ((0, 0), (0, head_dim_p - head_dim))).astype(jnp.bfloat16)
    head_b = jnp.concatenate(
        [params["cls_b"], params["ker_b"], params["obj_b"]], axis=1)
    head_b = jnp.pad(head_b,
                     ((0, 0), (0, head_dim_p - head_dim))).astype(jnp.float32)

    def full_spec(a):
        return pl.BlockSpec(a.shape, lambda bb, _nd=a.ndim: (0,) * _nd)

    in_specs = [pl.BlockSpec((1, H, W, Cin), lambda bb: (bb, 0, 0, 0))]
    in_specs += [full_spec(a) for a in conv_args]
    in_specs += [full_spec(iam_w), full_spec(iam_b),
                 full_spec(head_w), full_spec(head_b)]

    kernel = functools.partial(_instance_branch_kernel,
                               cins=tuple(cins), dim=dim, H=H, W=W)

    c_scr = max(Cin, dim)
    iam_flat, head_out = pl.pallas_call(
        kernel,
        out_shape=(
            jax.ShapeDtypeStruct((B, n_p, HW), jnp.float32),
            jax.ShapeDtypeStruct((B, n_p, head_dim_p), jnp.float32),
        ),
        grid=(B,),
        in_specs=in_specs,
        out_specs=(
            pl.BlockSpec((1, n_p, HW), lambda bb: (bb, 0, 0)),
            pl.BlockSpec((1, n_p, head_dim_p), lambda bb: (bb, 0, 0)),
        ),
        scratch_shapes=[pltpu.VMEM((H + 2, W + 2, c_scr), jnp.bfloat16)],
        compiler_params=pltpu.CompilerParams(
            dimension_semantics=("parallel",),
            vmem_limit_bytes=_vmem_limit_bytes()),
    )(x, *conv_args, iam_w, iam_b, head_w, head_b)

    pred_logits = head_out[:, :num_masks, :num_classes]
    pred_kernel = head_out[:, :num_masks, num_classes:num_classes + kernel_dim]
    pred_scores = head_out[:, :num_masks, num_classes + kernel_dim:head_dim]
    iam = iam_flat[:, :num_masks, :].reshape(B, num_masks, H, W)
    return pred_logits, pred_kernel, pred_scores, iam


if __name__ == "__main__":
    # Small config consistent with the module:
    B, in_channels, H, W = 2, 4, 16, 16
    dim, num_convs = 32, 2
    num_masks, kernel_dim, num_classes = 8, 16, 10

    key = jax.random.PRNGKey(0)
    k_x, k_p = jax.random.split(key)
    x = jax.random.normal(k_x, (B, in_channels, H, W), jnp.float32)
    params = make_params(k_p, in_channels=in_channels, dim=dim,
                         num_convs=num_convs, num_masks=num_masks,
                         kernel_dim=kernel_dim, num_classes=num_classes)

    pred_logits, pred_kernel, pred_scores, iam = instance_branch_forward(x, params)
    jax.block_until_ready((pred_logits, pred_kernel, pred_scores, iam))

    assert pred_logits.shape == (B, num_masks, num_classes)
    assert pred_kernel.shape == (B, num_masks, kernel_dim)
    assert pred_scores.shape == (B, num_masks, 1)
    assert iam.shape == (B, num_masks, H, W)
    print("KERNEL_OK")
</pallas_src>

<mosaic_0001>
module attributes {stable_mosaic.version = 11 : i64} {
  func.func @_instance_branch_kernel(%arg0: i32, %arg1: memref<1x16x16x4xf32, #tpu.memory_space<vmem>>, %arg2: memref<36x32xbf16, #tpu.memory_space<vmem>>, %arg3: memref<1x32xf32, #tpu.memory_space<vmem>>, %arg4: memref<288x32xbf16, #tpu.memory_space<vmem>>, %arg5: memref<1x32xf32, #tpu.memory_space<vmem>>, %arg6: memref<288x8xbf16, #tpu.memory_space<vmem>>, %arg7: memref<1x8xf32, #tpu.memory_space<vmem>>, %arg8: memref<32x128xbf16, #tpu.memory_space<vmem>>, %arg9: memref<1x128xf32, #tpu.memory_space<vmem>>, %arg10: memref<1x8x256xf32, #tpu.memory_space<vmem>>, %arg11: memref<1x8x128xf32, #tpu.memory_space<vmem>>, %arg12: memref<18x18x32xbf16, #tpu.memory_space<vmem>>) attributes {dimension_semantics = [#tpu.dimension_semantics<parallel>], iteration_bounds = array<i64: 2>, scalar_prefetch = 0 : i64, scratch_operands = 1 : i64, tpu.core_type = #tpu.core_type<tc>, window_params = [{transform_indices = @transform_0, window_bounds = array<i64: 1, 16, 16, 4>}, {pipeline_mode = #tpu.pipeline_mode<synchronous>, transform_indices = @transform_1, window_bounds = array<i64: 36, 32>}, {pipeline_mode = #tpu.pipeline_mode<synchronous>, transform_indices = @transform_2, window_bounds = array<i64: 1, 32>}, {pipeline_mode = #tpu.pipeline_mode<synchronous>, transform_indices = @transform_3, window_bounds = array<i64: 288, 32>}, {pipeline_mode = #tpu.pipeline_mode<synchronous>, transform_indices = @transform_4, window_bounds = array<i64: 1, 32>}, {pipeline_mode = #tpu.pipeline_mode<synchronous>, transform_indices = @transform_5, window_bounds = array<i64: 288, 8>}, {pipeline_mode = #tpu.pipeline_mode<synchronous>, transform_indices = @transform_6, window_bounds = array<i64: 1, 8>}, {pipeline_mode = #tpu.pipeline_mode<synchronous>, transform_indices = @transform_7, window_bounds = array<i64: 32, 128>}, {pipeline_mode = #tpu.pipeline_mode<synchronous>, transform_indices = @transform_8, window_bounds = array<i64: 1, 128>}, {transform_indices = @transform_9, window_bounds = array<i64: 1, 8, 256>}, {transform_indices = @transform_10, window_bounds = array<i64: 1, 8, 128>}]} {
    %cst = arith.constant 0.000000e+00 : bf16
    %0 = vector.broadcast %cst : bf16 to vector<1x18x32xbf16>
    %cst_0 = arith.constant 0.000000e+00 : bf16
    %1 = vector.broadcast %cst_0 : bf16 to vector<18x1x32xbf16>
    %c0 = arith.constant 0 : index
    %c0_1 = arith.constant 0 : index
    %c0_2 = arith.constant 0 : index
    %2 = vector.load %arg12[%c0, %c0_1, %c0_2] : memref<18x18x32xbf16, #tpu.memory_space<vmem>>, vector<1x18x32xbf16>
    tpu.vector_store %arg12[%c0, %c0_1, %c0_2], %0 {strides = array<i32>} : memref<18x18x32xbf16, #tpu.memory_space<vmem>>, vector<1x18x32xbf16>,
    %c17 = arith.constant 17 : index
    %c0_3 = arith.constant 0 : index
    %c0_4 = arith.constant 0 : index
    %3 = vector.load %arg12[%c17, %c0_3, %c0_4] : memref<18x18x32xbf16, #tpu.memory_space<vmem>>, vector<1x18x32xbf16>
    tpu.vector_store %arg12[%c17, %c0_3, %c0_4], %0 {strides = array<i32>} : memref<18x18x32xbf16, #tpu.memory_space<vmem>>, vector<1x18x32xbf16>,
    %c0_5 = arith.constant 0 : index
    %c0_6 = arith.constant 0 : index
    %c0_7 = arith.constant 0 : index
    %4 = vector.load %arg12[%c0_5, %c0_6, %c0_7] : memref<18x18x32xbf16, #tpu.memory_space<vmem>>, vector<18x1x32xbf16>
    tpu.vector_store %arg12[%c0_5, %c0_6, %c0_7], %1 {strides = array<i32>} : memref<18x18x32xbf16, #tpu.memory_space<vmem>>, vector<18x1x32xbf16>,
    %c0_8 = arith.constant 0 : index
    %c17_9 = arith.constant 17 : index
    %c0_10 = arith.constant 0 : index
    %5 = vector.load %arg12[%c0_8, %c17_9, %c0_10] : memref<18x18x32xbf16, #tpu.memory_space<vmem>>, vector<18x1x32xbf16>
    tpu.vector_store %arg12[%c0_8, %c17_9, %c0_10], %1 {strides = array<i32>} : memref<18x18x32xbf16, #tpu.memory_space<vmem>>, vector<18x1x32xbf16>,
    %c0_11 = arith.constant 0 : index
    %c0_12 = arith.constant 0 : index
    %c0_13 = arith.constant 0 : index
    %c0_14 = arith.constant 0 : index
    %6 = vector.load %arg1[%c0_11, %c0_12, %c0_13, %c0_14] : memref<1x16x16x4xf32, #tpu.memory_space<vmem>>, vector<1x16x16x4xf32>
    %7 = vector.shape_cast %6 : vector<1x16x16x4xf32> to vector<16x16x4xf32>
    %8 = arith.truncf %7 : vector<16x16x4xf32> to vector<16x16x4xbf16>
    %c1 = arith.constant 1 : index
    %c1_15 = arith.constant 1 : index
    %c0_16 = arith.constant 0 : index
    %9 = vector.load %arg12[%c1, %c1_15, %c0_16] : memref<18x18x32xbf16, #tpu.memory_space<vmem>>, vector<16x16x4xbf16>
    tpu.vector_store %arg12[%c1, %c1_15, %c0_16], %8 {strides = array<i32>} : memref<18x18x32xbf16, #tpu.memory_space<vmem>>, vector<16x16x4xbf16>,
    %c0_17 = arith.constant 0 : index
    %c0_18 = arith.constant 0 : index
    %10 = vector.load %arg3[%c0_17, %c0_18] : memref<1x32xf32, #tpu.memory_space<vmem>>, vector<1x32xf32>
    %c0_19 = arith.constant 0 : index
    %c0_20 = arith.constant 0 : index
    %c0_21 = arith.constant 0 : index
    %11 = vector.load %arg12[%c0_19, %c0_20, %c0_21] : memref<18x18x32xbf16, #tpu.memory_space<vmem>>, vector<18x18x32xbf16>
    %12 = vector.extract_strided_slice %11 {offsets = [0, 0, 0], sizes = [18, 18, 4], strides = [1, 1, 1]} : vector<18x18x32xbf16> to vector<18x18x4xbf16>
    %13 = vector.extract_strided_slice %12 {offsets = [0, 0, 0], sizes = [16, 16, 4], strides = [1, 1, 1]} : vector<18x18x4xbf16> to vector<16x16x4xbf16>
    %14 = vector.shape_cast %13 : vector<16x16x4xbf16> to vector<256x4xbf16>
    %c0_22 = arith.constant 0 : index
    %c0_23 = arith.constant 0 : index
    %15 = vector.load %arg2[%c0_22, %c0_23] : memref<36x32xbf16, #tpu.memory_space<vmem>>, vector<4x32xbf16>
    %cst_24 = arith.constant dense<0.000000e+00> : vector<256x32xf32>
    %16 = tpu.matmul %14, %15, %cst_24 {dimension_numbers = #tpu.dot_dimension_numbers<[1], [0], [0], [1], [0, 0, 1, 1], [], []>} : vector<256x4xbf16>, vector<4x32xbf16>, vector<256x32xf32> -> vector<256x32xf32>
    %17 = vector.extract_strided_slice %12 {offsets = [0, 1, 0], sizes = [16, 16, 4], strides = [1, 1, 1]} : vector<18x18x4xbf16> to vector<16x16x4xbf16>
    %18 = vector.shape_cast %17 : vector<16x16x4xbf16> to vector<256x4xbf16>
    %c4 = arith.constant 4 : index
    %c0_25 = arith.constant 0 : index
    %19 = vector.load %arg2[%c4, %c0_25] : memref<36x32xbf16, #tpu.memory_space<vmem>>, vector<4x32xbf16>
    %cst_26 = arith.constant dense<0.000000e+00> : vector<256x32xf32>
    %20 = tpu.matmul %18, %19, %cst_26 {dimension_numbers = #tpu.dot_dimension_numbers<[1], [0], [0], [1], [0, 0, 1, 1], [], []>} : vector<256x4xbf16>, vector<4x32xbf16>, vector<256x32xf32> -> vector<256x32xf32>
    %21 = arith.addf %16, %20 : vector<256x32xf32>
    %22 = vector.extract_strided_slice %12 {offsets = [0, 2, 0], sizes = [16, 16, 4], strides = [1, 1, 1]} : vector<18x18x4xbf16> to vector<16x16x4xbf16>
    %23 = vector.shape_cast %22 : vector<16x16x4xbf16> to vector<256x4xbf16>
    %c8 = arith.constant 8 : index
    %c0_27 = arith.constant 0 : index
    %24 = vector.load %arg2[%c8, %c0_27] : memref<36x32xbf16, #tpu.memory_space<vmem>>, vector<4x32xbf16>
    %cst_28 = arith.constant dense<0.000000e+00> : vector<256x32xf32>
    %25 = tpu.matmul %23, %24, %cst_28 {dimension_numbers = #tpu.dot_dimension_numbers<[1], [0], [0], [1], [0, 0, 1, 1], [], []>} : vector<256x4xbf16>, vector<4x32xbf16>, vector<256x32xf32> -> vector<256x32xf32>
    %26 = arith.addf %21, %25 : vector<256x32xf32>
    %27 = vector.extract_strided_slice %12 {offsets = [1, 0, 0], sizes = [16, 16, 4], strides = [1, 1, 1]} : vector<18x18x4xbf16> to vector<16x16x4xbf16>
    %28 = vector.shape_cast %27 : vector<16x16x4xbf16> to vector<256x4xbf16>
    %c12 = arith.constant 12 : index
    %c0_29 = arith.constant 0 : index
    %29 = vector.load %arg2[%c12, %c0_29] : memref<36x32xbf16, #tpu.memory_space<vmem>>, vector<4x32xbf16>
    %cst_30 = arith.constant dense<0.000000e+00> : vector<256x32xf32>
    %30 = tpu.matmul %28, %29, %cst_30 {dimension_numbers = #tpu.dot_dimension_numbers<[1], [0], [0], [1], [0, 0, 1, 1], [], []>} : vector<256x4xbf16>, vector<4x32xbf16>, vector<256x32xf32> -> vector<256x32xf32>
    %31 = arith.addf %26, %30 : vector<256x32xf32>
    %32 = vector.extract_strided_slice %12 {offsets = [1, 1, 0], sizes = [16, 16, 4], strides = [1, 1, 1]} : vector<18x18x4xbf16> to vector<16x16x4xbf16>
    %33 = vector.shape_cast %32 : vector<16x16x4xbf16> to vector<256x4xbf16>
    %c16 = arith.constant 16 : index
    %c0_31 = arith.constant 0 : index
    %34 = vector.load %arg2[%c16, %c0_31] : memref<36x32xbf16, #tpu.memory_space<vmem>>, vector<4x32xbf16>
    %cst_32 = arith.constant dense<0.000000e+00> : vector<256x32xf32>
    %35 = tpu.matmul %33, %34, %cst_32 {dimension_numbers = #tpu.dot_dimension_numbers<[1], [0], [0], [1], [0, 0, 1, 1], [], []>} : vector<256x4xbf16>, vector<4x32xbf16>, vector<256x32xf32> -> vector<256x32xf32>
    %36 = arith.addf %31, %35 : vector<256x32xf32>
    %37 = vector.extract_strided_slice %12 {offsets = [1, 2, 0], sizes = [16, 16, 4], strides = [1, 1, 1]} : vector<18x18x4xbf16> to vector<16x16x4xbf16>
    %38 = vector.shape_cast %37 : vector<16x16x4xbf16> to vector<256x4xbf16>
    %c20 = arith.constant 20 : index
    %c0_33 = arith.constant 0 : index
    %39 = vector.load %arg2[%c20, %c0_33] : memref<36x32xbf16, #tpu.memory_space<vmem>>, vector<4x32xbf16>
    %cst_34 = arith.constant dense<0.000000e+00> : vector<256x32xf32>
    %40 = tpu.matmul %38, %39, %cst_34 {dimension_numbers = #tpu.dot_dimension_numbers<[1], [0], [0], [1], [0, 0, 1, 1], [], []>} : vector<256x4xbf16>, vector<4x32xbf16>, vector<256x32xf32> -> vector<256x32xf32>
    %41 = arith.addf %36, %40 : vector<256x32xf32>
    %42 = vector.extract_strided_slice %12 {offsets = [2, 0, 0], sizes = [16, 16, 4], strides = [1, 1, 1]} : vector<18x18x4xbf16> to vector<16x16x4xbf16>
    %43 = vector.shape_cast %42 : vector<16x16x4xbf16> to vector<256x4xbf16>
    %c24 = arith.constant 24 : index
    %c0_35 = arith.constant 0 : index
    %44 = vector.load %arg2[%c24, %c0_35] : memref<36x32xbf16, #tpu.memory_space<vmem>>, vector<4x32xbf16>
    %cst_36 = arith.constant dense<0.000000e+00> : vector<256x32xf32>
    %45 = tpu.matmul %43, %44, %cst_36 {dimension_numbers = #tpu.dot_dimension_numbers<[1], [0], [0], [1], [0, 0, 1, 1], [], []>} : vector<256x4xbf16>, vector<4x32xbf16>, vector<256x32xf32> -> vector<256x32xf32>
    %46 = arith.addf %41, %45 : vector<256x32xf32>
    %47 = vector.extract_strided_slice %12 {offsets = [2, 1, 0], sizes = [16, 16, 4], strides = [1, 1, 1]} : vector<18x18x4xbf16> to vector<16x16x4xbf16>
    %48 = vector.shape_cast %47 : vector<16x16x4xbf16> to vector<256x4xbf16>
    %c28 = arith.constant 28 : index
    %c0_37 = arith.constant 0 : index
    %49 = vector.load %arg2[%c28, %c0_37] : memref<36x32xbf16, #tpu.memory_space<vmem>>, vector<4x32xbf16>
    %cst_38 = arith.constant dense<0.000000e+00> : vector<256x32xf32>
    %50 = tpu.matmul %48, %49, %cst_38 {dimension_numbers = #tpu.dot_dimension_numbers<[1], [0], [0], [1], [0, 0, 1, 1], [], []>} : vector<256x4xbf16>, vector<4x32xbf16>, vector<256x32xf32> -> vector<256x32xf32>
    %51 = arith.addf %46, %50 : vector<256x32xf32>
    %52 = vector.extract_strided_slice %12 {offsets = [2, 2, 0], sizes = [16, 16, 4], strides = [1, 1, 1]} : vector<18x18x4xbf16> to vector<16x16x4xbf16>
    %53 = vector.shape_cast %52 : vector<16x16x4xbf16> to vector<256x4xbf16>
    %c32 = arith.constant 32 : index
    %c0_39 = arith.constant 0 : index
    %54 = vector.load %arg2[%c32, %c0_39] : memref<36x32xbf16, #tpu.memory_space<vmem>>, vector<4x32xbf16>
    %cst_40 = arith.constant dense<0.000000e+00> : vector<256x32xf32>
    %55 = tpu.matmul %53, %54, %cst_40 {dimension_numbers = #tpu.dot_dimension_numbers<[1], [0], [0], [1], [0, 0, 1, 1], [], []>} : vector<256x4xbf16>, vector<4x32xbf16>, vector<256x32xf32> -> vector<256x32xf32>
    %56 = arith.addf %51, %55 : vector<256x32xf32>
    %57 = vector.broadcast %10 : vector<1x32xf32> to vector<256x32xf32>
    %58 = arith.addf %56, %57 : vector<256x32xf32>
    %cst_41 = arith.constant 0.000000e+00 : f32
    %59 = vector.broadcast %cst_41 : f32 to vector<256x32xf32>
    %60 = arith.maximumf %58, %59 : vector<256x32xf32>
    %61 = arith.truncf %60 : vector<256x32xf32> to vector<256x32xbf16>
    %62 = vector.shape_cast %61 : vector<256x32xbf16> to vector<16x16x32xbf16>
    %c1_42 = arith.constant 1 : index
    %c1_43 = arith.constant 1 : index
    %c0_44 = arith.constant 0 : index
    %63 = vector.load %arg12[%c1_42, %c1_43, %c0_44] : memref<18x18x32xbf16, #tpu.memory_space<vmem>>, vector<16x16x32xbf16>
    tpu.vector_store %arg12[%c1_42, %c1_43, %c0_44], %62 {strides = array<i32>} : memref<18x18x32xbf16, #tpu.memory_space<vmem>>, vector<16x16x32xbf16>,
    %c0_45 = arith.constant 0 : index
    %c0_46 = arith.constant 0 : index
    %64 = vector.load %arg5[%c0_45, %c0_46] : memref<1x32xf32, #tpu.memory_space<vmem>>, vector<1x32xf32>
    %c0_47 = arith.constant 0 : index
    %c0_48 = arith.constant 0 : index
    %c0_49 = arith.constant 0 : index
    %65 = vector.load %arg12[%c0_47, %c0_48, %c0_49] : memref<18x18x32xbf16, #tpu.memory_space<vmem>>, vector<18x18x32xbf16>
    %66 = vector.extract_strided_slice %65 {offsets = [0, 0, 0], sizes = [16, 16, 32], strides = [1, 1, 1]} : vector<18x18x32xbf16> to vector<16x16x32xbf16>
    %67 = vector.shape_cast %66 : vector<16x16x32xbf16> to vector<256x32xbf16>
    %c0_50 = arith.constant 0 : index
    %c0_51 = arith.constant 0 : index
    %68 = vector.load %arg4[%c0_50, %c0_51] : memref<288x32xbf16, #tpu.memory_space<vmem>>, vector<32x32xbf16>
    %cst_52 = arith.constant dense<0.000000e+00> : vector<256x32xf32>
    %69 = tpu.matmul %67, %68, %cst_52 {dimension_numbers = #tpu.dot_dimension_numbers<[1], [0], [0], [1], [0, 0, 1, 1], [], []>} : vector<256x32xbf16>, vector<32x32xbf16>, vector<256x32xf32> -> vector<256x32xf32>
    %70 = vector.extract_strided_slice %65 {offsets = [0, 1, 0], sizes = [16, 16, 32], strides = [1, 1, 1]} : vector<18x18x32xbf16> to vector<16x16x32xbf16>
    %71 = vector.shape_cast %70 : vector<16x16x32xbf16> to vector<256x32xbf16>
    %c32_53 = arith.constant 32 : index
    %c0_54 = arith.constant 0 : index
    %72 = vector.load %arg4[%c32_53, %c0_54] : memref<288x32xbf16, #tpu.memory_space<vmem>>, vector<32x32xbf16>
    %cst_55 = arith.constant dense<0.000000e+00> : vector<256x32xf32>
    %73 = tpu.matmul %71, %72, %cst_55 {dimension_numbers = #tpu.dot_dimension_numbers<[1], [0], [0], [1], [0, 0, 1, 1], [], []>} : vector<256x32xbf16>, vector<32x32xbf16>, vector<256x32xf32> -> vector<256x32xf32>
    %74 = arith.addf %69, %73 : vector<256x32xf32>
    %75 = vector.extract_strided_slice %65 {offsets = [0, 2, 0], sizes = [16, 16, 32], strides = [1, 1, 1]} : vector<18x18x32xbf16> to vector<16x16x32xbf16>
    %76 = vector.shape_cast %75 : vector<16x16x32xbf16> to vector<256x32xbf16>
    %c64 = arith.constant 64 : index
    %c0_56 = arith.constant 0 : index
    %77 = vector.load %arg4[%c64, %c0_56] : memref<288x32xbf16, #tpu.memory_space<vmem>>, vector<32x32xbf16>
    %cst_57 = arith.constant dense<0.000000e+00> : vector<256x32xf32>
    %78 = tpu.matmul %76, %77, %cst_57 {dimension_numbers = #tpu.dot_dimension_numbers<[1], [0], [0], [1], [0, 0, 1, 1], [], []>} : vector<256x32xbf16>, vector<32x32xbf16>, vector<256x32xf32> -> vector<256x32xf32>
    %79 = arith.addf %74, %78 : vector<256x32xf32>
    %80 = vector.extract_strided_slice %65 {offsets = [1, 0, 0], sizes = [16, 16, 32], strides = [1, 1, 1]} : vector<18x18x32xbf16> to vector<16x16x32xbf16>
    %81 = vector.shape_cast %80 : vector<16x16x32xbf16> to vector<256x32xbf16>
    %c96 = arith.constant 96 : index
    %c0_58 = arith.constant 0 : index
    %82 = vector.load %arg4[%c96, %c0_58] : memref<288x32xbf16, #tpu.memory_space<vmem>>, vector<32x32xbf16>
    %cst_59 = arith.constant dense<0.000000e+00> : vector<256x32xf32>
    %83 = tpu.matmul %81, %82, %cst_59 {dimension_numbers = #tpu.dot_dimension_numbers<[1], [0], [0], [1], [0, 0, 1, 1], [], []>} : vector<256x32xbf16>, vector<32x32xbf16>, vector<256x32xf32> -> vector<256x32xf32>
    %84 = arith.addf %79, %83 : vector<256x32xf32>
    %85 = vector.extract_strided_slice %65 {offsets = [1, 1, 0], sizes = [16, 16, 32], strides = [1, 1, 1]} : vector<18x18x32xbf16> to vector<16x16x32xbf16>
    %86 = vector.shape_cast %85 : vector<16x16x32xbf16> to vector<256x32xbf16>
    %c128 = arith.constant 128 : index
    %c0_60 = arith.constant 0 : index
    %87 = vector.load %arg4[%c128, %c0_60] : memref<288x32xbf16, #tpu.memory_space<vmem>>, vector<32x32xbf16>
    %cst_61 = arith.constant dense<0.000000e+00> : vector<256x32xf32>
    %88 = tpu.matmul %86, %87, %cst_61 {dimension_numbers = #tpu.dot_dimension_numbers<[1], [0], [0], [1], [0, 0, 1, 1], [], []>} : vector<256x32xbf16>, vector<32x32xbf16>, vector<256x32xf32> -> vector<256x32xf32>
    %89 = arith.addf %84, %88 : vector<256x32xf32>
    %90 = vector.extract_strided_slice %65 {offsets = [1, 2, 0], sizes = [16, 16, 32], strides = [1, 1, 1]} : vector<18x18x32xbf16> to vector<16x16x32xbf16>
    %91 = vector.shape_cast %90 : vector<16x16x32xbf16> to vector<256x32xbf16>
    %c160 = arith.constant 160 : index
    %c0_62 = arith.constant 0 : index
    %92 = vector.load %arg4[%c160, %c0_62] : memref<288x32xbf16, #tpu.memory_space<vmem>>, vector<32x32xbf16>
    %cst_63 = arith.constant dense<0.000000e+00> : vector<256x32xf32>
    %93 = tpu.matmul %91, %92, %cst_63 {dimension_numbers = #tpu.dot_dimension_numbers<[1], [0], [0], [1], [0, 0, 1, 1], [], []>} : vector<256x32xbf16>, vector<32x32xbf16>, vector<256x32xf32> -> vector<256x32xf32>
    %94 = arith.addf %89, %93 : vector<256x32xf32>
    %95 = vector.extract_strided_slice %65 {offsets = [2, 0, 0], sizes = [16, 16, 32], strides = [1, 1, 1]} : vector<18x18x32xbf16> to vector<16x16x32xbf16>
    %96 = vector.shape_cast %95 : vector<16x16x32xbf16> to vector<256x32xbf16>
    %c192 = arith.constant 192 : index
    %c0_64 = arith.constant 0 : index
    %97 = vector.load %arg4[%c192, %c0_64] : memref<288x32xbf16, #tpu.memory_space<vmem>>, vector<32x32xbf16>
    %cst_65 = arith.constant dense<0.000000e+00> : vector<256x32xf32>
    %98 = tpu.matmul %96, %97, %cst_65 {dimension_numbers = #tpu.dot_dimension_numbers<[1], [0], [0], [1], [0, 0, 1, 1], [], []>} : vector<256x32xbf16>, vector<32x32xbf16>, vector<256x32xf32> -> vector<256x32xf32>
    %99 = arith.addf %94, %98 : vector<256x32xf32>
    %100 = vector.extract_strided_slice %65 {offsets = [2, 1, 0], sizes = [16, 16, 32], strides = [1, 1, 1]} : vector<18x18x32xbf16> to vector<16x16x32xbf16>
    %101 = vector.shape_cast %100 : vector<16x16x32xbf16> to vector<256x32xbf16>
    %c224 = arith.constant 224 : index
    %c0_66 = arith.constant 0 : index
    %102 = vector.load %arg4[%c224, %c0_66] : memref<288x32xbf16, #tpu.memory_space<vmem>>, vector<32x32xbf16>
    %cst_67 = arith.constant dense<0.000000e+00> : vector<256x32xf32>
    %103 = tpu.matmul %101, %102, %cst_67 {dimension_numbers = #tpu.dot_dimension_numbers<[1], [0], [0], [1], [0, 0, 1, 1], [], []>} : vector<256x32xbf16>, vector<32x32xbf16>, vector<256x32xf32> -> vector<256x32xf32>
    %104 = arith.addf %99, %103 : vector<256x32xf32>
    %105 = vector.extract_strided_slice %65 {offsets = [2, 2, 0], sizes = [16, 16, 32], strides = [1, 1, 1]} : vector<18x18x32xbf16> to vector<16x16x32xbf16>
    %106 = vector.shape_cast %105 : vector<16x16x32xbf16> to vector<256x32xbf16>
    %c256 = arith.constant 256 : index
    %c0_68 = arith.constant 0 : index
    %107 = vector.load %arg4[%c256, %c0_68] : memref<288x32xbf16, #tpu.memory_space<vmem>>, vector<32x32xbf16>
    %cst_69 = arith.constant dense<0.000000e+00> : vector<256x32xf32>
    %108 = tpu.matmul %106, %107, %cst_69 {dimension_numbers = #tpu.dot_dimension_numbers<[1], [0], [0], [1], [0, 0, 1, 1], [], []>} : vector<256x32xbf16>, vector<32x32xbf16>, vector<256x32xf32> -> vector<256x32xf32>
    %109 = arith.addf %104, %108 : vector<256x32xf32>
    %110 = vector.broadcast %64 : vector<1x32xf32> to vector<256x32xf32>
    %111 = arith.addf %109, %110 : vector<256x32xf32>
    %cst_70 = arith.constant 0.000000e+00 : f32
    %112 = vector.broadcast %cst_70 : f32 to vector<256x32xf32>
    %113 = arith.maximumf %111, %112 : vector<256x32xf32>
    %114 = arith.truncf %113 : vector<256x32xf32> to vector<256x32xbf16>
    %115 = vector.shape_cast %114 : vector<256x32xbf16> to vector<16x16x32xbf16>
    %c1_71 = arith.constant 1 : index
    %c1_72 = arith.constant 1 : index
    %c0_73 = arith.constant 0 : index
    %116 = vector.load %arg12[%c1_71, %c1_72, %c0_73] : memref<18x18x32xbf16, #tpu.memory_space<vmem>>, vector<16x16x32xbf16>
    tpu.vector_store %arg12[%c1_71, %c1_72, %c0_73], %115 {strides = array<i32>} : memref<18x18x32xbf16, #tpu.memory_space<vmem>>, vector<16x16x32xbf16>,
    %c0_74 = arith.constant 0 : index
    %c0_75 = arith.constant 0 : index
    %c0_76 = arith.constant 0 : index
    %117 = vector.load %arg12[%c0_74, %c0_75, %c0_76] : memref<18x18x32xbf16, #tpu.memory_space<vmem>>, vector<18x18x32xbf16>
    %118 = vector.extract_strided_slice %117 {offsets = [0, 0, 0], sizes = [16, 16, 32], strides = [1, 1, 1]} : vector<18x18x32xbf16> to vector<16x16x32xbf16>
    %119 = vector.shape_cast %118 : vector<16x16x32xbf16> to vector<256x32xbf16>
    %c0_77 = arith.constant 0 : index
    %c0_78 = arith.constant 0 : index
    %120 = vector.load %arg6[%c0_77, %c0_78] : memref<288x8xbf16, #tpu.memory_space<vmem>>, vector<32x8xbf16>
    %cst_79 = arith.constant dense<0.000000e+00> : vector<256x8xf32>
    %121 = tpu.matmul %119, %120, %cst_79 {dimension_numbers = #tpu.dot_dimension_numbers<[1], [0], [0], [1], [0, 0, 1, 1], [], []>} : vector<256x32xbf16>, vector<32x8xbf16>, vector<256x8xf32> -> vector<256x8xf32>
    %122 = vector.extract_strided_slice %117 {offsets = [0, 1, 0], sizes = [16, 16, 32], strides = [1, 1, 1]} : vector<18x18x32xbf16> to vector<16x16x32xbf16>
    %123 = vector.shape_cast %122 : vector<16x16x32xbf16> to vector<256x32xbf16>
    %c32_80 = arith.constant 32 : index
    %c0_81 = arith.constant 0 : index
    %124 = vector.load %arg6[%c32_80, %c0_81] : memref<288x8xbf16, #tpu.memory_space<vmem>>, vector<32x8xbf16>
    %cst_82 = arith.constant dense<0.000000e+00> : vector<256x8xf32>
    %125 = tpu.matmul %123, %124, %cst_82 {dimension_numbers = #tpu.dot_dimension_numbers<[1], [0], [0], [1], [0, 0, 1, 1], [], []>} : vector<256x32xbf16>, vector<32x8xbf16>, vector<256x8xf32> -> vector<256x8xf32>
    %126 = arith.addf %121, %125 : vector<256x8xf32>
    %127 = vector.extract_strided_slice %117 {offsets = [0, 2, 0], sizes = [16, 16, 32], strides = [1, 1, 1]} : vector<18x18x32xbf16> to vector<16x16x32xbf16>
    %128 = vector.shape_cast %127 : vector<16x16x32xbf16> to vector<256x32xbf16>
    %c64_83 = arith.constant 64 : index
    %c0_84 = arith.constant 0 : index
    %129 = vector.load %arg6[%c64_83, %c0_84] : memref<288x8xbf16, #tpu.memory_space<vmem>>, vector<32x8xbf16>
    %cst_85 = arith.constant dense<0.000000e+00> : vector<256x8xf32>
    %130 = tpu.matmul %128, %129, %cst_85 {dimension_numbers = #tpu.dot_dimension_numbers<[1], [0], [0], [1], [0, 0, 1, 1], [], []>} : vector<256x32xbf16>, vector<32x8xbf16>, vector<256x8xf32> -> vector<256x8xf32>
    %131 = arith.addf %126, %130 : vector<256x8xf32>
    %132 = vector.extract_strided_slice %117 {offsets = [1, 0, 0], sizes = [16, 16, 32], strides = [1, 1, 1]} : vector<18x18x32xbf16> to vector<16x16x32xbf16>
    %133 = vector.shape_cast %132 : vector<16x16x32xbf16> to vector<256x32xbf16>
    %c96_86 = arith.constant 96 : index
    %c0_87 = arith.constant 0 : index
    %134 = vector.load %arg6[%c96_86, %c0_87] : memref<288x8xbf16, #tpu.memory_space<vmem>>, vector<32x8xbf16>
    %cst_88 = arith.constant dense<0.000000e+00> : vector<256x8xf32>
    %135 = tpu.matmul %133, %134, %cst_88 {dimension_numbers = #tpu.dot_dimension_numbers<[1], [0], [0], [1], [0, 0, 1, 1], [], []>} : vector<256x32xbf16>, vector<32x8xbf16>, vector<256x8xf32> -> vector<256x8xf32>
    %136 = arith.addf %131, %135 : vector<256x8xf32>
    %137 = vector.extract_strided_slice %117 {offsets = [1, 1, 0], sizes = [16, 16, 32], strides = [1, 1, 1]} : vector<18x18x32xbf16> to vector<16x16x32xbf16>
    %138 = vector.shape_cast %137 : vector<16x16x32xbf16> to vector<256x32xbf16>
    %c128_89 = arith.constant 128 : index
    %c0_90 = arith.constant 0 : index
    %139 = vector.load %arg6[%c128_89, %c0_90] : memref<288x8xbf16, #tpu.memory_space<vmem>>, vector<32x8xbf16>
    %cst_91 = arith.constant dense<0.000000e+00> : vector<256x8xf32>
    %140 = tpu.matmul %138, %139, %cst_91 {dimension_numbers = #tpu.dot_dimension_numbers<[1], [0], [0], [1], [0, 0, 1, 1], [], []>} : vector<256x32xbf16>, vector<32x8xbf16>, vector<256x8xf32> -> vector<256x8xf32>
    %141 = arith.addf %136, %140 : vector<256x8xf32>
    %142 = vector.extract_strided_slice %117 {offsets = [1, 2, 0], sizes = [16, 16, 32], strides = [1, 1, 1]} : vector<18x18x32xbf16> to vector<16x16x32xbf16>
    %143 = vector.shape_cast %142 : vector<16x16x32xbf16> to vector<256x32xbf16>
    %c160_92 = arith.constant 160 : index
    %c0_93 = arith.constant 0 : index
    %144 = vector.load %arg6[%c160_92, %c0_93] : memref<288x8xbf16, #tpu.memory_space<vmem>>, vector<32x8xbf16>
    %cst_94 = arith.constant dense<0.000000e+00> : vector<256x8xf32>
    %145 = tpu.matmul %143, %144, %cst_94 {dimension_numbers = #tpu.dot_dimension_numbers<[1], [0], [0], [1], [0, 0, 1, 1], [], []>} : vector<256x32xbf16>, vector<32x8xbf16>, vector<256x8xf32> -> vector<256x8xf32>
    %146 = arith.addf %141, %145 : vector<256x8xf32>
    %147 = vector.extract_strided_slice %117 {offsets = [2, 0, 0], sizes = [16, 16, 32], strides = [1, 1, 1]} : vector<18x18x32xbf16> to vector<16x16x32xbf16>
    %148 = vector.shape_cast %147 : vector<16x16x32xbf16> to vector<256x32xbf16>
    %c192_95 = arith.constant 192 : index
    %c0_96 = arith.constant 0 : index
    %149 = vector.load %arg6[%c192_95, %c0_96] : memref<288x8xbf16, #tpu.memory_space<vmem>>, vector<32x8xbf16>
    %cst_97 = arith.constant dense<0.000000e+00> : vector<256x8xf32>
    %150 = tpu.matmul %148, %149, %cst_97 {dimension_numbers = #tpu.dot_dimension_numbers<[1], [0], [0], [1], [0, 0, 1, 1], [], []>} : vector<256x32xbf16>, vector<32x8xbf16>, vector<256x8xf32> -> vector<256x8xf32>
    %151 = arith.addf %146, %150 : vector<256x8xf32>
    %152 = vector.extract_strided_slice %117 {offsets = [2, 1, 0], sizes = [16, 16, 32], strides = [1, 1, 1]} : vector<18x18x32xbf16> to vector<16x16x32xbf16>
    %153 = vector.shape_cast %152 : vector<16x16x32xbf16> to vector<256x32xbf16>
    %c224_98 = arith.constant 224 : index
    %c0_99 = arith.constant 0 : index
    %154 = vector.load %arg6[%c224_98, %c0_99] : memref<288x8xbf16, #tpu.memory_space<vmem>>, vector<32x8xbf16>
    %cst_100 = arith.constant dense<0.000000e+00> : vector<256x8xf32>
    %155 = tpu.matmul %153, %154, %cst_100 {dimension_numbers = #tpu.dot_dimension_numbers<[1], [0], [0], [1], [0, 0, 1, 1], [], []>} : vector<256x32xbf16>, vector<32x8xbf16>, vector<256x8xf32> -> vector<256x8xf32>
    %156 = arith.addf %151, %155 : vector<256x8xf32>
    %157 = vector.extract_strided_slice %117 {offsets = [2, 2, 0], sizes = [16, 16, 32], strides = [1, 1, 1]} : vector<18x18x32xbf16> to vector<16x16x32xbf16>
    %158 = vector.shape_cast %157 : vector<16x16x32xbf16> to vector<256x32xbf16>
    %c256_101 = arith.constant 256 : index
    %c0_102 = arith.constant 0 : index
    %159 = vector.load %arg6[%c256_101, %c0_102] : memref<288x8xbf16, #tpu.memory_space<vmem>>, vector<32x8xbf16>
    %cst_103 = arith.constant dense<0.000000e+00> : vector<256x8xf32>
    %160 = tpu.matmul %158, %159, %cst_103 {dimension_numbers = #tpu.dot_dimension_numbers<[1], [0], [0], [1], [0, 0, 1, 1], [], []>} : vector<256x32xbf16>, vector<32x8xbf16>, vector<256x8xf32> -> vector<256x8xf32>
    %161 = arith.addf %156, %160 : vector<256x8xf32>
    %c0_104 = arith.constant 0 : index
    %c0_105 = arith.constant 0 : index
    %162 = vector.load %arg7[%c0_104, %c0_105] : memref<1x8xf32, #tpu.memory_space<vmem>>, vector<1x8xf32>
    %163 = vector.broadcast %162 : vector<1x8xf32> to vector<256x8xf32>
    %164 = arith.addf %161, %163 : vector<256x8xf32>
    %165 = tpu.transpose %164, [1, 0] : vector<256x8xf32> -> vector<8x256xf32>
    %c0_106 = arith.constant 0 : index
    %c0_107 = arith.constant 0 : index
    %c0_108 = arith.constant 0 : index
    %166 = vector.load %arg10[%c0_106, %c0_107, %c0_108] : memref<1x8x256xf32, #tpu.memory_space<vmem>>, vector<1x8x256xf32>
    %167 = vector.shape_cast %166 : vector<1x8x256xf32> to vector<8x256xf32>
    %168 = vector.shape_cast %165 : vector<8x256xf32> to vector<1x8x256xf32>
    tpu.vector_store %arg10[%c0_106, %c0_107, %c0_108], %168 {strides = array<i32>} : memref<1x8x256xf32, #tpu.memory_space<vmem>>, vector<1x8x256xf32>,
    %cst_109 = arith.constant 0.000000e+00 : f32
    %169 = vector.broadcast %cst_109 : f32 to vector<8x256xf32>
    %170 = arith.subf %169, %165 : vector<8x256xf32>
    %171 = math.exp %170 : vector<8x256xf32>
    %cst_110 = arith.constant 1.000000e+00 : f32
    %172 = vector.broadcast %cst_110 : f32 to vector<8x256xf32>
    %173 = arith.addf %172, %171 : vector<8x256xf32>
    %174 = tpu.reciprocal %173 {approx = true} : vector<8x256xf32> -> vector<8x256xf32>
    %cst_111 = arith.constant dense<0.000000e+00> : vector<8xf32>
    %175 = vector.multi_reduction <add>, %174, %cst_111 [1] : vector<8x256xf32> to vector<8xf32>
    %176 = vector.shape_cast %175 : vector<8xf32> to vector<8x1xf32>
    %cst_112 = arith.constant 9.99999997E-7 : f32
    %177 = vector.broadcast %cst_112 : f32 to vector<8x1xf32>
    %178 = arith.maximumf %176, %177 : vector<8x1xf32>
    %179 = tpu.reciprocal %178 {approx = true} : vector<8x1xf32> -> vector<8x1xf32>
    %180 = arith.truncf %174 : vector<8x256xf32> to vector<8x256xbf16>
    %cst_113 = arith.constant dense<0.000000e+00> : vector<8x32xf32>
    %181 = tpu.matmul %180, %114, %cst_113 {dimension_numbers = #tpu.dot_dimension_numbers<[1], [0], [0], [1], [0, 0, 1, 1], [], []>} : vector<8x256xbf16>, vector<256x32xbf16>, vector<8x32xf32> -> vector<8x32xf32>
    %182 = vector.broadcast %179 : vector<8x1xf32> to vector<8x32xf32>
    %183 = arith.mulf %181, %182 : vector<8x32xf32>
    %184 = arith.truncf %183 : vector<8x32xf32> to vector<8x32xbf16>
    %c0_114 = arith.constant 0 : index
    %c0_115 = arith.constant 0 : index
    %185 = vector.load %arg8[%c0_114, %c0_115] : memref<32x128xbf16, #tpu.memory_space<vmem>>, vector<32x128xbf16>
    %cst_116 = arith.constant dense<0.000000e+00> : vector<8x128xf32>
    %186 = tpu.matmul %184, %185, %cst_116 {dimension_numbers = #tpu.dot_dimension_numbers<[1], [0], [0], [1], [0, 0, 1, 1], [], []>} : vector<8x32xbf16>, vector<32x128xbf16>, vector<8x128xf32> -> vector<8x128xf32>
    %c0_117 = arith.constant 0 : index
    %c0_118 = arith.constant 0 : index
    %187 = vector.load %arg9[%c0_117, %c0_118] : memref<1x128xf32, #tpu.memory_space<vmem>>, vector<1x128xf32>
    %188 = vector.broadcast %187 : vector<1x128xf32> to vector<8x128xf32>
    %189 = arith.addf %186, %188 : vector<8x128xf32>
    %c0_119 = arith.constant 0 : index
    %c0_120 = arith.constant 0 : index
    %c0_121 = arith.constant 0 : index
    %190 = vector.load %arg11[%c0_119, %c0_120, %c0_121] : memref<1x8x128xf32, #tpu.memory_space<vmem>>, vector<1x8x128xf32>
    %191 = vector.shape_cast %190 : vector<1x8x128xf32> to vector<8x128xf32>
    %192 = vector.shape_cast %189 : vector<8x128xf32> to vector<1x8x128xf32>
    tpu.vector_store %arg11[%c0_119, %c0_120, %c0_121], %192 {strides = array<i32>} : memref<1x8x128xf32, #tpu.memory_space<vmem>>, vector<1x8x128xf32>,
    return
  }
  func.func @transform_0(%arg0: i32) -> (i32, i32, i32, i32) {
    %c0_i32 = arith.constant 0 : i32
    %c0_i32_0 = arith.constant 0 : i32
    %c0_i32_1 = arith.constant 0 : i32
    %c0_i32_2 = arith.constant 0 : i32
    return %arg0, %c0_i32, %c0_i32_0, %c0_i32_1 : i32, i32, i32, i32
  }
  func.func @transform_1(%arg0: i32) -> (i32, i32) {
    %c0_i32 = arith.constant 0 : i32
    %c0_i32_0 = arith.constant 0 : i32
    %c0_i32_1 = arith.constant 0 : i32
    return %c0_i32, %c0_i32_0 : i32, i32
  }
  func.func @transform_2(%arg0: i32) -> (i32, i32) {
    %c0_i32 = arith.constant 0 : i32
    %c0_i32_0 = arith.constant 0 : i32
    %c0_i32_1 = arith.constant 0 : i32
    return %c0_i32, %c0_i32_0 : i32, i32
  }
  func.func @transform_3(%arg0: i32) -> (i32, i32) {
    %c0_i32 = arith.constant 0 : i32
    %c0_i32_0 = arith.constant 0 : i32
    %c0_i32_1 = arith.constant 0 : i32
    return %c0_i32, %c0_i32_0 : i32, i32
  }
  func.func @transform_4(%arg0: i32) -> (i32, i32) {
    %c0_i32 = arith.constant 0 : i32
    %c0_i32_0 = arith.constant 0 : i32
    %c0_i32_1 = arith.constant 0 : i32
    return %c0_i32, %c0_i32_0 : i32, i32
  }
  func.func @transform_5(%arg0: i32) -> (i32, i32) {
    %c0_i32 = arith.constant 0 : i32
    %c0_i32_0 = arith.constant 0 : i32
    %c0_i32_1 = arith.constant 0 : i32
    return %c0_i32, %c0_i32_0 : i32, i32
  }
  func.func @transform_6(%arg0: i32) -> (i32, i32) {
    %c0_i32 = arith.constant 0 : i32
    %c0_i32_0 = arith.constant 0 : i32
    %c0_i32_1 = arith.constant 0 : i32
    return %c0_i32, %c0_i32_0 : i32, i32
  }
  func.func @transform_7(%arg0: i32) -> (i32, i32) {
    %c0_i32 = arith.constant 0 : i32
    %c0_i32_0 = arith.constant 0 : i32
    %c0_i32_1 = arith.constant 0 : i32
    return %c0_i32, %c0_i32_0 : i32, i32
  }
  func.func @transform_8(%arg0: i32) -> (i32, i32) {
    %c0_i32 = arith.constant 0 : i32
    %c0_i32_0 = arith.constant 0 : i32
    %c0_i32_1 = arith.constant 0 : i32
    return %c0_i32, %c0_i32_0 : i32, i32
  }
  func.func @transform_9(%arg0: i32) -> (i32, i32, i32) {
    %c0_i32 = arith.constant 0 : i32
    %c0_i32_0 = arith.constant 0 : i32
    %c0_i32_1 = arith.constant 0 : i32
    return %arg0, %c0_i32, %c0_i32_0 : i32, i32, i32
  }
  func.func @transform_10(%arg0: i32) -> (i32, i32, i32) {
    %c0_i32 = arith.constant 0 : i32
    %c0_i32_0 = arith.constant 0 : i32
    %c0_i32_1 = arith.constant 0 : i32
    return %arg0, %c0_i32, %c0_i32_0 : i32, i32, i32
  }
}

</mosaic_0001>

<llo_original>
// kernel: tpu_custom_call.1
$region0: #{tpu_custom_call.1}
  #allocation0 [shape = 'u32[]', space=smem, size = 0x4, offset = 0x4, fixed_abs, tag = 'smem constant byte address 0x4 - core index']
  #allocation1 [shape = 'u32[144,128]{1,0:T(1,128)}', space=vmem, size = 0x12000, scoped, tag = 'internal scratch']
  #allocation2 [shape = 'bf16[18,18,32]{2,1,0:T(8,128)(2,1)}', space=vmem, size = 0x1b000, scoped, tag = 'scratch operand']
  %s0 = inlined_call_operand.vmem [shape: f32[2,16,16,4], index: 0, kind: input, shape index: {}]
  %s1 = inlined_call_operand.vmem [shape: bf16[36,32], index: 1, kind: input, shape index: {}]
  %s2 = inlined_call_operand.vmem [shape: f32[1,32], index: 2, kind: input, shape index: {}]
  %s3 = inlined_call_operand.vmem [shape: bf16[288,32], index: 3, kind: input, shape index: {}]
  %s4 = inlined_call_operand.vmem [shape: f32[1,32], index: 4, kind: input, shape index: {}]
  %s5 = inlined_call_operand.vmem [shape: bf16[288,8], index: 5, kind: input, shape index: {}]
  %s6 = inlined_call_operand.vmem [shape: f32[1,8], index: 6, kind: input, shape index: {}]
  %s7 = inlined_call_operand.vmem [shape: bf16[32,128], index: 7, kind: input, shape index: {}]
  %s8 = inlined_call_operand.vmem [shape: f32[1,128], index: 8, kind: input, shape index: {}]
  %s9 = inlined_call_operand.hbm [shape: f32[2,8,256], index: 9, kind: output, shape index: {0}]
  %s10 = inlined_call_operand.hbm [shape: f32[2,8,128], index: 10, kind: output, shape index: {1}]
  %11 = xla_tuple %s9, %s10
  %s12 = sld [smem:[#allocation0]]
  $region77: #{tpu_custom_call.1} parent=0
    _
  %s14 = ssub.s32 1, %s12
  %s15 = scalar_select 0, %s14, %s12
  $region1: #{tpu_custom_call.1} parent=0
    #allocation3 [shape = 'u8[16384]{0}', space=vmem, size = 0x4000, scoped, tag = 'output window, operand 0']
    #allocation4 [shape = 's32[2]{0}', space=sflag, size = 0x8, scoped, tag = 'scoped memory for tpu_custom_call.1']
    #allocation5 [shape = 'u8[8192]{0}', space=vmem, size = 0x2000, scoped, tag = 'output window, operand 1']
    #allocation6 [shape = 's32[2]{0}', space=sflag, size = 0x8, scoped, tag = 'scoped memory for tpu_custom_call.1']
    %16 = vsyncpa [#allocation4], 0
    %s17 = scalar_lea.sflag [#allocation4], 1
    %18 = vsyncpa %s17, 0
    %19 = vsyncpa [#allocation6], 0
    %s20 = scalar_lea.sflag [#allocation6], 1
    %21 = vsyncpa %s20, 0
    loop: start=0, step=1, limit=4
    $region2: #{tpu_custom_call.1} parent=1 // loop_pre_header
      _
    $region3: #{tpu_custom_call.1} parent=1 // loop_header
      %s23 = sphi 0, %s27
      %p24 = scmp.ge.s32.totalorder %s23, 4
      %s33 = sphi 0, %s35
      %s36 = sphi 0, %s33
      %s37 = sphi 0, %s36
      %s53 = sphi 0, %s37
      %s57 = sphi 0, %s57
      %s59 = sphi 0, %s57
      %s60 = sphi 0, %s59
      %s74 = sphi 0, %s60
      %s78 = sphi 0, %s78
      %s80 = sphi 0, %s78
      %s81 = sphi 0, %s80
      %s95 = sphi 0, %s81
      %s99 = sphi 0, %s99
      %s101 = sphi 0, %s99
      %s102 = sphi 0, %s101
      %s116 = sphi 0, %s102
      %s120 = sphi 0, %s120
      %s122 = sphi 0, %s120
      %s123 = sphi 0, %s122
      %s137 = sphi 0, %s123
      %s141 = sphi 0, %s141
      %s143 = sphi 0, %s141
      %s144 = sphi 0, %s143
      %s158 = sphi 0, %s144
      %s162 = sphi 0, %s162
      %s164 = sphi 0, %s162
      %s165 = sphi 0, %s164
      %s179 = sphi 0, %s165
      %s183 = sphi 0, %s183
      %s185 = sphi 0, %s183
      %s186 = sphi 0, %s185
      %s200 = sphi 0, %s186
      %s204 = sphi 0, %s204
      %s206 = sphi 0, %s204
      %s207 = sphi 0, %s206
      %s221 = sphi 0, %s207
      %s227 = sphi 0, %s229
      %s230 = sphi 0, %s227
      %s231 = sphi 0, %s230
      %s247 = sphi 0, %s231
      %s253 = sphi 0, %s255
      %s256 = sphi 0, %s253
      %s257 = sphi 0, %s256
      %s273 = sphi 0, %s257
    $region4: #{tpu_custom_call.1} parent=1 // loop_header_branch
      %26 = sbr.rel (%p24) target = $region8
    $region5: #{tpu_custom_call.1} parent=1 // loop_body
      %s28 = ssub.s32 %s23, 1
      %s29 = ssub.s32 %s23, 2
      %s30 = sadd.s32 %s23, 1
      %s31 = ssub.s32 %s23, %s30
      %p32 = scmp.eq.s32.totalorder %s31, 0
      %s34 = sadd.s32 %s33, 1
      %s35 = scalar_select %p32, %s33, %s34
      %p38 = pneg %p32
      %p39 = scmp.eq.s32.totalorder %s23, 1
      %p40 = por %p38, %p39
      %p41 = scmp.ne.s32.totalorder %s33, %s36
      %p42 = scmp.eq.s32.totalorder %s23, 0
      %p43 = por %p41, %p42
      %p44 = scmp.ne.s32.totalorder %s33, %s36
      %p45 = scmp.eq.s32.totalorder %s28, 1
      %p46 = por %p44, %p45
      %p47 = scmp.ne.s32.totalorder %s36, %s37
      %p48 = scmp.eq.s32.totalorder %s28, 0
      %p49 = por %p47, %p48
      %p50 = scmp.ne.s32.totalorder %s36, %s37
      %p51 = scmp.eq.s32.totalorder %s29, 1
      %p52 = por %p50, %p51
      %p54 = scmp.ne.s32.totalorder %s37, %s53
      %p55 = scmp.eq.s32.totalorder %s29, 0
      %p56 = por %p54, %p55
      %s58 = sadd.s32 %s57, 1
      %p61 = scmp.eq.s32.totalorder %s23, 1
      %p62 = scmp.ne.s32.totalorder %s57, %s59
      %p63 = scmp.eq.s32.totalorder %s23, 0
      %p64 = por %p62, %p63
      %p65 = scmp.ne.s32.totalorder %s57, %s59
      %p66 = scmp.eq.s32.totalorder %s28, 1
      %p67 = por %p65, %p66
      %p68 = scmp.ne.s32.totalorder %s59, %s60
      %p69 = scmp.eq.s32.totalorder %s28, 0
      %p70 = por %p68, %p69
      %p71 = scmp.ne.s32.totalorder %s59, %s60
      %p72 = scmp.eq.s32.totalorder %s29, 1
      %p73 = por %p71, %p72
      %p75 = scmp.ne.s32.totalorder %s60, %s74
      %p76 = scmp.eq.s32.totalorder %s29, 0
      %p77 = por %p75, %p76
      %s79 = sadd.s32 %s78, 1
      %p82 = scmp.eq.s32.totalorder %s23, 1
      %p83 = scmp.ne.s32.totalorder %s78, %s80
      %p84 = scmp.eq.s32.totalorder %s23, 0
      %p85 = por %p83, %p84
      %p86 = scmp.ne.s32.totalorder %s78, %s80
      %p87 = scmp.eq.s32.totalorder %s28, 1
      %p88 = por %p86, %p87
      %p89 = scmp.ne.s32.totalorder %s80, %s81
      %p90 = scmp.eq.s32.totalorder %s28, 0
      %p91 = por %p89, %p90
      %p92 = scmp.ne.s32.totalorder %s80, %s81
      %p93 = scmp.eq.s32.totalorder %s29, 1
      %p94 = por %p92, %p93
      %p96 = scmp.ne.s32.totalorder %s81, %s95
      %p97 = scmp.eq.s32.totalorder %s29, 0
      %p98 = por %p96, %p97
      %s100 = sadd.s32 %s99, 1
      %p103 = scmp.eq.s32.totalorder %s23, 1
      %p104 = scmp.ne.s32.totalorder %s99, %s101
      %p105 = scmp.eq.s32.totalorder %s23, 0
      %p106 = por %p104, %p105
      %p107 = scmp.ne.s32.totalorder %s99, %s101
      %p108 = scmp.eq.s32.totalorder %s28, 1
      %p109 = por %p107, %p108
      %p110 = scmp.ne.s32.totalorder %s101, %s102
      %p111 = scmp.eq.s32.totalorder %s28, 0
      %p112 = por %p110, %p111
      %p113 = scmp.ne.s32.totalorder %s101, %s102
      %p114 = scmp.eq.s32.totalorder %s29, 1
      %p115 = por %p113, %p114
      %p117 = scmp.ne.s32.totalorder %s102, %s116
      %p118 = scmp.eq.s32.totalorder %s29, 0
      %p119 = por %p117, %p118
      %s121 = sadd.s32 %s120, 1
      %p124 = scmp.eq.s32.totalorder %s23, 1
      %p125 = scmp.ne.s32.totalorder %s120, %s122
      %p126 = scmp.eq.s32.totalorder %s23, 0
      %p127 = por %p125, %p126
      %p128 = scmp.ne.s32.totalorder %s120, %s122
      %p129 = scmp.eq.s32.totalorder %s28, 1
      %p130 = por %p128, %p129
      %p131 = scmp.ne.s32.totalorder %s122, %s123
      %p132 = scmp.eq.s32.totalorder %s28, 0
      %p133 = por %p131, %p132
      %p134 = scmp.ne.s32.totalorder %s122, %s123
      %p135 = scmp.eq.s32.totalorder %s29, 1
      %p136 = por %p134, %p135
      %p138 = scmp.ne.s32.totalorder %s123, %s137
      %p139 = scmp.eq.s32.totalorder %s29, 0
      %p140 = por %p138, %p139
      %s142 = sadd.s32 %s141, 1
      %p145 = scmp.eq.s32.totalorder %s23, 1
      %p146 = scmp.ne.s32.totalorder %s141, %s143
      %p147 = scmp.eq.s32.totalorder %s23, 0
      %p148 = por %p146, %p147
      %p149 = scmp.ne.s32.totalorder %s141, %s143
      %p150 = scmp.eq.s32.totalorder %s28, 1
      %p151 = por %p149, %p150
      %p152 = scmp.ne.s32.totalorder %s143, %s144
      %p153 = scmp.eq.s32.totalorder %s28, 0
      %p154 = por %p152, %p153
      %p155 = scmp.ne.s32.totalorder %s143, %s144
      %p156 = scmp.eq.s32.totalorder %s29, 1
      %p157 = por %p155, %p156
      %p159 = scmp.ne.s32.totalorder %s144, %s158
      %p160 = scmp.eq.s32.totalorder %s29, 0
      %p161 = por %p159, %p160
      %s163 = sadd.s32 %s162, 1
      %p166 = scmp.eq.s32.totalorder %s23, 1
      %p167 = scmp.ne.s32.totalorder %s162, %s164
      %p168 = scmp.eq.s32.totalorder %s23, 0
      %p169 = por %p167, %p168
      %p170 = scmp.ne.s32.totalorder %s162, %s164
      %p171 = scmp.eq.s32.totalorder %s28, 1
      %p172 = por %p170, %p171
      %p173 = scmp.ne.s32.totalorder %s164, %s165
      %p174 = scmp.eq.s32.totalorder %s28, 0
      %p175 = por %p173, %p174
      %p176 = scmp.ne.s32.totalorder %s164, %s165
      %p177 = scmp.eq.s32.totalorder %s29, 1
      %p178 = por %p176, %p177
      %p180 = scmp.ne.s32.totalorder %s165, %s179
      %p181 = scmp.eq.s32.totalorder %s29, 0
      %p182 = por %p180, %p181
      %s184 = sadd.s32 %s183, 1
      %p187 = scmp.eq.s32.totalorder %s23, 1
      %p188 = scmp.ne.s32.totalorder %s183, %s185
      %p189 = scmp.eq.s32.totalorder %s23, 0
      %p190 = por %p188, %p189
      %p191 = scmp.ne.s32.totalorder %s183, %s185
      %p192 = scmp.eq.s32.totalorder %s28, 1
      %p193 = por %p191, %p192
      %p194 = scmp.ne.s32.totalorder %s185, %s186
      %p195 = scmp.eq.s32.totalorder %s28, 0
      %p196 = por %p194, %p195
      %p197 = scmp.ne.s32.totalorder %s185, %s186
      %p198 = scmp.eq.s32.totalorder %s29, 1
      %p199 = por %p197, %p198
      %p201 = scmp.ne.s32.totalorder %s186, %s200
      %p202 = scmp.eq.s32.totalorder %s29, 0
      %p203 = por %p201, %p202
      %s205 = sadd.s32 %s204, 1
      %p208 = scmp.eq.s32.totalorder %s23, 1
      %p209 = scmp.ne.s32.totalorder %s204, %s206
      %p210 = scmp.eq.s32.totalorder %s23, 0
      %p211 = por %p209, %p210
      %p212 = scmp.ne.s32.totalorder %s204, %s206
      %p213 = scmp.eq.s32.totalorder %s28, 1
      %p214 = por %p212, %p213
      %p215 = scmp.ne.s32.totalorder %s206, %s207
      %p216 = scmp.eq.s32.totalorder %s28, 0
      %p217 = por %p215, %p216
      %p218 = scmp.ne.s32.totalorder %s206, %s207
      %p219 = scmp.eq.s32.totalorder %s29, 1
      %p220 = por %p218, %p219
      %p222 = scmp.ne.s32.totalorder %s207, %s221
      %p223 = scmp.eq.s32.totalorder %s29, 0
      %p224 = por %p222, %p223
      %s225 = ssub.s32 %s23, %s30
      %p226 = scmp.eq.s32.totalorder %s225, 0
      %s228 = sadd.s32 %s227, 1
      %s229 = scalar_select %p226, %s227, %s228
      %p232 = pneg %p226
      %p233 = scmp.eq.s32.totalorder %s23, 1
      %p234 = por %p232, %p233
      %p235 = scmp.ne.s32.totalorder %s227, %s230
      %p236 = scmp.eq.s32.totalorder %s23, 0
      %p237 = por %p235, %p236
      %p238 = scmp.ne.s32.totalorder %s227, %s230
      %p239 = scmp.eq.s32.totalorder %s28, 1
      %p240 = por %p238, %p239
      %p241 = scmp.ne.s32.totalorder %s230, %s231
      %p242 = scmp.eq.s32.totalorder %s28, 0
      %p243 = por %p241, %p242
      %p244 = scmp.ne.s32.totalorder %s230, %s231
      %p245 = scmp.eq.s32.totalorder %s29, 1
      %p246 = por %p244, %p245
      %p248 = scmp.ne.s32.totalorder %s231, %s247
      %p249 = scmp.eq.s32.totalorder %s29, 0
      %p250 = por %p248, %p249
      %s251 = ssub.s32 %s23, %s30
      %p252 = scmp.eq.s32.totalorder %s251, 0
      %s254 = sadd.s32 %s253, 1
      %s255 = scalar_select %p252, %s253, %s254
      %p258 = pneg %p252
      %p259 = scmp.eq.s32.totalorder %s23, 1
      %p260 = por %p258, %p259
      %p261 = scmp.ne.s32.totalorder %s253, %s256
      %p262 = scmp.eq.s32.totalorder %s23, 0
      %p263 = por %p261, %p262
      %p264 = scmp.ne.s32.totalorder %s253, %s256
      %p265 = scmp.eq.s32.totalorder %s28, 1
      %p266 = por %p264, %p265
      %p267 = scmp.ne.s32.totalorder %s256, %s257
      %p268 = scmp.eq.s32.totalorder %s28, 0
      %p269 = por %p267, %p268
      %p270 = scmp.ne.s32.totalorder %s256, %s257
      %p271 = scmp.eq.s32.totalorder %s29, 1
      %p272 = por %p270, %p271
      %p274 = scmp.ne.s32.totalorder %s257, %s273
      %p275 = scmp.eq.s32.totalorder %s29, 0
      %p276 = por %p274, %p275
      %p277 = scmp.le.s32.totalorder 1, %s23
      %p278 = scmp.lt.s32.totalorder %s23, 3
      %p279 = pnand %p277, %p278
      %p280 = pneg %p279
      // Predicated region
      $region9: #{tpu_custom_call.1} parent=5 // pred_check
        _
      $region10: #{tpu_custom_call.1} parent=5 // pred_check_branch
        %282 = sbr.rel (%p279) target = $region12
      $region11: #{tpu_custom_call.1} parent=5 // pred_region
        %s283 = ssub.s32 %s23, 1
        // Predicated region
        $region13: #{tpu_custom_call.1} parent=11 // pred_check
          %p284 = pneg %p70
        $region14: #{tpu_custom_call.1} parent=11 // pred_check_branch
          %286 = sbr.rel (%p284) target = $region16
        $region15: #{tpu_custom_call.1} parent=11 // pred_region
          _
        $region16: #{tpu_custom_call.1} parent=11 // pred_fallthru
          _
        // Predicated region
        $region17: #{tpu_custom_call.1} parent=11 // pred_check
          %p287 = pneg %p91
        $region18: #{tpu_custom_call.1} parent=11 // pred_check_branch
          %289 = sbr.rel (%p287) target = $region20
        $region19: #{tpu_custom_call.1} parent=11 // pred_region
          _
        $region20: #{tpu_custom_call.1} parent=11 // pred_fallthru
          _
        // Predicated region
        $region21: #{tpu_custom_call.1} parent=11 // pred_check
          %p290 = pneg %p112
        $region22: #{tpu_custom_call.1} parent=11 // pred_check_branch
          %292 = sbr.rel (%p290) target = $region24
        $region23: #{tpu_custom_call.1} parent=11 // pred_region
          _
        $region24: #{tpu_custom_call.1} parent=11 // pred_fallthru
          _
        // Predicated region
        $region25: #{tpu_custom_call.1} parent=11 // pred_check
          %p293 = pneg %p133
        $region26: #{tpu_custom_call.1} parent=11 // pred_check_branch
          %295 = sbr.rel (%p293) target = $region28
        $region27: #{tpu_custom_call.1} parent=11 // pred_region
          _
        $region28: #{tpu_custom_call.1} parent=11 // pred_fallthru
          _
        // Predicated region
        $region29: #{tpu_custom_call.1} parent=11 // pred_check
          %p296 = pneg %p154
        $region30: #{tpu_custom_call.1} parent=11 // pred_check_branch
          %298 = sbr.rel (%p296) target = $region32
        $region31: #{tpu_custom_call.1} parent=11 // pred_region
          _
        $region32: #{tpu_custom_call.1} parent=11 // pred_fallthru
          _
        // Predicated region
        $region33: #{tpu_custom_call.1} parent=11 // pred_check
          %p299 = pneg %p175
        $region34: #{tpu_custom_call.1} parent=11 // pred_check_branch
          %301 = sbr.rel (%p299) target = $region36
        $region35: #{tpu_custom_call.1} parent=11 // pred_region
          _
        $region36: #{tpu_custom_call.1} parent=11 // pred_fallthru
          _
        // Predicated region
        $region37: #{tpu_custom_call.1} parent=11 // pred_check
          %p302 = pneg %p196
        $region38: #{tpu_custom_call.1} parent=11 // pred_check_branch
          %304 = sbr.rel (%p302) target = $region40
        $region39: #{tpu_custom_call.1} parent=11 // pred_region
          _
        $region40: #{tpu_custom_call.1} parent=11 // pred_fallthru
          _
        // Predicated region
        $region41: #{tpu_custom_call.1} parent=11 // pred_check
          %p305 = pneg %p217
        $region42: #{tpu_custom_call.1} parent=11 // pred_check_branch
          %307 = sbr.rel (%p305) target = $region44
        $region43: #{tpu_custom_call.1} parent=11 // pred_region
          _
        $region44: #{tpu_custom_call.1} parent=11 // pred_fallthru
          _
      $region12: #{tpu_custom_call.1} parent=5 // pred_fallthru
        _
      %p308 = scmp.lt.s32.totalorder %s23, 2
      // Predicated region
      $region45: #{tpu_custom_call.1} parent=5 // pred_check
        %p309 = pneg %p308
      $region46: #{tpu_custom_call.1} parent=5 // pred_check_branch
        %311 = sbr.rel (%p309) target = $region48
      $region47: #{tpu_custom_call.1} parent=5 // pred_region
        // Predicated region
        $region49: #{tpu_custom_call.1} parent=47 // pred_check
          %p312 = pneg %p43
        $region50: #{tpu_custom_call.1} parent=47 // pred_check_branch
          %314 = sbr.rel (%p312) target = $region52
        $region51: #{tpu_custom_call.1} parent=47 // pred_region
          %p315 = scmp.lt.s32.totalorder %s23, 1
          %s316 = scalar_select %p315, %s23, 1
          %s317 = smul.addr %s316, 32
          %s318 = smul.addr %s317, 8
          %s319 = scalar_lea.vmem %s0, %s318
        $region52: #{tpu_custom_call.1} parent=47 // pred_fallthru
          _
      $region48: #{tpu_custom_call.1} parent=5 // pred_fallthru
        _
      %p320 = scmp.le.s32.totalorder 1, %s23
      %p321 = scmp.lt.s32.totalorder %s23, 3
      %p322 = pnand %p320, %p321
      %p323 = pneg %p322
      // Predicated region
      $region53: #{tpu_custom_call.1} parent=5 // pred_check
        _
      $region54: #{tpu_custom_call.1} parent=5 // pred_check_branch
        %325 = sbr.rel (%p322) target = $region56
      $region55: #{tpu_custom_call.1} parent=5 // pred_region
        %s326 = ssub.s32 %s23, 1
        %p327 = scmp.lt.s32.totalorder %s28, 1
        %s328 = scalar_select %p327, %s28, 1
        %s329 = smul.addr %s328, 32
        %s330 = smul.addr %s329, 8
        %s331 = scalar_lea.vmem %s0, %s330
        %p332 = pneg %p49
        %p333 = pneg %p46
        %p334 = pneg %p70
        %p335 = pneg %p67
        %p336 = pneg %p91
        %p337 = pneg %p88
        %p338 = pneg %p112
        %p339 = pneg %p109
        %p340 = pneg %p133
        %p341 = pneg %p130
        %p342 = pneg %p154
        %p343 = pneg %p151
        %p344 = pneg %p175
        %p345 = pneg %p172
        %p346 = pneg %p196
        %p347 = pneg %p193
        %p348 = pneg %p217
        %p349 = pneg %p214
        %p350 = pneg %p243
        %p351 = pneg %p240
        %s352 = sand.u32 %s230, 1
        %s353 = scalar_lea.sflag [#allocation4], %s352
        %s354 = sand.u32 %s230, 1
        %s355 = smul.addr %s354, 16
        %s356 = scalar_lea.vmem [#allocation3], %s355
        %p357 = pneg %p269
        %p358 = pneg %p266
        %s359 = sand.u32 %s256, 1
        %s360 = scalar_lea.sflag [#allocation6], %s359
        %s361 = sand.u32 %s256, 1
        %s362 = smul.addr %s361, 8
        %s363 = scalar_lea.vmem [#allocation5], %s362
        %p364 = scmp.lt.s32.totalorder %s28, 1
        %s365 = scalar_select %p364, %s28, 1
        %s366 = smul.addr %s365, 32
        %s367 = smul.addr %s366, 8
        %s368 = scalar_lea.vmem %s0, %s367
        %vm370 = vcmask 257024
        %371 = vst.msk [vmem:[#allocation2] sm:$0xf] %vm370, 0
        %372 = vst.msk [vmem:[#allocation2 + $0x4] sm:$0xf] %vm370, 0
        %vm373 = vcmask 253952
        %374 = vst.msk [vmem:[#allocation2 + $0x8] sm:$0x1] %vm373, 0
        %s375 = scalar_lea.vmem [#allocation2], 204
        %376 = vst.msk [vmem:[%s375] sm:$0xf] %vm370, 0
        %377 = vst.msk [vmem:[%s375 + $0x4] sm:$0xf] %vm370, 0
        %378 = vst.msk [vmem:[%s375 + $0x8] sm:$0x1] %vm373, 0
        %vm379 = vcmask 253952
        %vm380 = vsmask.f32 256
        %vm381 = vmand %vm379, %vm380
        %v382 = vld [vmem:[#allocation2] sm:$0x1]
        %v383 = vsel %vm381, 0, %v382
        %384 = vst [vmem:[#allocation2] sm:$0x1] %v383
        %v385 = vld [vmem:[#allocation2 + $0xc] sm:$0x1]
        %v386 = vsel %vm381, 0, %v385
        %387 = vst [vmem:[#allocation2 + $0xc] sm:$0x1] %v386
        %v388 = vld [vmem:[#allocation2 + $0x18] sm:$0x1]
        %v389 = vsel %vm381, 0, %v388
        %390 = vst [vmem:[#allocation2 + $0x18] sm:$0x1] %v389
        %v391 = vld [vmem:[#allocation2 + $0x24] sm:$0x1]
        %v392 = vsel %vm381, 0, %v391
        %393 = vst [vmem:[#allocation2 + $0x24] sm:$0x1] %v392
        %v394 = vld [vmem:[#allocation2 + $0x30] sm:$0x1]
        %v395 = vsel %vm381, 0, %v394
        %396 = vst [vmem:[#allocation2 + $0x30] sm:$0x1] %v395
        %v397 = vld [vmem:[#allocation2 + $0x3c] sm:$0x1]
        %v398 = vsel %vm381, 0, %v397
        %399 = vst [vmem:[#allocation2 + $0x3c] sm:$0x1] %v398
        %v400 = vld [vmem:[#allocation2 + $0x48] sm:$0x1]
        %v401 = vsel %vm381, 0, %v400
        %402 = vst [vmem:[#allocation2 + $0x48] sm:$0x1] %v401
        %v403 = vld [vmem:[#allocation2 + $0x54] sm:$0x1]
        %v404 = vsel %vm381, 0, %v403
        %405 = vst [vmem:[#allocation2 + $0x54] sm:$0x1] %v404
        %v406 = vld [vmem:[#allocation2 + $0x60] sm:$0x1]
        %v407 = vsel %vm381, 0, %v406
        %408 = vst [vmem:[#allocation2 + $0x60] sm:$0x1] %v407
        %v409 = vld [vmem:[#allocation2 + $0x6c] sm:$0x1]
        %v410 = vsel %vm381, 0, %v409
        %411 = vst [vmem:[#allocation2 + $0x6c] sm:$0x1] %v410
        %v412 = vld [vmem:[#allocation2 + $0x78] sm:$0x1]
        %v413 = vsel %vm381, 0, %v412
        %414 = vst [vmem:[#allocation2 + $0x78] sm:$0x1] %v413
        %v415 = vld [vmem:[#allocation2 + $0x84] sm:$0x1]
        %v416 = vsel %vm381, 0, %v415
        %417 = vst [vmem:[#allocation2 + $0x84] sm:$0x1] %v416
        %v418 = vld [vmem:[#allocation2 + $0x90] sm:$0x1]
        %v419 = vsel %vm381, 0, %v418
        %420 = vst [vmem:[#allocation2 + $0x90] sm:$0x1] %v419
        %v421 = vld [vmem:[#allocation2 + $0x9c] sm:$0x1]
        %v422 = vsel %vm381, 0, %v421
        %423 = vst [vmem:[#allocation2 + $0x9c] sm:$0x1] %v422
        %v424 = vld [vmem:[#allocation2 + $0xa8] sm:$0x1]
        %v425 = vsel %vm381, 0, %v424
        %426 = vst [vmem:[#allocation2 + $0xa8] sm:$0x1] %v425
        %v427 = vld [vmem:[#allocation2 + $0xb4] sm:$0x1]
        %v428 = vsel %vm381, 0, %v427
        %429 = vst [vmem:[#allocation2 + $0xb4] sm:$0x1] %v428
        %v430 = vld [vmem:[#allocation2 + $0xc0] sm:$0x1]
        %v431 = vsel %vm381, 0, %v430
        %432 = vst [vmem:[#allocation2 + $0xc0] sm:$0x1] %v431
        %v433 = vld [vmem:[#allocation2 + $0xcc] sm:$0x1]
        %v434 = vsel %vm381, 0, %v433
        %435 = vst [vmem:[#allocation2 + $0xcc] sm:$0x1] %v434
        %vm436 = vsmask.f32 7938
        %vm437 = vmand %vm379, %vm436
        %v438 = vld [vmem:[#allocation2 + $0x8] sm:$0x1]
        %v439 = vsel %vm437, 0, %v438
        %440 = vst [vmem:[#allocation2 + $0x8] sm:$0x1] %v439
        %v441 = vld [vmem:[#allocation2 + $0x14] sm:$0x1]
        %v442 = vsel %vm437, 0, %v441
        %443 = vst [vmem:[#allocation2 + $0x14] sm:$0x1] %v442
        %v444 = vld [vmem:[#allocation2 + $0x20] sm:$0x1]
        %v445 = vsel %vm437, 0, %v444
        %446 = vst [vmem:[#allocation2 + $0x20] sm:$0x1] %v445
        %v447 = vld [vmem:[#allocation2 + $0x2c] sm:$0x1]
        %v448 = vsel %vm437, 0, %v447
        %449 = vst [vmem:[#allocation2 + $0x2c] sm:$0x1] %v448
        %v450 = vld [vmem:[#allocation2 + $0x38] sm:$0x1]
        %v451 = vsel %vm437, 0, %v450
        %452 = vst [vmem:[#allocation2 + $0x38] sm:$0x1] %v451
        %v453 = vld [vmem:[#allocation2 + $0x44] sm:$0x1]
        %v454 = vsel %vm437, 0, %v453
        %455 = vst [vmem:[#allocation2 + $0x44] sm:$0x1] %v454
        %v456 = vld [vmem:[#allocation2 + $0x50] sm:$0x1]
        %v457 = vsel %vm437, 0, %v456
        %458 = vst [vmem:[#allocation2 + $0x50] sm:$0x1] %v457
        %v459 = vld [vmem:[#allocation2 + $0x5c] sm:$0x1]
        %v460 = vsel %vm437, 0, %v459
        %461 = vst [vmem:[#allocation2 + $0x5c] sm:$0x1] %v460
        %v462 = vld [vmem:[#allocation2 + $0x68] sm:$0x1]
        %v463 = vsel %vm437, 0, %v462
        %464 = vst [vmem:[#allocation2 + $0x68] sm:$0x1] %v463
        %v465 = vld [vmem:[#allocation2 + $0x74] sm:$0x1]
        %v466 = vsel %vm437, 0, %v465
        %467 = vst [vmem:[#allocation2 + $0x74] sm:$0x1] %v466
        %v468 = vld [vmem:[#allocation2 + $0x80] sm:$0x1]
        %v469 = vsel %vm437, 0, %v468
        %470 = vst [vmem:[#allocation2 + $0x80] sm:$0x1] %v469
        %v471 = vld [vmem:[#allocation2 + $0x8c] sm:$0x1]
        %v472 = vsel %vm437, 0, %v471
        %473 = vst [vmem:[#allocation2 + $0x8c] sm:$0x1] %v472
        %v474 = vld [vmem:[#allocation2 + $0x98] sm:$0x1]
        %v475 = vsel %vm437, 0, %v474
        %476 = vst [vmem:[#allocation2 + $0x98] sm:$0x1] %v475
        %v477 = vld [vmem:[#allocation2 + $0xa4] sm:$0x1]
        %v478 = vsel %vm437, 0, %v477
        %479 = vst [vmem:[#allocation2 + $0xa4] sm:$0x1] %v478
        %v480 = vld [vmem:[#allocation2 + $0xb0] sm:$0x1]
        %v481 = vsel %vm437, 0, %v480
        %482 = vst [vmem:[#allocation2 + $0xb0] sm:$0x1] %v481
        %v483 = vld [vmem:[#allocation2 + $0xbc] sm:$0x1]
        %v484 = vsel %vm437, 0, %v483
        %485 = vst [vmem:[#allocation2 + $0xbc] sm:$0x1] %v484
        %v486 = vld [vmem:[#allocation2 + $0xc8] sm:$0x1]
        %v487 = vsel %vm437, 0, %v486
        %488 = vst [vmem:[#allocation2 + $0xc8] sm:$0x1] %v487
        %v489 = vld [vmem:[#allocation2 + $0xd4] sm:$0x1]
        %v490 = vsel %vm437, 0, %v489
        %491 = vst [vmem:[#allocation2 + $0xd4] sm:$0x1] %v490
        %v492 = vld [vmem:[%s368] sm:$0xff]
        %v493 = vld [vmem:[%s368 + $0x8] sm:$0xff]
        %v494 = vld [vmem:[%s368 + $0x10] sm:$0xff]
        %v495 = vld [vmem:[%s368 + $0x18] sm:$0xff]
        %v496 = vld [vmem:[%s368 + $0x20] sm:$0xff]
        %v497 = vld [vmem:[%s368 + $0x28] sm:$0xff]
        %v498 = vld [vmem:[%s368 + $0x30] sm:$0xff]
        %v499 = vld [vmem:[%s368 + $0x38] sm:$0xff]
        %v500 = vld [vmem:[%s368 + $0x40] sm:$0xff]
        %v501 = vld [vmem:[%s368 + $0x48] sm:$0xff]
        %v502 = vld [vmem:[%s368 + $0x50] sm:$0xff]
        %v503 = vld [vmem:[%s368 + $0x58] sm:$0xff]
        %v504 = vld [vmem:[%s368 + $0x60] sm:$0xff]
        %v505 = vld [vmem:[%s368 + $0x68] sm:$0xff]
        %v506 = vld [vmem:[%s368 + $0x70] sm:$0xff]
        %v507 = vld [vmem:[%s368 + $0x78] sm:$0xff]
        %v508 = vld [vmem:[%s368 + $0x80] sm:$0xff]
        %v509 = vld [vmem:[%s368 + $0x88] sm:$0xff]
        %v510 = vld [vmem:[%s368 + $0x90] sm:$0xff]
        %v511 = vld [vmem:[%s368 + $0x98] sm:$0xff]
        %v512 = vld [vmem:[%s368 + $0xa0] sm:$0xff]
        %v513 = vld [vmem:[%s368 + $0xa8] sm:$0xff]
        %v514 = vld [vmem:[%s368 + $0xb0] sm:$0xff]
        %v515 = vld [vmem:[%s368 + $0xb8] sm:$0xff]
        %v516 = vld [vmem:[%s368 + $0xc0] sm:$0xff]
        %v517 = vld [vmem:[%s368 + $0xc8] sm:$0xff]
        %v518 = vld [vmem:[%s368 + $0xd0] sm:$0xff]
        %v519 = vld [vmem:[%s368 + $0xd8] sm:$0xff]
        %v520 = vld [vmem:[%s368 + $0xe0] sm:$0xff]
        %v521 = vld [vmem:[%s368 + $0xe8] sm:$0xff]
        %v522 = vld [vmem:[%s368 + $0xf0] sm:$0xff]
        %v523 = vld [vmem:[%s368 + $0xf8] sm:$0xff]
        %v524 = vpack.c.bf16 %v493, %v492
        %v525 = vpack.c.bf16 %v495, %v494
        %v526 = vpack.c.bf16 %v497, %v496
        %v527 = vpack.c.bf16 %v499, %v498
        %v528 = vpack.c.bf16 %v501, %v500
        %v529 = vpack.c.bf16 %v503, %v502
        %v530 = vpack.c.bf16 %v505, %v504
        %v531 = vpack.c.bf16 %v507, %v506
        %v532 = vpack.c.bf16 %v509, %v508
        %v533 = vpack.c.bf16 %v511, %v510
        %v534 = vpack.c.bf16 %v513, %v512
        %v535 = vpack.c.bf16 %v515, %v514
        %v536 = vpack.c.bf16 %v517, %v516
        %v537 = vpack.c.bf16 %v519, %v518
        %v538 = vpack.c.bf16 %v521, %v520
        %v539 = vpack.c.bf16 %v523, %v522
        %v556 = vunpack.c.l.b16 %v524
        %v557 = vunpack.c.h.b16 %v524
        %v558 = vunpack.c.l.b16 %v525
        %v559 = vunpack.c.h.b16 %v525
        %v560 = vunpack.c.l.b16 %v526
        %v561 = vunpack.c.h.b16 %v526
        %v562 = vunpack.c.l.b16 %v527
        %v563 = vunpack.c.h.b16 %v527
        %v564 = vunpack.c.l.b16 %v528
        %v565 = vunpack.c.h.b16 %v528
        %v566 = vunpack.c.l.b16 %v529
        %v567 = vunpack.c.h.b16 %v529
        %v568 = vunpack.c.l.b16 %v530
        %v569 = vunpack.c.h.b16 %v530
        %v570 = vunpack.c.l.b16 %v531
        %v571 = vunpack.c.h.b16 %v531
        %v572 = vunpack.c.l.b16 %v532
        %v573 = vunpack.c.h.b16 %v532
        %v574 = vunpack.c.l.b16 %v533
        %v575 = vunpack.c.h.b16 %v533
        %v576 = vunpack.c.l.b16 %v534
        %v577 = vunpack.c.h.b16 %v534
        %v578 = vunpack.c.l.b16 %v535
        %v579 = vunpack.c.h.b16 %v535
        %v580 = vunpack.c.l.b16 %v536
        %v581 = vunpack.c.h.b16 %v536
        %v582 = vunpack.c.l.b16 %v537
        %v583 = vunpack.c.h.b16 %v537
        %v584 = vunpack.c.l.b16 %v538
        %v585 = vunpack.c.h.b16 %v538
        %v586 = vunpack.c.l.b16 %v539
        %v587 = vunpack.c.h.b16 %v539
        %v588 = vpack.c.b16 %v556, %v556
        %v589 = vpack.c.b16 %v557, %v557
        %v590 = vpack.c.b16 %v558, %v558
        %v591 = vpack.c.b16 %v559, %v559
        %v592 = vpack.c.b16 %v560, %v560
        %v593 = vpack.c.b16 %v561, %v561
        %v594 = vpack.c.b16 %v562, %v562
        %v595 = vpack.c.b16 %v563, %v563
        %v596 = vpack.c.b16 %v564, %v564
        %v597 = vpack.c.b16 %v565, %v565
        %v598 = vpack.c.b16 %v566, %v566
        %v599 = vpack.c.b16 %v567, %v567
        %v600 = vpack.c.b16 %v568, %v568
        %v601 = vpack.c.b16 %v569, %v569
        %v602 = vpack.c.b16 %v570, %v570
        %v603 = vpack.c.b16 %v571, %v571
        %v604 = vpack.c.b16 %v572, %v572
        %v605 = vpack.c.b16 %v573, %v573
        %v606 = vpack.c.b16 %v574, %v574
        %v607 = vpack.c.b16 %v575, %v575
        %v608 = vpack.c.b16 %v576, %v576
        %v609 = vpack.c.b16 %v577, %v577
        %v610 = vpack.c.b16 %v578, %v578
        %v611 = vpack.c.b16 %v579, %v579
        %v612 = vpack.c.b16 %v580, %v580
        %v613 = vpack.c.b16 %v581, %v581
        %v614 = vpack.c.b16 %v582, %v582
        %v615 = vpack.c.b16 %v583, %v583
        %v616 = vpack.c.b16 %v584, %v584
        %v617 = vpack.c.b16 %v585, %v585
        %v618 = vpack.c.b16 %v586, %v586
        %v619 = vpack.c.b16 %v587, %v587
        %vm620 = vsmask.f32 4368
        %vm621 = vmor %vm380, %vm620
        %v623 = vshrl.u32 %v588, 16
        %v625 = vrot.slane %v623, 7
        %v626 = vshll.u32 %v588, 16
        %v628 = vor.u32 %v625, %v626
        %v629 = vrot.slane %v625, 4
        %v631 = vshrl.u32 %v589, 16
        %v633 = vrot.slane %v631, 7
        %v634 = vshll.u32 %v589, 16
        %v636 = vor.u32 %v633, %v634
        %v637 = vsel %vm621, %v629, %v636
        %v638 = vrot.slane %v633, 4
        %v640 = vshrl.u32 %v590, 16
        %v642 = vrot.slane %v640, 7
        %v643 = vshll.u32 %v590, 16
        %v645 = vor.u32 %v642, %v643
        %v646 = vrot.slane %v642, 4
        %v648 = vshrl.u32 %v591, 16
        %v650 = vrot.slane %v648, 7
        %v651 = vshll.u32 %v591, 16
        %v653 = vor.u32 %v650, %v651
        %v654 = vsel %vm621, %v646, %v653
        %v655 = vrot.slane %v650, 4
        %v657 = vshrl.u32 %v592, 16
        %v659 = vrot.slane %v657, 7
        %v660 = vshll.u32 %v592, 16
        %v662 = vor.u32 %v659, %v660
        %v663 = vrot.slane %v659, 4
        %v665 = vshrl.u32 %v593, 16
        %v667 = vrot.slane %v665, 7
        %v668 = vshll.u32 %v593, 16
        %v670 = vor.u32 %v667, %v668
        %v671 = vsel %vm621, %v663, %v670
        %v672 = vrot.slane %v667, 4
        %v674 = vshrl.u32 %v594, 16
        %v676 = vrot.slane %v674, 7
        %v677 = vshll.u32 %v594, 16
        %v679 = vor.u32 %v676, %v677
        %v680 = vrot.slane %v676, 4
        %v682 = vshrl.u32 %v595, 16
        %v684 = vrot.slane %v682, 7
        %v685 = vshll.u32 %v595, 16
        %v687 = vor.u32 %v684, %v685
        %v688 = vsel %vm621, %v680, %v687
        %v689 = vrot.slane %v684, 4
        %v691 = vshrl.u32 %v596, 16
        %v693 = vrot.slane %v691, 7
        %v694 = vshll.u32 %v596, 16
        %v696 = vor.u32 %v693, %v694
        %v697 = vrot.slane %v693, 4
        %v699 = vshrl.u32 %v597, 16
        %v701 = vrot.slane %v699, 7
        %v702 = vshll.u32 %v597, 16
        %v704 = vor.u32 %v701, %v702
        %v705 = vsel %vm621, %v697, %v704
        %v706 = vrot.slane %v701, 4
        %v708 = vshrl.u32 %v598, 16
        %v710 = vrot.slane %v708, 7
        %v711 = vshll.u32 %v598, 16
        %v713 = vor.u32 %v710, %v711
        %v714 = vrot.slane %v710, 4
        %v716 = vshrl.u32 %v599, 16
        %v718 = vrot.slane %v716, 7
        %v719 = vshll.u32 %v599, 16
        %v721 = vor.u32 %v718, %v719
        %v722 = vsel %vm621, %v714, %v721
        %v723 = vrot.slane %v718, 4
        %v725 = vshrl.u32 %v600, 16
        %v727 = vrot.slane %v725, 7
        %v728 = vshll.u32 %v600, 16
        %v730 = vor.u32 %v727, %v728
        %v731 = vrot.slane %v727, 4
        %v733 = vshrl.u32 %v601, 16
        %v735 = vrot.slane %v733, 7
        %v736 = vshll.u32 %v601, 16
        %v738 = vor.u32 %v735, %v736
        %v739 = vsel %vm621, %v731, %v738
        %v740 = vrot.slane %v735, 4
        %v742 = vshrl.u32 %v602, 16
        %v744 = vrot.slane %v742, 7
        %v745 = vshll.u32 %v602, 16
        %v747 = vor.u32 %v744, %v745
        %v748 = vrot.slane %v744, 4
        %v750 = vshrl.u32 %v603, 16
        %v752 = vrot.slane %v750, 7
        %v753 = vshll.u32 %v603, 16
        %v755 = vor.u32 %v752, %v753
        %v756 = vsel %vm621, %v748, %v755
        %v757 = vrot.slane %v752, 4
        %v759 = vshrl.u32 %v604, 16
        %v761 = vrot.slane %v759, 7
        %v762 = vshll.u32 %v604, 16
        %v764 = vor.u32 %v761, %v762
        %v765 = vrot.slane %v761, 4
        %v767 = vshrl.u32 %v605, 16
        %v769 = vrot.slane %v767, 7
        %v770 = vshll.u32 %v605, 16
        %v772 = vor.u32 %v769, %v770
        %v773 = vsel %vm621, %v765, %v772
        %v774 = vrot.slane %v769, 4
        %v776 = vshrl.u32 %v606, 16
        %v778 = vrot.slane %v776, 7
        %v779 = vshll.u32 %v606, 16
        %v781 = vor.u32 %v778, %v779
        %v782 = vrot.slane %v778, 4
        %v784 = vshrl.u32 %v607, 16
        %v786 = vrot.slane %v784, 7
        %v787 = vshll.u32 %v607, 16
        %v789 = vor.u32 %v786, %v787
        %v790 = vsel %vm621, %v782, %v789
        %v791 = vrot.slane %v786, 4
        %v793 = vshrl.u32 %v608, 16
        %v795 = vrot.slane %v793, 7
        %v796 = vshll.u32 %v608, 16
        %v798 = vor.u32 %v795, %v796
        %v799 = vrot.slane %v795, 4
        %v801 = vshrl.u32 %v609, 16
        %v803 = vrot.slane %v801, 7
        %v804 = vshll.u32 %v609, 16
        %v806 = vor.u32 %v803, %v804
        %v807 = vsel %vm621, %v799, %v806
        %v808 = vrot.slane %v803, 4
        %v810 = vshrl.u32 %v610, 16
        %v812 = vrot.slane %v810, 7
        %v813 = vshll.u32 %v610, 16
        %v815 = vor.u32 %v812, %v813
        %v816 = vrot.slane %v812, 4
        %v818 = vshrl.u32 %v611, 16
        %v820 = vrot.slane %v818, 7
        %v821 = vshll.u32 %v611, 16
        %v823 = vor.u32 %v820, %v821
        %v824 = vsel %vm621, %v816, %v823
        %v825 = vrot.slane %v820, 4
        %v827 = vshrl.u32 %v612, 16
        %v829 = vrot.slane %v827, 7
        %v830 = vshll.u32 %v612, 16
        %v832 = vor.u32 %v829, %v830
        %v833 = vrot.slane %v829, 4
        %v835 = vshrl.u32 %v613, 16
        %v837 = vrot.slane %v835, 7
        %v838 = vshll.u32 %v613, 16
        %v840 = vor.u32 %v837, %v838
        %v841 = vsel %vm621, %v833, %v840
        %v842 = vrot.slane %v837, 4
        %v844 = vshrl.u32 %v614, 16
        %v846 = vrot.slane %v844, 7
        %v847 = vshll.u32 %v614, 16
        %v849 = vor.u32 %v846, %v847
        %v850 = vrot.slane %v846, 4
        %v852 = vshrl.u32 %v615, 16
        %v854 = vrot.slane %v852, 7
        %v855 = vshll.u32 %v615, 16
        %v857 = vor.u32 %v854, %v855
        %v858 = vsel %vm621, %v850, %v857
        %v859 = vrot.slane %v854, 4
        %v861 = vshrl.u32 %v616, 16
        %v863 = vrot.slane %v861, 7
        %v864 = vshll.u32 %v616, 16
        %v866 = vor.u32 %v863, %v864
        %v867 = vrot.slane %v863, 4
        %v869 = vshrl.u32 %v617, 16
        %v871 = vrot.slane %v869, 7
        %v872 = vshll.u32 %v617, 16
        %v874 = vor.u32 %v871, %v872
        %v875 = vsel %vm621, %v867, %v874
        %v876 = vrot.slane %v871, 4
        %v878 = vshrl.u32 %v618, 16
        %v880 = vrot.slane %v878, 7
        %v881 = vshll.u32 %v618, 16
        %v883 = vor.u32 %v880, %v881
        %v884 = vrot.slane %v880, 4
        %v886 = vshrl.u32 %v619, 16
        %v888 = vrot.slane %v886, 7
        %v889 = vshll.u32 %v619, 16
        %v891 = vor.u32 %v888, %v889
        %v892 = vsel %vm621, %v884, %v891
        %v893 = vrot.slane %v888, 4
        %s942 = scalar_lea.vmem [#allocation2], 12
        %vm943 = vcmask 27648
        %vm944 = vmand %vm943, %vm436
        %v945 = vld [vmem:[%s942] sm:$0xf]
        %v946 = vsel %vm944, %v628, %v945
        %947 = vst [vmem:[%s942] sm:$0xf] %v946
        %vm948 = vcmask 27648
        %949 = vst.msk [vmem:[%s942 + $0x4] sm:$0xf] %vm948, %v637
        %vm950 = vcmask 24576
        %vm951 = vmand %vm950, %vm380
        %v952 = vld [vmem:[%s942 + $0x8] sm:$0x1]
        %v953 = vsel %vm951, %v638, %v952
        %954 = vst [vmem:[%s942 + $0x8] sm:$0x1] %v953
        %v955 = vld [vmem:[%s942 + $0xc] sm:$0xf]
        %v956 = vsel %vm944, %v645, %v955
        %957 = vst [vmem:[%s942 + $0xc] sm:$0xf] %v956
        %958 = vst.msk [vmem:[%s942 + $0x10] sm:$0xf] %vm948, %v654
        %v959 = vld [vmem:[%s942 + $0x14] sm:$0x1]
        %v960 = vsel %vm951, %v655, %v959
        %961 = vst [vmem:[%s942 + $0x14] sm:$0x1] %v960
        %v962 = vld [vmem:[%s942 + $0x18] sm:$0xf]
        %v963 = vsel %vm944, %v662, %v962
        %964 = vst [vmem:[%s942 + $0x18] sm:$0xf] %v963
        %965 = vst.msk [vmem:[%s942 + $0x1c] sm:$0xf] %vm948, %v671
        %v966 = vld [vmem:[%s942 + $0x20] sm:$0x1]
        %v967 = vsel %vm951, %v672, %v966
        %968 = vst [vmem:[%s942 + $0x20] sm:$0x1] %v967
        %v969 = vld [vmem:[%s942 + $0x24] sm:$0xf]
        %v970 = vsel %vm944, %v679, %v969
        %971 = vst [vmem:[%s942 + $0x24] sm:$0xf] %v970
        %972 = vst.msk [vmem:[%s942 + $0x28] sm:$0xf] %vm948, %v688
        %v973 = vld [vmem:[%s942 + $0x2c] sm:$0x1]
        %v974 = vsel %vm951, %v689, %v973
        %975 = vst [vmem:[%s942 + $0x2c] sm:$0x1] %v974
        %v976 = vld [vmem:[%s942 + $0x30] sm:$0xf]
        %v977 = vsel %vm944, %v696, %v976
        %978 = vst [vmem:[%s942 + $0x30] sm:$0xf] %v977
        %979 = vst.msk [vmem:[%s942 + $0x34] sm:$0xf] %vm948, %v705
        %v980 = vld [vmem:[%s942 + $0x38] sm:$0x1]
        %v981 = vsel %vm951, %v706, %v980
        %982 = vst [vmem:[%s942 + $0x38] sm:$0x1] %v981
        %v983 = vld [vmem:[%s942 + $0x3c] sm:$0xf]
        %v984 = vsel %vm944, %v713, %v983
        %985 = vst [vmem:[%s942 + $0x3c] sm:$0xf] %v984
        %986 = vst.msk [vmem:[%s942 + $0x40] sm:$0xf] %vm948, %v722
        %v987 = vld [vmem:[%s942 + $0x44] sm:$0x1]
        %v988 = vsel %vm951, %v723, %v987
        %989 = vst [vmem:[%s942 + $0x44] sm:$0x1] %v988
        %v990 = vld [vmem:[%s942 + $0x48] sm:$0xf]
        %v991 = vsel %vm944, %v730, %v990
        %992 = vst [vmem:[%s942 + $0x48] sm:$0xf] %v991
        %993 = vst.msk [vmem:[%s942 + $0x4c] sm:$0xf] %vm948, %v739
        %v994 = vld [vmem:[%s942 + $0x50] sm:$0x1]
        %v995 = vsel %vm951, %v740, %v994
        %996 = vst [vmem:[%s942 + $0x50] sm:$0x1] %v995
        %v997 = vld [vmem:[%s942 + $0x54] sm:$0xf]
        %v998 = vsel %vm944, %v747, %v997
        %999 = vst [vmem:[%s942 + $0x54] sm:$0xf] %v998
        %1000 = vst.msk [vmem:[%s942 + $0x58] sm:$0xf] %vm948, %v756
        %v1001 = vld [vmem:[%s942 + $0x5c] sm:$0x1]
        %v1002 = vsel %vm951, %v757, %v1001
        %1003 = vst [vmem:[%s942 + $0x5c] sm:$0x1] %v1002
        %v1004 = vld [vmem:[%s942 + $0x60] sm:$0xf]
        %v1005 = vsel %vm944, %v764, %v1004
        %1006 = vst [vmem:[%s942 + $0x60] sm:$0xf] %v1005
        %1007 = vst.msk [vmem:[%s942 + $0x64] sm:$0xf] %vm948, %v773
        %v1008 = vld [vmem:[%s942 + $0x68] sm:$0x1]
        %v1009 = vsel %vm951, %v774, %v1008
        %1010 = vst [vmem:[%s942 + $0x68] sm:$0x1] %v1009
        %v1011 = vld [vmem:[%s942 + $0x6c] sm:$0xf]
        %v1012 = vsel %vm944, %v781, %v1011
        %1013 = vst [vmem:[%s942 + $0x6c] sm:$0xf] %v1012
        %1014 = vst.msk [vmem:[%s942 + $0x70] sm:$0xf] %vm948, %v790
        %v1015 = vld [vmem:[%s942 + $0x74] sm:$0x1]
        %v1016 = vsel %vm951, %v791, %v1015
        %1017 = vst [vmem:[%s942 + $0x74] sm:$0x1] %v1016
        %v1018 = vld [vmem:[%s942 + $0x78] sm:$0xf]
        %v1019 = vsel %vm944, %v798, %v1018
        %1020 = vst [vmem:[%s942 + $0x78] sm:$0xf] %v1019
        %1021 = vst.msk [vmem:[%s942 + $0x7c] sm:$0xf] %vm948, %v807
        %v1022 = vld [vmem:[%s942 + $0x80] sm:$0x1]
        %v1023 = vsel %vm951, %v808, %v1022
        %1024 = vst [vmem:[%s942 + $0x80] sm:$0x1] %v1023
        %v1025 = vld [vmem:[%s942 + $0x84] sm:$0xf]
        %v1026 = vsel %vm944, %v815, %v1025
        %1027 = vst [vmem:[%s942 + $0x84] sm:$0xf] %v1026
        %1028 = vst.msk [vmem:[%s942 + $0x88] sm:$0xf] %vm948, %v824
        %v1029 = vld [vmem:[%s942 + $0x8c] sm:$0x1]
        %v1030 = vsel %vm951, %v825, %v1029
        %1031 = vst [vmem:[%s942 + $0x8c] sm:$0x1] %v1030
        %v1032 = vld [vmem:[%s942 + $0x90] sm:$0xf]
        %v1033 = vsel %vm944, %v832, %v1032
        %1034 = vst [vmem:[%s942 + $0x90] sm:$0xf] %v1033
        %1035 = vst.msk [vmem:[%s942 + $0x94] sm:$0xf] %vm948, %v841
        %v1036 = vld [vmem:[%s942 + $0x98] sm:$0x1]
        %v1037 = vsel %vm951, %v842, %v1036
        %1038 = vst [vmem:[%s942 + $0x98] sm:$0x1] %v1037
        %v1039 = vld [vmem:[%s942 + $0x9c] sm:$0xf]
        %v1040 = vsel %vm944, %v849, %v1039
        %1041 = vst [vmem:[%s942 + $0x9c] sm:$0xf] %v1040
        %1042 = vst.msk [vmem:[%s942 + $0xa0] sm:$0xf] %vm948, %v858
        %v1043 = vld [vmem:[%s942 + $0xa4] sm:$0x1]
        %v1044 = vsel %vm951, %v859, %v1043
        %1045 = vst [vmem:[%s942 + $0xa4] sm:$0x1] %v1044
        %v1046 = vld [vmem:[%s942 + $0xa8] sm:$0xf]
        %v1047 = vsel %vm944, %v866, %v1046
        %1048 = vst [vmem:[%s942 + $0xa8] sm:$0xf] %v1047
        %1049 = vst.msk [vmem:[%s942 + $0xac] sm:$0xf] %vm948, %v875
        %v1050 = vld [vmem:[%s942 + $0xb0] sm:$0x1]
        %v1051 = vsel %vm951, %v876, %v1050
        %1052 = vst [vmem:[%s942 + $0xb0] sm:$0x1] %v1051
        %v1053 = vld [vmem:[%s942 + $0xb4] sm:$0xf]
        %v1054 = vsel %vm944, %v883, %v1053
        %1055 = vst [vmem:[%s942 + $0xb4] sm:$0xf] %v1054
        %1056 = vst.msk [vmem:[%s942 + $0xb8] sm:$0xf] %vm948, %v892
        %v1057 = vld [vmem:[%s942 + $0xbc] sm:$0x1]
        %v1058 = vsel %vm951, %v893, %v1057
        %1059 = vst [vmem:[%s942 + $0xbc] sm:$0x1] %v1058
        %v1060 = vld [vmem:[%s2] sm:$0x1]
        %v1061 = vld [vmem:[#allocation2] sm:$0xf]
        %v1062 = vld [vmem:[#allocation2 + $0x4] sm:$0xf]
        %v1063 = vld [vmem:[#allocation2 + $0x8] sm:$0x1]
        %v1064 = vld [vmem:[#allocation2 + $0xc] sm:$0xf]
        %v1065 = vld [vmem:[#allocation2 + $0x10] sm:$0xf]
        %v1066 = vld [vmem:[#allocation2 + $0x14] sm:$0x1]
        %v1067 = vld [vmem:[#allocation2 + $0x18] sm:$0xf]
        %v1068 = vld [vmem:[#allocation2 + $0x1c] sm:$0xf]
        %v1069 = vld [vmem:[#allocation2 + $0x20] sm:$0x1]
        %v1070 = vld [vmem:[#allocation2 + $0x24] sm:$0xf]
        %v1071 = vld [vmem:[#allocation2 + $0x28] sm:$0xf]
        %v1072 = vld [vmem:[#allocation2 + $0x2c] sm:$0x1]
        %v1073 = vld [vmem:[#allocation2 + $0x30] sm:$0xf]
        %v1074 = vld [vmem:[#allocation2 + $0x34] sm:$0xf]
        %v1075 = vld [vmem:[#allocation2 + $0x38] sm:$0x1]
        %v1076 = vld [vmem:[#allocation2 + $0x3c] sm:$0xf]
        %v1077 = vld [vmem:[#allocation2 + $0x40] sm:$0xf]
        %v1078 = vld [vmem:[#allocation2 + $0x44] sm:$0x1]
        %v1079 = vld [vmem:[#allocation2 + $0x48] sm:$0xf]
        %v1080 = vld [vmem:[#allocation2 + $0x4c] sm:$0xf]
        %v1081 = vld [vmem:[#allocation2 + $0x50] sm:$0x1]
        %v1082 = vld [vmem:[#allocation2 + $0x54] sm:$0xf]
        %v1083 = vld [vmem:[#allocation2 + $0x58] sm:$0xf]
        %v1084 = vld [vmem:[#allocation2 + $0x5c] sm:$0x1]
        %v1085 = vld [vmem:[#allocation2 + $0x60] sm:$0xf]
        %v1086 = vld [vmem:[#allocation2 + $0x64] sm:$0xf]
        %v1087 = vld [vmem:[#allocation2 + $0x68] sm:$0x1]
        %v1088 = vld [vmem:[#allocation2 + $0x6c] sm:$0xf]
        %v1089 = vld [vmem:[#allocation2 + $0x70] sm:$0xf]
        %v1090 = vld [vmem:[#allocation2 + $0x74] sm:$0x1]
        %v1091 = vld [vmem:[#allocation2 + $0x78] sm:$0xf]
        %v1092 = vld [vmem:[#allocation2 + $0x7c] sm:$0xf]
        %v1093 = vld [vmem:[#allocation2 + $0x80] sm:$0x1]
        %v1094 = vld [vmem:[#allocation2 + $0x84] sm:$0xf]
        %v1095 = vld [vmem:[#allocation2 + $0x88] sm:$0xf]
        %v1096 = vld [vmem:[#allocation2 + $0x8c] sm:$0x1]
        %v1097 = vld [vmem:[#allocation2 + $0x90] sm:$0xf]
        %v1098 = vld [vmem:[#allocation2 + $0x94] sm:$0xf]
        %v1099 = vld [vmem:[#allocation2 + $0x98] sm:$0x1]
        %v1100 = vld [vmem:[#allocation2 + $0x9c] sm:$0xf]
        %v1101 = vld [vmem:[#allocation2 + $0xa0] sm:$0xf]
        %v1102 = vld [vmem:[#allocation2 + $0xa4] sm:$0x1]
        %v1103 = vld [vmem:[#allocation2 + $0xa8] sm:$0xf]
        %v1104 = vld [vmem:[#allocation2 + $0xac] sm:$0xf]
        %v1105 = vld [vmem:[#allocation2 + $0xb0] sm:$0x1]
        %v1106 = vld [vmem:[#allocation2 + $0xb4] sm:$0xf]
        %v1107 = vld [vmem:[#allocation2 + $0xb8] sm:$0xf]
        %v1108 = vld [vmem:[#allocation2 + $0xbc] sm:$0x1]
        %v1109 = vld [vmem:[#allocation2 + $0xc0] sm:$0xf]
        %v1110 = vld [vmem:[#allocation2 + $0xc4] sm:$0xf]
        %v1111 = vld [vmem:[#allocation2 + $0xc8] sm:$0x1]
        %v1112 = vld [vmem:[#allocation2 + $0xcc] sm:$0xf]
        %v1113 = vld [vmem:[#allocation2 + $0xd0] sm:$0xf]
        %v1114 = vld [vmem:[#allocation2 + $0xd4] sm:$0x1]
        %v1115 = vld [vmem:[%s1] sm:$0x3]
        %vm1116 = vsmask.f32 3328
        %vm1117 = vsmask.f32 7440
        %vm1118 = vmor %vm1116, %vm1117
        %v1120 = vshrl.u32 %v1061, 16
        %v1122 = vrot.slane %v1120, 4
        %v1123 = vshll.u32 %v1061, 16
        %v1125 = vrot.slane %v1123, 5
        %v1126 = vor.u32 %v1122, %v1125
        %v1127 = vrot.slane %v1126, 4
        %v1129 = vshll.u32 %v1062, 16
        %v1131 = vrot.slane %v1129, 5
        %v1132 = vsel %vm1118, %v1127, %v1131
        %v1133 = vshrl.u32 %v1062, 16
        %v1135 = vrot.slane %v1133, 4
        %v1136 = vor.u32 %v1135, %v1131
        %v1137 = vrot.slane %v1136, 4
        %v1139 = vshll.u32 %v1063, 16
        %v1141 = vrot.slane %v1139, 5
        %v1142 = vsel %vm1118, %v1137, %v1141
        %v1144 = vshrl.u32 %v1064, 16
        %v1146 = vrot.slane %v1144, 4
        %v1147 = vshll.u32 %v1064, 16
        %v1149 = vrot.slane %v1147, 5
        %v1150 = vor.u32 %v1146, %v1149
        %v1151 = vrot.slane %v1150, 4
        %v1153 = vshll.u32 %v1065, 16
        %v1155 = vrot.slane %v1153, 5
        %v1156 = vsel %vm1118, %v1151, %v1155
        %v1157 = vshrl.u32 %v1065, 16
        %v1159 = vrot.slane %v1157, 4
        %v1160 = vor.u32 %v1159, %v1155
        %v1161 = vrot.slane %v1160, 4
        %v1163 = vshll.u32 %v1066, 16
        %v1165 = vrot.slane %v1163, 5
        %v1166 = vsel %vm1118, %v1161, %v1165
        %v1168 = vshrl.u32 %v1067, 16
        %v1170 = vrot.slane %v1168, 4
        %v1171 = vshll.u32 %v1067, 16
        %v1173 = vrot.slane %v1171, 5
        %v1174 = vor.u32 %v1170, %v1173
        %v1175 = vrot.slane %v1174, 4
        %v1177 = vshll.u32 %v1068, 16
        %v1179 = vrot.slane %v1177, 5
        %v1180 = vsel %vm1118, %v1175, %v1179
        %v1181 = vshrl.u32 %v1068, 16
        %v1183 = vrot.slane %v1181, 4
        %v1184 = vor.u32 %v1183, %v1179
        %v1185 = vrot.slane %v1184, 4
        %v1187 = vshll.u32 %v1069, 16
        %v1189 = vrot.slane %v1187, 5
        %v1190 = vsel %vm1118, %v1185, %v1189
        %v1192 = vshrl.u32 %v1070, 16
        %v1194 = vrot.slane %v1192, 4
        %v1195 = vshll.u32 %v1070, 16
        %v1197 = vrot.slane %v1195, 5
        %v1198 = vor.u32 %v1194, %v1197
        %v1199 = vrot.slane %v1198, 4
        %v1201 = vshll.u32 %v1071, 16
        %v1203 = vrot.slane %v1201, 5
        %v1204 = vsel %vm1118, %v1199, %v1203
        %v1205 = vshrl.u32 %v1071, 16
        %v1207 = vrot.slane %v1205, 4
        %v1208 = vor.u32 %v1207, %v1203
        %v1209 = vrot.slane %v1208, 4
        %v1211 = vshll.u32 %v1072, 16
        %v1213 = vrot.slane %v1211, 5
        %v1214 = vsel %vm1118, %v1209, %v1213
        %v1216 = vshrl.u32 %v1073, 16
        %v1218 = vrot.slane %v1216, 4
        %v1219 = vshll.u32 %v1073, 16
        %v1221 = vrot.slane %v1219, 5
        %v1222 = vor.u32 %v1218, %v1221
        %v1223 = vrot.slane %v1222, 4
        %v1225 = vshll.u32 %v1074, 16
        %v1227 = vrot.slane %v1225, 5
        %v1228 = vsel %vm1118, %v1223, %v1227
        %v1229 = vshrl.u32 %v1074, 16
        %v1231 = vrot.slane %v1229, 4
        %v1232 = vor.u32 %v1231, %v1227
        %v1233 = vrot.slane %v1232, 4
        %v1235 = vshll.u32 %v1075, 16
        %v1237 = vrot.slane %v1235, 5
        %v1238 = vsel %vm1118, %v1233, %v1237
        %v1240 = vshrl.u32 %v1076, 16
        %v1242 = vrot.slane %v1240, 4
        %v1243 = vshll.u32 %v1076, 16
        %v1245 = vrot.slane %v1243, 5
        %v1246 = vor.u32 %v1242, %v1245
        %v1247 = vrot.slane %v1246, 4
        %v1249 = vshll.u32 %v1077, 16
        %v1251 = vrot.slane %v1249, 5
        %v1252 = vsel %vm1118, %v1247, %v1251
        %v1253 = vshrl.u32 %v1077, 16
        %v1255 = vrot.slane %v1253, 4
        %v1256 = vor.u32 %v1255, %v1251
        %v1257 = vrot.slane %v1256, 4
        %v1259 = vshll.u32 %v1078, 16
        %v1261 = vrot.slane %v1259, 5
        %v1262 = vsel %vm1118, %v1257, %v1261
        %v1264 = vshrl.u32 %v1079, 16
        %v1266 = vrot.slane %v1264, 4
        %v1267 = vshll.u32 %v1079, 16
        %v1269 = vrot.slane %v1267, 5
        %v1270 = vor.u32 %v1266, %v1269
        %v1271 = vrot.slane %v1270, 4
        %v1273 = vshll.u32 %v1080, 16
        %v1275 = vrot.slane %v1273, 5
        %v1276 = vsel %vm1118, %v1271, %v1275
        %v1277 = vshrl.u32 %v1080, 16
        %v1279 = vrot.slane %v1277, 4
        %v1280 = vor.u32 %v1279, %v1275
        %v1281 = vrot.slane %v1280, 4
        %v1283 = vshll.u32 %v1081, 16
        %v1285 = vrot.slane %v1283, 5
        %v1286 = vsel %vm1118, %v1281, %v1285
        %v1288 = vshrl.u32 %v1082, 16
        %v1290 = vrot.slane %v1288, 4
        %v1291 = vshll.u32 %v1082, 16
        %v1293 = vrot.slane %v1291, 5
        %v1294 = vor.u32 %v1290, %v1293
        %v1295 = vrot.slane %v1294, 4
        %v1297 = vshll.u32 %v1083, 16
        %v1299 = vrot.slane %v1297, 5
        %v1300 = vsel %vm1118, %v1295, %v1299
        %v1301 = vshrl.u32 %v1083, 16
        %v1303 = vrot.slane %v1301, 4
        %v1304 = vor.u32 %v1303, %v1299
        %v1305 = vrot.slane %v1304, 4
        %v1307 = vshll.u32 %v1084, 16
        %v1309 = vrot.slane %v1307, 5
        %v1310 = vsel %vm1118, %v1305, %v1309
        %v1312 = vshrl.u32 %v1085, 16
        %v1314 = vrot.slane %v1312, 4
        %v1315 = vshll.u32 %v1085, 16
        %v1317 = vrot.slane %v1315, 5
        %v1318 = vor.u32 %v1314, %v1317
        %v1319 = vrot.slane %v1318, 4
        %v1321 = vshll.u32 %v1086, 16
        %v1323 = vrot.slane %v1321, 5
        %v1324 = vsel %vm1118, %v1319, %v1323
        %v1325 = vshrl.u32 %v1086, 16
        %v1327 = vrot.slane %v1325, 4
        %v1328 = vor.u32 %v1327, %v1323
        %v1329 = vrot.slane %v1328, 4
        %v1331 = vshll.u32 %v1087, 16
        %v1333 = vrot.slane %v1331, 5
        %v1334 = vsel %vm1118, %v1329, %v1333
        %v1336 = vshrl.u32 %v1088, 16
        %v1338 = vrot.slane %v1336, 4
        %v1339 = vshll.u32 %v1088, 16
        %v1341 = vrot.slane %v1339, 5
        %v1342 = vor.u32 %v1338, %v1341
        %v1343 = vrot.slane %v1342, 4
        %v1345 = vshll.u32 %v1089, 16
        %v1347 = vrot.slane %v1345, 5
        %v1348 = vsel %vm1118, %v1343, %v1347
        %v1349 = vshrl.u32 %v1089, 16
        %v1351 = vrot.slane %v1349, 4
        %v1352 = vor.u32 %v1351, %v1347
        %v1353 = vrot.slane %v1352, 4
        %v1355 = vshll.u32 %v1090, 16
        %v1357 = vrot.slane %v1355, 5
        %v1358 = vsel %vm1118, %v1353, %v1357
        %v1360 = vshrl.u32 %v1091, 16
        %v1362 = vrot.slane %v1360, 4
        %v1363 = vshll.u32 %v1091, 16
        %v1365 = vrot.slane %v1363, 5
        %v1366 = vor.u32 %v1362, %v1365
        %v1367 = vrot.slane %v1366, 4
        %v1369 = vshll.u32 %v1092, 16
        %v1371 = vrot.slane %v1369, 5
        %v1372 = vsel %vm1118, %v1367, %v1371
        %v1373 = vshrl.u32 %v1092, 16
        %v1375 = vrot.slane %v1373, 4
        %v1376 = vor.u32 %v1375, %v1371
        %v1377 = vrot.slane %v1376, 4
        %v1379 = vshll.u32 %v1093, 16
        %v1381 = vrot.slane %v1379, 5
        %v1382 = vsel %vm1118, %v1377, %v1381
        %v1384 = vshrl.u32 %v1094, 16
        %v1386 = vrot.slane %v1384, 4
        %v1387 = vshll.u32 %v1094, 16
        %v1389 = vrot.slane %v1387, 5
        %v1390 = vor.u32 %v1386, %v1389
        %v1391 = vrot.slane %v1390, 4
        %v1393 = vshll.u32 %v1095, 16
        %v1395 = vrot.slane %v1393, 5
        %v1396 = vsel %vm1118, %v1391, %v1395
        %v1397 = vshrl.u32 %v1095, 16
        %v1399 = vrot.slane %v1397, 4
        %v1400 = vor.u32 %v1399, %v1395
        %v1401 = vrot.slane %v1400, 4
        %v1403 = vshll.u32 %v1096, 16
        %v1405 = vrot.slane %v1403, 5
        %v1406 = vsel %vm1118, %v1401, %v1405
        %v1408 = vshrl.u32 %v1097, 16
        %v1410 = vrot.slane %v1408, 4
        %v1411 = vshll.u32 %v1097, 16
        %v1413 = vrot.slane %v1411, 5
        %v1414 = vor.u32 %v1410, %v1413
        %v1415 = vrot.slane %v1414, 4
        %v1417 = vshll.u32 %v1098, 16
        %v1419 = vrot.slane %v1417, 5
        %v1420 = vsel %vm1118, %v1415, %v1419
        %v1421 = vshrl.u32 %v1098, 16
        %v1423 = vrot.slane %v1421, 4
        %v1424 = vor.u32 %v1423, %v1419
        %v1425 = vrot.slane %v1424, 4
        %v1427 = vshll.u32 %v1099, 16
        %v1429 = vrot.slane %v1427, 5
        %v1430 = vsel %vm1118, %v1425, %v1429
        %v1432 = vshrl.u32 %v1100, 16
        %v1434 = vrot.slane %v1432, 4
        %v1435 = vshll.u32 %v1100, 16
        %v1437 = vrot.slane %v1435, 5
        %v1438 = vor.u32 %v1434, %v1437
        %v1439 = vrot.slane %v1438, 4
        %v1441 = vshll.u32 %v1101, 16
        %v1443 = vrot.slane %v1441, 5
        %v1444 = vsel %vm1118, %v1439, %v1443
        %v1445 = vshrl.u32 %v1101, 16
        %v1447 = vrot.slane %v1445, 4
        %v1448 = vor.u32 %v1447, %v1443
        %v1449 = vrot.slane %v1448, 4
        %v1451 = vshll.u32 %v1102, 16
        %v1453 = vrot.slane %v1451, 5
        %v1454 = vsel %vm1118, %v1449, %v1453
        %v1456 = vshrl.u32 %v1103, 16
        %v1458 = vrot.slane %v1456, 4
        %v1459 = vshll.u32 %v1103, 16
        %v1461 = vrot.slane %v1459, 5
        %v1462 = vor.u32 %v1458, %v1461
        %v1463 = vrot.slane %v1462, 4
        %v1465 = vshll.u32 %v1104, 16
        %v1467 = vrot.slane %v1465, 5
        %v1468 = vsel %vm1118, %v1463, %v1467
        %v1469 = vshrl.u32 %v1104, 16
        %v1471 = vrot.slane %v1469, 4
        %v1472 = vor.u32 %v1471, %v1467
        %v1473 = vrot.slane %v1472, 4
        %v1475 = vshll.u32 %v1105, 16
        %v1477 = vrot.slane %v1475, 5
        %v1478 = vsel %vm1118, %v1473, %v1477
        %v1480 = vshrl.u32 %v1106, 16
        %v1482 = vrot.slane %v1480, 4
        %v1483 = vshll.u32 %v1106, 16
        %v1485 = vrot.slane %v1483, 5
        %v1486 = vor.u32 %v1482, %v1485
        %v1487 = vrot.slane %v1486, 4
        %v1489 = vshll.u32 %v1107, 16
        %v1491 = vrot.slane %v1489, 5
        %v1492 = vsel %vm1118, %v1487, %v1491
        %v1493 = vshrl.u32 %v1107, 16
        %v1495 = vrot.slane %v1493, 4
        %v1496 = vor.u32 %v1495, %v1491
        %v1497 = vrot.slane %v1496, 4
        %v1499 = vshll.u32 %v1108, 16
        %v1501 = vrot.slane %v1499, 5
        %v1502 = vsel %vm1118, %v1497, %v1501
        %v1503 = vld [vmem:[%s1] sm:$0xc]
        %v1504 = vunpack.c.l.b16 %v1132
        %v1505 = vunpack.c.l.b16 %v1142
        %v1506 = vunpack.c.l.b16 %v1156
        %v1507 = vunpack.c.l.b16 %v1166
        %v1508 = vunpack.c.l.b16 %v1180
        %v1509 = vunpack.c.l.b16 %v1190
        %v1510 = vunpack.c.l.b16 %v1204
        %v1511 = vunpack.c.l.b16 %v1214
        %v1512 = vunpack.c.l.b16 %v1228
        %v1513 = vunpack.c.l.b16 %v1238
        %v1514 = vunpack.c.l.b16 %v1252
        %v1515 = vunpack.c.l.b16 %v1262
        %v1516 = vunpack.c.l.b16 %v1276
        %v1517 = vunpack.c.l.b16 %v1286
        %v1518 = vunpack.c.l.b16 %v1300
        %v1519 = vunpack.c.l.b16 %v1310
        %v1520 = vunpack.c.l.b16 %v1324
        %v1521 = vunpack.c.l.b16 %v1334
        %v1522 = vunpack.c.l.b16 %v1348
        %v1523 = vunpack.c.l.b16 %v1358
        %v1524 = vunpack.c.l.b16 %v1372
        %v1525 = vunpack.c.l.b16 %v1382
        %v1526 = vunpack.c.l.b16 %v1396
        %v1527 = vunpack.c.l.b16 %v1406
        %v1528 = vunpack.c.l.b16 %v1420
        %v1529 = vunpack.c.l.b16 %v1430
        %v1530 = vunpack.c.l.b16 %v1444
        %v1531 = vunpack.c.l.b16 %v1454
        %v1532 = vunpack.c.l.b16 %v1468
        %v1533 = vunpack.c.l.b16 %v1478
        %v1534 = vunpack.c.l.b16 %v1492
        %v1535 = vunpack.c.l.b16 %v1502
        %v1536 = vpack.c.b16 %v1505, %v1504
        %v1537 = vpack.c.b16 %v1507, %v1506
        %v1538 = vpack.c.b16 %v1509, %v1508
        %v1539 = vpack.c.b16 %v1511, %v1510
        %v1540 = vpack.c.b16 %v1513, %v1512
        %v1541 = vpack.c.b16 %v1515, %v1514
        %v1542 = vpack.c.b16 %v1517, %v1516
        %v1543 = vpack.c.b16 %v1519, %v1518
        %v1544 = vpack.c.b16 %v1521, %v1520
        %v1545 = vpack.c.b16 %v1523, %v1522
        %v1546 = vpack.c.b16 %v1525, %v1524
        %v1547 = vpack.c.b16 %v1527, %v1526
        %v1548 = vpack.c.b16 %v1529, %v1528
        %v1549 = vpack.c.b16 %v1531, %v1530
        %v1550 = vpack.c.b16 %v1533, %v1532
        %v1551 = vpack.c.b16 %v1535, %v1534
        %v1553 = vunpack.c.l.b16 %v1503
        %v1554 = vpack.c.b16 %v1553, %v1553
        %v1555 = vrot.slane %v1554, 2
        %vm1556 = vcmask 31744
        %v1558 = vsel %vm1556, %v1536, 0
        %v1561 = vsel %vm1556, %v1537, 0
        %v1564 = vsel %vm1556, %v1538, 0
        %v1567 = vsel %vm1556, %v1539, 0
        %v1570 = vsel %vm1556, %v1540, 0
        %v1573 = vsel %vm1556, %v1541, 0
        %v1576 = vsel %vm1556, %v1542, 0
        %v1579 = vsel %vm1556, %v1543, 0
        %v1582 = vsel %vm1556, %v1544, 0
        %v1585 = vsel %vm1556, %v1545, 0
        %v1588 = vsel %vm1556, %v1546, 0
        %v1591 = vsel %vm1556, %v1547, 0
        %v1594 = vsel %vm1556, %v1548, 0
        %v1597 = vsel %vm1556, %v1549, 0
        %v1600 = vsel %vm1556, %v1550, 0
        %v1603 = vsel %vm1556, %v1551, 0
        %vm1605 = vcmask 1041408
        %v1607 = vsel %vm1605, %v1555, 0
        %1609 = vmatprep.subr.bf16.mxu0 0
        %1610 = vmatpush1.bf16.msra.mxu0 0
        %1611 = vmatprep.subr.bf16.mxu0 0
        %1612 = vmatpush1.bf16.msra.mxu0 0
        %1613 = vmatprep.subr.bf16.mxu0 0
        %1614 = vmatpush1.bf16.msra.mxu0 0
        %1615 = vmatprep.subr.bf16.mxu0 0
        %1616 = vmatpush1.bf16.msra.mxu0 0
        %1617 = vmatprep.subr.bf16.mxu0 0
        %1618 = vmatpush1.bf16.msra.mxu0 0
        %1619 = vmatprep.subr.bf16.mxu0 0
        %1620 = vmatpush1.bf16.msra.mxu0 0
        %1621 = vmatprep.subr.bf16.mxu0 0
        %1622 = vmatpush1.bf16.msra.mxu0 0
        %1623 = vmatprep.subr.bf16.mxu0 0
        %1624 = vmatpush1.bf16.msra.mxu0 %v1607
        %1625 = vmatprep.subr.bf16.mxu0 0
        %1626 = vmatpush2.bf16.msra.mxu0 0
        %1627 = vmatprep.subr.bf16.mxu0 0
        %1628 = vmatpush2.bf16.msra.mxu0 0
        %1629 = vmatprep.subr.bf16.mxu0 0
        %1630 = vmatpush2.bf16.msra.mxu0 0
        %1631 = vmatprep.subr.bf16.mxu0 0
        %1632 = vmatpush2.bf16.msra.mxu0 0
        %1633 = vmatprep.subr.bf16.mxu0 0
        %1634 = vmatpush2.bf16.msra.mxu0 0
        %1635 = vmatprep.subr.bf16.mxu0 0
        %1636 = vmatpush2.bf16.msra.mxu0 0
        %1637 = vmatprep.subr.bf16.mxu0 0
        %1638 = vmatpush2.bf16.msra.mxu0 0
        %1639 = vmatprep.subr.bf16.mxu0 0
        %1640 = vmatpush2.bf16.msra.mxu0 0
        %1641 = vmatprep.mubr.bf16.mxu0 0
        %1642 = vmatmul.mubr.bf16.gmra.mxu0 %v1558
        %v1643 = vpop.f32.mrf.mxu0
        %v1644 = vadd.f32 0.0, %v1643
        %v1645 = vpop.f32.mrf.mxu0
        %v1646 = vpop.f32.mrf.mxu0
        %v1647 = vadd.f32 0.0, %v1646
        %v1648 = vpop.f32.mrf.mxu0
        %1649 = vmatprep.mubr.bf16.mxu0 0
        %1650 = vmatmul.mubr.bf16.gmra.mxu0 %v1561
        %v1651 = vpop.f32.mrf.mxu0
        %v1652 = vadd.f32 0.0, %v1651
        %v1653 = vpop.f32.mrf.mxu0
        %v1654 = vpop.f32.mrf.mxu0
        %v1655 = vadd.f32 0.0, %v1654
        %v1656 = vpop.f32.mrf.mxu0
        %1657 = vmatprep.mubr.bf16.mxu0 0
        %1658 = vmatmul.mubr.bf16.gmra.mxu0 %v1564
        %v1659 = vpop.f32.mrf.mxu0
        %v1660 = vadd.f32 0.0, %v1659
        %v1661 = vpop.f32.mrf.mxu0
        %v1662 = vpop.f32.mrf.mxu0
        %v1663 = vadd.f32 0.0, %v1662
        %v1664 = vpop.f32.mrf.mxu0
        %1665 = vmatprep.mubr.bf16.mxu0 0
        %1666 = vmatmul.mubr.bf16.gmra.mxu0 %v1567
        %v1667 = vpop.f32.mrf.mxu0
        %v1668 = vadd.f32 0.0, %v1667
        %v1669 = vpop.f32.mrf.mxu0
        %v1670 = vpop.f32.mrf.mxu0
        %v1671 = vadd.f32 0.0, %v1670
        %v1672 = vpop.f32.mrf.mxu0
        %1673 = vmatprep.mubr.bf16.mxu0 0
        %1674 = vmatmul.mubr.bf16.gmra.mxu0 %v1570
        %v1675 = vpop.f32.mrf.mxu0
        %v1676 = vadd.f32 0.0, %v1675
        %v1677 = vpop.f32.mrf.mxu0
        %v1678 = vpop.f32.mrf.mxu0
        %v1679 = vadd.f32 0.0, %v1678
        %v1680 = vpop.f32.mrf.mxu0
        %1681 = vmatprep.mubr.bf16.mxu0 0
        %1682 = vmatmul.mubr.bf16.gmra.mxu0 %v1573
        %v1683 = vpop.f32.mrf.mxu0
        %v1684 = vadd.f32 0.0, %v1683
        %v1685 = vpop.f32.mrf.mxu0
        %v1686 = vpop.f32.mrf.mxu0
        %v1687 = vadd.f32 0.0, %v1686
        %v1688 = vpop.f32.mrf.mxu0
        %1689 = vmatprep.mubr.bf16.mxu0 0
        %1690 = vmatmul.mubr.bf16.gmra.mxu0 %v1576
        %v1691 = vpop.f32.mrf.mxu0
        %v1692 = vadd.f32 0.0, %v1691
        %v1693 = vpop.f32.mrf.mxu0
        %v1694 = vpop.f32.mrf.mxu0
        %v1695 = vadd.f32 0.0, %v1694
        %v1696 = vpop.f32.mrf.mxu0
        %1697 = vmatprep.mubr.bf16.mxu0 0
        %1698 = vmatmul.mubr.bf16.gmra.mxu0 %v1579
        %v1699 = vpop.f32.mrf.mxu0
        %v1700 = vadd.f32 0.0, %v1699
        %v1701 = vpop.f32.mrf.mxu0
        %v1702 = vpop.f32.mrf.mxu0
        %v1703 = vadd.f32 0.0, %v1702
        %v1704 = vpop.f32.mrf.mxu0
        %1705 = vmatprep.mubr.bf16.mxu0 0
        %1706 = vmatmul.mubr.bf16.gmra.mxu0 %v1582
        %v1707 = vpop.f32.mrf.mxu0
        %v1708 = vadd.f32 0.0, %v1707
        %v1709 = vpop.f32.mrf.mxu0
        %v1710 = vpop.f32.mrf.mxu0
        %v1711 = vadd.f32 0.0, %v1710
        %v1712 = vpop.f32.mrf.mxu0
        %1713 = vmatprep.mubr.bf16.mxu0 0
        %1714 = vmatmul.mubr.bf16.gmra.mxu0 %v1585
        %v1715 = vpop.f32.mrf.mxu0
        %v1716 = vadd.f32 0.0, %v1715
        %v1717 = vpop.f32.mrf.mxu0
        %v1718 = vpop.f32.mrf.mxu0
        %v1719 = vadd.f32 0.0, %v1718
        %v1720 = vpop.f32.mrf.mxu0
        %1721 = vmatprep.mubr.bf16.mxu0 0
        %1722 = vmatmul.mubr.bf16.gmra.mxu0 %v1588
        %v1723 = vpop.f32.mrf.mxu0
        %v1724 = vadd.f32 0.0, %v1723
        %v1725 = vpop.f32.mrf.mxu0
        %v1726 = vpop.f32.mrf.mxu0
        %v1727 = vadd.f32 0.0, %v1726
        %v1728 = vpop.f32.mrf.mxu0
        %1729 = vmatprep.mubr.bf16.mxu0 0
        %1730 = vmatmul.mubr.bf16.gmra.mxu0 %v1591
        %v1731 = vpop.f32.mrf.mxu0
        %v1732 = vadd.f32 0.0, %v1731
        %v1733 = vpop.f32.mrf.mxu0
        %v1734 = vpop.f32.mrf.mxu0
        %v1735 = vadd.f32 0.0, %v1734
        %v1736 = vpop.f32.mrf.mxu0
        %1737 = vmatprep.mubr.bf16.mxu0 0
        %1738 = vmatmul.mubr.bf16.gmra.mxu0 %v1594
        %v1739 = vpop.f32.mrf.mxu0
        %v1740 = vadd.f32 0.0, %v1739
        %v1741 = vpop.f32.mrf.mxu0
        %v1742 = vpop.f32.mrf.mxu0
        %v1743 = vadd.f32 0.0, %v1742
        %v1744 = vpop.f32.mrf.mxu0
        %1745 = vmatprep.mubr.bf16.mxu0 0
        %1746 = vmatmul.mubr.bf16.gmra.mxu0 %v1597
        %v1747 = vpop.f32.mrf.mxu0
        %v1748 = vadd.f32 0.0, %v1747
        %v1749 = vpop.f32.mrf.mxu0
        %v1750 = vpop.f32.mrf.mxu0
        %v1751 = vadd.f32 0.0, %v1750
        %v1752 = vpop.f32.mrf.mxu0
        %1753 = vmatprep.mubr.bf16.mxu0 0
        %1754 = vmatmul.mubr.bf16.gmra.mxu0 %v1600
        %v1755 = vpop.f32.mrf.mxu0
        %v1756 = vadd.f32 0.0, %v1755
        %v1757 = vpop.f32.mrf.mxu0
        %v1758 = vpop.f32.mrf.mxu0
        %v1759 = vadd.f32 0.0, %v1758
        %v1760 = vpop.f32.mrf.mxu0
        %1761 = vmatprep.mubr.bf16.mxu0 0
        %1762 = vmatmul.mubr.bf16.gmra.mxu0 %v1603
        %v1763 = vpop.f32.mrf.mxu0
        %v1764 = vadd.f32 0.0, %v1763
        %v1765 = vpop.f32.mrf.mxu0
        %v1766 = vpop.f32.mrf.mxu0
        %v1767 = vadd.f32 0.0, %v1766
        %v1768 = vpop.f32.mrf.mxu0
        %1769 = vdwg.mxu0
        %v1802 = vunpack.c.l.b16 %v1061
        %v1803 = vunpack.c.l.b16 %v1062
        %v1804 = vunpack.c.l.b16 %v1064
        %v1805 = vunpack.c.l.b16 %v1065
        %v1806 = vunpack.c.l.b16 %v1067
        %v1807 = vunpack.c.l.b16 %v1068
        %v1808 = vunpack.c.l.b16 %v1070
        %v1809 = vunpack.c.l.b16 %v1071
        %v1810 = vunpack.c.l.b16 %v1073
        %v1811 = vunpack.c.l.b16 %v1074
        %v1812 = vunpack.c.l.b16 %v1076
        %v1813 = vunpack.c.l.b16 %v1077
        %v1814 = vunpack.c.l.b16 %v1079
        %v1815 = vunpack.c.l.b16 %v1080
        %v1816 = vunpack.c.l.b16 %v1082
        %v1817 = vunpack.c.l.b16 %v1083
        %v1818 = vunpack.c.l.b16 %v1085
        %v1819 = vunpack.c.l.b16 %v1086
        %v1820 = vunpack.c.l.b16 %v1088
        %v1821 = vunpack.c.l.b16 %v1089
        %v1822 = vunpack.c.l.b16 %v1091
        %v1823 = vunpack.c.l.b16 %v1092
        %v1824 = vunpack.c.l.b16 %v1094
        %v1825 = vunpack.c.l.b16 %v1095
        %v1826 = vunpack.c.l.b16 %v1097
        %v1827 = vunpack.c.l.b16 %v1098
        %v1828 = vunpack.c.l.b16 %v1100
        %v1829 = vunpack.c.l.b16 %v1101
        %v1830 = vunpack.c.l.b16 %v1103
        %v1831 = vunpack.c.l.b16 %v1104
        %v1832 = vunpack.c.l.b16 %v1106
        %v1833 = vunpack.c.l.b16 %v1107
        %v1834 = vpack.c.b16 %v1803, %v1802
        %v1835 = vpack.c.b16 %v1805, %v1804
        %v1836 = vpack.c.b16 %v1807, %v1806
        %v1837 = vpack.c.b16 %v1809, %v1808
        %v1838 = vpack.c.b16 %v1811, %v1810
        %v1839 = vpack.c.b16 %v1813, %v1812
        %v1840 = vpack.c.b16 %v1815, %v1814
        %v1841 = vpack.c.b16 %v1817, %v1816
        %v1842 = vpack.c.b16 %v1819, %v1818
        %v1843 = vpack.c.b16 %v1821, %v1820
        %v1844 = vpack.c.b16 %v1823, %v1822
        %v1845 = vpack.c.b16 %v1825, %v1824
        %v1846 = vpack.c.b16 %v1827, %v1826
        %v1847 = vpack.c.b16 %v1829, %v1828
        %v1848 = vpack.c.b16 %v1831, %v1830
        %v1849 = vpack.c.b16 %v1833, %v1832
        %v1851 = vsel %vm1556, %v1834, 0
        %v1854 = vsel %vm1556, %v1835, 0
        %v1857 = vsel %vm1556, %v1836, 0
        %v1860 = vsel %vm1556, %v1837, 0
        %v1863 = vsel %vm1556, %v1838, 0
        %v1866 = vsel %vm1556, %v1839, 0
        %v1869 = vsel %vm1556, %v1840, 0
        %v1872 = vsel %vm1556, %v1841, 0
        %v1875 = vsel %vm1556, %v1842, 0
        %v1878 = vsel %vm1556, %v1843, 0
        %v1881 = vsel %vm1556, %v1844, 0
        %v1884 = vsel %vm1556, %v1845, 0
        %v1887 = vsel %vm1556, %v1846, 0
        %v1890 = vsel %vm1556, %v1847, 0
        %v1893 = vsel %vm1556, %v1848, 0
        %v1896 = vsel %vm1556, %v1849, 0
        %v1899 = vsel %vm1605, %v1115, 0
        %1901 = vmatprep.subr.bf16.mxu0 0
        %1902 = vmatpush1.bf16.msra.mxu0 0
        %1903 = vmatprep.subr.bf16.mxu0 0
        %1904 = vmatpush1.bf16.msra.mxu0 0
        %1905 = vmatprep.subr.bf16.mxu0 0
        %1906 = vmatpush1.bf16.msra.mxu0 0
        %1907 = vmatprep.subr.bf16.mxu0 0
        %1908 = vmatpush1.bf16.msra.mxu0 0
        %1909 = vmatprep.subr.bf16.mxu0 0
        %1910 = vmatpush1.bf16.msra.mxu0 0
        %1911 = vmatprep.subr.bf16.mxu0 0
        %1912 = vmatpush1.bf16.msra.mxu0 0
        %1913 = vmatprep.subr.bf16.mxu0 0
        %1914 = vmatpush1.bf16.msra.mxu0 0
        %1915 = vmatprep.subr.bf16.mxu0 0
        %1916 = vmatpush1.bf16.msra.mxu0 %v1899
        %1917 = vmatprep.subr.bf16.mxu0 0
        %1918 = vmatpush2.bf16.msra.mxu0 0
        %1919 = vmatprep.subr.bf16.mxu0 0
        %1920 = vmatpush2.bf16.msra.mxu0 0
        %1921 = vmatprep.subr.bf16.mxu0 0
        %1922 = vmatpush2.bf16.msra.mxu0 0
        %1923 = vmatprep.subr.bf16.mxu0 0
        %1924 = vmatpush2.bf16.msra.mxu0 0
        %1925 = vmatprep.subr.bf16.mxu0 0
        %1926 = vmatpush2.bf16.msra.mxu0 0
        %1927 = vmatprep.subr.bf16.mxu0 0
        %1928 = vmatpush2.bf16.msra.mxu0 0
        %1929 = vmatprep.subr.bf16.mxu0 0
        %1930 = vmatpush2.bf16.msra.mxu0 0
        %1931 = vmatprep.subr.bf16.mxu0 0
        %1932 = vmatpush2.bf16.msra.mxu0 0
        %1933 = vmatprep.mubr.bf16.mxu0 0
        %1934 = vmatmul.mubr.bf16.gmra.mxu0 %v1851
        %v1935 = vpop.f32.mrf.mxu0
        %v1936 = vadd.f32 %v1644, %v1935
        %v1937 = vpop.f32.mrf.mxu0
        %v1938 = vpop.f32.mrf.mxu0
        %v1939 = vadd.f32 %v1647, %v1938
        %v1940 = vpop.f32.mrf.mxu0
        %1941 = vmatprep.mubr.bf16.mxu0 0
        %1942 = vmatmul.mubr.bf16.gmra.mxu0 %v1854
        %v1943 = vpop.f32.mrf.mxu0
        %v1944 = vadd.f32 %v1652, %v1943
        %v1945 = vpop.f32.mrf.mxu0
        %v1946 = vpop.f32.mrf.mxu0
        %v1947 = vadd.f32 %v1655, %v1946
        %v1948 = vpop.f32.mrf.mxu0
        %1949 = vmatprep.mubr.bf16.mxu0 0
        %1950 = vmatmul.mubr.bf16.gmra.mxu0 %v1857
        %v1951 = vpop.f32.mrf.mxu0
        %v1952 = vadd.f32 %v1660, %v1951
        %v1953 = vpop.f32.mrf.mxu0
        %v1954 = vpop.f32.mrf.mxu0
        %v1955 = vadd.f32 %v1663, %v1954
        %v1956 = vpop.f32.mrf.mxu0
        %1957 = vmatprep.mubr.bf16.mxu0 0
        %1958 = vmatmul.mubr.bf16.gmra.mxu0 %v1860
        %v1959 = vpop.f32.mrf.mxu0
        %v1960 = vadd.f32 %v1668, %v1959
        %v1961 = vpop.f32.mrf.mxu0
        %v1962 = vpop.f32.mrf.mxu0
        %v1963 = vadd.f32 %v1671, %v1962
        %v1964 = vpop.f32.mrf.mxu0
        %1965 = vmatprep.mubr.bf16.mxu0 0
        %1966 = vmatmul.mubr.bf16.gmra.mxu0 %v1863
        %v1967 = vpop.f32.mrf.mxu0
        %v1968 = vadd.f32 %v1676, %v1967
        %v1969 = vpop.f32.mrf.mxu0
        %v1970 = vpop.f32.mrf.mxu0
        %v1971 = vadd.f32 %v1679, %v1970
        %v1972 = vpop.f32.mrf.mxu0
        %1973 = vmatprep.mubr.bf16.mxu0 0
        %1974 = vmatmul.mubr.bf16.gmra.mxu0 %v1866
        %v1975 = vpop.f32.mrf.mxu0
        %v1976 = vadd.f32 %v1684, %v1975
        %v1977 = vpop.f32.mrf.mxu0
        %v1978 = vpop.f32.mrf.mxu0
        %v1979 = vadd.f32 %v1687, %v1978
        %v1980 = vpop.f32.mrf.mxu0
        %1981 = vmatprep.mubr.bf16.mxu0 0
        %1982 = vmatmul.mubr.bf16.gmra.mxu0 %v1869
        %v1983 = vpop.f32.mrf.mxu0
        %v1984 = vadd.f32 %v1692, %v1983
        %v1985 = vpop.f32.mrf.mxu0
        %v1986 = vpop.f32.mrf.mxu0
        %v1987 = vadd.f32 %v1695, %v1986
        %v1988 = vpop.f32.mrf.mxu0
        %1989 = vmatprep.mubr.bf16.mxu0 0
        %1990 = vmatmul.mubr.bf16.gmra.mxu0 %v1872
        %v1991 = vpop.f32.mrf.mxu0
        %v1992 = vadd.f32 %v1700, %v1991
        %v1993 = vpop.f32.mrf.mxu0
        %v1994 = vpop.f32.mrf.mxu0
        %v1995 = vadd.f32 %v1703, %v1994
        %v1996 = vpop.f32.mrf.mxu0
        %1997 = vmatprep.mubr.bf16.mxu0 0
        %1998 = vmatmul.mubr.bf16.gmra.mxu0 %v1875
        %v1999 = vpop.f32.mrf.mxu0
        %v2000 = vadd.f32 %v1708, %v1999
        %v2001 = vpop.f32.mrf.mxu0
        %v2002 = vpop.f32.mrf.mxu0
        %v2003 = vadd.f32 %v1711, %v2002
        %v2004 = vpop.f32.mrf.mxu0
        %2005 = vmatprep.mubr.bf16.mxu0 0
        %2006 = vmatmul.mubr.bf16.gmra.mxu0 %v1878
        %v2007 = vpop.f32.mrf.mxu0
        %v2008 = vadd.f32 %v1716, %v2007
        %v2009 = vpop.f32.mrf.mxu0
        %v2010 = vpop.f32.mrf.mxu0
        %v2011 = vadd.f32 %v1719, %v2010
        %v2012 = vpop.f32.mrf.mxu0
        %2013 = vmatprep.mubr.bf16.mxu0 0
        %2014 = vmatmul.mubr.bf16.gmra.mxu0 %v1881
        %v2015 = vpop.f32.mrf.mxu0
        %v2016 = vadd.f32 %v1724, %v2015
        %v2017 = vpop.f32.mrf.mxu0
        %v2018 = vpop.f32.mrf.mxu0
        %v2019 = vadd.f32 %v1727, %v2018
        %v2020 = vpop.f32.mrf.mxu0
        %2021 = vmatprep.mubr.bf16.mxu0 0
        %2022 = vmatmul.mubr.bf16.gmra.mxu0 %v1884
        %v2023 = vpop.f32.mrf.mxu0
        %v2024 = vadd.f32 %v1732, %v2023
        %v2025 = vpop.f32.mrf.mxu0
        %v2026 = vpop.f32.mrf.mxu0
        %v2027 = vadd.f32 %v1735, %v2026
        %v2028 = vpop.f32.mrf.mxu0
        %2029 = vmatprep.mubr.bf16.mxu0 0
        %2030 = vmatmul.mubr.bf16.gmra.mxu0 %v1887
        %v2031 = vpop.f32.mrf.mxu0
        %v2032 = vadd.f32 %v1740, %v2031
        %v2033 = vpop.f32.mrf.mxu0
        %v2034 = vpop.f32.mrf.mxu0
        %v2035 = vadd.f32 %v1743, %v2034
        %v2036 = vpop.f32.mrf.mxu0
        %2037 = vmatprep.mubr.bf16.mxu0 0
        %2038 = vmatmul.mubr.bf16.gmra.mxu0 %v1890
        %v2039 = vpop.f32.mrf.mxu0
        %v2040 = vadd.f32 %v1748, %v2039
        %v2041 = vpop.f32.mrf.mxu0
        %v2042 = vpop.f32.mrf.mxu0
        %v2043 = vadd.f32 %v1751, %v2042
        %v2044 = vpop.f32.mrf.mxu0
        %2045 = vmatprep.mubr.bf16.mxu0 0
        %2046 = vmatmul.mubr.bf16.gmra.mxu0 %v1893
        %v2047 = vpop.f32.mrf.mxu0
        %v2048 = vadd.f32 %v1756, %v2047
        %v2049 = vpop.f32.mrf.mxu0
        %v2050 = vpop.f32.mrf.mxu0
        %v2051 = vadd.f32 %v1759, %v2050
        %v2052 = vpop.f32.mrf.mxu0
        %2053 = vmatprep.mubr.bf16.mxu0 0
        %2054 = vmatmul.mubr.bf16.gmra.mxu0 %v1896
        %v2055 = vpop.f32.mrf.mxu0
        %v2056 = vadd.f32 %v1764, %v2055
        %v2057 = vpop.f32.mrf.mxu0
        %v2058 = vpop.f32.mrf.mxu0
        %v2059 = vadd.f32 %v1767, %v2058
        %v2060 = vpop.f32.mrf.mxu0
        %2061 = vdwg.mxu0
        %vm2078 = vcmask 1042432
        %vm2079 = vcmask 1046532
        %vm2080 = vmor %vm2078, %vm2079
        %v2081 = vrot.slane %v1061, 5
        %v2082 = vrot.slane %v2081, 4
        %v2083 = vrot.slane %v1062, 5
        %v2084 = vsel %vm2080, %v2082, %v2083
        %v2085 = vrot.slane %v2083, 4
        %v2086 = vrot.slane %v1063, 5
        %v2087 = vsel %vm2080, %v2085, %v2086
        %v2088 = vrot.slane %v1064, 5
        %v2089 = vrot.slane %v2088, 4
        %v2090 = vrot.slane %v1065, 5
        %v2091 = vsel %vm2080, %v2089, %v2090
        %v2092 = vrot.slane %v2090, 4
        %v2093 = vrot.slane %v1066, 5
        %v2094 = vsel %vm2080, %v2092, %v2093
        %v2095 = vrot.slane %v1067, 5
        %v2096 = vrot.slane %v2095, 4
        %v2097 = vrot.slane %v1068, 5
        %v2098 = vsel %vm2080, %v2096, %v2097
        %v2099 = vrot.slane %v2097, 4
        %v2100 = vrot.slane %v1069, 5
        %v2101 = vsel %vm2080, %v2099, %v2100
        %v2102 = vrot.slane %v1070, 5
        %v2103 = vrot.slane %v2102, 4
        %v2104 = vrot.slane %v1071, 5
        %v2105 = vsel %vm2080, %v2103, %v2104
        %v2106 = vrot.slane %v2104, 4
        %v2107 = vrot.slane %v1072, 5
        %v2108 = vsel %vm2080, %v2106, %v2107
        %v2109 = vrot.slane %v1073, 5
        %v2110 = vrot.slane %v2109, 4
        %v2111 = vrot.slane %v1074, 5
        %v2112 = vsel %vm2080, %v2110, %v2111
        %v2113 = vrot.slane %v2111, 4
        %v2114 = vrot.slane %v1075, 5
        %v2115 = vsel %vm2080, %v2113, %v2114
        %v2116 = vrot.slane %v1076, 5
        %v2117 = vrot.slane %v2116, 4
        %v2118 = vrot.slane %v1077, 5
        %v2119 = vsel %vm2080, %v2117, %v2118
        %v2120 = vrot.slane %v2118, 4
        %v2121 = vrot.slane %v1078, 5
        %v2122 = vsel %vm2080, %v2120, %v2121
        %v2123 = vrot.slane %v1079, 5
        %v2124 = vrot.slane %v2123, 4
        %v2125 = vrot.slane %v1080, 5
        %v2126 = vsel %vm2080, %v2124, %v2125
        %v2127 = vrot.slane %v2125, 4
        %v2128 = vrot.slane %v1081, 5
        %v2129 = vsel %vm2080, %v2127, %v2128
        %v2130 = vrot.slane %v1082, 5
        %v2131 = vrot.slane %v2130, 4
        %v2132 = vrot.slane %v1083, 5
        %v2133 = vsel %vm2080, %v2131, %v2132
        %v2134 = vrot.slane %v2132, 4
        %v2135 = vrot.slane %v1084, 5
        %v2136 = vsel %vm2080, %v2134, %v2135
        %v2137 = vrot.slane %v1085, 5
        %v2138 = vrot.slane %v2137, 4
        %v2139 = vrot.slane %v1086, 5
        %v2140 = vsel %vm2080, %v2138, %v2139
        %v2141 = vrot.slane %v2139, 4
        %v2142 = vrot.slane %v1087, 5
        %v2143 = vsel %vm2080, %v2141, %v2142
        %v2144 = vrot.slane %v1088, 5
        %v2145 = vrot.slane %v2144, 4
        %v2146 = vrot.slane %v1089, 5
        %v2147 = vsel %vm2080, %v2145, %v2146
        %v2148 = vrot.slane %v2146, 4
        %v2149 = vrot.slane %v1090, 5
        %v2150 = vsel %vm2080, %v2148, %v2149
        %v2151 = vrot.slane %v1091, 5
        %v2152 = vrot.slane %v2151, 4
        %v2153 = vrot.slane %v1092, 5
        %v2154 = vsel %vm2080, %v2152, %v2153
        %v2155 = vrot.slane %v2153, 4
        %v2156 = vrot.slane %v1093, 5
        %v2157 = vsel %vm2080, %v2155, %v2156
        %v2158 = vrot.slane %v1094, 5
        %v2159 = vrot.slane %v2158, 4
        %v2160 = vrot.slane %v1095, 5
        %v2161 = vsel %vm2080, %v2159, %v2160
        %v2162 = vrot.slane %v2160, 4
        %v2163 = vrot.slane %v1096, 5
        %v2164 = vsel %vm2080, %v2162, %v2163
        %v2165 = vrot.slane %v1097, 5
        %v2166 = vrot.slane %v2165, 4
        %v2167 = vrot.slane %v1098, 5
        %v2168 = vsel %vm2080, %v2166, %v2167
        %v2169 = vrot.slane %v2167, 4
        %v2170 = vrot.slane %v1099, 5
        %v2171 = vsel %vm2080, %v2169, %v2170
        %v2172 = vrot.slane %v1100, 5
        %v2173 = vrot.slane %v2172, 4
        %v2174 = vrot.slane %v1101, 5
        %v2175 = vsel %vm2080, %v2173, %v2174
        %v2176 = vrot.slane %v2174, 4
        %v2177 = vrot.slane %v1102, 5
        %v2178 = vsel %vm2080, %v2176, %v2177
        %v2179 = vrot.slane %v1103, 5
        %v2180 = vrot.slane %v2179, 4
        %v2181 = vrot.slane %v1104, 5
        %v2182 = vsel %vm2080, %v2180, %v2181
        %v2183 = vrot.slane %v2181, 4
        %v2184 = vrot.slane %v1105, 5
        %v2185 = vsel %vm2080, %v2183, %v2184
        %v2186 = vrot.slane %v1106, 5
        %v2187 = vrot.slane %v2186, 4
        %v2188 = vrot.slane %v1107, 5
        %v2189 = vsel %vm2080, %v2187, %v2188
        %v2190 = vrot.slane %v2188, 4
        %v2191 = vrot.slane %v1108, 5
        %v2192 = vsel %vm2080, %v2190, %v2191
        %v2193 = vld [vmem:[%s1 + $0x4] sm:$0x3]
        %v2194 = vunpack.c.l.b16 %v2084
        %v2195 = vunpack.c.l.b16 %v2087
        %v2196 = vunpack.c.l.b16 %v2091
        %v2197 = vunpack.c.l.b16 %v2094
        %v2198 = vunpack.c.l.b16 %v2098
        %v2199 = vunpack.c.l.b16 %v2101
        %v2200 = vunpack.c.l.b16 %v2105
        %v2201 = vunpack.c.l.b16 %v2108
        %v2202 = vunpack.c.l.b16 %v2112
        %v2203 = vunpack.c.l.b16 %v2115
        %v2204 = vunpack.c.l.b16 %v2119
        %v2205 = vunpack.c.l.b16 %v2122
        %v2206 = vunpack.c.l.b16 %v2126
        %v2207 = vunpack.c.l.b16 %v2129
        %v2208 = vunpack.c.l.b16 %v2133
        %v2209 = vunpack.c.l.b16 %v2136
        %v2210 = vunpack.c.l.b16 %v2140
        %v2211 = vunpack.c.l.b16 %v2143
        %v2212 = vunpack.c.l.b16 %v2147
        %v2213 = vunpack.c.l.b16 %v2150
        %v2214 = vunpack.c.l.b16 %v2154
        %v2215 = vunpack.c.l.b16 %v2157
        %v2216 = vunpack.c.l.b16 %v2161
        %v2217 = vunpack.c.l.b16 %v2164
        %v2218 = vunpack.c.l.b16 %v2168
        %v2219 = vunpack.c.l.b16 %v2171
        %v2220 = vunpack.c.l.b16 %v2175
        %v2221 = vunpack.c.l.b16 %v2178
        %v2222 = vunpack.c.l.b16 %v2182
        %v2223 = vunpack.c.l.b16 %v2185
        %v2224 = vunpack.c.l.b16 %v2189
        %v2225 = vunpack.c.l.b16 %v2192
        %v2226 = vpack.c.b16 %v2195, %v2194
        %v2227 = vpack.c.b16 %v2197, %v2196
        %v2228 = vpack.c.b16 %v2199, %v2198
        %v2229 = vpack.c.b16 %v2201, %v2200
        %v2230 = vpack.c.b16 %v2203, %v2202
        %v2231 = vpack.c.b16 %v2205, %v2204
        %v2232 = vpack.c.b16 %v2207, %v2206
        %v2233 = vpack.c.b16 %v2209, %v2208
        %v2234 = vpack.c.b16 %v2211, %v2210
        %v2235 = vpack.c.b16 %v2213, %v2212
        %v2236 = vpack.c.b16 %v2215, %v2214
        %v2237 = vpack.c.b16 %v2217, %v2216
        %v2238 = vpack.c.b16 %v2219, %v2218
        %v2239 = vpack.c.b16 %v2221, %v2220
        %v2240 = vpack.c.b16 %v2223, %v2222
        %v2241 = vpack.c.b16 %v2225, %v2224
        %v2243 = vsel %vm1556, %v2226, 0
        %v2246 = vsel %vm1556, %v2227, 0
        %v2249 = vsel %vm1556, %v2228, 0
        %v2252 = vsel %vm1556, %v2229, 0
        %v2255 = vsel %vm1556, %v2230, 0
        %v2258 = vsel %vm1556, %v2231, 0
        %v2261 = vsel %vm1556, %v2232, 0
        %v2264 = vsel %vm1556, %v2233, 0
        %v2267 = vsel %vm1556, %v2234, 0
        %v2270 = vsel %vm1556, %v2235, 0
        %v2273 = vsel %vm1556, %v2236, 0
        %v2276 = vsel %vm1556, %v2237, 0
        %v2279 = vsel %vm1556, %v2238, 0
        %v2282 = vsel %vm1556, %v2239, 0
        %v2285 = vsel %vm1556, %v2240, 0
        %v2288 = vsel %vm1556, %v2241, 0
        %v2291 = vsel %vm1605, %v2193, 0
        %2293 = vmatprep.subr.bf16.mxu0 0
        %2294 = vmatpush1.bf16.msra.mxu0 0
        %2295 = vmatprep.subr.bf16.mxu0 0
        %2296 = vmatpush1.bf16.msra.mxu0 0
        %2297 = vmatprep.subr.bf16.mxu0 0
        %2298 = vmatpush1.bf16.msra.mxu0 0
        %2299 = vmatprep.subr.bf16.mxu0 0
        %2300 = vmatpush1.bf16.msra.mxu0 0
        %2301 = vmatprep.subr.bf16.mxu0 0
        %2302 = vmatpush1.bf16.msra.mxu0 0
        %2303 = vmatprep.subr.bf16.mxu0 0
        %2304 = vmatpush1.bf16.msra.mxu0 0
        %2305 = vmatprep.subr.bf16.mxu0 0
        %2306 = vmatpush1.bf16.msra.mxu0 0
        %2307 = vmatprep.subr.bf16.mxu0 0
        %2308 = vmatpush1.bf16.msra.mxu0 %v2291
        %2309 = vmatprep.subr.bf16.mxu0 0
        %2310 = vmatpush2.bf16.msra.mxu0 0
        %2311 = vmatprep.subr.bf16.mxu0 0
        %2312 = vmatpush2.bf16.msra.mxu0 0
        %2313 = vmatprep.subr.bf16.mxu0 0
        %2314 = vmatpush2.bf16.msra.mxu0 0
        %2315 = vmatprep.subr.bf16.mxu0 0
        %2316 = vmatpush2.bf16.msra.mxu0 0
        %2317 = vmatprep.subr.bf16.mxu0 0
        %2318 = vmatpush2.bf16.msra.mxu0 0
        %2319 = vmatprep.subr.bf16.mxu0 0
        %2320 = vmatpush2.bf16.msra.mxu0 0
        %2321 = vmatprep.subr.bf16.mxu0 0
        %2322 = vmatpush2.bf16.msra.mxu0 0
        %2323 = vmatprep.subr.bf16.mxu0 0
        %2324 = vmatpush2.bf16.msra.mxu0 0
        %2325 = vmatprep.mubr.bf16.mxu0 0
        %2326 = vmatmul.mubr.bf16.gmra.mxu0 %v2243
        %v2327 = vpop.f32.mrf.mxu0
        %v2328 = vadd.f32 0.0, %v2327
        %v2329 = vpop.f32.mrf.mxu0
        %v2330 = vpop.f32.mrf.mxu0
        %v2331 = vadd.f32 0.0, %v2330
        %v2332 = vpop.f32.mrf.mxu0
        %2333 = vmatprep.mubr.bf16.mxu0 0
        %2334 = vmatmul.mubr.bf16.gmra.mxu0 %v2246
        %v2335 = vpop.f32.mrf.mxu0
        %v2336 = vadd.f32 0.0, %v2335
        %v2337 = vpop.f32.mrf.mxu0
        %v2338 = vpop.f32.mrf.mxu0
        %v2339 = vadd.f32 0.0, %v2338
        %v2340 = vpop.f32.mrf.mxu0
        %2341 = vmatprep.mubr.bf16.mxu0 0
        %2342 = vmatmul.mubr.bf16.gmra.mxu0 %v2249
        %v2343 = vpop.f32.mrf.mxu0
        %v2344 = vadd.f32 0.0, %v2343
        %v2345 = vpop.f32.mrf.mxu0
        %v2346 = vpop.f32.mrf.mxu0
        %v2347 = vadd.f32 0.0, %v2346
        %v2348 = vpop.f32.mrf.mxu0
        %2349 = vmatprep.mubr.bf16.mxu0 0
        %2350 = vmatmul.mubr.bf16.gmra.mxu0 %v2252
        %v2351 = vpop.f32.mrf.mxu0
        %v2352 = vadd.f32 0.0, %v2351
        %v2353 = vpop.f32.mrf.mxu0
        %v2354 = vpop.f32.mrf.mxu0
        %v2355 = vadd.f32 0.0, %v2354
        %v2356 = vpop.f32.mrf.mxu0
        %2357 = vmatprep.mubr.bf16.mxu0 0
        %2358 = vmatmul.mubr.bf16.gmra.mxu0 %v2255
        %v2359 = vpop.f32.mrf.mxu0
        %v2360 = vadd.f32 0.0, %v2359
        %v2361 = vpop.f32.mrf.mxu0
        %v2362 = vpop.f32.mrf.mxu0
        %v2363 = vadd.f32 0.0, %v2362
        %v2364 = vpop.f32.mrf.mxu0
        %2365 = vmatprep.mubr.bf16.mxu0 0
        %2366 = vmatmul.mubr.bf16.gmra.mxu0 %v2258
        %v2367 = vpop.f32.mrf.mxu0
        %v2368 = vadd.f32 0.0, %v2367
        %v2369 = vpop.f32.mrf.mxu0
        %v2370 = vpop.f32.mrf.mxu0
        %v2371 = vadd.f32 0.0, %v2370
        %v2372 = vpop.f32.mrf.mxu0
        %2373 = vmatprep.mubr.bf16.mxu0 0
        %2374 = vmatmul.mubr.bf16.gmra.mxu0 %v2261
        %v2375 = vpop.f32.mrf.mxu0
        %v2376 = vadd.f32 0.0, %v2375
        %v2377 = vpop.f32.mrf.mxu0
        %v2378 = vpop.f32.mrf.mxu0
        %v2379 = vadd.f32 0.0, %v2378
        %v2380 = vpop.f32.mrf.mxu0
        %2381 = vmatprep.mubr.bf16.mxu0 0
        %2382 = vmatmul.mubr.bf16.gmra.mxu0 %v2264
        %v2383 = vpop.f32.mrf.mxu0
        %v2384 = vadd.f32 0.0, %v2383
        %v2385 = vpop.f32.mrf.mxu0
        %v2386 = vpop.f32.mrf.mxu0
        %v2387 = vadd.f32 0.0, %v2386
        %v2388 = vpop.f32.mrf.mxu0
        %2389 = vmatprep.mubr.bf16.mxu0 0
        %2390 = vmatmul.mubr.bf16.gmra.mxu0 %v2267
        %v2391 = vpop.f32.mrf.mxu0
        %v2392 = vadd.f32 0.0, %v2391
        %v2393 = vpop.f32.mrf.mxu0
        %v2394 = vpop.f32.mrf.mxu0
        %v2395 = vadd.f32 0.0, %v2394
        %v2396 = vpop.f32.mrf.mxu0
        %2397 = vmatprep.mubr.bf16.mxu0 0
        %2398 = vmatmul.mubr.bf16.gmra.mxu0 %v2270
        %v2399 = vpop.f32.mrf.mxu0
        %v2400 = vadd.f32 0.0, %v2399
        %v2401 = vpop.f32.mrf.mxu0
        %v2402 = vpop.f32.mrf.mxu0
        %v2403 = vadd.f32 0.0, %v2402
        %v2404 = vpop.f32.mrf.mxu0
        %2405 = vmatprep.mubr.bf16.mxu0 0
        %2406 = vmatmul.mubr.bf16.gmra.mxu0 %v2273
        %v2407 = vpop.f32.mrf.mxu0
        %v2408 = vadd.f32 0.0, %v2407
        %v2409 = vpop.f32.mrf.mxu0
        %v2410 = vpop.f32.mrf.mxu0
        %v2411 = vadd.f32 0.0, %v2410
        %v2412 = vpop.f32.mrf.mxu0
        %2413 = vmatprep.mubr.bf16.mxu0 0
        %2414 = vmatmul.mubr.bf16.gmra.mxu0 %v2276
        %v2415 = vpop.f32.mrf.mxu0
        %v2416 = vadd.f32 0.0, %v2415
        %v2417 = vpop.f32.mrf.mxu0
        %v2418 = vpop.f32.mrf.mxu0
        %v2419 = vadd.f32 0.0, %v2418
        %v2420 = vpop.f32.mrf.mxu0
        %2421 = vmatprep.mubr.bf16.mxu0 0
        %2422 = vmatmul.mubr.bf16.gmra.mxu0 %v2279
        %v2423 = vpop.f32.mrf.mxu0
        %v2424 = vadd.f32 0.0, %v2423
        %v2425 = vpop.f32.mrf.mxu0
        %v2426 = vpop.f32.mrf.mxu0
        %v2427 = vadd.f32 0.0, %v2426
        %v2428 = vpop.f32.mrf.mxu0
        %2429 = vmatprep.mubr.bf16.mxu0 0
        %2430 = vmatmul.mubr.bf16.gmra.mxu0 %v2282
        %v2431 = vpop.f32.mrf.mxu0
        %v2432 = vadd.f32 0.0, %v2431
        %v2433 = vpop.f32.mrf.mxu0
        %v2434 = vpop.f32.mrf.mxu0
        %v2435 = vadd.f32 0.0, %v2434
        %v2436 = vpop.f32.mrf.mxu0
        %2437 = vmatprep.mubr.bf16.mxu0 0
        %2438 = vmatmul.mubr.bf16.gmra.mxu0 %v2285
        %v2439 = vpop.f32.mrf.mxu0
        %v2440 = vadd.f32 0.0, %v2439
        %v2441 = vpop.f32.mrf.mxu0
        %v2442 = vpop.f32.mrf.mxu0
        %v2443 = vadd.f32 0.0, %v2442
        %v2444 = vpop.f32.mrf.mxu0
        %2445 = vmatprep.mubr.bf16.mxu0 0
        %2446 = vmatmul.mubr.bf16.gmra.mxu0 %v2288
        %v2447 = vpop.f32.mrf.mxu0
        %v2448 = vadd.f32 0.0, %v2447
        %v2449 = vpop.f32.mrf.mxu0
        %v2450 = vpop.f32.mrf.mxu0
        %v2451 = vadd.f32 0.0, %v2450
        %v2452 = vpop.f32.mrf.mxu0
        %2453 = vdwg.mxu0
        %v2454 = vadd.f32 %v1936, %v2328
        %v2455 = vadd.f32 %v1939, %v2331
        %v2456 = vadd.f32 %v1944, %v2336
        %v2457 = vadd.f32 %v1947, %v2339
        %v2458 = vadd.f32 %v1952, %v2344
        %v2459 = vadd.f32 %v1955, %v2347
        %v2460 = vadd.f32 %v1960, %v2352
        %v2461 = vadd.f32 %v1963, %v2355
        %v2462 = vadd.f32 %v1968, %v2360
        %v2463 = vadd.f32 %v1971, %v2363
        %v2464 = vadd.f32 %v1976, %v2368
        %v2465 = vadd.f32 %v1979, %v2371
        %v2466 = vadd.f32 %v1984, %v2376
        %v2467 = vadd.f32 %v1987, %v2379
        %v2468 = vadd.f32 %v1992, %v2384
        %v2469 = vadd.f32 %v1995, %v2387
        %v2470 = vadd.f32 %v2000, %v2392
        %v2471 = vadd.f32 %v2003, %v2395
        %v2472 = vadd.f32 %v2008, %v2400
        %v2473 = vadd.f32 %v2011, %v2403
        %v2474 = vadd.f32 %v2016, %v2408
        %v2475 = vadd.f32 %v2019, %v2411
        %v2476 = vadd.f32 %v2024, %v2416
        %v2477 = vadd.f32 %v2027, %v2419
        %v2478 = vadd.f32 %v2032, %v2424
        %v2479 = vadd.f32 %v2035, %v2427
        %v2480 = vadd.f32 %v2040, %v2432
        %v2481 = vadd.f32 %v2043, %v2435
        %v2482 = vadd.f32 %v2048, %v2440
        %v2483 = vadd.f32 %v2051, %v2443
        %v2484 = vadd.f32 %v2056, %v2448
        %v2485 = vadd.f32 %v2059, %v2451
        %v2486 = vld [vmem:[%s1 + $0x4] sm:$0xc]
        %v2489 = vunpack.c.l.b16 %v1109
        %v2490 = vunpack.c.l.b16 %v1110
        %v2491 = vpack.c.b16 %v2490, %v2489
        %v2493 = vunpack.c.l.b16 %v2486
        %v2494 = vpack.c.b16 %v2493, %v2493
        %v2495 = vrot.slane %v2494, 2
        %v2497 = vsel %vm1556, %v2491, 0
        %v2500 = vsel %vm1605, %v2495, 0
        %2502 = vmatprep.subr.bf16.mxu0 0
        %2503 = vmatpush1.bf16.msra.mxu0 0
        %2504 = vmatprep.subr.bf16.mxu0 0
        %2505 = vmatpush1.bf16.msra.mxu0 0
        %2506 = vmatprep.subr.bf16.mxu0 0
        %2507 = vmatpush1.bf16.msra.mxu0 0
        %2508 = vmatprep.subr.bf16.mxu0 0
        %2509 = vmatpush1.bf16.msra.mxu0 0
        %2510 = vmatprep.subr.bf16.mxu0 0
        %2511 = vmatpush1.bf16.msra.mxu0 0
        %2512 = vmatprep.subr.bf16.mxu0 0
        %2513 = vmatpush1.bf16.msra.mxu0 0
        %2514 = vmatprep.subr.bf16.mxu0 0
        %2515 = vmatpush1.bf16.msra.mxu0 0
        %2516 = vmatprep.subr.bf16.mxu0 0
        %2517 = vmatpush1.bf16.msra.mxu0 %v2500
        %2518 = vmatprep.subr.bf16.mxu0 0
        %2519 = vmatpush2.bf16.msra.mxu0 0
        %2520 = vmatprep.subr.bf16.mxu0 0
        %2521 = vmatpush2.bf16.msra.mxu0 0
        %2522 = vmatprep.subr.bf16.mxu0 0
        %2523 = vmatpush2.bf16.msra.mxu0 0
        %2524 = vmatprep.subr.bf16.mxu0 0
        %2525 = vmatpush2.bf16.msra.mxu0 0
        %2526 = vmatprep.subr.bf16.mxu0 0
        %2527 = vmatpush2.bf16.msra.mxu0 0
        %2528 = vmatprep.subr.bf16.mxu0 0
        %2529 = vmatpush2.bf16.msra.mxu0 0
        %2530 = vmatprep.subr.bf16.mxu0 0
        %2531 = vmatpush2.bf16.msra.mxu0 0
        %2532 = vmatprep.subr.bf16.mxu0 0
        %2533 = vmatpush2.bf16.msra.mxu0 0
        %2534 = vmatprep.mubr.bf16.mxu0 0
        %2535 = vmatmul.mubr.bf16.gmra.mxu0 %v1854
        %v2536 = vpop.f32.mrf.mxu0
        %v2537 = vadd.f32 0.0, %v2536
        %v2538 = vpop.f32.mrf.mxu0
        %v2539 = vpop.f32.mrf.mxu0
        %v2540 = vadd.f32 0.0, %v2539
        %v2541 = vpop.f32.mrf.mxu0
        %2542 = vmatprep.mubr.bf16.mxu0 0
        %2543 = vmatmul.mubr.bf16.gmra.mxu0 %v1857
        %v2544 = vpop.f32.mrf.mxu0
        %v2545 = vadd.f32 0.0, %v2544
        %v2546 = vpop.f32.mrf.mxu0
        %v2547 = vpop.f32.mrf.mxu0
        %v2548 = vadd.f32 0.0, %v2547
        %v2549 = vpop.f32.mrf.mxu0
        %2550 = vmatprep.mubr.bf16.mxu0 0
        %2551 = vmatmul.mubr.bf16.gmra.mxu0 %v1860
        %v2552 = vpop.f32.mrf.mxu0
        %v2553 = vadd.f32 0.0, %v2552
        %v2554 = vpop.f32.mrf.mxu0
        %v2555 = vpop.f32.mrf.mxu0
        %v2556 = vadd.f32 0.0, %v2555
        %v2557 = vpop.f32.mrf.mxu0
        %2558 = vmatprep.mubr.bf16.mxu0 0
        %2559 = vmatmul.mubr.bf16.gmra.mxu0 %v1863
        %v2560 = vpop.f32.mrf.mxu0
        %v2561 = vadd.f32 0.0, %v2560
        %v2562 = vpop.f32.mrf.mxu0
        %v2563 = vpop.f32.mrf.mxu0
        %v2564 = vadd.f32 0.0, %v2563
        %v2565 = vpop.f32.mrf.mxu0
        %2566 = vmatprep.mubr.bf16.mxu0 0
        %2567 = vmatmul.mubr.bf16.gmra.mxu0 %v1866
        %v2568 = vpop.f32.mrf.mxu0
        %v2569 = vadd.f32 0.0, %v2568
        %v2570 = vpop.f32.mrf.mxu0
        %v2571 = vpop.f32.mrf.mxu0
        %v2572 = vadd.f32 0.0, %v2571
        %v2573 = vpop.f32.mrf.mxu0
        %2574 = vmatprep.mubr.bf16.mxu0 0
        %2575 = vmatmul.mubr.bf16.gmra.mxu0 %v1869
        %v2576 = vpop.f32.mrf.mxu0
        %v2577 = vadd.f32 0.0, %v2576
        %v2578 = vpop.f32.mrf.mxu0
        %v2579 = vpop.f32.mrf.mxu0
        %v2580 = vadd.f32 0.0, %v2579
        %v2581 = vpop.f32.mrf.mxu0
        %2582 = vmatprep.mubr.bf16.mxu0 0
        %2583 = vmatmul.mubr.bf16.gmra.mxu0 %v1872
        %v2584 = vpop.f32.mrf.mxu0
        %v2585 = vadd.f32 0.0, %v2584
        %v2586 = vpop.f32.mrf.mxu0
        %v2587 = vpop.f32.mrf.mxu0
        %v2588 = vadd.f32 0.0, %v2587
        %v2589 = vpop.f32.mrf.mxu0
        %2590 = vmatprep.mubr.bf16.mxu0 0
        %2591 = vmatmul.mubr.bf16.gmra.mxu0 %v1875
        %v2592 = vpop.f32.mrf.mxu0
        %v2593 = vadd.f32 0.0, %v2592
        %v2594 = vpop.f32.mrf.mxu0
        %v2595 = vpop.f32.mrf.mxu0
        %v2596 = vadd.f32 0.0, %v2595
        %v2597 = vpop.f32.mrf.mxu0
        %2598 = vmatprep.mubr.bf16.mxu0 0
        %2599 = vmatmul.mubr.bf16.gmra.mxu0 %v1878
        %v2600 = vpop.f32.mrf.mxu0
        %v2601 = vadd.f32 0.0, %v2600
        %v2602 = vpop.f32.mrf.mxu0
        %v2603 = vpop.f32.mrf.mxu0
        %v2604 = vadd.f32 0.0, %v2603
        %v2605 = vpop.f32.mrf.mxu0
        %2606 = vmatprep.mubr.bf16.mxu0 0
        %2607 = vmatmul.mubr.bf16.gmra.mxu0 %v1881
        %v2608 = vpop.f32.mrf.mxu0
        %v2609 = vadd.f32 0.0, %v2608
        %v2610 = vpop.f32.mrf.mxu0
        %v2611 = vpop.f32.mrf.mxu0
        %v2612 = vadd.f32 0.0, %v2611
        %v2613 = vpop.f32.mrf.mxu0
        %2614 = vmatprep.mubr.bf16.mxu0 0
        %2615 = vmatmul.mubr.bf16.gmra.mxu0 %v1884
        %v2616 = vpop.f32.mrf.mxu0
        %v2617 = vadd.f32 0.0, %v2616
        %v2618 = vpop.f32.mrf.mxu0
        %v2619 = vpop.f32.mrf.mxu0
        %v2620 = vadd.f32 0.0, %v2619
        %v2621 = vpop.f32.mrf.mxu0
        %2622 = vmatprep.mubr.bf16.mxu0 0
        %2623 = vmatmul.mubr.bf16.gmra.mxu0 %v1887
        %v2624 = vpop.f32.mrf.mxu0
        %v2625 = vadd.f32 0.0, %v2624
        %v2626 = vpop.f32.mrf.mxu0
        %v2627 = vpop.f32.mrf.mxu0
        %v2628 = vadd.f32 0.0, %v2627
        %v2629 = vpop.f32.mrf.mxu0
        %2630 = vmatprep.mubr.bf16.mxu0 0
        %2631 = vmatmul.mubr.bf16.gmra.mxu0 %v1890
        %v2632 = vpop.f32.mrf.mxu0
        %v2633 = vadd.f32 0.0, %v2632
        %v2634 = vpop.f32.mrf.mxu0
        %v2635 = vpop.f32.mrf.mxu0
        %v2636 = vadd.f32 0.0, %v2635
        %v2637 = vpop.f32.mrf.mxu0
        %2638 = vmatprep.mubr.bf16.mxu0 0
        %2639 = vmatmul.mubr.bf16.gmra.mxu0 %v1893
        %v2640 = vpop.f32.mrf.mxu0
        %v2641 = vadd.f32 0.0, %v2640
        %v2642 = vpop.f32.mrf.mxu0
        %v2643 = vpop.f32.mrf.mxu0
        %v2644 = vadd.f32 0.0, %v2643
        %v2645 = vpop.f32.mrf.mxu0
        %2646 = vmatprep.mubr.bf16.mxu0 0
        %2647 = vmatmul.mubr.bf16.gmra.mxu0 %v1896
        %v2648 = vpop.f32.mrf.mxu0
        %v2649 = vadd.f32 0.0, %v2648
        %v2650 = vpop.f32.mrf.mxu0
        %v2651 = vpop.f32.mrf.mxu0
        %v2652 = vadd.f32 0.0, %v2651
        %v2653 = vpop.f32.mrf.mxu0
        %2654 = vmatprep.mubr.bf16.mxu0 0
        %2655 = vmatmul.mubr.bf16.gmra.mxu0 %v2497
        %v2656 = vpop.f32.mrf.mxu0
        %v2657 = vadd.f32 0.0, %v2656
        %v2658 = vpop.f32.mrf.mxu0
        %v2659 = vpop.f32.mrf.mxu0
        %v2660 = vadd.f32 0.0, %v2659
        %v2661 = vpop.f32.mrf.mxu0
        %2662 = vdwg.mxu0
        %v2663 = vadd.f32 %v2454, %v2537
        %v2664 = vadd.f32 %v2455, %v2540
        %v2665 = vadd.f32 %v2456, %v2545
        %v2666 = vadd.f32 %v2457, %v2548
        %v2667 = vadd.f32 %v2458, %v2553
        %v2668 = vadd.f32 %v2459, %v2556
        %v2669 = vadd.f32 %v2460, %v2561
        %v2670 = vadd.f32 %v2461, %v2564
        %v2671 = vadd.f32 %v2462, %v2569
        %v2672 = vadd.f32 %v2463, %v2572
        %v2673 = vadd.f32 %v2464, %v2577
        %v2674 = vadd.f32 %v2465, %v2580
        %v2675 = vadd.f32 %v2466, %v2585
        %v2676 = vadd.f32 %v2467, %v2588
        %v2677 = vadd.f32 %v2468, %v2593
        %v2678 = vadd.f32 %v2469, %v2596
        %v2679 = vadd.f32 %v2470, %v2601
        %v2680 = vadd.f32 %v2471, %v2604
        %v2681 = vadd.f32 %v2472, %v2609
        %v2682 = vadd.f32 %v2473, %v2612
        %v2683 = vadd.f32 %v2474, %v2617
        %v2684 = vadd.f32 %v2475, %v2620
        %v2685 = vadd.f32 %v2476, %v2625
        %v2686 = vadd.f32 %v2477, %v2628
        %v2687 = vadd.f32 %v2478, %v2633
        %v2688 = vadd.f32 %v2479, %v2636
        %v2689 = vadd.f32 %v2480, %v2641
        %v2690 = vadd.f32 %v2481, %v2644
        %v2691 = vadd.f32 %v2482, %v2649
        %v2692 = vadd.f32 %v2483, %v2652
        %v2693 = vadd.f32 %v2484, %v2657
        %v2694 = vadd.f32 %v2485, %v2660
        %v2696 = vshrl.u32 %v1109, 16
        %v2698 = vrot.slane %v2696, 4
        %v2699 = vshll.u32 %v1109, 16
        %v2701 = vrot.slane %v2699, 5
        %v2702 = vor.u32 %v2698, %v2701
        %v2703 = vrot.slane %v2702, 4
        %v2705 = vshll.u32 %v1110, 16
        %v2707 = vrot.slane %v2705, 5
        %v2708 = vsel %vm1118, %v2703, %v2707
        %v2709 = vshrl.u32 %v1110, 16
        %v2711 = vrot.slane %v2709, 4
        %v2712 = vor.u32 %v2711, %v2707
        %v2713 = vrot.slane %v2712, 4
        %v2715 = vshll.u32 %v1111, 16
        %v2717 = vrot.slane %v2715, 5
        %v2718 = vsel %vm1118, %v2713, %v2717
        %v2719 = vld [vmem:[%s1 + $0x8] sm:$0x3]
        %v2720 = vunpack.c.l.b16 %v2708
        %v2721 = vunpack.c.l.b16 %v2718
        %v2722 = vpack.c.b16 %v2721, %v2720
        %v2724 = vsel %vm1556, %v2722, 0
        %v2727 = vsel %vm1605, %v2719, 0
        %2729 = vmatprep.subr.bf16.mxu0 0
        %2730 = vmatpush1.bf16.msra.mxu0 0
        %2731 = vmatprep.subr.bf16.mxu0 0
        %2732 = vmatpush1.bf16.msra.mxu0 0
        %2733 = vmatprep.subr.bf16.mxu0 0
        %2734 = vmatpush1.bf16.msra.mxu0 0
        %2735 = vmatprep.subr.bf16.mxu0 0
        %2736 = vmatpush1.bf16.msra.mxu0 0
        %2737 = vmatprep.subr.bf16.mxu0 0
        %2738 = vmatpush1.bf16.msra.mxu0 0
        %2739 = vmatprep.subr.bf16.mxu0 0
        %2740 = vmatpush1.bf16.msra.mxu0 0
        %2741 = vmatprep.subr.bf16.mxu0 0
        %2742 = vmatpush1.bf16.msra.mxu0 0
        %2743 = vmatprep.subr.bf16.mxu0 0
        %2744 = vmatpush1.bf16.msra.mxu0 %v2727
        %2745 = vmatprep.subr.bf16.mxu0 0
        %2746 = vmatpush2.bf16.msra.mxu0 0
        %2747 = vmatprep.subr.bf16.mxu0 0
        %2748 = vmatpush2.bf16.msra.mxu0 0
        %2749 = vmatprep.subr.bf16.mxu0 0
        %2750 = vmatpush2.bf16.msra.mxu0 0
        %2751 = vmatprep.subr.bf16.mxu0 0
        %2752 = vmatpush2.bf16.msra.mxu0 0
        %2753 = vmatprep.subr.bf16.mxu0 0
        %2754 = vmatpush2.bf16.msra.mxu0 0
        %2755 = vmatprep.subr.bf16.mxu0 0
        %2756 = vmatpush2.bf16.msra.mxu0 0
        %2757 = vmatprep.subr.bf16.mxu0 0
        %2758 = vmatpush2.bf16.msra.mxu0 0
        %2759 = vmatprep.subr.bf16.mxu0 0
        %2760 = vmatpush2.bf16.msra.mxu0 0
        %2761 = vmatprep.mubr.bf16.mxu0 0
        %2762 = vmatmul.mubr.bf16.gmra.mxu0 %v1561
        %v2763 = vpop.f32.mrf.mxu0
        %v2764 = vadd.f32 0.0, %v2763
        %v2765 = vpop.f32.mrf.mxu0
        %v2766 = vpop.f32.mrf.mxu0
        %v2767 = vadd.f32 0.0, %v2766
        %v2768 = vpop.f32.mrf.mxu0
        %2769 = vmatprep.mubr.bf16.mxu0 0
        %2770 = vmatmul.mubr.bf16.gmra.mxu0 %v1564
        %v2771 = vpop.f32.mrf.mxu0
        %v2772 = vadd.f32 0.0, %v2771
        %v2773 = vpop.f32.mrf.mxu0
        %v2774 = vpop.f32.mrf.mxu0
        %v2775 = vadd.f32 0.0, %v2774
        %v2776 = vpop.f32.mrf.mxu0
        %2777 = vmatprep.mubr.bf16.mxu0 0
        %2778 = vmatmul.mubr.bf16.gmra.mxu0 %v1567
        %v2779 = vpop.f32.mrf.mxu0
        %v2780 = vadd.f32 0.0, %v2779
        %v2781 = vpop.f32.mrf.mxu0
        %v2782 = vpop.f32.mrf.mxu0
        %v2783 = vadd.f32 0.0, %v2782
        %v2784 = vpop.f32.mrf.mxu0
        %2785 = vmatprep.mubr.bf16.mxu0 0
        %2786 = vmatmul.mubr.bf16.gmra.mxu0 %v1570
        %v2787 = vpop.f32.mrf.mxu0
        %v2788 = vadd.f32 0.0, %v2787
        %v2789 = vpop.f32.mrf.mxu0
        %v2790 = vpop.f32.mrf.mxu0
        %v2791 = vadd.f32 0.0, %v2790
        %v2792 = vpop.f32.mrf.mxu0
        %2793 = vmatprep.mubr.bf16.mxu0 0
        %2794 = vmatmul.mubr.bf16.gmra.mxu0 %v1573
        %v2795 = vpop.f32.mrf.mxu0
        %v2796 = vadd.f32 0.0, %v2795
        %v2797 = vpop.f32.mrf.mxu0
        %v2798 = vpop.f32.mrf.mxu0
        %v2799 = vadd.f32 0.0, %v2798
        %v2800 = vpop.f32.mrf.mxu0
        %2801 = vmatprep.mubr.bf16.mxu0 0
        %2802 = vmatmul.mubr.bf16.gmra.mxu0 %v1576
        %v2803 = vpop.f32.mrf.mxu0
        %v2804 = vadd.f32 0.0, %v2803
        %v2805 = vpop.f32.mrf.mxu0
        %v2806 = vpop.f32.mrf.mxu0
        %v2807 = vadd.f32 0.0, %v2806
        %v2808 = vpop.f32.mrf.mxu0
        %2809 = vmatprep.mubr.bf16.mxu0 0
        %2810 = vmatmul.mubr.bf16.gmra.mxu0 %v1579
        %v2811 = vpop.f32.mrf.mxu0
        %v2812 = vadd.f32 0.0, %v2811
        %v2813 = vpop.f32.mrf.mxu0
        %v2814 = vpop.f32.mrf.mxu0
        %v2815 = vadd.f32 0.0, %v2814
        %v2816 = vpop.f32.mrf.mxu0
        %2817 = vmatprep.mubr.bf16.mxu0 0
        %2818 = vmatmul.mubr.bf16.gmra.mxu0 %v1582
        %v2819 = vpop.f32.mrf.mxu0
        %v2820 = vadd.f32 0.0, %v2819
        %v2821 = vpop.f32.mrf.mxu0
        %v2822 = vpop.f32.mrf.mxu0
        %v2823 = vadd.f32 0.0, %v2822
        %v2824 = vpop.f32.mrf.mxu0
        %2825 = vmatprep.mubr.bf16.mxu0 0
        %2826 = vmatmul.mubr.bf16.gmra.mxu0 %v1585
        %v2827 = vpop.f32.mrf.mxu0
        %v2828 = vadd.f32 0.0, %v2827
        %v2829 = vpop.f32.mrf.mxu0
        %v2830 = vpop.f32.mrf.mxu0
        %v2831 = vadd.f32 0.0, %v2830
        %v2832 = vpop.f32.mrf.mxu0
        %2833 = vmatprep.mubr.bf16.mxu0 0
        %2834 = vmatmul.mubr.bf16.gmra.mxu0 %v1588
        %v2835 = vpop.f32.mrf.mxu0
        %v2836 = vadd.f32 0.0, %v2835
        %v2837 = vpop.f32.mrf.mxu0
        %v2838 = vpop.f32.mrf.mxu0
        %v2839 = vadd.f32 0.0, %v2838
        %v2840 = vpop.f32.mrf.mxu0
        %2841 = vmatprep.mubr.bf16.mxu0 0
        %2842 = vmatmul.mubr.bf16.gmra.mxu0 %v1591
        %v2843 = vpop.f32.mrf.mxu0
        %v2844 = vadd.f32 0.0, %v2843
        %v2845 = vpop.f32.mrf.mxu0
        %v2846 = vpop.f32.mrf.mxu0
        %v2847 = vadd.f32 0.0, %v2846
        %v2848 = vpop.f32.mrf.mxu0
        %2849 = vmatprep.mubr.bf16.mxu0 0
        %2850 = vmatmul.mubr.bf16.gmra.mxu0 %v1594
        %v2851 = vpop.f32.mrf.mxu0
        %v2852 = vadd.f32 0.0, %v2851
        %v2853 = vpop.f32.mrf.mxu0
        %v2854 = vpop.f32.mrf.mxu0
        %v2855 = vadd.f32 0.0, %v2854
        %v2856 = vpop.f32.mrf.mxu0
        %2857 = vmatprep.mubr.bf16.mxu0 0
        %2858 = vmatmul.mubr.bf16.gmra.mxu0 %v1597
        %v2859 = vpop.f32.mrf.mxu0
        %v2860 = vadd.f32 0.0, %v2859
        %v2861 = vpop.f32.mrf.mxu0
        %v2862 = vpop.f32.mrf.mxu0
        %v2863 = vadd.f32 0.0, %v2862
        %v2864 = vpop.f32.mrf.mxu0
        %2865 = vmatprep.mubr.bf16.mxu0 0
        %2866 = vmatmul.mubr.bf16.gmra.mxu0 %v1600
        %v2867 = vpop.f32.mrf.mxu0
        %v2868 = vadd.f32 0.0, %v2867
        %v2869 = vpop.f32.mrf.mxu0
        %v2870 = vpop.f32.mrf.mxu0
        %v2871 = vadd.f32 0.0, %v2870
        %v2872 = vpop.f32.mrf.mxu0
        %2873 = vmatprep.mubr.bf16.mxu0 0
        %2874 = vmatmul.mubr.bf16.gmra.mxu0 %v1603
        %v2875 = vpop.f32.mrf.mxu0
        %v2876 = vadd.f32 0.0, %v2875
        %v2877 = vpop.f32.mrf.mxu0
        %v2878 = vpop.f32.mrf.mxu0
        %v2879 = vadd.f32 0.0, %v2878
        %v2880 = vpop.f32.mrf.mxu0
        %2881 = vmatprep.mubr.bf16.mxu0 0
        %2882 = vmatmul.mubr.bf16.gmra.mxu0 %v2724
        %v2883 = vpop.f32.mrf.mxu0
        %v2884 = vadd.f32 0.0, %v2883
        %v2885 = vpop.f32.mrf.mxu0
        %v2886 = vpop.f32.mrf.mxu0
        %v2887 = vadd.f32 0.0, %v2886
        %v2888 = vpop.f32.mrf.mxu0
        %2889 = vdwg.mxu0
        %v2890 = vadd.f32 %v2663, %v2764
        %v2891 = vadd.f32 %v2664, %v2767
        %v2892 = vadd.f32 %v2665, %v2772
        %v2893 = vadd.f32 %v2666, %v2775
        %v2894 = vadd.f32 %v2667, %v2780
        %v2895 = vadd.f32 %v2668, %v2783
        %v2896 = vadd.f32 %v2669, %v2788
        %v2897 = vadd.f32 %v2670, %v2791
        %v2898 = vadd.f32 %v2671, %v2796
        %v2899 = vadd.f32 %v2672, %v2799
        %v2900 = vadd.f32 %v2673, %v2804
        %v2901 = vadd.f32 %v2674, %v2807
        %v2902 = vadd.f32 %v2675, %v2812
        %v2903 = vadd.f32 %v2676, %v2815
        %v2904 = vadd.f32 %v2677, %v2820
        %v2905 = vadd.f32 %v2678, %v2823
        %v2906 = vadd.f32 %v2679, %v2828
        %v2907 = vadd.f32 %v2680, %v2831
        %v2908 = vadd.f32 %v2681, %v2836
        %v2909 = vadd.f32 %v2682, %v2839
        %v2910 = vadd.f32 %v2683, %v2844
        %v2911 = vadd.f32 %v2684, %v2847
        %v2912 = vadd.f32 %v2685, %v2852
        %v2913 = vadd.f32 %v2686, %v2855
        %v2914 = vadd.f32 %v2687, %v2860
        %v2915 = vadd.f32 %v2688, %v2863
        %v2916 = vadd.f32 %v2689, %v2868
        %v2917 = vadd.f32 %v2690, %v2871
        %v2918 = vadd.f32 %v2691, %v2876
        %v2919 = vadd.f32 %v2692, %v2879
        %v2920 = vadd.f32 %v2693, %v2884
        %v2921 = vadd.f32 %v2694, %v2887
        %v2923 = vrot.slane %v1109, 5
        %v2924 = vrot.slane %v2923, 4
        %v2925 = vrot.slane %v1110, 5
        %v2926 = vsel %vm2080, %v2924, %v2925
        %v2927 = vrot.slane %v2925, 4
        %v2928 = vrot.slane %v1111, 5
        %v2929 = vsel %vm2080, %v2927, %v2928
        %v2930 = vld [vmem:[%s1 + $0x8] sm:$0xc]
        %v2931 = vunpack.c.l.b16 %v2926
        %v2932 = vunpack.c.l.b16 %v2929
        %v2933 = vpack.c.b16 %v2932, %v2931
        %v2935 = vunpack.c.l.b16 %v2930
        %v2936 = vpack.c.b16 %v2935, %v2935
        %v2937 = vrot.slane %v2936, 2
        %v2939 = vsel %vm1556, %v2933, 0
        %v2942 = vsel %vm1605, %v2937, 0
        %2944 = vmatprep.subr.bf16.mxu0 0
        %2945 = vmatpush1.bf16.msra.mxu0 0
        %2946 = vmatprep.subr.bf16.mxu0 0
        %2947 = vmatpush1.bf16.msra.mxu0 0
        %2948 = vmatprep.subr.bf16.mxu0 0
        %2949 = vmatpush1.bf16.msra.mxu0 0
        %2950 = vmatprep.subr.bf16.mxu0 0
        %2951 = vmatpush1.bf16.msra.mxu0 0
        %2952 = vmatprep.subr.bf16.mxu0 0
        %2953 = vmatpush1.bf16.msra.mxu0 0
        %2954 = vmatprep.subr.bf16.mxu0 0
        %2955 = vmatpush1.bf16.msra.mxu0 0
        %2956 = vmatprep.subr.bf16.mxu0 0
        %2957 = vmatpush1.bf16.msra.mxu0 0
        %2958 = vmatprep.subr.bf16.mxu0 0
        %2959 = vmatpush1.bf16.msra.mxu0 %v2942
        %2960 = vmatprep.subr.bf16.mxu0 0
        %2961 = vmatpush2.bf16.msra.mxu0 0
        %2962 = vmatprep.subr.bf16.mxu0 0
        %2963 = vmatpush2.bf16.msra.mxu0 0
        %2964 = vmatprep.subr.bf16.mxu0 0
        %2965 = vmatpush2.bf16.msra.mxu0 0
        %2966 = vmatprep.subr.bf16.mxu0 0
        %2967 = vmatpush2.bf16.msra.mxu0 0
        %2968 = vmatprep.subr.bf16.mxu0 0
        %2969 = vmatpush2.bf16.msra.mxu0 0
        %2970 = vmatprep.subr.bf16.mxu0 0
        %2971 = vmatpush2.bf16.msra.mxu0 0
        %2972 = vmatprep.subr.bf16.mxu0 0
        %2973 = vmatpush2.bf16.msra.mxu0 0
        %2974 = vmatprep.subr.bf16.mxu0 0
        %2975 = vmatpush2.bf16.msra.mxu0 0
        %2976 = vmatprep.mubr.bf16.mxu0 0
        %2977 = vmatmul.mubr.bf16.gmra.mxu0 %v2246
        %v2978 = vpop.f32.mrf.mxu0
        %v2979 = vadd.f32 0.0, %v2978
        %v2980 = vpop.f32.mrf.mxu0
        %v2981 = vpop.f32.mrf.mxu0
        %v2982 = vadd.f32 0.0, %v2981
        %v2983 = vpop.f32.mrf.mxu0
        %2984 = vmatprep.mubr.bf16.mxu0 0
        %2985 = vmatmul.mubr.bf16.gmra.mxu0 %v2249
        %v2986 = vpop.f32.mrf.mxu0
        %v2987 = vadd.f32 0.0, %v2986
        %v2988 = vpop.f32.mrf.mxu0
        %v2989 = vpop.f32.mrf.mxu0
        %v2990 = vadd.f32 0.0, %v2989
        %v2991 = vpop.f32.mrf.mxu0
        %2992 = vmatprep.mubr.bf16.mxu0 0
        %2993 = vmatmul.mubr.bf16.gmra.mxu0 %v2252
        %v2994 = vpop.f32.mrf.mxu0
        %v2995 = vadd.f32 0.0, %v2994
        %v2996 = vpop.f32.mrf.mxu0
        %v2997 = vpop.f32.mrf.mxu0
        %v2998 = vadd.f32 0.0, %v2997
        %v2999 = vpop.f32.mrf.mxu0
        %3000 = vmatprep.mubr.bf16.mxu0 0
        %3001 = vmatmul.mubr.bf16.gmra.mxu0 %v2255
        %v3002 = vpop.f32.mrf.mxu0
        %v3003 = vadd.f32 0.0, %v3002
        %v3004 = vpop.f32.mrf.mxu0
        %v3005 = vpop.f32.mrf.mxu0
        %v3006 = vadd.f32 0.0, %v3005
        %v3007 = vpop.f32.mrf.mxu0
        %3008 = vmatprep.mubr.bf16.mxu0 0
        %3009 = vmatmul.mubr.bf16.gmra.mxu0 %v2258
        %v3010 = vpop.f32.mrf.mxu0
        %v3011 = vadd.f32 0.0, %v3010
        %v3012 = vpop.f32.mrf.mxu0
        %v3013 = vpop.f32.mrf.mxu0
        %v3014 = vadd.f32 0.0, %v3013
        %v3015 = vpop.f32.mrf.mxu0
        %3016 = vmatprep.mubr.bf16.mxu0 0
        %3017 = vmatmul.mubr.bf16.gmra.mxu0 %v2261
        %v3018 = vpop.f32.mrf.mxu0
        %v3019 = vadd.f32 0.0, %v3018
        %v3020 = vpop.f32.mrf.mxu0
        %v3021 = vpop.f32.mrf.mxu0
        %v3022 = vadd.f32 0.0, %v3021
        %v3023 = vpop.f32.mrf.mxu0
        %3024 = vmatprep.mubr.bf16.mxu0 0
        %3025 = vmatmul.mubr.bf16.gmra.mxu0 %v2264
        %v3026 = vpop.f32.mrf.mxu0
        %v3027 = vadd.f32 0.0, %v3026
        %v3028 = vpop.f32.mrf.mxu0
        %v3029 = vpop.f32.mrf.mxu0
        %v3030 = vadd.f32 0.0, %v3029
        %v3031 = vpop.f32.mrf.mxu0
        %3032 = vmatprep.mubr.bf16.mxu0 0
        %3033 = vmatmul.mubr.bf16.gmra.mxu0 %v2267
        %v3034 = vpop.f32.mrf.mxu0
        %v3035 = vadd.f32 0.0, %v3034
        %v3036 = vpop.f32.mrf.mxu0
        %v3037 = vpop.f32.mrf.mxu0
        %v3038 = vadd.f32 0.0, %v3037
        %v3039 = vpop.f32.mrf.mxu0
        %3040 = vmatprep.mubr.bf16.mxu0 0
        %3041 = vmatmul.mubr.bf16.gmra.mxu0 %v2270
        %v3042 = vpop.f32.mrf.mxu0
        %v3043 = vadd.f32 0.0, %v3042
        %v3044 = vpop.f32.mrf.mxu0
        %v3045 = vpop.f32.mrf.mxu0
        %v3046 = vadd.f32 0.0, %v3045
        %v3047 = vpop.f32.mrf.mxu0
        %3048 = vmatprep.mubr.bf16.mxu0 0
        %3049 = vmatmul.mubr.bf16.gmra.mxu0 %v2273
        %v3050 = vpop.f32.mrf.mxu0
        %v3051 = vadd.f32 0.0, %v3050
        %v3052 = vpop.f32.mrf.mxu0
        %v3053 = vpop.f32.mrf.mxu0
        %v3054 = vadd.f32 0.0, %v3053
        %v3055 = vpop.f32.mrf.mxu0
        %3056 = vmatprep.mubr.bf16.mxu0 0
        %3057 = vmatmul.mubr.bf16.gmra.mxu0 %v2276
        %v3058 = vpop.f32.mrf.mxu0
        %v3059 = vadd.f32 0.0, %v3058
        %v3060 = vpop.f32.mrf.mxu0
        %v3061 = vpop.f32.mrf.mxu0
        %v3062 = vadd.f32 0.0, %v3061
        %v3063 = vpop.f32.mrf.mxu0
        %3064 = vmatprep.mubr.bf16.mxu0 0
        %3065 = vmatmul.mubr.bf16.gmra.mxu0 %v2279
        %v3066 = vpop.f32.mrf.mxu0
        %v3067 = vadd.f32 0.0, %v3066
        %v3068 = vpop.f32.mrf.mxu0
        %v3069 = vpop.f32.mrf.mxu0
        %v3070 = vadd.f32 0.0, %v3069
        %v3071 = vpop.f32.mrf.mxu0
        %3072 = vmatprep.mubr.bf16.mxu0 0
        %3073 = vmatmul.mubr.bf16.gmra.mxu0 %v2282
        %v3074 = vpop.f32.mrf.mxu0
        %v3075 = vadd.f32 0.0, %v3074
        %v3076 = vpop.f32.mrf.mxu0
        %v3077 = vpop.f32.mrf.mxu0
        %v3078 = vadd.f32 0.0, %v3077
        %v3079 = vpop.f32.mrf.mxu0
        %3080 = vmatprep.mubr.bf16.mxu0 0
        %3081 = vmatmul.mubr.bf16.gmra.mxu0 %v2285
        %v3082 = vpop.f32.mrf.mxu0
        %v3083 = vadd.f32 0.0, %v3082
        %v3084 = vpop.f32.mrf.mxu0
        %v3085 = vpop.f32.mrf.mxu0
        %v3086 = vadd.f32 0.0, %v3085
        %v3087 = vpop.f32.mrf.mxu0
        %3088 = vmatprep.mubr.bf16.mxu0 0
        %3089 = vmatmul.mubr.bf16.gmra.mxu0 %v2288
        %v3090 = vpop.f32.mrf.mxu0
        %v3091 = vadd.f32 0.0, %v3090
        %v3092 = vpop.f32.mrf.mxu0
        %v3093 = vpop.f32.mrf.mxu0
        %v3094 = vadd.f32 0.0, %v3093
        %v3095 = vpop.f32.mrf.mxu0
        %3096 = vmatprep.mubr.bf16.mxu0 0
        %3097 = vmatmul.mubr.bf16.gmra.mxu0 %v2939
        %v3098 = vpop.f32.mrf.mxu0
        %v3099 = vadd.f32 0.0, %v3098
        %v3100 = vpop.f32.mrf.mxu0
        %v3101 = vpop.f32.mrf.mxu0
        %v3102 = vadd.f32 0.0, %v3101
        %v3103 = vpop.f32.mrf.mxu0
        %3104 = vdwg.mxu0
        %v3105 = vadd.f32 %v2890, %v2979
        %v3106 = vadd.f32 %v2891, %v2982
        %v3107 = vadd.f32 %v2892, %v2987
        %v3108 = vadd.f32 %v2893, %v2990
        %v3109 = vadd.f32 %v2894, %v2995
        %v3110 = vadd.f32 %v2895, %v2998
        %v3111 = vadd.f32 %v2896, %v3003
        %v3112 = vadd.f32 %v2897, %v3006
        %v3113 = vadd.f32 %v2898, %v3011
        %v3114 = vadd.f32 %v2899, %v3014
        %v3115 = vadd.f32 %v2900, %v3019
        %v3116 = vadd.f32 %v2901, %v3022
        %v3117 = vadd.f32 %v2902, %v3027
        %v3118 = vadd.f32 %v2903, %v3030
        %v3119 = vadd.f32 %v2904, %v3035
        %v3120 = vadd.f32 %v2905, %v3038
        %v3121 = vadd.f32 %v2906, %v3043
        %v3122 = vadd.f32 %v2907, %v3046
        %v3123 = vadd.f32 %v2908, %v3051
        %v3124 = vadd.f32 %v2909, %v3054
        %v3125 = vadd.f32 %v2910, %v3059
        %v3126 = vadd.f32 %v2911, %v3062
        %v3127 = vadd.f32 %v2912, %v3067
        %v3128 = vadd.f32 %v2913, %v3070
        %v3129 = vadd.f32 %v2914, %v3075
        %v3130 = vadd.f32 %v2915, %v3078
        %v3131 = vadd.f32 %v2916, %v3083
        %v3132 = vadd.f32 %v2917, %v3086
        %v3133 = vadd.f32 %v2918, %v3091
        %v3134 = vadd.f32 %v2919, %v3094
        %v3135 = vadd.f32 %v2920, %v3099
        %v3136 = vadd.f32 %v2921, %v3102
        %v3137 = vld [vmem:[%s1 + $0xc] sm:$0x3]
        %v3140 = vunpack.c.l.b16 %v1112
        %v3141 = vunpack.c.l.b16 %v1113
        %v3142 = vpack.c.b16 %v3141, %v3140
        %v3144 = vsel %vm1556, %v3142, 0
        %v3147 = vsel %vm1605, %v3137, 0
        %3149 = vmatprep.subr.bf16.mxu0 0
        %3150 = vmatpush1.bf16.msra.mxu0 0
        %3151 = vmatprep.subr.bf16.mxu0 0
        %3152 = vmatpush1.bf16.msra.mxu0 0
        %3153 = vmatprep.subr.bf16.mxu0 0
        %3154 = vmatpush1.bf16.msra.mxu0 0
        %3155 = vmatprep.subr.bf16.mxu0 0
        %3156 = vmatpush1.bf16.msra.mxu0 0
        %3157 = vmatprep.subr.bf16.mxu0 0
        %3158 = vmatpush1.bf16.msra.mxu0 0
        %3159 = vmatprep.subr.bf16.mxu0 0
        %3160 = vmatpush1.bf16.msra.mxu0 0
        %3161 = vmatprep.subr.bf16.mxu0 0
        %3162 = vmatpush1.bf16.msra.mxu0 0
        %3163 = vmatprep.subr.bf16.mxu0 0
        %3164 = vmatpush1.bf16.msra.mxu0 %v3147
        %3165 = vmatprep.subr.bf16.mxu0 0
        %3166 = vmatpush2.bf16.msra.mxu0 0
        %3167 = vmatprep.subr.bf16.mxu0 0
        %3168 = vmatpush2.bf16.msra.mxu0 0
        %3169 = vmatprep.subr.bf16.mxu0 0
        %3170 = vmatpush2.bf16.msra.mxu0 0
        %3171 = vmatprep.subr.bf16.mxu0 0
        %3172 = vmatpush2.bf16.msra.mxu0 0
        %3173 = vmatprep.subr.bf16.mxu0 0
        %3174 = vmatpush2.bf16.msra.mxu0 0
        %3175 = vmatprep.subr.bf16.mxu0 0
        %3176 = vmatpush2.bf16.msra.mxu0 0
        %3177 = vmatprep.subr.bf16.mxu0 0
        %3178 = vmatpush2.bf16.msra.mxu0 0
        %3179 = vmatprep.subr.bf16.mxu0 0
        %3180 = vmatpush2.bf16.msra.mxu0 0
        %3181 = vmatprep.mubr.bf16.mxu0 0
        %3182 = vmatmul.mubr.bf16.gmra.mxu0 %v1857
        %v3183 = vpop.f32.mrf.mxu0
        %v3184 = vadd.f32 0.0, %v3183
        %v3185 = vpop.f32.mrf.mxu0
        %v3186 = vpop.f32.mrf.mxu0
        %v3187 = vadd.f32 0.0, %v3186
        %v3188 = vpop.f32.mrf.mxu0
        %3189 = vmatprep.mubr.bf16.mxu0 0
        %3190 = vmatmul.mubr.bf16.gmra.mxu0 %v1860
        %v3191 = vpop.f32.mrf.mxu0
        %v3192 = vadd.f32 0.0, %v3191
        %v3193 = vpop.f32.mrf.mxu0
        %v3194 = vpop.f32.mrf.mxu0
        %v3195 = vadd.f32 0.0, %v3194
        %v3196 = vpop.f32.mrf.mxu0
        %3197 = vmatprep.mubr.bf16.mxu0 0
        %3198 = vmatmul.mubr.bf16.gmra.mxu0 %v1863
        %v3199 = vpop.f32.mrf.mxu0
        %v3200 = vadd.f32 0.0, %v3199
        %v3201 = vpop.f32.mrf.mxu0
        %v3202 = vpop.f32.mrf.mxu0
        %v3203 = vadd.f32 0.0, %v3202
        %v3204 = vpop.f32.mrf.mxu0
        %3205 = vmatprep.mubr.bf16.mxu0 0
        %3206 = vmatmul.mubr.bf16.gmra.mxu0 %v1866
        %v3207 = vpop.f32.mrf.mxu0
        %v3208 = vadd.f32 0.0, %v3207
        %v3209 = vpop.f32.mrf.mxu0
        %v3210 = vpop.f32.mrf.mxu0
        %v3211 = vadd.f32 0.0, %v3210
        %v3212 = vpop.f32.mrf.mxu0
        %3213 = vmatprep.mubr.bf16.mxu0 0
        %3214 = vmatmul.mubr.bf16.gmra.mxu0 %v1869
        %v3215 = vpop.f32.mrf.mxu0
        %v3216 = vadd.f32 0.0, %v3215
        %v3217 = vpop.f32.mrf.mxu0
        %v3218 = vpop.f32.mrf.mxu0
        %v3219 = vadd.f32 0.0, %v3218
        %v3220 = vpop.f32.mrf.mxu0
        %3221 = vmatprep.mubr.bf16.mxu0 0
        %3222 = vmatmul.mubr.bf16.gmra.mxu0 %v1872
        %v3223 = vpop.f32.mrf.mxu0
        %v3224 = vadd.f32 0.0, %v3223
        %v3225 = vpop.f32.mrf.mxu0
        %v3226 = vpop.f32.mrf.mxu0
        %v3227 = vadd.f32 0.0, %v3226
        %v3228 = vpop.f32.mrf.mxu0
        %3229 = vmatprep.mubr.bf16.mxu0 0
        %3230 = vmatmul.mubr.bf16.gmra.mxu0 %v1875
        %v3231 = vpop.f32.mrf.mxu0
        %v3232 = vadd.f32 0.0, %v3231
        %v3233 = vpop.f32.mrf.mxu0
        %v3234 = vpop.f32.mrf.mxu0
        %v3235 = vadd.f32 0.0, %v3234
        %v3236 = vpop.f32.mrf.mxu0
        %3237 = vmatprep.mubr.bf16.mxu0 0
        %3238 = vmatmul.mubr.bf16.gmra.mxu0 %v1878
        %v3239 = vpop.f32.mrf.mxu0
        %v3240 = vadd.f32 0.0, %v3239
        %v3241 = vpop.f32.mrf.mxu0
        %v3242 = vpop.f32.mrf.mxu0
        %v3243 = vadd.f32 0.0, %v3242
        %v3244 = vpop.f32.mrf.mxu0
        %3245 = vmatprep.mubr.bf16.mxu0 0
        %3246 = vmatmul.mubr.bf16.gmra.mxu0 %v1881
        %v3247 = vpop.f32.mrf.mxu0
        %v3248 = vadd.f32 0.0, %v3247
        %v3249 = vpop.f32.mrf.mxu0
        %v3250 = vpop.f32.mrf.mxu0
        %v3251 = vadd.f32 0.0, %v3250
        %v3252 = vpop.f32.mrf.mxu0
        %3253 = vmatprep.mubr.bf16.mxu0 0
        %3254 = vmatmul.mubr.bf16.gmra.mxu0 %v1884
        %v3255 = vpop.f32.mrf.mxu0
        %v3256 = vadd.f32 0.0, %v3255
        %v3257 = vpop.f32.mrf.mxu0
        %v3258 = vpop.f32.mrf.mxu0
        %v3259 = vadd.f32 0.0, %v3258
        %v3260 = vpop.f32.mrf.mxu0
        %3261 = vmatprep.mubr.bf16.mxu0 0
        %3262 = vmatmul.mubr.bf16.gmra.mxu0 %v1887
        %v3263 = vpop.f32.mrf.mxu0
        %v3264 = vadd.f32 0.0, %v3263
        %v3265 = vpop.f32.mrf.mxu0
        %v3266 = vpop.f32.mrf.mxu0
        %v3267 = vadd.f32 0.0, %v3266
        %v3268 = vpop.f32.mrf.mxu0
        %3269 = vmatprep.mubr.bf16.mxu0 0
        %3270 = vmatmul.mubr.bf16.gmra.mxu0 %v1890
        %v3271 = vpop.f32.mrf.mxu0
        %v3272 = vadd.f32 0.0, %v3271
        %v3273 = vpop.f32.mrf.mxu0
        %v3274 = vpop.f32.mrf.mxu0
        %v3275 = vadd.f32 0.0, %v3274
        %v3276 = vpop.f32.mrf.mxu0
        %3277 = vmatprep.mubr.bf16.mxu0 0
        %3278 = vmatmul.mubr.bf16.gmra.mxu0 %v1893
        %v3279 = vpop.f32.mrf.mxu0
        %v3280 = vadd.f32 0.0, %v3279
        %v3281 = vpop.f32.mrf.mxu0
        %v3282 = vpop.f32.mrf.mxu0
        %v3283 = vadd.f32 0.0, %v3282
        %v3284 = vpop.f32.mrf.mxu0
        %3285 = vmatprep.mubr.bf16.mxu0 0
        %3286 = vmatmul.mubr.bf16.gmra.mxu0 %v1896
        %v3287 = vpop.f32.mrf.mxu0
        %v3288 = vadd.f32 0.0, %v3287
        %v3289 = vpop.f32.mrf.mxu0
        %v3290 = vpop.f32.mrf.mxu0
        %v3291 = vadd.f32 0.0, %v3290
        %v3292 = vpop.f32.mrf.mxu0
        %3293 = vmatprep.mubr.bf16.mxu0 0
        %3294 = vmatmul.mubr.bf16.gmra.mxu0 %v2497
        %v3295 = vpop.f32.mrf.mxu0
        %v3296 = vadd.f32 0.0, %v3295
        %v3297 = vpop.f32.mrf.mxu0
        %v3298 = vpop.f32.mrf.mxu0
        %v3299 = vadd.f32 0.0, %v3298
        %v3300 = vpop.f32.mrf.mxu0
        %3301 = vmatprep.mubr.bf16.mxu0 0
        %3302 = vmatmul.mubr.bf16.gmra.mxu0 %v3144
        %v3303 = vpop.f32.mrf.mxu0
        %v3304 = vadd.f32 0.0, %v3303
        %v3305 = vpop.f32.mrf.mxu0
        %v3306 = vpop.f32.mrf.mxu0
        %v3307 = vadd.f32 0.0, %v3306
        %v3308 = vpop.f32.mrf.mxu0
        %3309 = vdwg.mxu0
        %v3310 = vadd.f32 %v3105, %v3184
        %v3311 = vadd.f32 %v3106, %v3187
        %v3312 = vadd.f32 %v3107, %v3192
        %v3313 = vadd.f32 %v3108, %v3195
        %v3314 = vadd.f32 %v3109, %v3200
        %v3315 = vadd.f32 %v3110, %v3203
        %v3316 = vadd.f32 %v3111, %v3208
        %v3317 = vadd.f32 %v3112, %v3211
        %v3318 = vadd.f32 %v3113, %v3216
        %v3319 = vadd.f32 %v3114, %v3219
        %v3320 = vadd.f32 %v3115, %v3224
        %v3321 = vadd.f32 %v3116, %v3227
        %v3322 = vadd.f32 %v3117, %v3232
        %v3323 = vadd.f32 %v3118, %v3235
        %v3324 = vadd.f32 %v3119, %v3240
        %v3325 = vadd.f32 %v3120, %v3243
        %v3326 = vadd.f32 %v3121, %v3248
        %v3327 = vadd.f32 %v3122, %v3251
        %v3328 = vadd.f32 %v3123, %v3256
        %v3329 = vadd.f32 %v3124, %v3259
        %v3330 = vadd.f32 %v3125, %v3264
        %v3331 = vadd.f32 %v3126, %v3267
        %v3332 = vadd.f32 %v3127, %v3272
        %v3333 = vadd.f32 %v3128, %v3275
        %v3334 = vadd.f32 %v3129, %v3280
        %v3335 = vadd.f32 %v3130, %v3283
        %v3336 = vadd.f32 %v3131, %v3288
        %v3337 = vadd.f32 %v3132, %v3291
        %v3338 = vadd.f32 %v3133, %v3296
        %v3339 = vadd.f32 %v3134, %v3299
        %v3340 = vadd.f32 %v3135, %v3304
        %v3341 = vadd.f32 %v3136, %v3307
        %v3343 = vshrl.u32 %v1112, 16
        %v3345 = vrot.slane %v3343, 4
        %v3346 = vshll.u32 %v1112, 16
        %v3348 = vrot.slane %v3346, 5
        %v3349 = vor.u32 %v3345, %v3348
        %v3350 = vrot.slane %v3349, 4
        %v3352 = vshll.u32 %v1113, 16
        %v3354 = vrot.slane %v3352, 5
        %v3355 = vsel %vm1118, %v3350, %v3354
        %v3356 = vshrl.u32 %v1113, 16
        %v3358 = vrot.slane %v3356, 4
        %v3359 = vor.u32 %v3358, %v3354
        %v3360 = vrot.slane %v3359, 4
        %v3362 = vshll.u32 %v1114, 16
        %v3364 = vrot.slane %v3362, 5
        %v3365 = vsel %vm1118, %v3360, %v3364
        %v3366 = vld [vmem:[%s1 + $0xc] sm:$0xc]
        %v3367 = vunpack.c.l.b16 %v3355
        %v3368 = vunpack.c.l.b16 %v3365
        %v3369 = vpack.c.b16 %v3368, %v3367
        %v3371 = vunpack.c.l.b16 %v3366
        %v3372 = vpack.c.b16 %v3371, %v3371
        %v3373 = vrot.slane %v3372, 2
        %v3375 = vsel %vm1556, %v3369, 0
        %v3378 = vsel %vm1605, %v3373, 0
        %3380 = vmatprep.subr.bf16.mxu0 0
        %3381 = vmatpush1.bf16.msra.mxu0 0
        %3382 = vmatprep.subr.bf16.mxu0 0
        %3383 = vmatpush1.bf16.msra.mxu0 0
        %3384 = vmatprep.subr.bf16.mxu0 0
        %3385 = vmatpush1.bf16.msra.mxu0 0
        %3386 = vmatprep.subr.bf16.mxu0 0
        %3387 = vmatpush1.bf16.msra.mxu0 0
        %3388 = vmatprep.subr.bf16.mxu0 0
        %3389 = vmatpush1.bf16.msra.mxu0 0
        %3390 = vmatprep.subr.bf16.mxu0 0
        %3391 = vmatpush1.bf16.msra.mxu0 0
        %3392 = vmatprep.subr.bf16.mxu0 0
        %3393 = vmatpush1.bf16.msra.mxu0 0
        %3394 = vmatprep.subr.bf16.mxu0 0
        %3395 = vmatpush1.bf16.msra.mxu0 %v3378
        %3396 = vmatprep.subr.bf16.mxu0 0
        %3397 = vmatpush2.bf16.msra.mxu0 0
        %3398 = vmatprep.subr.bf16.mxu0 0
        %3399 = vmatpush2.bf16.msra.mxu0 0
        %3400 = vmatprep.subr.bf16.mxu0 0
        %3401 = vmatpush2.bf16.msra.mxu0 0
        %3402 = vmatprep.subr.bf16.mxu0 0
        %3403 = vmatpush2.bf16.msra.mxu0 0
        %3404 = vmatprep.subr.bf16.mxu0 0
        %3405 = vmatpush2.bf16.msra.mxu0 0
        %3406 = vmatprep.subr.bf16.mxu0 0
        %3407 = vmatpush2.bf16.msra.mxu0 0
        %3408 = vmatprep.subr.bf16.mxu0 0
        %3409 = vmatpush2.bf16.msra.mxu0 0
        %3410 = vmatprep.subr.bf16.mxu0 0
        %3411 = vmatpush2.bf16.msra.mxu0 0
        %3412 = vmatprep.mubr.bf16.mxu0 0
        %3413 = vmatmul.mubr.bf16.gmra.mxu0 %v1564
        %v3414 = vpop.f32.mrf.mxu0
        %v3415 = vadd.f32 0.0, %v3414
        %v3416 = vpop.f32.mrf.mxu0
        %v3417 = vpop.f32.mrf.mxu0
        %v3418 = vadd.f32 0.0, %v3417
        %v3419 = vpop.f32.mrf.mxu0
        %3420 = vmatprep.mubr.bf16.mxu0 0
        %3421 = vmatmul.mubr.bf16.gmra.mxu0 %v1567
        %v3422 = vpop.f32.mrf.mxu0
        %v3423 = vadd.f32 0.0, %v3422
        %v3424 = vpop.f32.mrf.mxu0
        %v3425 = vpop.f32.mrf.mxu0
        %v3426 = vadd.f32 0.0, %v3425
        %v3427 = vpop.f32.mrf.mxu0
        %3428 = vmatprep.mubr.bf16.mxu0 0
        %3429 = vmatmul.mubr.bf16.gmra.mxu0 %v1570
        %v3430 = vpop.f32.mrf.mxu0
        %v3431 = vadd.f32 0.0, %v3430
        %v3432 = vpop.f32.mrf.mxu0
        %v3433 = vpop.f32.mrf.mxu0
        %v3434 = vadd.f32 0.0, %v3433
        %v3435 = vpop.f32.mrf.mxu0
        %3436 = vmatprep.mubr.bf16.mxu0 0
        %3437 = vmatmul.mubr.bf16.gmra.mxu0 %v1573
        %v3438 = vpop.f32.mrf.mxu0
        %v3439 = vadd.f32 0.0, %v3438
        %v3440 = vpop.f32.mrf.mxu0
        %v3441 = vpop.f32.mrf.mxu0
        %v3442 = vadd.f32 0.0, %v3441
        %v3443 = vpop.f32.mrf.mxu0
        %3444 = vmatprep.mubr.bf16.mxu0 0
        %3445 = vmatmul.mubr.bf16.gmra.mxu0 %v1576
        %v3446 = vpop.f32.mrf.mxu0
        %v3447 = vadd.f32 0.0, %v3446
        %v3448 = vpop.f32.mrf.mxu0
        %v3449 = vpop.f32.mrf.mxu0
        %v3450 = vadd.f32 0.0, %v3449
        %v3451 = vpop.f32.mrf.mxu0
        %3452 = vmatprep.mubr.bf16.mxu0 0
        %3453 = vmatmul.mubr.bf16.gmra.mxu0 %v1579
        %v3454 = vpop.f32.mrf.mxu0
        %v3455 = vadd.f32 0.0, %v3454
        %v3456 = vpop.f32.mrf.mxu0
        %v3457 = vpop.f32.mrf.mxu0
        %v3458 = vadd.f32 0.0, %v3457
        %v3459 = vpop.f32.mrf.mxu0
        %3460 = vmatprep.mubr.bf16.mxu0 0
        %3461 = vmatmul.mubr.bf16.gmra.mxu0 %v1582
        %v3462 = vpop.f32.mrf.mxu0
        %v3463 = vadd.f32 0.0, %v3462
        %v3464 = vpop.f32.mrf.mxu0
        %v3465 = vpop.f32.mrf.mxu0
        %v3466 = vadd.f32 0.0, %v3465
        %v3467 = vpop.f32.mrf.mxu0
        %3468 = vmatprep.mubr.bf16.mxu0 0
        %3469 = vmatmul.mubr.bf16.gmra.mxu0 %v1585
        %v3470 = vpop.f32.mrf.mxu0
        %v3471 = vadd.f32 0.0, %v3470
        %v3472 = vpop.f32.mrf.mxu0
        %v3473 = vpop.f32.mrf.mxu0
        %v3474 = vadd.f32 0.0, %v3473
        %v3475 = vpop.f32.mrf.mxu0
        %3476 = vmatprep.mubr.bf16.mxu0 0
        %3477 = vmatmul.mubr.bf16.gmra.mxu0 %v1588
        %v3478 = vpop.f32.mrf.mxu0
        %v3479 = vadd.f32 0.0, %v3478
        %v3480 = vpop.f32.mrf.mxu0
        %v3481 = vpop.f32.mrf.mxu0
        %v3482 = vadd.f32 0.0, %v3481
        %v3483 = vpop.f32.mrf.mxu0
        %3484 = vmatprep.mubr.bf16.mxu0 0
        %3485 = vmatmul.mubr.bf16.gmra.mxu0 %v1591
        %v3486 = vpop.f32.mrf.mxu0
        %v3487 = vadd.f32 0.0, %v3486
        %v3488 = vpop.f32.mrf.mxu0
        %v3489 = vpop.f32.mrf.mxu0
        %v3490 = vadd.f32 0.0, %v3489
        %v3491 = vpop.f32.mrf.mxu0
        %3492 = vmatprep.mubr.bf16.mxu0 0
        %3493 = vmatmul.mubr.bf16.gmra.mxu0 %v1594
        %v3494 = vpop.f32.mrf.mxu0
        %v3495 = vadd.f32 0.0, %v3494
        %v3496 = vpop.f32.mrf.mxu0
        %v3497 = vpop.f32.mrf.mxu0
        %v3498 = vadd.f32 0.0, %v3497
        %v3499 = vpop.f32.mrf.mxu0
        %3500 = vmatprep.mubr.bf16.mxu0 0
        %3501 = vmatmul.mubr.bf16.gmra.mxu0 %v1597
        %v3502 = vpop.f32.mrf.mxu0
        %v3503 = vadd.f32 0.0, %v3502
        %v3504 = vpop.f32.mrf.mxu0
        %v3505 = vpop.f32.mrf.mxu0
        %v3506 = vadd.f32 0.0, %v3505
        %v3507 = vpop.f32.mrf.mxu0
        %3508 = vmatprep.mubr.bf16.mxu0 0
        %3509 = vmatmul.mubr.bf16.gmra.mxu0 %v1600
        %v3510 = vpop.f32.mrf.mxu0
        %v3511 = vadd.f32 0.0, %v3510
        %v3512 = vpop.f32.mrf.mxu0
        %v3513 = vpop.f32.mrf.mxu0
        %v3514 = vadd.f32 0.0, %v3513
        %v3515 = vpop.f32.mrf.mxu0
        %3516 = vmatprep.mubr.bf16.mxu0 0
        %3517 = vmatmul.mubr.bf16.gmra.mxu0 %v1603
        %v3518 = vpop.f32.mrf.mxu0
        %v3519 = vadd.f32 0.0, %v3518
        %v3520 = vpop.f32.mrf.mxu0
        %v3521 = vpop.f32.mrf.mxu0
        %v3522 = vadd.f32 0.0, %v3521
        %v3523 = vpop.f32.mrf.mxu0
        %3524 = vmatprep.mubr.bf16.mxu0 0
        %3525 = vmatmul.mubr.bf16.gmra.mxu0 %v2724
        %v3526 = vpop.f32.mrf.mxu0
        %v3527 = vadd.f32 0.0, %v3526
        %v3528 = vpop.f32.mrf.mxu0
        %v3529 = vpop.f32.mrf.mxu0
        %v3530 = vadd.f32 0.0, %v3529
        %v3531 = vpop.f32.mrf.mxu0
        %3532 = vmatprep.mubr.bf16.mxu0 0
        %3533 = vmatmul.mubr.bf16.gmra.mxu0 %v3375
        %v3534 = vpop.f32.mrf.mxu0
        %v3535 = vadd.f32 0.0, %v3534
        %v3536 = vpop.f32.mrf.mxu0
        %v3537 = vpop.f32.mrf.mxu0
        %v3538 = vadd.f32 0.0, %v3537
        %v3539 = vpop.f32.mrf.mxu0
        %3540 = vdwg.mxu0
        %v3541 = vadd.f32 %v3310, %v3415
        %v3542 = vadd.f32 %v3311, %v3418
        %v3543 = vadd.f32 %v3312, %v3423
        %v3544 = vadd.f32 %v3313, %v3426
        %v3545 = vadd.f32 %v3314, %v3431
        %v3546 = vadd.f32 %v3315, %v3434
        %v3547 = vadd.f32 %v3316, %v3439
        %v3548 = vadd.f32 %v3317, %v3442
        %v3549 = vadd.f32 %v3318, %v3447
        %v3550 = vadd.f32 %v3319, %v3450
        %v3551 = vadd.f32 %v3320, %v3455
        %v3552 = vadd.f32 %v3321, %v3458
        %v3553 = vadd.f32 %v3322, %v3463
        %v3554 = vadd.f32 %v3323, %v3466
        %v3555 = vadd.f32 %v3324, %v3471
        %v3556 = vadd.f32 %v3325, %v3474
        %v3557 = vadd.f32 %v3326, %v3479
        %v3558 = vadd.f32 %v3327, %v3482
        %v3559 = vadd.f32 %v3328, %v3487
        %v3560 = vadd.f32 %v3329, %v3490
        %v3561 = vadd.f32 %v3330, %v3495
        %v3562 = vadd.f32 %v3331, %v3498
        %v3563 = vadd.f32 %v3332, %v3503
        %v3564 = vadd.f32 %v3333, %v3506
        %v3565 = vadd.f32 %v3334, %v3511
        %v3566 = vadd.f32 %v3335, %v3514
        %v3567 = vadd.f32 %v3336, %v3519
        %v3568 = vadd.f32 %v3337, %v3522
        %v3569 = vadd.f32 %v3338, %v3527
        %v3570 = vadd.f32 %v3339, %v3530
        %v3571 = vadd.f32 %v3340, %v3535
        %v3572 = vadd.f32 %v3341, %v3538
        %v3574 = vrot.slane %v1112, 5
        %v3575 = vrot.slane %v3574, 4
        %v3576 = vrot.slane %v1113, 5
        %v3577 = vsel %vm2080, %v3575, %v3576
        %v3578 = vrot.slane %v3576, 4
        %v3579 = vrot.slane %v1114, 5
        %v3580 = vsel %vm2080, %v3578, %v3579
        %v3581 = vld [vmem:[%s1 + $0x10] sm:$0x3]
        %v3582 = vunpack.c.l.b16 %v3577
        %v3583 = vunpack.c.l.b16 %v3580
        %v3584 = vpack.c.b16 %v3583, %v3582
        %v3586 = vsel %vm1556, %v3584, 0
        %v3589 = vsel %vm1605, %v3581, 0
        %3591 = vmatprep.subr.bf16.mxu0 0
        %3592 = vmatpush1.bf16.msra.mxu0 0
        %3593 = vmatprep.subr.bf16.mxu0 0
        %3594 = vmatpush1.bf16.msra.mxu0 0
        %3595 = vmatprep.subr.bf16.mxu0 0
        %3596 = vmatpush1.bf16.msra.mxu0 0
        %3597 = vmatprep.subr.bf16.mxu0 0
        %3598 = vmatpush1.bf16.msra.mxu0 0
        %3599 = vmatprep.subr.bf16.mxu0 0
        %3600 = vmatpush1.bf16.msra.mxu0 0
        %3601 = vmatprep.subr.bf16.mxu0 0
        %3602 = vmatpush1.bf16.msra.mxu0 0
        %3603 = vmatprep.subr.bf16.mxu0 0
        %3604 = vmatpush1.bf16.msra.mxu0 0
        %3605 = vmatprep.subr.bf16.mxu0 0
        %3606 = vmatpush1.bf16.msra.mxu0 %v3589
        %3607 = vmatprep.subr.bf16.mxu0 0
        %3608 = vmatpush2.bf16.msra.mxu0 0
        %3609 = vmatprep.subr.bf16.mxu0 0
        %3610 = vmatpush2.bf16.msra.mxu0 0
        %3611 = vmatprep.subr.bf16.mxu0 0
        %3612 = vmatpush2.bf16.msra.mxu0 0
        %3613 = vmatprep.subr.bf16.mxu0 0
        %3614 = vmatpush2.bf16.msra.mxu0 0
        %3615 = vmatprep.subr.bf16.mxu0 0
        %3616 = vmatpush2.bf16.msra.mxu0 0
        %3617 = vmatprep.subr.bf16.mxu0 0
        %3618 = vmatpush2.bf16.msra.mxu0 0
        %3619 = vmatprep.subr.bf16.mxu0 0
        %3620 = vmatpush2.bf16.msra.mxu0 0
        %3621 = vmatprep.subr.bf16.mxu0 0
        %3622 = vmatpush2.bf16.msra.mxu0 0
        %3623 = vmatprep.mubr.bf16.mxu0 0
        %3624 = vmatmul.mubr.bf16.gmra.mxu0 %v2249
        %v3625 = vpop.f32.mrf.mxu0
        %v3626 = vadd.f32 0.0, %v3625
        %v3627 = vpop.f32.mrf.mxu0
        %v3628 = vpop.f32.mrf.mxu0
        %v3629 = vadd.f32 0.0, %v3628
        %v3630 = vpop.f32.mrf.mxu0
        %3631 = vmatprep.mubr.bf16.mxu0 0
        %3632 = vmatmul.mubr.bf16.gmra.mxu0 %v2252
        %v3633 = vpop.f32.mrf.mxu0
        %v3634 = vadd.f32 0.0, %v3633
        %v3635 = vpop.f32.mrf.mxu0
        %v3636 = vpop.f32.mrf.mxu0
        %v3637 = vadd.f32 0.0, %v3636
        %v3638 = vpop.f32.mrf.mxu0
        %3639 = vmatprep.mubr.bf16.mxu0 0
        %3640 = vmatmul.mubr.bf16.gmra.mxu0 %v2255
        %v3641 = vpop.f32.mrf.mxu0
        %v3642 = vadd.f32 0.0, %v3641
        %v3643 = vpop.f32.mrf.mxu0
        %v3644 = vpop.f32.mrf.mxu0
        %v3645 = vadd.f32 0.0, %v3644
        %v3646 = vpop.f32.mrf.mxu0
        %3647 = vmatprep.mubr.bf16.mxu0 0
        %3648 = vmatmul.mubr.bf16.gmra.mxu0 %v2258
        %v3649 = vpop.f32.mrf.mxu0
        %v3650 = vadd.f32 0.0, %v3649
        %v3651 = vpop.f32.mrf.mxu0
        %v3652 = vpop.f32.mrf.mxu0
        %v3653 = vadd.f32 0.0, %v3652
        %v3654 = vpop.f32.mrf.mxu0
        %3655 = vmatprep.mubr.bf16.mxu0 0
        %3656 = vmatmul.mubr.bf16.gmra.mxu0 %v2261
        %v3657 = vpop.f32.mrf.mxu0
        %v3658 = vadd.f32 0.0, %v3657
        %v3659 = vpop.f32.mrf.mxu0
        %v3660 = vpop.f32.mrf.mxu0
        %v3661 = vadd.f32 0.0, %v3660
        %v3662 = vpop.f32.mrf.mxu0
        %3663 = vmatprep.mubr.bf16.mxu0 0
        %3664 = vmatmul.mubr.bf16.gmra.mxu0 %v2264
        %v3665 = vpop.f32.mrf.mxu0
        %v3666 = vadd.f32 0.0, %v3665
        %v3667 = vpop.f32.mrf.mxu0
        %v3668 = vpop.f32.mrf.mxu0
        %v3669 = vadd.f32 0.0, %v3668
        %v3670 = vpop.f32.mrf.mxu0
        %3671 = vmatprep.mubr.bf16.mxu0 0
        %3672 = vmatmul.mubr.bf16.gmra.mxu0 %v2267
        %v3673 = vpop.f32.mrf.mxu0
        %v3674 = vadd.f32 0.0, %v3673
        %v3675 = vpop.f32.mrf.mxu0
        %v3676 = vpop.f32.mrf.mxu0
        %v3677 = vadd.f32 0.0, %v3676
        %v3678 = vpop.f32.mrf.mxu0
        %3679 = vmatprep.mubr.bf16.mxu0 0
        %3680 = vmatmul.mubr.bf16.gmra.mxu0 %v2270
        %v3681 = vpop.f32.mrf.mxu0
        %v3682 = vadd.f32 0.0, %v3681
        %v3683 = vpop.f32.mrf.mxu0
        %v3684 = vpop.f32.mrf.mxu0
        %v3685 = vadd.f32 0.0, %v3684
        %v3686 = vpop.f32.mrf.mxu0
        %3687 = vmatprep.mubr.bf16.mxu0 0
        %3688 = vmatmul.mubr.bf16.gmra.mxu0 %v2273
        %v3689 = vpop.f32.mrf.mxu0
        %v3690 = vadd.f32 0.0, %v3689
        %v3691 = vpop.f32.mrf.mxu0
        %v3692 = vpop.f32.mrf.mxu0
        %v3693 = vadd.f32 0.0, %v3692
        %v3694 = vpop.f32.mrf.mxu0
        %3695 = vmatprep.mubr.bf16.mxu0 0
        %3696 = vmatmul.mubr.bf16.gmra.mxu0 %v2276
        %v3697 = vpop.f32.mrf.mxu0
        %v3698 = vadd.f32 0.0, %v3697
        %v3699 = vpop.f32.mrf.mxu0
        %v3700 = vpop.f32.mrf.mxu0
        %v3701 = vadd.f32 0.0, %v3700
        %v3702 = vpop.f32.mrf.mxu0
        %3703 = vmatprep.mubr.bf16.mxu0 0
        %3704 = vmatmul.mubr.bf16.gmra.mxu0 %v2279
        %v3705 = vpop.f32.mrf.mxu0
        %v3706 = vadd.f32 0.0, %v3705
        %v3707 = vpop.f32.mrf.mxu0
        %v3708 = vpop.f32.mrf.mxu0
        %v3709 = vadd.f32 0.0, %v3708
        %v3710 = vpop.f32.mrf.mxu0
        %3711 = vmatprep.mubr.bf16.mxu0 0
        %3712 = vmatmul.mubr.bf16.gmra.mxu0 %v2282
        %v3713 = vpop.f32.mrf.mxu0
        %v3714 = vadd.f32 0.0, %v3713
        %v3715 = vpop.f32.mrf.mxu0
        %v3716 = vpop.f32.mrf.mxu0
        %v3717 = vadd.f32 0.0, %v3716
        %v3718 = vpop.f32.mrf.mxu0
        %3719 = vmatprep.mubr.bf16.mxu0 0
        %3720 = vmatmul.mubr.bf16.gmra.mxu0 %v2285
        %v3721 = vpop.f32.mrf.mxu0
        %v3722 = vadd.f32 0.0, %v3721
        %v3723 = vpop.f32.mrf.mxu0
        %v3724 = vpop.f32.mrf.mxu0
        %v3725 = vadd.f32 0.0, %v3724
        %v3726 = vpop.f32.mrf.mxu0
        %3727 = vmatprep.mubr.bf16.mxu0 0
        %3728 = vmatmul.mubr.bf16.gmra.mxu0 %v2288
        %v3729 = vpop.f32.mrf.mxu0
        %v3730 = vadd.f32 0.0, %v3729
        %v3731 = vpop.f32.mrf.mxu0
        %v3732 = vpop.f32.mrf.mxu0
        %v3733 = vadd.f32 0.0, %v3732
        %v3734 = vpop.f32.mrf.mxu0
        %3735 = vmatprep.mubr.bf16.mxu0 0
        %3736 = vmatmul.mubr.bf16.gmra.mxu0 %v2939
        %v3737 = vpop.f32.mrf.mxu0
        %v3738 = vadd.f32 0.0, %v3737
        %v3739 = vpop.f32.mrf.mxu0
        %v3740 = vpop.f32.mrf.mxu0
        %v3741 = vadd.f32 0.0, %v3740
        %v3742 = vpop.f32.mrf.mxu0
        %3743 = vmatprep.mubr.bf16.mxu0 0
        %3744 = vmatmul.mubr.bf16.gmra.mxu0 %v3586
        %v3745 = vpop.f32.mrf.mxu0
        %v3746 = vadd.f32 0.0, %v3745
        %v3747 = vpop.f32.mrf.mxu0
        %v3748 = vpop.f32.mrf.mxu0
        %v3749 = vadd.f32 0.0, %v3748
        %v3750 = vpop.f32.mrf.mxu0
        %3751 = vdwg.mxu0
        %v3752 = vadd.f32 %v3541, %v3626
        %v3753 = vadd.f32 %v3542, %v3629
        %v3754 = vadd.f32 %v3543, %v3634
        %v3755 = vadd.f32 %v3544, %v3637
        %v3756 = vadd.f32 %v3545, %v3642
        %v3757 = vadd.f32 %v3546, %v3645
        %v3758 = vadd.f32 %v3547, %v3650
        %v3759 = vadd.f32 %v3548, %v3653
        %v3760 = vadd.f32 %v3549, %v3658
        %v3761 = vadd.f32 %v3550, %v3661
        %v3762 = vadd.f32 %v3551, %v3666
        %v3763 = vadd.f32 %v3552, %v3669
        %v3764 = vadd.f32 %v3553, %v3674
        %v3765 = vadd.f32 %v3554, %v3677
        %v3766 = vadd.f32 %v3555, %v3682
        %v3767 = vadd.f32 %v3556, %v3685
        %v3768 = vadd.f32 %v3557, %v3690
        %v3769 = vadd.f32 %v3558, %v3693
        %v3770 = vadd.f32 %v3559, %v3698
        %v3771 = vadd.f32 %v3560, %v3701
        %v3772 = vadd.f32 %v3561, %v3706
        %v3773 = vadd.f32 %v3562, %v3709
        %v3774 = vadd.f32 %v3563, %v3714
        %v3775 = vadd.f32 %v3564, %v3717
        %v3776 = vadd.f32 %v3565, %v3722
        %v3777 = vadd.f32 %v3566, %v3725
        %v3778 = vadd.f32 %v3567, %v3730
        %v3779 = vadd.f32 %v3568, %v3733
        %v3780 = vadd.f32 %v3569, %v3738
        %v3781 = vadd.f32 %v3570, %v3741
        %v3782 = vadd.f32 %v3571, %v3746
        %v3783 = vadd.f32 %v3572, %v3749
        %v3785 = vlaneseq
        %v3786 = vshrl.u32 %v3785, 7
        %v3787 = vsub.s32 0, %v3786
        %v3788 = vrot.slane %v1060, %v3787
        %v3790 = vadd.f32 %v3752, %v3788
        %v3791 = vadd.f32 %v3753, %v3788
        %v3792 = vadd.f32 %v3754, %v3788
        %v3793 = vadd.f32 %v3755, %v3788
        %v3794 = vadd.f32 %v3756, %v3788
        %v3795 = vadd.f32 %v3757, %v3788
        %v3796 = vadd.f32 %v3758, %v3788
        %v3797 = vadd.f32 %v3759, %v3788
        %v3798 = vadd.f32 %v3760, %v3788
        %v3799 = vadd.f32 %v3761, %v3788
        %v3800 = vadd.f32 %v3762, %v3788
        %v3801 = vadd.f32 %v3763, %v3788
        %v3802 = vadd.f32 %v3764, %v3788
        %v3803 = vadd.f32 %v3765, %v3788
        %v3804 = vadd.f32 %v3766, %v3788
        %v3805 = vadd.f32 %v3767, %v3788
        %v3806 = vadd.f32 %v3768, %v3788
        %v3807 = vadd.f32 %v3769, %v3788
        %v3808 = vadd.f32 %v3770, %v3788
        %v3809 = vadd.f32 %v3771, %v3788
        %v3810 = vadd.f32 %v3772, %v3788
        %v3811 = vadd.f32 %v3773, %v3788
        %v3812 = vadd.f32 %v3774, %v3788
        %v3813 = vadd.f32 %v3775, %v3788
        %v3814 = vadd.f32 %v3776, %v3788
        %v3815 = vadd.f32 %v3777, %v3788
        %v3816 = vadd.f32 %v3778, %v3788
        %v3817 = vadd.f32 %v3779, %v3788
        %v3818 = vadd.f32 %v3780, %v3788
        %v3819 = vadd.f32 %v3781, %v3788
        %v3820 = vadd.f32 %v3782, %v3788
        %v3821 = vadd.f32 %v3783, %v3788
        %v3822 = vmax.f32 %v3790, 0.0
        %v3823 = vmax.f32 %v3791, 0.0
        %v3824 = vmax.f32 %v3792, 0.0
        %v3825 = vmax.f32 %v3793, 0.0
        %v3826 = vmax.f32 %v3794, 0.0
        %v3827 = vmax.f32 %v3795, 0.0
        %v3828 = vmax.f32 %v3796, 0.0
        %v3829 = vmax.f32 %v3797, 0.0
        %v3830 = vmax.f32 %v3798, 0.0
        %v3831 = vmax.f32 %v3799, 0.0
        %v3832 = vmax.f32 %v3800, 0.0
        %v3833 = vmax.f32 %v3801, 0.0
        %v3834 = vmax.f32 %v3802, 0.0
        %v3835 = vmax.f32 %v3803, 0.0
        %v3836 = vmax.f32 %v3804, 0.0
        %v3837 = vmax.f32 %v3805, 0.0
        %v3838 = vmax.f32 %v3806, 0.0
        %v3839 = vmax.f32 %v3807, 0.0
        %v3840 = vmax.f32 %v3808, 0.0
        %v3841 = vmax.f32 %v3809, 0.0
        %v3842 = vmax.f32 %v3810, 0.0
        %v3843 = vmax.f32 %v3811, 0.0
        %v3844 = vmax.f32 %v3812, 0.0
        %v3845 = vmax.f32 %v3813, 0.0
        %v3846 = vmax.f32 %v3814, 0.0
        %v3847 = vmax.f32 %v3815, 0.0
        %v3848 = vmax.f32 %v3816, 0.0
        %v3849 = vmax.f32 %v3817, 0.0
        %v3850 = vmax.f32 %v3818, 0.0
        %v3851 = vmax.f32 %v3819, 0.0
        %v3852 = vmax.f32 %v3820, 0.0
        %v3853 = vmax.f32 %v3821, 0.0
        %v3854 = vpack.c.bf16 %v3823, %v3822
        %v3855 = vpack.c.bf16 %v3825, %v3824
        %v3856 = vpack.c.bf16 %v3827, %v3826
        %v3857 = vpack.c.bf16 %v3829, %v3828
        %v3858 = vpack.c.bf16 %v3831, %v3830
        %v3859 = vpack.c.bf16 %v3833, %v3832
        %v3860 = vpack.c.bf16 %v3835, %v3834
        %v3861 = vpack.c.bf16 %v3837, %v3836
        %v3862 = vpack.c.bf16 %v3839, %v3838
        %v3863 = vpack.c.bf16 %v3841, %v3840
        %v3864 = vpack.c.bf16 %v3843, %v3842
        %v3865 = vpack.c.bf16 %v3845, %v3844
        %v3866 = vpack.c.bf16 %v3847, %v3846
        %v3867 = vpack.c.bf16 %v3849, %v3848
        %v3868 = vpack.c.bf16 %v3851, %v3850
        %v3869 = vpack.c.bf16 %v3853, %v3852
        %v3886 = vunpack.c.l.b16 %v3854
        %v3887 = vunpack.c.h.b16 %v3854
        %v3888 = vunpack.c.l.b16 %v3855
        %v3889 = vunpack.c.h.b16 %v3855
        %v3890 = vunpack.c.l.b16 %v3856
        %v3891 = vunpack.c.h.b16 %v3856
        %v3892 = vunpack.c.l.b16 %v3857
        %v3893 = vunpack.c.h.b16 %v3857
        %v3894 = vunpack.c.l.b16 %v3858
        %v3895 = vunpack.c.h.b16 %v3858
        %v3896 = vunpack.c.l.b16 %v3859
        %v3897 = vunpack.c.h.b16 %v3859
        %v3898 = vunpack.c.l.b16 %v3860
        %v3899 = vunpack.c.h.b16 %v3860
        %v3900 = vunpack.c.l.b16 %v3861
        %v3901 = vunpack.c.h.b16 %v3861
        %v3902 = vunpack.c.l.b16 %v3862
        %v3903 = vunpack.c.h.b16 %v3862
        %v3904 = vunpack.c.l.b16 %v3863
        %v3905 = vunpack.c.h.b16 %v3863
        %v3906 = vunpack.c.l.b16 %v3864
        %v3907 = vunpack.c.h.b16 %v3864
        %v3908 = vunpack.c.l.b16 %v3865
        %v3909 = vunpack.c.h.b16 %v3865
        %v3910 = vunpack.c.l.b16 %v3866
        %v3911 = vunpack.c.h.b16 %v3866
        %v3912 = vunpack.c.l.b16 %v3867
        %v3913 = vunpack.c.h.b16 %v3867
        %v3914 = vunpack.c.l.b16 %v3868
        %v3915 = vunpack.c.h.b16 %v3868
        %v3916 = vunpack.c.l.b16 %v3869
        %v3917 = vunpack.c.h.b16 %v3869
        %v3918 = vpack.c.b16 %v3886, %v3886
        %v3919 = vpack.c.b16 %v3887, %v3887
        %v3920 = vpack.c.b16 %v3888, %v3888
        %v3921 = vpack.c.b16 %v3889, %v3889
        %v3922 = vpack.c.b16 %v3890, %v3890
        %v3923 = vpack.c.b16 %v3891, %v3891
        %v3924 = vpack.c.b16 %v3892, %v3892
        %v3925 = vpack.c.b16 %v3893, %v3893
        %v3926 = vpack.c.b16 %v3894, %v3894
        %v3927 = vpack.c.b16 %v3895, %v3895
        %v3928 = vpack.c.b16 %v3896, %v3896
        %v3929 = vpack.c.b16 %v3897, %v3897
        %v3930 = vpack.c.b16 %v3898, %v3898
        %v3931 = vpack.c.b16 %v3899, %v3899
        %v3932 = vpack.c.b16 %v3900, %v3900
        %v3933 = vpack.c.b16 %v3901, %v3901
        %v3934 = vpack.c.b16 %v3902, %v3902
        %v3935 = vpack.c.b16 %v3903, %v3903
        %v3936 = vpack.c.b16 %v3904, %v3904
        %v3937 = vpack.c.b16 %v3905, %v3905
        %v3938 = vpack.c.b16 %v3906, %v3906
        %v3939 = vpack.c.b16 %v3907, %v3907
        %v3940 = vpack.c.b16 %v3908, %v3908
        %v3941 = vpack.c.b16 %v3909, %v3909
        %v3942 = vpack.c.b16 %v3910, %v3910
        %v3943 = vpack.c.b16 %v3911, %v3911
        %v3944 = vpack.c.b16 %v3912, %v3912
        %v3945 = vpack.c.b16 %v3913, %v3913
        %v3946 = vpack.c.b16 %v3914, %v3914
        %v3947 = vpack.c.b16 %v3915, %v3915
        %v3948 = vpack.c.b16 %v3916, %v3916
        %v3949 = vpack.c.b16 %v3917, %v3917
        %v3951 = vshrl.u32 %v3918, 16
        %v3953 = vrot.slane %v3951, 7
        %v3954 = vshll.u32 %v3918, 16
        %v3956 = vor.u32 %v3953, %v3954
        %v3957 = vrot.slane %v3953, 4
        %v3959 = vshrl.u32 %v3919, 16
        %v3961 = vrot.slane %v3959, 7
        %v3962 = vshll.u32 %v3919, 16
        %v3964 = vor.u32 %v3961, %v3962
        %v3965 = vsel %vm621, %v3957, %v3964
        %v3966 = vrot.slane %v3961, 4
        %v3968 = vshrl.u32 %v3920, 16
        %v3970 = vrot.slane %v3968, 7
        %v3971 = vshll.u32 %v3920, 16
        %v3973 = vor.u32 %v3970, %v3971
        %v3974 = vrot.slane %v3970, 4
        %v3976 = vshrl.u32 %v3921, 16
        %v3978 = vrot.slane %v3976, 7
        %v3979 = vshll.u32 %v3921, 16
        %v3981 = vor.u32 %v3978, %v3979
        %v3982 = vsel %vm621, %v3974, %v3981
        %v3983 = vrot.slane %v3978, 4
        %v3985 = vshrl.u32 %v3922, 16
        %v3987 = vrot.slane %v3985, 7
        %v3988 = vshll.u32 %v3922, 16
        %v3990 = vor.u32 %v3987, %v3988
        %v3991 = vrot.slane %v3987, 4
        %v3993 = vshrl.u32 %v3923, 16
        %v3995 = vrot.slane %v3993, 7
        %v3996 = vshll.u32 %v3923, 16
        %v3998 = vor.u32 %v3995, %v3996
        %v3999 = vsel %vm621, %v3991, %v3998
        %v4000 = vrot.slane %v3995, 4
        %v4002 = vshrl.u32 %v3924, 16
        %v4004 = vrot.slane %v4002, 7
        %v4005 = vshll.u32 %v3924, 16
        %v4007 = vor.u32 %v4004, %v4005
        %v4008 = vrot.slane %v4004, 4
        %v4010 = vshrl.u32 %v3925, 16
        %v4012 = vrot.slane %v4010, 7
        %v4013 = vshll.u32 %v3925, 16
        %v4015 = vor.u32 %v4012, %v4013
        %v4016 = vsel %vm621, %v4008, %v4015
        %v4017 = vrot.slane %v4012, 4
        %v4019 = vshrl.u32 %v3926, 16
        %v4021 = vrot.slane %v4019, 7
        %v4022 = vshll.u32 %v3926, 16
        %v4024 = vor.u32 %v4021, %v4022
        %v4025 = vrot.slane %v4021, 4
        %v4027 = vshrl.u32 %v3927, 16
        %v4029 = vrot.slane %v4027, 7
        %v4030 = vshll.u32 %v3927, 16
        %v4032 = vor.u32 %v4029, %v4030
        %v4033 = vsel %vm621, %v4025, %v4032
        %v4034 = vrot.slane %v4029, 4
        %v4036 = vshrl.u32 %v3928, 16
        %v4038 = vrot.slane %v4036, 7
        %v4039 = vshll.u32 %v3928, 16
        %v4041 = vor.u32 %v4038, %v4039
        %v4042 = vrot.slane %v4038, 4
        %v4044 = vshrl.u32 %v3929, 16
        %v4046 = vrot.slane %v4044, 7
        %v4047 = vshll.u32 %v3929, 16
        %v4049 = vor.u32 %v4046, %v4047
        %v4050 = vsel %vm621, %v4042, %v4049
        %v4051 = vrot.slane %v4046, 4
        %v4053 = vshrl.u32 %v3930, 16
        %v4055 = vrot.slane %v4053, 7
        %v4056 = vshll.u32 %v3930, 16
        %v4058 = vor.u32 %v4055, %v4056
        %v4059 = vrot.slane %v4055, 4
        %v4061 = vshrl.u32 %v3931, 16
        %v4063 = vrot.slane %v4061, 7
        %v4064 = vshll.u32 %v3931, 16
        %v4066 = vor.u32 %v4063, %v4064
        %v4067 = vsel %vm621, %v4059, %v4066
        %v4068 = vrot.slane %v4063, 4
        %v4070 = vshrl.u32 %v3932, 16
        %v4072 = vrot.slane %v4070, 7
        %v4073 = vshll.u32 %v3932, 16
        %v4075 = vor.u32 %v4072, %v4073
        %v4076 = vrot.slane %v4072, 4
        %v4078 = vshrl.u32 %v3933, 16
        %v4080 = vrot.slane %v4078, 7
        %v4081 = vshll.u32 %v3933, 16
        %v4083 = vor.u32 %v4080, %v4081
        %v4084 = vsel %vm621, %v4076, %v4083
        %v4085 = vrot.slane %v4080, 4
        %v4087 = vshrl.u32 %v3934, 16
        %v4089 = vrot.slane %v4087, 7
        %v4090 = vshll.u32 %v3934, 16
        %v4092 = vor.u32 %v4089, %v4090
        %v4093 = vrot.slane %v4089, 4
        %v4095 = vshrl.u32 %v3935, 16
        %v4097 = vrot.slane %v4095, 7
        %v4098 = vshll.u32 %v3935, 16
        %v4100 = vor.u32 %v4097, %v4098
        %v4101 = vsel %vm621, %v4093, %v4100
        %v4102 = vrot.slane %v4097, 4
        %v4104 = vshrl.u32 %v3936, 16
        %v4106 = vrot.slane %v4104, 7
        %v4107 = vshll.u32 %v3936, 16
        %v4109 = vor.u32 %v4106, %v4107
        %v4110 = vrot.slane %v4106, 4
        %v4112 = vshrl.u32 %v3937, 16
        %v4114 = vrot.slane %v4112, 7
        %v4115 = vshll.u32 %v3937, 16
        %v4117 = vor.u32 %v4114, %v4115
        %v4118 = vsel %vm621, %v4110, %v4117
        %v4119 = vrot.slane %v4114, 4
        %v4121 = vshrl.u32 %v3938, 16
        %v4123 = vrot.slane %v4121, 7
        %v4124 = vshll.u32 %v3938, 16
        %v4126 = vor.u32 %v4123, %v4124
        %v4127 = vrot.slane %v4123, 4
        %v4129 = vshrl.u32 %v3939, 16
        %v4131 = vrot.slane %v4129, 7
        %v4132 = vshll.u32 %v3939, 16
        %v4134 = vor.u32 %v4131, %v4132
        %v4135 = vsel %vm621, %v4127, %v4134
        %v4136 = vrot.slane %v4131, 4
        %v4138 = vshrl.u32 %v3940, 16
        %v4140 = vrot.slane %v4138, 7
        %v4141 = vshll.u32 %v3940, 16
        %v4143 = vor.u32 %v4140, %v4141
        %v4144 = vrot.slane %v4140, 4
        %v4146 = vshrl.u32 %v3941, 16
        %v4148 = vrot.slane %v4146, 7
        %v4149 = vshll.u32 %v3941, 16
        %v4151 = vor.u32 %v4148, %v4149
        %v4152 = vsel %vm621, %v4144, %v4151
        %v4153 = vrot.slane %v4148, 4
        %v4155 = vshrl.u32 %v3942, 16
        %v4157 = vrot.slane %v4155, 7
        %v4158 = vshll.u32 %v3942, 16
        %v4160 = vor.u32 %v4157, %v4158
        %v4161 = vrot.slane %v4157, 4
        %v4163 = vshrl.u32 %v3943, 16
        %v4165 = vrot.slane %v4163, 7
        %v4166 = vshll.u32 %v3943, 16
        %v4168 = vor.u32 %v4165, %v4166
        %v4169 = vsel %vm621, %v4161, %v4168
        %v4170 = vrot.slane %v4165, 4
        %v4172 = vshrl.u32 %v3944, 16
        %v4174 = vrot.slane %v4172, 7
        %v4175 = vshll.u32 %v3944, 16
        %v4177 = vor.u32 %v4174, %v4175
        %v4178 = vrot.slane %v4174, 4
        %v4180 = vshrl.u32 %v3945, 16
        %v4182 = vrot.slane %v4180, 7
        %v4183 = vshll.u32 %v3945, 16
        %v4185 = vor.u32 %v4182, %v4183
        %v4186 = vsel %vm621, %v4178, %v4185
        %v4187 = vrot.slane %v4182, 4
        %v4189 = vshrl.u32 %v3946, 16
        %v4191 = vrot.slane %v4189, 7
        %v4192 = vshll.u32 %v3946, 16
        %v4194 = vor.u32 %v4191, %v4192
        %v4195 = vrot.slane %v4191, 4
        %v4197 = vshrl.u32 %v3947, 16
        %v4199 = vrot.slane %v4197, 7
        %v4200 = vshll.u32 %v3947, 16
        %v4202 = vor.u32 %v4199, %v4200
        %v4203 = vsel %vm621, %v4195, %v4202
        %v4204 = vrot.slane %v4199, 4
        %v4206 = vshrl.u32 %v3948, 16
        %v4208 = vrot.slane %v4206, 7
        %v4209 = vshll.u32 %v3948, 16
        %v4211 = vor.u32 %v4208, %v4209
        %v4212 = vrot.slane %v4208, 4
        %v4214 = vshrl.u32 %v3949, 16
        %v4216 = vrot.slane %v4214, 7
        %v4217 = vshll.u32 %v3949, 16
        %v4219 = vor.u32 %v4216, %v4217
        %v4220 = vsel %vm621, %v4212, %v4219
        %v4221 = vrot.slane %v4216, 4
        %vm4270 = vcmask 257024
        %vm4271 = vmand %vm4270, %vm436
        %v4272 = vld [vmem:[%s942] sm:$0xf]
        %v4273 = vsel %vm4271, %v3956, %v4272
        %4274 = vst [vmem:[%s942] sm:$0xf] %v4273
        %4275 = vst.msk [vmem:[%s942 + $0x4] sm:$0xf] %vm370, %v3965
        %v4276 = vld [vmem:[%s942 + $0x8] sm:$0x1]
        %v4277 = vsel %vm381, %v3966, %v4276
        %4278 = vst [vmem:[%s942 + $0x8] sm:$0x1] %v4277
        %v4279 = vld [vmem:[%s942 + $0xc] sm:$0xf]
        %v4280 = vsel %vm4271, %v3973, %v4279
        %4281 = vst [vmem:[%s942 + $0xc] sm:$0xf] %v4280
        %4282 = vst.msk [vmem:[%s942 + $0x10] sm:$0xf] %vm370, %v3982
        %v4283 = vld [vmem:[%s942 + $0x14] sm:$0x1]
        %v4284 = vsel %vm381, %v3983, %v4283
        %4285 = vst [vmem:[%s942 + $0x14] sm:$0x1] %v4284
        %v4286 = vld [vmem:[%s942 + $0x18] sm:$0xf]
        %v4287 = vsel %vm4271, %v3990, %v4286
        %4288 = vst [vmem:[%s942 + $0x18] sm:$0xf] %v4287
        %4289 = vst.msk [vmem:[%s942 + $0x1c] sm:$0xf] %vm370, %v3999
        %v4290 = vld [vmem:[%s942 + $0x20] sm:$0x1]
        %v4291 = vsel %vm381, %v4000, %v4290
        %4292 = vst [vmem:[%s942 + $0x20] sm:$0x1] %v4291
        %v4293 = vld [vmem:[%s942 + $0x24] sm:$0xf]
        %v4294 = vsel %vm4271, %v4007, %v4293
        %4295 = vst [vmem:[%s942 + $0x24] sm:$0xf] %v4294
        %4296 = vst.msk [vmem:[%s942 + $0x28] sm:$0xf] %vm370, %v4016
        %v4297 = vld [vmem:[%s942 + $0x2c] sm:$0x1]
        %v4298 = vsel %vm381, %v4017, %v4297
        %4299 = vst [vmem:[%s942 + $0x2c] sm:$0x1] %v4298
        %v4300 = vld [vmem:[%s942 + $0x30] sm:$0xf]
        %v4301 = vsel %vm4271, %v4024, %v4300
        %4302 = vst [vmem:[%s942 + $0x30] sm:$0xf] %v4301
        %4303 = vst.msk [vmem:[%s942 + $0x34] sm:$0xf] %vm370, %v4033
        %v4304 = vld [vmem:[%s942 + $0x38] sm:$0x1]
        %v4305 = vsel %vm381, %v4034, %v4304
        %4306 = vst [vmem:[%s942 + $0x38] sm:$0x1] %v4305
        %v4307 = vld [vmem:[%s942 + $0x3c] sm:$0xf]
        %v4308 = vsel %vm4271, %v4041, %v4307
        %4309 = vst [vmem:[%s942 + $0x3c] sm:$0xf] %v4308
        %4310 = vst.msk [vmem:[%s942 + $0x40] sm:$0xf] %vm370, %v4050
        %v4311 = vld [vmem:[%s942 + $0x44] sm:$0x1]
        %v4312 = vsel %vm381, %v4051, %v4311
        %4313 = vst [vmem:[%s942 + $0x44] sm:$0x1] %v4312
        %v4314 = vld [vmem:[%s942 + $0x48] sm:$0xf]
        %v4315 = vsel %vm4271, %v4058, %v4314
        %4316 = vst [vmem:[%s942 + $0x48] sm:$0xf] %v4315
        %4317 = vst.msk [vmem:[%s942 + $0x4c] sm:$0xf] %vm370, %v4067
        %v4318 = vld [vmem:[%s942 + $0x50] sm:$0x1]
        %v4319 = vsel %vm381, %v4068, %v4318
        %4320 = vst [vmem:[%s942 + $0x50] sm:$0x1] %v4319
        %v4321 = vld [vmem:[%s942 + $0x54] sm:$0xf]
        %v4322 = vsel %vm4271, %v4075, %v4321
        %4323 = vst [vmem:[%s942 + $0x54] sm:$0xf] %v4322
        %4324 = vst.msk [vmem:[%s942 + $0x58] sm:$0xf] %vm370, %v4084
        %v4325 = vld [vmem:[%s942 + $0x5c] sm:$0x1]
        %v4326 = vsel %vm381, %v4085, %v4325
        %4327 = vst [vmem:[%s942 + $0x5c] sm:$0x1] %v4326
        %v4328 = vld [vmem:[%s942 + $0x60] sm:$0xf]
        %v4329 = vsel %vm4271, %v4092, %v4328
        %4330 = vst [vmem:[%s942 + $0x60] sm:$0xf] %v4329
        %4331 = vst.msk [vmem:[%s942 + $0x64] sm:$0xf] %vm370, %v4101
        %v4332 = vld [vmem:[%s942 + $0x68] sm:$0x1]
        %v4333 = vsel %vm381, %v4102, %v4332
        %4334 = vst [vmem:[%s942 + $0x68] sm:$0x1] %v4333
        %v4335 = vld [vmem:[%s942 + $0x6c] sm:$0xf]
        %v4336 = vsel %vm4271, %v4109, %v4335
        %4337 = vst [vmem:[%s942 + $0x6c] sm:$0xf] %v4336
        %4338 = vst.msk [vmem:[%s942 + $0x70] sm:$0xf] %vm370, %v4118
        %v4339 = vld [vmem:[%s942 + $0x74] sm:$0x1]
        %v4340 = vsel %vm381, %v4119, %v4339
        %4341 = vst [vmem:[%s942 + $0x74] sm:$0x1] %v4340
        %v4342 = vld [vmem:[%s942 + $0x78] sm:$0xf]
        %v4343 = vsel %vm4271, %v4126, %v4342
        %4344 = vst [vmem:[%s942 + $0x78] sm:$0xf] %v4343
        %4345 = vst.msk [vmem:[%s942 + $0x7c] sm:$0xf] %vm370, %v4135
        %v4346 = vld [vmem:[%s942 + $0x80] sm:$0x1]
        %v4347 = vsel %vm381, %v4136, %v4346
        %4348 = vst [vmem:[%s942 + $0x80] sm:$0x1] %v4347
        %v4349 = vld [vmem:[%s942 + $0x84] sm:$0xf]
        %v4350 = vsel %vm4271, %v4143, %v4349
        %4351 = vst [vmem:[%s942 + $0x84] sm:$0xf] %v4350
        %4352 = vst.msk [vmem:[%s942 + $0x88] sm:$0xf] %vm370, %v4152
        %v4353 = vld [vmem:[%s942 + $0x8c] sm:$0x1]
        %v4354 = vsel %vm381, %v4153, %v4353
        %4355 = vst [vmem:[%s942 + $0x8c] sm:$0x1] %v4354
        %v4356 = vld [vmem:[%s942 + $0x90] sm:$0xf]
        %v4357 = vsel %vm4271, %v4160, %v4356
        %4358 = vst [vmem:[%s942 + $0x90] sm:$0xf] %v4357
        %4359 = vst.msk [vmem:[%s942 + $0x94] sm:$0xf] %vm370, %v4169
        %v4360 = vld [vmem:[%s942 + $0x98] sm:$0x1]
        %v4361 = vsel %vm381, %v4170, %v4360
        %4362 = vst [vmem:[%s942 + $0x98] sm:$0x1] %v4361
        %v4363 = vld [vmem:[%s942 + $0x9c] sm:$0xf]
        %v4364 = vsel %vm4271, %v4177, %v4363
        %4365 = vst [vmem:[%s942 + $0x9c] sm:$0xf] %v4364
        %4366 = vst.msk [vmem:[%s942 + $0xa0] sm:$0xf] %vm370, %v4186
        %v4367 = vld [vmem:[%s942 + $0xa4] sm:$0x1]
        %v4368 = vsel %vm381, %v4187, %v4367
        %4369 = vst [vmem:[%s942 + $0xa4] sm:$0x1] %v4368
        %v4370 = vld [vmem:[%s942 + $0xa8] sm:$0xf]
        %v4371 = vsel %vm4271, %v4194, %v4370
        %4372 = vst [vmem:[%s942 + $0xa8] sm:$0xf] %v4371
        %4373 = vst.msk [vmem:[%s942 + $0xac] sm:$0xf] %vm370, %v4203
        %v4374 = vld [vmem:[%s942 + $0xb0] sm:$0x1]
        %v4375 = vsel %vm381, %v4204, %v4374
        %4376 = vst [vmem:[%s942 + $0xb0] sm:$0x1] %v4375
        %v4377 = vld [vmem:[%s942 + $0xb4] sm:$0xf]
        %v4378 = vsel %vm4271, %v4211, %v4377
        %4379 = vst [vmem:[%s942 + $0xb4] sm:$0xf] %v4378
        %4380 = vst.msk [vmem:[%s942 + $0xb8] sm:$0xf] %vm370, %v4220
        %v4381 = vld [vmem:[%s942 + $0xbc] sm:$0x1]
        %v4382 = vsel %vm381, %v4221, %v4381
        %4383 = vst [vmem:[%s942 + $0xbc] sm:$0x1] %v4382
        %v4384 = vld [vmem:[%s4] sm:$0x1]
        %v4385 = vld [vmem:[#allocation2] sm:$0xf]
        %v4386 = vld [vmem:[#allocation2 + $0x4] sm:$0xf]
        %v4387 = vld [vmem:[#allocation2 + $0x8] sm:$0x1]
        %v4388 = vld [vmem:[#allocation2 + $0xc] sm:$0xf]
        %v4389 = vld [vmem:[#allocation2 + $0x10] sm:$0xf]
        %v4390 = vld [vmem:[#allocation2 + $0x14] sm:$0x1]
        %v4391 = vld [vmem:[#allocation2 + $0x18] sm:$0xf]
        %v4392 = vld [vmem:[#allocation2 + $0x1c] sm:$0xf]
        %v4393 = vld [vmem:[#allocation2 + $0x20] sm:$0x1]
        %v4394 = vld [vmem:[#allocation2 + $0x24] sm:$0xf]
        %v4395 = vld [vmem:[#allocation2 + $0x28] sm:$0xf]
        %v4396 = vld [vmem:[#allocation2 + $0x2c] sm:$0x1]
        %v4397 = vld [vmem:[#allocation2 + $0x30] sm:$0xf]
        %v4398 = vld [vmem:[#allocation2 + $0x34] sm:$0xf]
        %v4399 = vld [vmem:[#allocation2 + $0x38] sm:$0x1]
        %v4400 = vld [vmem:[#allocation2 + $0x3c] sm:$0xf]
        %v4401 = vld [vmem:[#allocation2 + $0x40] sm:$0xf]
        %v4402 = vld [vmem:[#allocation2 + $0x44] sm:$0x1]
        %v4403 = vld [vmem:[#allocation2 + $0x48] sm:$0xf]
        %v4404 = vld [vmem:[#allocation2 + $0x4c] sm:$0xf]
        %v4405 = vld [vmem:[#allocation2 + $0x50] sm:$0x1]
        %v4406 = vld [vmem:[#allocation2 + $0x54] sm:$0xf]
        %v4407 = vld [vmem:[#allocation2 + $0x58] sm:$0xf]
        %v4408 = vld [vmem:[#allocation2 + $0x5c] sm:$0x1]
        %v4409 = vld [vmem:[#allocation2 + $0x60] sm:$0xf]
        %v4410 = vld [vmem:[#allocation2 + $0x64] sm:$0xf]
        %v4411 = vld [vmem:[#allocation2 + $0x68] sm:$0x1]
        %v4412 = vld [vmem:[#allocation2 + $0x6c] sm:$0xf]
        %v4413 = vld [vmem:[#allocation2 + $0x70] sm:$0xf]
        %v4414 = vld [vmem:[#allocation2 + $0x74] sm:$0x1]
        %v4415 = vld [vmem:[#allocation2 + $0x78] sm:$0xf]
        %v4416 = vld [vmem:[#allocation2 + $0x7c] sm:$0xf]
        %v4417 = vld [vmem:[#allocation2 + $0x80] sm:$0x1]
        %v4418 = vld [vmem:[#allocation2 + $0x84] sm:$0xf]
        %v4419 = vld [vmem:[#allocation2 + $0x88] sm:$0xf]
        %v4420 = vld [vmem:[#allocation2 + $0x8c] sm:$0x1]
        %v4421 = vld [vmem:[#allocation2 + $0x90] sm:$0xf]
        %v4422 = vld [vmem:[#allocation2 + $0x94] sm:$0xf]
        %v4423 = vld [vmem:[#allocation2 + $0x98] sm:$0x1]
        %v4424 = vld [vmem:[#allocation2 + $0x9c] sm:$0xf]
        %v4425 = vld [vmem:[#allocation2 + $0xa0] sm:$0xf]
        %v4426 = vld [vmem:[#allocation2 + $0xa4] sm:$0x1]
        %v4427 = vld [vmem:[#allocation2 + $0xa8] sm:$0xf]
        %v4428 = vld [vmem:[#allocation2 + $0xac] sm:$0xf]
        %v4429 = vld [vmem:[#allocation2 + $0xb0] sm:$0x1]
        %v4430 = vld [vmem:[#allocation2 + $0xb4] sm:$0xf]
        %v4431 = vld [vmem:[#allocation2 + $0xb8] sm:$0xf]
        %v4432 = vld [vmem:[#allocation2 + $0xbc] sm:$0x1]
        %v4433 = vld [vmem:[#allocation2 + $0xc0] sm:$0xf]
        %v4434 = vld [vmem:[#allocation2 + $0xc4] sm:$0xf]
        %v4435 = vld [vmem:[#allocation2 + $0xc8] sm:$0x1]
        %v4436 = vld [vmem:[#allocation2 + $0xcc] sm:$0xf]
        %v4437 = vld [vmem:[#allocation2 + $0xd0] sm:$0xf]
        %v4438 = vld [vmem:[#allocation2 + $0xd4] sm:$0x1]
        %v4439 = vld [vmem:[%s3] sm:$0xf]
        %v4440 = vld [vmem:[%s3 + $0x4] sm:$0xf]
        %v4441 = vld [vmem:[%s3 + $0x8] sm:$0xf]
        %v4442 = vld [vmem:[%s3 + $0xc] sm:$0xf]
        %v4444 = vshrl.u32 %v4385, 16
        %v4446 = vrot.slane %v4444, 4
        %v4447 = vshll.u32 %v4385, 16
        %v4449 = vrot.slane %v4447, 5
        %v4450 = vor.u32 %v4446, %v4449
        %v4451 = vrot.slane %v4450, 4
        %v4453 = vshll.u32 %v4386, 16
        %v4455 = vrot.slane %v4453, 5
        %v4456 = vsel %vm1118, %v4451, %v4455
        %v4457 = vshrl.u32 %v4386, 16
        %v4459 = vrot.slane %v4457, 4
        %v4460 = vor.u32 %v4459, %v4455
        %v4461 = vrot.slane %v4460, 4
        %v4463 = vshll.u32 %v4387, 16
        %v4465 = vrot.slane %v4463, 5
        %v4466 = vsel %vm1118, %v4461, %v4465
        %v4468 = vshrl.u32 %v4388, 16
        %v4470 = vrot.slane %v4468, 4
        %v4471 = vshll.u32 %v4388, 16
        %v4473 = vrot.slane %v4471, 5
        %v4474 = vor.u32 %v4470, %v4473
        %v4475 = vrot.slane %v4474, 4
        %v4477 = vshll.u32 %v4389, 16
        %v4479 = vrot.slane %v4477, 5
        %v4480 = vsel %vm1118, %v4475, %v4479
        %v4481 = vshrl.u32 %v4389, 16
        %v4483 = vrot.slane %v4481, 4
        %v4484 = vor.u32 %v4483, %v4479
        %v4485 = vrot.slane %v4484, 4
        %v4487 = vshll.u32 %v4390, 16
        %v4489 = vrot.slane %v4487, 5
        %v4490 = vsel %vm1118, %v4485, %v4489
        %v4492 = vshrl.u32 %v4391, 16
        %v4494 = vrot.slane %v4492, 4
        %v4495 = vshll.u32 %v4391, 16
        %v4497 = vrot.slane %v4495, 5
        %v4498 = vor.u32 %v4494, %v4497
        %v4499 = vrot.slane %v4498, 4
        %v4501 = vshll.u32 %v4392, 16
        %v4503 = vrot.slane %v4501, 5
        %v4504 = vsel %vm1118, %v4499, %v4503
        %v4505 = vshrl.u32 %v4392, 16
        %v4507 = vrot.slane %v4505, 4
        %v4508 = vor.u32 %v4507, %v4503
        %v4509 = vrot.slane %v4508, 4
        %v4511 = vshll.u32 %v4393, 16
        %v4513 = vrot.slane %v4511, 5
        %v4514 = vsel %vm1118, %v4509, %v4513
        %v4516 = vshrl.u32 %v4394, 16
        %v4518 = vrot.slane %v4516, 4
        %v4519 = vshll.u32 %v4394, 16
        %v4521 = vrot.slane %v4519, 5
        %v4522 = vor.u32 %v4518, %v4521
        %v4523 = vrot.slane %v4522, 4
        %v4525 = vshll.u32 %v4395, 16
        %v4527 = vrot.slane %v4525, 5
        %v4528 = vsel %vm1118, %v4523, %v4527
        %v4529 = vshrl.u32 %v4395, 16
        %v4531 = vrot.slane %v4529, 4
        %v4532 = vor.u32 %v4531, %v4527
        %v4533 = vrot.slane %v4532, 4
        %v4535 = vshll.u32 %v4396, 16
        %v4537 = vrot.slane %v4535, 5
        %v4538 = vsel %vm1118, %v4533, %v4537
        %v4540 = vshrl.u32 %v4397, 16
        %v4542 = vrot.slane %v4540, 4
        %v4543 = vshll.u32 %v4397, 16
        %v4545 = vrot.slane %v4543, 5
        %v4546 = vor.u32 %v4542, %v4545
        %v4547 = vrot.slane %v4546, 4
        %v4549 = vshll.u32 %v4398, 16
        %v4551 = vrot.slane %v4549, 5
        %v4552 = vsel %vm1118, %v4547, %v4551
        %v4553 = vshrl.u32 %v4398, 16
        %v4555 = vrot.slane %v4553, 4
        %v4556 = vor.u32 %v4555, %v4551
        %v4557 = vrot.slane %v4556, 4
        %v4559 = vshll.u32 %v4399, 16
        %v4561 = vrot.slane %v4559, 5
        %v4562 = vsel %vm1118, %v4557, %v4561
        %v4564 = vshrl.u32 %v4400, 16
        %v4566 = vrot.slane %v4564, 4
        %v4567 = vshll.u32 %v4400, 16
        %v4569 = vrot.slane %v4567, 5
        %v4570 = vor.u32 %v4566, %v4569
        %v4571 = vrot.slane %v4570, 4
        %v4573 = vshll.u32 %v4401, 16
        %v4575 = vrot.slane %v4573, 5
        %v4576 = vsel %vm1118, %v4571, %v4575
        %v4577 = vshrl.u32 %v4401, 16
        %v4579 = vrot.slane %v4577, 4
        %v4580 = vor.u32 %v4579, %v4575
        %v4581 = vrot.slane %v4580, 4
        %v4583 = vshll.u32 %v4402, 16
        %v4585 = vrot.slane %v4583, 5
        %v4586 = vsel %vm1118, %v4581, %v4585
        %v4588 = vshrl.u32 %v4403, 16
        %v4590 = vrot.slane %v4588, 4
        %v4591 = vshll.u32 %v4403, 16
        %v4593 = vrot.slane %v4591, 5
        %v4594 = vor.u32 %v4590, %v4593
        %v4595 = vrot.slane %v4594, 4
        %v4597 = vshll.u32 %v4404, 16
        %v4599 = vrot.slane %v4597, 5
        %v4600 = vsel %vm1118, %v4595, %v4599
        %v4601 = vshrl.u32 %v4404, 16
        %v4603 = vrot.slane %v4601, 4
        %v4604 = vor.u32 %v4603, %v4599
        %v4605 = vrot.slane %v4604, 4
        %v4607 = vshll.u32 %v4405, 16
        %v4609 = vrot.slane %v4607, 5
        %v4610 = vsel %vm1118, %v4605, %v4609
        %v4612 = vshrl.u32 %v4406, 16
        %v4614 = vrot.slane %v4612, 4
        %v4615 = vshll.u32 %v4406, 16
        %v4617 = vrot.slane %v4615, 5
        %v4618 = vor.u32 %v4614, %v4617
        %v4619 = vrot.slane %v4618, 4
        %v4621 = vshll.u32 %v4407, 16
        %v4623 = vrot.slane %v4621, 5
        %v4624 = vsel %vm1118, %v4619, %v4623
        %v4625 = vshrl.u32 %v4407, 16
        %v4627 = vrot.slane %v4625, 4
        %v4628 = vor.u32 %v4627, %v4623
        %v4629 = vrot.slane %v4628, 4
        %v4631 = vshll.u32 %v4408, 16
        %v4633 = vrot.slane %v4631, 5
        %v4634 = vsel %vm1118, %v4629, %v4633
        %v4636 = vshrl.u32 %v4409, 16
        %v4638 = vrot.slane %v4636, 4
        %v4639 = vshll.u32 %v4409, 16
        %v4641 = vrot.slane %v4639, 5
        %v4642 = vor.u32 %v4638, %v4641
        %v4643 = vrot.slane %v4642, 4
        %v4645 = vshll.u32 %v4410, 16
        %v4647 = vrot.slane %v4645, 5
        %v4648 = vsel %vm1118, %v4643, %v4647
        %v4649 = vshrl.u32 %v4410, 16
        %v4651 = vrot.slane %v4649, 4
        %v4652 = vor.u32 %v4651, %v4647
        %v4653 = vrot.slane %v4652, 4
        %v4655 = vshll.u32 %v4411, 16
        %v4657 = vrot.slane %v4655, 5
        %v4658 = vsel %vm1118, %v4653, %v4657
        %v4660 = vshrl.u32 %v4412, 16
        %v4662 = vrot.slane %v4660, 4
        %v4663 = vshll.u32 %v4412, 16
        %v4665 = vrot.slane %v4663, 5
        %v4666 = vor.u32 %v4662, %v4665
        %v4667 = vrot.slane %v4666, 4
        %v4669 = vshll.u32 %v4413, 16
        %v4671 = vrot.slane %v4669, 5
        %v4672 = vsel %vm1118, %v4667, %v4671
        %v4673 = vshrl.u32 %v4413, 16
        %v4675 = vrot.slane %v4673, 4
        %v4676 = vor.u32 %v4675, %v4671
        %v4677 = vrot.slane %v4676, 4
        %v4679 = vshll.u32 %v4414, 16
        %v4681 = vrot.slane %v4679, 5
        %v4682 = vsel %vm1118, %v4677, %v4681
        %v4684 = vshrl.u32 %v4415, 16
        %v4686 = vrot.slane %v4684, 4
        %v4687 = vshll.u32 %v4415, 16
        %v4689 = vrot.slane %v4687, 5
        %v4690 = vor.u32 %v4686, %v4689
        %v4691 = vrot.slane %v4690, 4
        %v4693 = vshll.u32 %v4416, 16
        %v4695 = vrot.slane %v4693, 5
        %v4696 = vsel %vm1118, %v4691, %v4695
        %v4697 = vshrl.u32 %v4416, 16
        %v4699 = vrot.slane %v4697, 4
        %v4700 = vor.u32 %v4699, %v4695
        %v4701 = vrot.slane %v4700, 4
        %v4703 = vshll.u32 %v4417, 16
        %v4705 = vrot.slane %v4703, 5
        %v4706 = vsel %vm1118, %v4701, %v4705
        %v4708 = vshrl.u32 %v4418, 16
        %v4710 = vrot.slane %v4708, 4
        %v4711 = vshll.u32 %v4418, 16
        %v4713 = vrot.slane %v4711, 5
        %v4714 = vor.u32 %v4710, %v4713
        %v4715 = vrot.slane %v4714, 4
        %v4717 = vshll.u32 %v4419, 16
        %v4719 = vrot.slane %v4717, 5
        %v4720 = vsel %vm1118, %v4715, %v4719
        %v4721 = vshrl.u32 %v4419, 16
        %v4723 = vrot.slane %v4721, 4
        %v4724 = vor.u32 %v4723, %v4719
        %v4725 = vrot.slane %v4724, 4
        %v4727 = vshll.u32 %v4420, 16
        %v4729 = vrot.slane %v4727, 5
        %v4730 = vsel %vm1118, %v4725, %v4729
        %v4732 = vshrl.u32 %v4421, 16
        %v4734 = vrot.slane %v4732, 4
        %v4735 = vshll.u32 %v4421, 16
        %v4737 = vrot.slane %v4735, 5
        %v4738 = vor.u32 %v4734, %v4737
        %v4739 = vrot.slane %v4738, 4
        %v4741 = vshll.u32 %v4422, 16
        %v4743 = vrot.slane %v4741, 5
        %v4744 = vsel %vm1118, %v4739, %v4743
        %v4745 = vshrl.u32 %v4422, 16
        %v4747 = vrot.slane %v4745, 4
        %v4748 = vor.u32 %v4747, %v4743
        %v4749 = vrot.slane %v4748, 4
        %v4751 = vshll.u32 %v4423, 16
        %v4753 = vrot.slane %v4751, 5
        %v4754 = vsel %vm1118, %v4749, %v4753
        %v4756 = vshrl.u32 %v4424, 16
        %v4758 = vrot.slane %v4756, 4
        %v4759 = vshll.u32 %v4424, 16
        %v4761 = vrot.slane %v4759, 5
        %v4762 = vor.u32 %v4758, %v4761
        %v4763 = vrot.slane %v4762, 4
        %v4765 = vshll.u32 %v4425, 16
        %v4767 = vrot.slane %v4765, 5
        %v4768 = vsel %vm1118, %v4763, %v4767
        %v4769 = vshrl.u32 %v4425, 16
        %v4771 = vrot.slane %v4769, 4
        %v4772 = vor.u32 %v4771, %v4767
        %v4773 = vrot.slane %v4772, 4
        %v4775 = vshll.u32 %v4426, 16
        %v4777 = vrot.slane %v4775, 5
        %v4778 = vsel %vm1118, %v4773, %v4777
        %v4780 = vshrl.u32 %v4427, 16
        %v4782 = vrot.slane %v4780, 4
        %v4783 = vshll.u32 %v4427, 16
        %v4785 = vrot.slane %v4783, 5
        %v4786 = vor.u32 %v4782, %v4785
        %v4787 = vrot.slane %v4786, 4
        %v4789 = vshll.u32 %v4428, 16
        %v4791 = vrot.slane %v4789, 5
        %v4792 = vsel %vm1118, %v4787, %v4791
        %v4793 = vshrl.u32 %v4428, 16
        %v4795 = vrot.slane %v4793, 4
        %v4796 = vor.u32 %v4795, %v4791
        %v4797 = vrot.slane %v4796, 4
        %v4799 = vshll.u32 %v4429, 16
        %v4801 = vrot.slane %v4799, 5
        %v4802 = vsel %vm1118, %v4797, %v4801
        %v4804 = vshrl.u32 %v4430, 16
        %v4806 = vrot.slane %v4804, 4
        %v4807 = vshll.u32 %v4430, 16
        %v4809 = vrot.slane %v4807, 5
        %v4810 = vor.u32 %v4806, %v4809
        %v4811 = vrot.slane %v4810, 4
        %v4813 = vshll.u32 %v4431, 16
        %v4815 = vrot.slane %v4813, 5
        %v4816 = vsel %vm1118, %v4811, %v4815
        %v4817 = vshrl.u32 %v4431, 16
        %v4819 = vrot.slane %v4817, 4
        %v4820 = vor.u32 %v4819, %v4815
        %v4821 = vrot.slane %v4820, 4
        %v4823 = vshll.u32 %v4432, 16
        %v4825 = vrot.slane %v4823, 5
        %v4826 = vsel %vm1118, %v4821, %v4825
        %v4827 = vld [vmem:[%s3 + $0x10] sm:$0xf]
        %v4828 = vld [vmem:[%s3 + $0x14] sm:$0xf]
        %v4829 = vld [vmem:[%s3 + $0x18] sm:$0xf]
        %v4830 = vld [vmem:[%s3 + $0x1c] sm:$0xf]
        %v4831 = vunpack.c.l.b16 %v4456
        %v4832 = vunpack.c.l.b16 %v4466
        %v4833 = vunpack.c.l.b16 %v4480
        %v4834 = vunpack.c.l.b16 %v4490
        %v4835 = vunpack.c.l.b16 %v4504
        %v4836 = vunpack.c.l.b16 %v4514
        %v4837 = vunpack.c.l.b16 %v4528
        %v4838 = vunpack.c.l.b16 %v4538
        %v4839 = vunpack.c.l.b16 %v4552
        %v4840 = vunpack.c.l.b16 %v4562
        %v4841 = vunpack.c.l.b16 %v4576
        %v4842 = vunpack.c.l.b16 %v4586
        %v4843 = vunpack.c.l.b16 %v4600
        %v4844 = vunpack.c.l.b16 %v4610
        %v4845 = vunpack.c.l.b16 %v4624
        %v4846 = vunpack.c.l.b16 %v4634
        %v4847 = vunpack.c.l.b16 %v4648
        %v4848 = vunpack.c.l.b16 %v4658
        %v4849 = vunpack.c.l.b16 %v4672
        %v4850 = vunpack.c.l.b16 %v4682
        %v4851 = vunpack.c.l.b16 %v4696
        %v4852 = vunpack.c.l.b16 %v4706
        %v4853 = vunpack.c.l.b16 %v4720
        %v4854 = vunpack.c.l.b16 %v4730
        %v4855 = vunpack.c.l.b16 %v4744
        %v4856 = vunpack.c.l.b16 %v4754
        %v4857 = vunpack.c.l.b16 %v4768
        %v4858 = vunpack.c.l.b16 %v4778
        %v4859 = vunpack.c.l.b16 %v4792
        %v4860 = vunpack.c.l.b16 %v4802
        %v4861 = vunpack.c.l.b16 %v4816
        %v4862 = vunpack.c.l.b16 %v4826
        %v4863 = vpack.c.b16 %v4832, %v4831
        %v4864 = vpack.c.b16 %v4834, %v4833
        %v4865 = vpack.c.b16 %v4836, %v4835
        %v4866 = vpack.c.b16 %v4838, %v4837
        %v4867 = vpack.c.b16 %v4840, %v4839
        %v4868 = vpack.c.b16 %v4842, %v4841
        %v4869 = vpack.c.b16 %v4844, %v4843
        %v4870 = vpack.c.b16 %v4846, %v4845
        %v4871 = vpack.c.b16 %v4848, %v4847
        %v4872 = vpack.c.b16 %v4850, %v4849
        %v4873 = vpack.c.b16 %v4852, %v4851
        %v4874 = vpack.c.b16 %v4854, %v4853
        %v4875 = vpack.c.b16 %v4856, %v4855
        %v4876 = vpack.c.b16 %v4858, %v4857
        %v4877 = vpack.c.b16 %v4860, %v4859
        %v4878 = vpack.c.b16 %v4862, %v4861
        %v4883 = vunpack.c.l.b16 %v4827
        %v4884 = vunpack.c.l.b16 %v4828
        %v4885 = vunpack.c.l.b16 %v4829
        %v4886 = vunpack.c.l.b16 %v4830
        %v4887 = vpack.c.b16 %v4884, %v4883
        %v4888 = vpack.c.b16 %v4886, %v4885
        %vm4891 = vcmask 261120
        %v4893 = vsel %vm4891, %v4863, 0
        %v4896 = vsel %vm4891, %v4864, 0
        %v4899 = vsel %vm4891, %v4865, 0
        %v4902 = vsel %vm4891, %v4866, 0
        %v4905 = vsel %vm4891, %v4867, 0
        %v4908 = vsel %vm4891, %v4868, 0
        %v4911 = vsel %vm4891, %v4869, 0
        %v4914 = vsel %vm4891, %v4870, 0
        %v4917 = vsel %vm4891, %v4871, 0
        %v4920 = vsel %vm4891, %v4872, 0
        %v4923 = vsel %vm4891, %v4873, 0
        %v4926 = vsel %vm4891, %v4874, 0
        %v4929 = vsel %vm4891, %v4875, 0
        %v4932 = vsel %vm4891, %v4876, 0
        %v4935 = vsel %vm4891, %v4877, 0
        %v4938 = vsel %vm4891, %v4878, 0
        %4940 = vmatprep.subr.bf16.mxu0 0
        %4941 = vmatpush1.bf16.msra.mxu0 0
        %4942 = vmatprep.subr.bf16.mxu0 0
        %4943 = vmatpush1.bf16.msra.mxu0 0
        %4944 = vmatprep.subr.bf16.mxu0 0
        %4945 = vmatpush1.bf16.msra.mxu0 0
        %4946 = vmatprep.subr.bf16.mxu0 0
        %4947 = vmatpush1.bf16.msra.mxu0 0
        %4948 = vmatprep.subr.bf16.mxu0 0
        %4949 = vmatpush1.bf16.msra.mxu0 0
        %4950 = vmatprep.subr.bf16.mxu0 0
        %4951 = vmatpush1.bf16.msra.mxu0 0
        %4952 = vmatprep.subr.bf16.mxu0 0
        %4953 = vmatpush1.bf16.msra.mxu0 %v4888
        %4954 = vmatprep.subr.bf16.mxu0 0
        %4955 = vmatpush1.bf16.msra.mxu0 %v4887
        %4956 = vmatprep.subr.bf16.mxu0 0
        %4957 = vmatpush2.bf16.msra.mxu0 0
        %4958 = vmatprep.subr.bf16.mxu0 0
        %4959 = vmatpush2.bf16.msra.mxu0 0
        %4960 = vmatprep.subr.bf16.mxu0 0
        %4961 = vmatpush2.bf16.msra.mxu0 0
        %4962 = vmatprep.subr.bf16.mxu0 0
        %4963 = vmatpush2.bf16.msra.mxu0 0
        %4964 = vmatprep.subr.bf16.mxu0 0
        %4965 = vmatpush2.bf16.msra.mxu0 0
        %4966 = vmatprep.subr.bf16.mxu0 0
        %4967 = vmatpush2.bf16.msra.mxu0 0
        %4968 = vmatprep.subr.bf16.mxu0 0
        %4969 = vmatpush2.bf16.msra.mxu0 0
        %4970 = vmatprep.subr.bf16.mxu0 0
        %4971 = vmatpush2.bf16.msra.mxu0 0
        %4972 = vmatprep.mubr.bf16.mxu0 0
        %4973 = vmatmul.mubr.bf16.gmra.mxu0 %v4893
        %v4974 = vpop.f32.mrf.mxu0
        %v4975 = vadd.f32 0.0, %v4974
        %v4976 = vpop.f32.mrf.mxu0
        %v4977 = vpop.f32.mrf.mxu0
        %v4978 = vadd.f32 0.0, %v4977
        %v4979 = vpop.f32.mrf.mxu0
        %4980 = vmatprep.mubr.bf16.mxu0 0
        %4981 = vmatmul.mubr.bf16.gmra.mxu0 %v4896
        %v4982 = vpop.f32.mrf.mxu0
        %v4983 = vadd.f32 0.0, %v4982
        %v4984 = vpop.f32.mrf.mxu0
        %v4985 = vpop.f32.mrf.mxu0
        %v4986 = vadd.f32 0.0, %v4985
        %v4987 = vpop.f32.mrf.mxu0
        %4988 = vmatprep.mubr.bf16.mxu0 0
        %4989 = vmatmul.mubr.bf16.gmra.mxu0 %v4899
        %v4990 = vpop.f32.mrf.mxu0
        %v4991 = vadd.f32 0.0, %v4990
        %v4992 = vpop.f32.mrf.mxu0
        %v4993 = vpop.f32.mrf.mxu0
        %v4994 = vadd.f32 0.0, %v4993
        %v4995 = vpop.f32.mrf.mxu0
        %4996 = vmatprep.mubr.bf16.mxu0 0
        %4997 = vmatmul.mubr.bf16.gmra.mxu0 %v4902
        %v4998 = vpop.f32.mrf.mxu0
        %v4999 = vadd.f32 0.0, %v4998
        %v5000 = vpop.f32.mrf.mxu0
        %v5001 = vpop.f32.mrf.mxu0
        %v5002 = vadd.f32 0.0, %v5001
        %v5003 = vpop.f32.mrf.mxu0
        %5004 = vmatprep.mubr.bf16.mxu0 0
        %5005 = vmatmul.mubr.bf16.gmra.mxu0 %v4905
        %v5006 = vpop.f32.mrf.mxu0
        %v5007 = vadd.f32 0.0, %v5006
        %v5008 = vpop.f32.mrf.mxu0
        %v5009 = vpop.f32.mrf.mxu0
        %v5010 = vadd.f32 0.0, %v5009
        %v5011 = vpop.f32.mrf.mxu0
        %5012 = vmatprep.mubr.bf16.mxu0 0
        %5013 = vmatmul.mubr.bf16.gmra.mxu0 %v4908
        %v5014 = vpop.f32.mrf.mxu0
        %v5015 = vadd.f32 0.0, %v5014
        %v5016 = vpop.f32.mrf.mxu0
        %v5017 = vpop.f32.mrf.mxu0
        %v5018 = vadd.f32 0.0, %v5017
        %v5019 = vpop.f32.mrf.mxu0
        %5020 = vmatprep.mubr.bf16.mxu0 0
        %5021 = vmatmul.mubr.bf16.gmra.mxu0 %v4911
        %v5022 = vpop.f32.mrf.mxu0
        %v5023 = vadd.f32 0.0, %v5022
        %v5024 = vpop.f32.mrf.mxu0
        %v5025 = vpop.f32.mrf.mxu0
        %v5026 = vadd.f32 0.0, %v5025
        %v5027 = vpop.f32.mrf.mxu0
        %5028 = vmatprep.mubr.bf16.mxu0 0
        %5029 = vmatmul.mubr.bf16.gmra.mxu0 %v4914
        %v5030 = vpop.f32.mrf.mxu0
        %v5031 = vadd.f32 0.0, %v5030
        %v5032 = vpop.f32.mrf.mxu0
        %v5033 = vpop.f32.mrf.mxu0
        %v5034 = vadd.f32 0.0, %v5033
        %v5035 = vpop.f32.mrf.mxu0
        %5036 = vmatprep.mubr.bf16.mxu0 0
        %5037 = vmatmul.mubr.bf16.gmra.mxu0 %v4917
        %v5038 = vpop.f32.mrf.mxu0
        %v5039 = vadd.f32 0.0, %v5038
        %v5040 = vpop.f32.mrf.mxu0
        %v5041 = vpop.f32.mrf.mxu0
        %v5042 = vadd.f32 0.0, %v5041
        %v5043 = vpop.f32.mrf.mxu0
        %5044 = vmatprep.mubr.bf16.mxu0 0
        %5045 = vmatmul.mubr.bf16.gmra.mxu0 %v4920
        %v5046 = vpop.f32.mrf.mxu0
        %v5047 = vadd.f32 0.0, %v5046
        %v5048 = vpop.f32.mrf.mxu0
        %v5049 = vpop.f32.mrf.mxu0
        %v5050 = vadd.f32 0.0, %v5049
        %v5051 = vpop.f32.mrf.mxu0
        %5052 = vmatprep.mubr.bf16.mxu0 0
        %5053 = vmatmul.mubr.bf16.gmra.mxu0 %v4923
        %v5054 = vpop.f32.mrf.mxu0
        %v5055 = vadd.f32 0.0, %v5054
        %v5056 = vpop.f32.mrf.mxu0
        %v5057 = vpop.f32.mrf.mxu0
        %v5058 = vadd.f32 0.0, %v5057
        %v5059 = vpop.f32.mrf.mxu0
        %5060 = vmatprep.mubr.bf16.mxu0 0
        %5061 = vmatmul.mubr.bf16.gmra.mxu0 %v4926
        %v5062 = vpop.f32.mrf.mxu0
        %v5063 = vadd.f32 0.0, %v5062
        %v5064 = vpop.f32.mrf.mxu0
        %v5065 = vpop.f32.mrf.mxu0
        %v5066 = vadd.f32 0.0, %v5065
        %v5067 = vpop.f32.mrf.mxu0
        %5068 = vmatprep.mubr.bf16.mxu0 0
        %5069 = vmatmul.mubr.bf16.gmra.mxu0 %v4929
        %v5070 = vpop.f32.mrf.mxu0
        %v5071 = vadd.f32 0.0, %v5070
        %v5072 = vpop.f32.mrf.mxu0
        %v5073 = vpop.f32.mrf.mxu0
        %v5074 = vadd.f32 0.0, %v5073
        %v5075 = vpop.f32.mrf.mxu0
        %5076 = vmatprep.mubr.bf16.mxu0 0
        %5077 = vmatmul.mubr.bf16.gmra.mxu0 %v4932
        %v5078 = vpop.f32.mrf.mxu0
        %v5079 = vadd.f32 0.0, %v5078
        %v5080 = vpop.f32.mrf.mxu0
        %v5081 = vpop.f32.mrf.mxu0
        %v5082 = vadd.f32 0.0, %v5081
        %v5083 = vpop.f32.mrf.mxu0
        %5084 = vmatprep.mubr.bf16.mxu0 0
        %5085 = vmatmul.mubr.bf16.gmra.mxu0 %v4935
        %v5086 = vpop.f32.mrf.mxu0
        %v5087 = vadd.f32 0.0, %v5086
        %v5088 = vpop.f32.mrf.mxu0
        %v5089 = vpop.f32.mrf.mxu0
        %v5090 = vadd.f32 0.0, %v5089
        %v5091 = vpop.f32.mrf.mxu0
        %5092 = vmatprep.mubr.bf16.mxu0 0
        %5093 = vmatmul.mubr.bf16.gmra.mxu0 %v4938
        %v5094 = vpop.f32.mrf.mxu0
        %v5095 = vadd.f32 0.0, %v5094
        %v5096 = vpop.f32.mrf.mxu0
        %v5097 = vpop.f32.mrf.mxu0
        %v5098 = vadd.f32 0.0, %v5097
        %v5099 = vpop.f32.mrf.mxu0
        %5100 = vdwg.mxu0
        %v5133 = vunpack.c.l.b16 %v4385
        %v5134 = vunpack.c.l.b16 %v4386
        %v5135 = vunpack.c.l.b16 %v4388
        %v5136 = vunpack.c.l.b16 %v4389
        %v5137 = vunpack.c.l.b16 %v4391
        %v5138 = vunpack.c.l.b16 %v4392
        %v5139 = vunpack.c.l.b16 %v4394
        %v5140 = vunpack.c.l.b16 %v4395
        %v5141 = vunpack.c.l.b16 %v4397
        %v5142 = vunpack.c.l.b16 %v4398
        %v5143 = vunpack.c.l.b16 %v4400
        %v5144 = vunpack.c.l.b16 %v4401
        %v5145 = vunpack.c.l.b16 %v4403
        %v5146 = vunpack.c.l.b16 %v4404
        %v5147 = vunpack.c.l.b16 %v4406
        %v5148 = vunpack.c.l.b16 %v4407
        %v5149 = vunpack.c.l.b16 %v4409
        %v5150 = vunpack.c.l.b16 %v4410
        %v5151 = vunpack.c.l.b16 %v4412
        %v5152 = vunpack.c.l.b16 %v4413
        %v5153 = vunpack.c.l.b16 %v4415
        %v5154 = vunpack.c.l.b16 %v4416
        %v5155 = vunpack.c.l.b16 %v4418
        %v5156 = vunpack.c.l.b16 %v4419
        %v5157 = vunpack.c.l.b16 %v4421
        %v5158 = vunpack.c.l.b16 %v4422
        %v5159 = vunpack.c.l.b16 %v4424
        %v5160 = vunpack.c.l.b16 %v4425
        %v5161 = vunpack.c.l.b16 %v4427
        %v5162 = vunpack.c.l.b16 %v4428
        %v5163 = vunpack.c.l.b16 %v4430
        %v5164 = vunpack.c.l.b16 %v4431
        %v5165 = vpack.c.b16 %v5134, %v5133
        %v5166 = vpack.c.b16 %v5136, %v5135
        %v5167 = vpack.c.b16 %v5138, %v5137
        %v5168 = vpack.c.b16 %v5140, %v5139
        %v5169 = vpack.c.b16 %v5142, %v5141
        %v5170 = vpack.c.b16 %v5144, %v5143
        %v5171 = vpack.c.b16 %v5146, %v5145
        %v5172 = vpack.c.b16 %v5148, %v5147
        %v5173 = vpack.c.b16 %v5150, %v5149
        %v5174 = vpack.c.b16 %v5152, %v5151
        %v5175 = vpack.c.b16 %v5154, %v5153
        %v5176 = vpack.c.b16 %v5156, %v5155
        %v5177 = vpack.c.b16 %v5158, %v5157
        %v5178 = vpack.c.b16 %v5160, %v5159
        %v5179 = vpack.c.b16 %v5162, %v5161
        %v5180 = vpack.c.b16 %v5164, %v5163
        %v5185 = vunpack.c.l.b16 %v4439
        %v5186 = vunpack.c.l.b16 %v4440
        %v5187 = vunpack.c.l.b16 %v4441
        %v5188 = vunpack.c.l.b16 %v4442
        %v5189 = vpack.c.b16 %v5186, %v5185
        %v5190 = vpack.c.b16 %v5188, %v5187
        %v5194 = vsel %vm4891, %v5165, 0
        %v5197 = vsel %vm4891, %v5166, 0
        %v5200 = vsel %vm4891, %v5167, 0
        %v5203 = vsel %vm4891, %v5168, 0
        %v5206 = vsel %vm4891, %v5169, 0
        %v5209 = vsel %vm4891, %v5170, 0
        %v5212 = vsel %vm4891, %v5171, 0
        %v5215 = vsel %vm4891, %v5172, 0
        %v5218 = vsel %vm4891, %v5173, 0
        %v5221 = vsel %vm4891, %v5174, 0
        %v5224 = vsel %vm4891, %v5175, 0
        %v5227 = vsel %vm4891, %v5176, 0
        %v5230 = vsel %vm4891, %v5177, 0
        %v5233 = vsel %vm4891, %v5178, 0
        %v5236 = vsel %vm4891, %v5179, 0
        %v5239 = vsel %vm4891, %v5180, 0
        %5241 = vmatprep.subr.bf16.mxu0 0
        %5242 = vmatpush1.bf16.msra.mxu0 0
        %5243 = vmatprep.subr.bf16.mxu0 0
        %5244 = vmatpush1.bf16.msra.mxu0 0
        %5245 = vmatprep.subr.bf16.mxu0 0
        %5246 = vmatpush1.bf16.msra.mxu0 0
        %5247 = vmatprep.subr.bf16.mxu0 0
        %5248 = vmatpush1.bf16.msra.mxu0 0
        %5249 = vmatprep.subr.bf16.mxu0 0
        %5250 = vmatpush1.bf16.msra.mxu0 0
        %5251 = vmatprep.subr.bf16.mxu0 0
        %5252 = vmatpush1.bf16.msra.mxu0 0
        %5253 = vmatprep.subr.bf16.mxu0 0
        %5254 = vmatpush1.bf16.msra.mxu0 %v5190
        %5255 = vmatprep.subr.bf16.mxu0 0
        %5256 = vmatpush1.bf16.msra.mxu0 %v5189
        %5257 = vmatprep.subr.bf16.mxu0 0
        %5258 = vmatpush2.bf16.msra.mxu0 0
        %5259 = vmatprep.subr.bf16.mxu0 0
        %5260 = vmatpush2.bf16.msra.mxu0 0
        %5261 = vmatprep.subr.bf16.mxu0 0
        %5262 = vmatpush2.bf16.msra.mxu0 0
        %5263 = vmatprep.subr.bf16.mxu0 0
        %5264 = vmatpush2.bf16.msra.mxu0 0
        %5265 = vmatprep.subr.bf16.mxu0 0
        %5266 = vmatpush2.bf16.msra.mxu0 0
        %5267 = vmatprep.subr.bf16.mxu0 0
        %5268 = vmatpush2.bf16.msra.mxu0 0
        %5269 = vmatprep.subr.bf16.mxu0 0
        %5270 = vmatpush2.bf16.msra.mxu0 0
        %5271 = vmatprep.subr.bf16.mxu0 0
        %5272 = vmatpush2.bf16.msra.mxu0 0
        %5273 = vmatprep.mubr.bf16.mxu0 0
        %5274 = vmatmul.mubr.bf16.gmra.mxu0 %v5194
        %v5275 = vpop.f32.mrf.mxu0
        %v5276 = vadd.f32 %v4975, %v5275
        %v5277 = vpop.f32.mrf.mxu0
        %v5278 = vpop.f32.mrf.mxu0
        %v5279 = vadd.f32 %v4978, %v5278
        %v5280 = vpop.f32.mrf.mxu0
        %5281 = vmatprep.mubr.bf16.mxu0 0
        %5282 = vmatmul.mubr.bf16.gmra.mxu0 %v5197
        %v5283 = vpop.f32.mrf.mxu0
        %v5284 = vadd.f32 %v4983, %v5283
        %v5285 = vpop.f32.mrf.mxu0
        %v5286 = vpop.f32.mrf.mxu0
        %v5287 = vadd.f32 %v4986, %v5286
        %v5288 = vpop.f32.mrf.mxu0
        %5289 = vmatprep.mubr.bf16.mxu0 0
        %5290 = vmatmul.mubr.bf16.gmra.mxu0 %v5200
        %v5291 = vpop.f32.mrf.mxu0
        %v5292 = vadd.f32 %v4991, %v5291
        %v5293 = vpop.f32.mrf.mxu0
        %v5294 = vpop.f32.mrf.mxu0
        %v5295 = vadd.f32 %v4994, %v5294
        %v5296 = vpop.f32.mrf.mxu0
        %5297 = vmatprep.mubr.bf16.mxu0 0
        %5298 = vmatmul.mubr.bf16.gmra.mxu0 %v5203
        %v5299 = vpop.f32.mrf.mxu0
        %v5300 = vadd.f32 %v4999, %v5299
        %v5301 = vpop.f32.mrf.mxu0
        %v5302 = vpop.f32.mrf.mxu0
        %v5303 = vadd.f32 %v5002, %v5302
        %v5304 = vpop.f32.mrf.mxu0
        %5305 = vmatprep.mubr.bf16.mxu0 0
        %5306 = vmatmul.mubr.bf16.gmra.mxu0 %v5206
        %v5307 = vpop.f32.mrf.mxu0
        %v5308 = vadd.f32 %v5007, %v5307
        %v5309 = vpop.f32.mrf.mxu0
        %v5310 = vpop.f32.mrf.mxu0
        %v5311 = vadd.f32 %v5010, %v5310
        %v5312 = vpop.f32.mrf.mxu0
        %5313 = vmatprep.mubr.bf16.mxu0 0
        %5314 = vmatmul.mubr.bf16.gmra.mxu0 %v5209
        %v5315 = vpop.f32.mrf.mxu0
        %v5316 = vadd.f32 %v5015, %v5315
        %v5317 = vpop.f32.mrf.mxu0
        %v5318 = vpop.f32.mrf.mxu0
        %v5319 = vadd.f32 %v5018, %v5318
        %v5320 = vpop.f32.mrf.mxu0
        %5321 = vmatprep.mubr.bf16.mxu0 0
        %5322 = vmatmul.mubr.bf16.gmra.mxu0 %v5212
        %v5323 = vpop.f32.mrf.mxu0
        %v5324 = vadd.f32 %v5023, %v5323
        %v5325 = vpop.f32.mrf.mxu0
        %v5326 = vpop.f32.mrf.mxu0
        %v5327 = vadd.f32 %v5026, %v5326
        %v5328 = vpop.f32.mrf.mxu0
        %5329 = vmatprep.mubr.bf16.mxu0 0
        %5330 = vmatmul.mubr.bf16.gmra.mxu0 %v5215
        %v5331 = vpop.f32.mrf.mxu0
        %v5332 = vadd.f32 %v5031, %v5331
        %v5333 = vpop.f32.mrf.mxu0
        %v5334 = vpop.f32.mrf.mxu0
        %v5335 = vadd.f32 %v5034, %v5334
        %v5336 = vpop.f32.mrf.mxu0
        %5337 = vmatprep.mubr.bf16.mxu0 0
        %5338 = vmatmul.mubr.bf16.gmra.mxu0 %v5218
        %v5339 = vpop.f32.mrf.mxu0
        %v5340 = vadd.f32 %v5039, %v5339
        %v5341 = vpop.f32.mrf.mxu0
        %v5342 = vpop.f32.mrf.mxu0
        %v5343 = vadd.f32 %v5042, %v5342
        %v5344 = vpop.f32.mrf.mxu0
        %5345 = vmatprep.mubr.bf16.mxu0 0
        %5346 = vmatmul.mubr.bf16.gmra.mxu0 %v5221
        %v5347 = vpop.f32.mrf.mxu0
        %v5348 = vadd.f32 %v5047, %v5347
        %v5349 = vpop.f32.mrf.mxu0
        %v5350 = vpop.f32.mrf.mxu0
        %v5351 = vadd.f32 %v5050, %v5350
        %v5352 = vpop.f32.mrf.mxu0
        %5353 = vmatprep.mubr.bf16.mxu0 0
        %5354 = vmatmul.mubr.bf16.gmra.mxu0 %v5224
        %v5355 = vpop.f32.mrf.mxu0
        %v5356 = vadd.f32 %v5055, %v5355
        %v5357 = vpop.f32.mrf.mxu0
        %v5358 = vpop.f32.mrf.mxu0
        %v5359 = vadd.f32 %v5058, %v5358
        %v5360 = vpop.f32.mrf.mxu0
        %5361 = vmatprep.mubr.bf16.mxu0 0
        %5362 = vmatmul.mubr.bf16.gmra.mxu0 %v5227
        %v5363 = vpop.f32.mrf.mxu0
        %v5364 = vadd.f32 %v5063, %v5363
        %v5365 = vpop.f32.mrf.mxu0
        %v5366 = vpop.f32.mrf.mxu0
        %v5367 = vadd.f32 %v5066, %v5366
        %v5368 = vpop.f32.mrf.mxu0
        %5369 = vmatprep.mubr.bf16.mxu0 0
        %5370 = vmatmul.mubr.bf16.gmra.mxu0 %v5230
        %v5371 = vpop.f32.mrf.mxu0
        %v5372 = vadd.f32 %v5071, %v5371
        %v5373 = vpop.f32.mrf.mxu0
        %v5374 = vpop.f32.mrf.mxu0
        %v5375 = vadd.f32 %v5074, %v5374
        %v5376 = vpop.f32.mrf.mxu0
        %5377 = vmatprep.mubr.bf16.mxu0 0
        %5378 = vmatmul.mubr.bf16.gmra.mxu0 %v5233
        %v5379 = vpop.f32.mrf.mxu0
        %v5380 = vadd.f32 %v5079, %v5379
        %v5381 = vpop.f32.mrf.mxu0
        %v5382 = vpop.f32.mrf.mxu0
        %v5383 = vadd.f32 %v5082, %v5382
        %v5384 = vpop.f32.mrf.mxu0
        %5385 = vmatprep.mubr.bf16.mxu0 0
        %5386 = vmatmul.mubr.bf16.gmra.mxu0 %v5236
        %v5387 = vpop.f32.mrf.mxu0
        %v5388 = vadd.f32 %v5087, %v5387
        %v5389 = vpop.f32.mrf.mxu0
        %v5390 = vpop.f32.mrf.mxu0
        %v5391 = vadd.f32 %v5090, %v5390
        %v5392 = vpop.f32.mrf.mxu0
        %5393 = vmatprep.mubr.bf16.mxu0 0
        %5394 = vmatmul.mubr.bf16.gmra.mxu0 %v5239
        %v5395 = vpop.f32.mrf.mxu0
        %v5396 = vadd.f32 %v5095, %v5395
        %v5397 = vpop.f32.mrf.mxu0
        %v5398 = vpop.f32.mrf.mxu0
        %v5399 = vadd.f32 %v5098, %v5398
        %v5400 = vpop.f32.mrf.mxu0
        %5401 = vdwg.mxu0
        %v5418 = vrot.slane %v4385, 5
        %v5419 = vrot.slane %v5418, 4
        %v5420 = vrot.slane %v4386, 5
        %v5421 = vsel %vm2080, %v5419, %v5420
        %v5422 = vrot.slane %v5420, 4
        %v5423 = vrot.slane %v4387, 5
        %v5424 = vsel %vm2080, %v5422, %v5423
        %v5425 = vrot.slane %v4388, 5
        %v5426 = vrot.slane %v5425, 4
        %v5427 = vrot.slane %v4389, 5
        %v5428 = vsel %vm2080, %v5426, %v5427
        %v5429 = vrot.slane %v5427, 4
        %v5430 = vrot.slane %v4390, 5
        %v5431 = vsel %vm2080, %v5429, %v5430
        %v5432 = vrot.slane %v4391, 5
        %v5433 = vrot.slane %v5432, 4
        %v5434 = vrot.slane %v4392, 5
        %v5435 = vsel %vm2080, %v5433, %v5434
        %v5436 = vrot.slane %v5434, 4
        %v5437 = vrot.slane %v4393, 5
        %v5438 = vsel %vm2080, %v5436, %v5437
        %v5439 = vrot.slane %v4394, 5
        %v5440 = vrot.slane %v5439, 4
        %v5441 = vrot.slane %v4395, 5
        %v5442 = vsel %vm2080, %v5440, %v5441
        %v5443 = vrot.slane %v5441, 4
        %v5444 = vrot.slane %v4396, 5
        %v5445 = vsel %vm2080, %v5443, %v5444
        %v5446 = vrot.slane %v4397, 5
        %v5447 = vrot.slane %v5446, 4
        %v5448 = vrot.slane %v4398, 5
        %v5449 = vsel %vm2080, %v5447, %v5448
        %v5450 = vrot.slane %v5448, 4
        %v5451 = vrot.slane %v4399, 5
        %v5452 = vsel %vm2080, %v5450, %v5451
        %v5453 = vrot.slane %v4400, 5
        %v5454 = vrot.slane %v5453, 4
        %v5455 = vrot.slane %v4401, 5
        %v5456 = vsel %vm2080, %v5454, %v5455
        %v5457 = vrot.slane %v5455, 4
        %v5458 = vrot.slane %v4402, 5
        %v5459 = vsel %vm2080, %v5457, %v5458
        %v5460 = vrot.slane %v4403, 5
        %v5461 = vrot.slane %v5460, 4
        %v5462 = vrot.slane %v4404, 5
        %v5463 = vsel %vm2080, %v5461, %v5462
        %v5464 = vrot.slane %v5462, 4
        %v5465 = vrot.slane %v4405, 5
        %v5466 = vsel %vm2080, %v5464, %v5465
        %v5467 = vrot.slane %v4406, 5
        %v5468 = vrot.slane %v5467, 4
        %v5469 = vrot.slane %v4407, 5
        %v5470 = vsel %vm2080, %v5468, %v5469
        %v5471 = vrot.slane %v5469, 4
        %v5472 = vrot.slane %v4408, 5
        %v5473 = vsel %vm2080, %v5471, %v5472
        %v5474 = vrot.slane %v4409, 5
        %v5475 = vrot.slane %v5474, 4
        %v5476 = vrot.slane %v4410, 5
        %v5477 = vsel %vm2080, %v5475, %v5476
        %v5478 = vrot.slane %v5476, 4
        %v5479 = vrot.slane %v4411, 5
        %v5480 = vsel %vm2080, %v5478, %v5479
        %v5481 = vrot.slane %v4412, 5
        %v5482 = vrot.slane %v5481, 4
        %v5483 = vrot.slane %v4413, 5
        %v5484 = vsel %vm2080, %v5482, %v5483
        %v5485 = vrot.slane %v5483, 4
        %v5486 = vrot.slane %v4414, 5
        %v5487 = vsel %vm2080, %v5485, %v5486
        %v5488 = vrot.slane %v4415, 5
        %v5489 = vrot.slane %v5488, 4
        %v5490 = vrot.slane %v4416, 5
        %v5491 = vsel %vm2080, %v5489, %v5490
        %v5492 = vrot.slane %v5490, 4
        %v5493 = vrot.slane %v4417, 5
        %v5494 = vsel %vm2080, %v5492, %v5493
        %v5495 = vrot.slane %v4418, 5
        %v5496 = vrot.slane %v5495, 4
        %v5497 = vrot.slane %v4419, 5
        %v5498 = vsel %vm2080, %v5496, %v5497
        %v5499 = vrot.slane %v5497, 4
        %v5500 = vrot.slane %v4420, 5
        %v5501 = vsel %vm2080, %v5499, %v5500
        %v5502 = vrot.slane %v4421, 5
        %v5503 = vrot.slane %v5502, 4
        %v5504 = vrot.slane %v4422, 5
        %v5505 = vsel %vm2080, %v5503, %v5504
        %v5506 = vrot.slane %v5504, 4
        %v5507 = vrot.slane %v4423, 5
        %v5508 = vsel %vm2080, %v5506, %v5507
        %v5509 = vrot.slane %v4424, 5
        %v5510 = vrot.slane %v5509, 4
        %v5511 = vrot.slane %v4425, 5
        %v5512 = vsel %vm2080, %v5510, %v5511
        %v5513 = vrot.slane %v5511, 4
        %v5514 = vrot.slane %v4426, 5
        %v5515 = vsel %vm2080, %v5513, %v5514
        %v5516 = vrot.slane %v4427, 5
        %v5517 = vrot.slane %v5516, 4
        %v5518 = vrot.slane %v4428, 5
        %v5519 = vsel %vm2080, %v5517, %v5518
        %v5520 = vrot.slane %v5518, 4
        %v5521 = vrot.slane %v4429, 5
        %v5522 = vsel %vm2080, %v5520, %v5521
        %v5523 = vrot.slane %v4430, 5
        %v5524 = vrot.slane %v5523, 4
        %v5525 = vrot.slane %v4431, 5
        %v5526 = vsel %vm2080, %v5524, %v5525
        %v5527 = vrot.slane %v5525, 4
        %v5528 = vrot.slane %v4432, 5
        %v5529 = vsel %vm2080, %v5527, %v5528
        %v5530 = vld [vmem:[%s3 + $0x20] sm:$0xf]
        %v5531 = vld [vmem:[%s3 + $0x24] sm:$0xf]
        %v5532 = vld [vmem:[%s3 + $0x28] sm:$0xf]
        %v5533 = vld [vmem:[%s3 + $0x2c] sm:$0xf]
        %v5534 = vunpack.c.l.b16 %v5421
        %v5535 = vunpack.c.l.b16 %v5424
        %v5536 = vunpack.c.l.b16 %v5428
        %v5537 = vunpack.c.l.b16 %v5431
        %v5538 = vunpack.c.l.b16 %v5435
        %v5539 = vunpack.c.l.b16 %v5438
        %v5540 = vunpack.c.l.b16 %v5442
        %v5541 = vunpack.c.l.b16 %v5445
        %v5542 = vunpack.c.l.b16 %v5449
        %v5543 = vunpack.c.l.b16 %v5452
        %v5544 = vunpack.c.l.b16 %v5456
        %v5545 = vunpack.c.l.b16 %v5459
        %v5546 = vunpack.c.l.b16 %v5463
        %v5547 = vunpack.c.l.b16 %v5466
        %v5548 = vunpack.c.l.b16 %v5470
        %v5549 = vunpack.c.l.b16 %v5473
        %v5550 = vunpack.c.l.b16 %v5477
        %v5551 = vunpack.c.l.b16 %v5480
        %v5552 = vunpack.c.l.b16 %v5484
        %v5553 = vunpack.c.l.b16 %v5487
        %v5554 = vunpack.c.l.b16 %v5491
        %v5555 = vunpack.c.l.b16 %v5494
        %v5556 = vunpack.c.l.b16 %v5498
        %v5557 = vunpack.c.l.b16 %v5501
        %v5558 = vunpack.c.l.b16 %v5505
        %v5559 = vunpack.c.l.b16 %v5508
        %v5560 = vunpack.c.l.b16 %v5512
        %v5561 = vunpack.c.l.b16 %v5515
        %v5562 = vunpack.c.l.b16 %v5519
        %v5563 = vunpack.c.l.b16 %v5522
        %v5564 = vunpack.c.l.b16 %v5526
        %v5565 = vunpack.c.l.b16 %v5529
        %v5566 = vpack.c.b16 %v5535, %v5534
        %v5567 = vpack.c.b16 %v5537, %v5536
        %v5568 = vpack.c.b16 %v5539, %v5538
        %v5569 = vpack.c.b16 %v5541, %v5540
        %v5570 = vpack.c.b16 %v5543, %v5542
        %v5571 = vpack.c.b16 %v5545, %v5544
        %v5572 = vpack.c.b16 %v5547, %v5546
        %v5573 = vpack.c.b16 %v5549, %v5548
        %v5574 = vpack.c.b16 %v5551, %v5550
        %v5575 = vpack.c.b16 %v5553, %v5552
        %v5576 = vpack.c.b16 %v5555, %v5554
        %v5577 = vpack.c.b16 %v5557, %v5556
        %v5578 = vpack.c.b16 %v5559, %v5558
        %v5579 = vpack.c.b16 %v5561, %v5560
        %v5580 = vpack.c.b16 %v5563, %v5562
        %v5581 = vpack.c.b16 %v5565, %v5564
        %v5586 = vunpack.c.l.b16 %v5530
        %v5587 = vunpack.c.l.b16 %v5531
        %v5588 = vunpack.c.l.b16 %v5532
        %v5589 = vunpack.c.l.b16 %v5533
        %v5590 = vpack.c.b16 %v5587, %v5586
        %v5591 = vpack.c.b16 %v5589, %v5588
        %v5595 = vsel %vm4891, %v5566, 0
        %v5598 = vsel %vm4891, %v5567, 0
        %v5601 = vsel %vm4891, %v5568, 0
        %v5604 = vsel %vm4891, %v5569, 0
        %v5607 = vsel %vm4891, %v5570, 0
        %v5610 = vsel %vm4891, %v5571, 0
        %v5613 = vsel %vm4891, %v5572, 0
        %v5616 = vsel %vm4891, %v5573, 0
        %v5619 = vsel %vm4891, %v5574, 0
        %v5622 = vsel %vm4891, %v5575, 0
        %v5625 = vsel %vm4891, %v5576, 0
        %v5628 = vsel %vm4891, %v5577, 0
        %v5631 = vsel %vm4891, %v5578, 0
        %v5634 = vsel %vm4891, %v5579, 0
        %v5637 = vsel %vm4891, %v5580, 0
        %v5640 = vsel %vm4891, %v5581, 0
        %5642 = vmatprep.subr.bf16.mxu0 0
        %5643 = vmatpush1.bf16.msra.mxu0 0
        %5644 = vmatprep.subr.bf16.mxu0 0
        %5645 = vmatpush1.bf16.msra.mxu0 0
        %5646 = vmatprep.subr.bf16.mxu0 0
        %5647 = vmatpush1.bf16.msra.mxu0 0
        %5648 = vmatprep.subr.bf16.mxu0 0
        %5649 = vmatpush1.bf16.msra.mxu0 0
        %5650 = vmatprep.subr.bf16.mxu0 0
        %5651 = vmatpush1.bf16.msra.mxu0 0
        %5652 = vmatprep.subr.bf16.mxu0 0
        %5653 = vmatpush1.bf16.msra.mxu0 0
        %5654 = vmatprep.subr.bf16.mxu0 0
        %5655 = vmatpush1.bf16.msra.mxu0 %v5591
        %5656 = vmatprep.subr.bf16.mxu0 0
        %5657 = vmatpush1.bf16.msra.mxu0 %v5590
        %5658 = vmatprep.subr.bf16.mxu0 0
        %5659 = vmatpush2.bf16.msra.mxu0 0
        %5660 = vmatprep.subr.bf16.mxu0 0
        %5661 = vmatpush2.bf16.msra.mxu0 0
        %5662 = vmatprep.subr.bf16.mxu0 0
        %5663 = vmatpush2.bf16.msra.mxu0 0
        %5664 = vmatprep.subr.bf16.mxu0 0
        %5665 = vmatpush2.bf16.msra.mxu0 0
        %5666 = vmatprep.subr.bf16.mxu0 0
        %5667 = vmatpush2.bf16.msra.mxu0 0
        %5668 = vmatprep.subr.bf16.mxu0 0
        %5669 = vmatpush2.bf16.msra.mxu0 0
        %5670 = vmatprep.subr.bf16.mxu0 0
        %5671 = vmatpush2.bf16.msra.mxu0 0
        %5672 = vmatprep.subr.bf16.mxu0 0
        %5673 = vmatpush2.bf16.msra.mxu0 0
        %5674 = vmatprep.mubr.bf16.mxu0 0
        %5675 = vmatmul.mubr.bf16.gmra.mxu0 %v5595
        %v5676 = vpop.f32.mrf.mxu0
        %v5677 = vadd.f32 0.0, %v5676
        %v5678 = vpop.f32.mrf.mxu0
        %v5679 = vpop.f32.mrf.mxu0
        %v5680 = vadd.f32 0.0, %v5679
        %v5681 = vpop.f32.mrf.mxu0
        %5682 = vmatprep.mubr.bf16.mxu0 0
        %5683 = vmatmul.mubr.bf16.gmra.mxu0 %v5598
        %v5684 = vpop.f32.mrf.mxu0
        %v5685 = vadd.f32 0.0, %v5684
        %v5686 = vpop.f32.mrf.mxu0
        %v5687 = vpop.f32.mrf.mxu0
        %v5688 = vadd.f32 0.0, %v5687
        %v5689 = vpop.f32.mrf.mxu0
        %5690 = vmatprep.mubr.bf16.mxu0 0
        %5691 = vmatmul.mubr.bf16.gmra.mxu0 %v5601
        %v5692 = vpop.f32.mrf.mxu0
        %v5693 = vadd.f32 0.0, %v5692
        %v5694 = vpop.f32.mrf.mxu0
        %v5695 = vpop.f32.mrf.mxu0
        %v5696 = vadd.f32 0.0, %v5695
        %v5697 = vpop.f32.mrf.mxu0
        %5698 = vmatprep.mubr.bf16.mxu0 0
        %5699 = vmatmul.mubr.bf16.gmra.mxu0 %v5604
        %v5700 = vpop.f32.mrf.mxu0
        %v5701 = vadd.f32 0.0, %v5700
        %v5702 = vpop.f32.mrf.mxu0
        %v5703 = vpop.f32.mrf.mxu0
        %v5704 = vadd.f32 0.0, %v5703
        %v5705 = vpop.f32.mrf.mxu0
        %5706 = vmatprep.mubr.bf16.mxu0 0
        %5707 = vmatmul.mubr.bf16.gmra.mxu0 %v5607
        %v5708 = vpop.f32.mrf.mxu0
        %v5709 = vadd.f32 0.0, %v5708
        %v5710 = vpop.f32.mrf.mxu0
        %v5711 = vpop.f32.mrf.mxu0
        %v5712 = vadd.f32 0.0, %v5711
        %v5713 = vpop.f32.mrf.mxu0
        %5714 = vmatprep.mubr.bf16.mxu0 0
        %5715 = vmatmul.mubr.bf16.gmra.mxu0 %v5610
        %v5716 = vpop.f32.mrf.mxu0
        %v5717 = vadd.f32 0.0, %v5716
        %v5718 = vpop.f32.mrf.mxu0
        %v5719 = vpop.f32.mrf.mxu0
        %v5720 = vadd.f32 0.0, %v5719
        %v5721 = vpop.f32.mrf.mxu0
        %5722 = vmatprep.mubr.bf16.mxu0 0
        %5723 = vmatmul.mubr.bf16.gmra.mxu0 %v5613
        %v5724 = vpop.f32.mrf.mxu0
        %v5725 = vadd.f32 0.0, %v5724
        %v5726 = vpop.f32.mrf.mxu0
        %v5727 = vpop.f32.mrf.mxu0
        %v5728 = vadd.f32 0.0, %v5727
        %v5729 = vpop.f32.mrf.mxu0
        %5730 = vmatprep.mubr.bf16.mxu0 0
        %5731 = vmatmul.mubr.bf16.gmra.mxu0 %v5616
        %v5732 = vpop.f32.mrf.mxu0
        %v5733 = vadd.f32 0.0, %v5732
        %v5734 = vpop.f32.mrf.mxu0
        %v5735 = vpop.f32.mrf.mxu0
        %v5736 = vadd.f32 0.0, %v5735
        %v5737 = vpop.f32.mrf.mxu0
        %5738 = vmatprep.mubr.bf16.mxu0 0
        %5739 = vmatmul.mubr.bf16.gmra.mxu0 %v5619
        %v5740 = vpop.f32.mrf.mxu0
        %v5741 = vadd.f32 0.0, %v5740
        %v5742 = vpop.f32.mrf.mxu0
        %v5743 = vpop.f32.mrf.mxu0
        %v5744 = vadd.f32 0.0, %v5743
        %v5745 = vpop.f32.mrf.mxu0
        %5746 = vmatprep.mubr.bf16.mxu0 0
        %5747 = vmatmul.mubr.bf16.gmra.mxu0 %v5622
        %v5748 = vpop.f32.mrf.mxu0
        %v5749 = vadd.f32 0.0, %v5748
        %v5750 = vpop.f32.mrf.mxu0
        %v5751 = vpop.f32.mrf.mxu0
        %v5752 = vadd.f32 0.0, %v5751
        %v5753 = vpop.f32.mrf.mxu0
        %5754 = vmatprep.mubr.bf16.mxu0 0
        %5755 = vmatmul.mubr.bf16.gmra.mxu0 %v5625
        %v5756 = vpop.f32.mrf.mxu0
        %v5757 = vadd.f32 0.0, %v5756
        %v5758 = vpop.f32.mrf.mxu0
        %v5759 = vpop.f32.mrf.mxu0
        %v5760 = vadd.f32 0.0, %v5759
        %v5761 = vpop.f32.mrf.mxu0
        %5762 = vmatprep.mubr.bf16.mxu0 0
        %5763 = vmatmul.mubr.bf16.gmra.mxu0 %v5628
        %v5764 = vpop.f32.mrf.mxu0
        %v5765 = vadd.f32 0.0, %v5764
        %v5766 = vpop.f32.mrf.mxu0
        %v5767 = vpop.f32.mrf.mxu0
        %v5768 = vadd.f32 0.0, %v5767
        %v5769 = vpop.f32.mrf.mxu0
        %5770 = vmatprep.mubr.bf16.mxu0 0
        %5771 = vmatmul.mubr.bf16.gmra.mxu0 %v5631
        %v5772 = vpop.f32.mrf.mxu0
        %v5773 = vadd.f32 0.0, %v5772
        %v5774 = vpop.f32.mrf.mxu0
        %v5775 = vpop.f32.mrf.mxu0
        %v5776 = vadd.f32 0.0, %v5775
        %v5777 = vpop.f32.mrf.mxu0
        %5778 = vmatprep.mubr.bf16.mxu0 0
        %5779 = vmatmul.mubr.bf16.gmra.mxu0 %v5634
        %v5780 = vpop.f32.mrf.mxu0
        %v5781 = vadd.f32 0.0, %v5780
        %v5782 = vpop.f32.mrf.mxu0
        %v5783 = vpop.f32.mrf.mxu0
        %v5784 = vadd.f32 0.0, %v5783
        %v5785 = vpop.f32.mrf.mxu0
        %5786 = vmatprep.mubr.bf16.mxu0 0
        %5787 = vmatmul.mubr.bf16.gmra.mxu0 %v5637
        %v5788 = vpop.f32.mrf.mxu0
        %v5789 = vadd.f32 0.0, %v5788
        %v5790 = vpop.f32.mrf.mxu0
        %v5791 = vpop.f32.mrf.mxu0
        %v5792 = vadd.f32 0.0, %v5791
        %v5793 = vpop.f32.mrf.mxu0
        %5794 = vmatprep.mubr.bf16.mxu0 0
        %5795 = vmatmul.mubr.bf16.gmra.mxu0 %v5640
        %v5796 = vpop.f32.mrf.mxu0
        %v5797 = vadd.f32 0.0, %v5796
        %v5798 = vpop.f32.mrf.mxu0
        %v5799 = vpop.f32.mrf.mxu0
        %v5800 = vadd.f32 0.0, %v5799
        %v5801 = vpop.f32.mrf.mxu0
        %5802 = vdwg.mxu0
        %v5803 = vadd.f32 %v5276, %v5677
        %v5804 = vadd.f32 %v5279, %v5680
        %v5805 = vadd.f32 %v5284, %v5685
        %v5806 = vadd.f32 %v5287, %v5688
        %v5807 = vadd.f32 %v5292, %v5693
        %v5808 = vadd.f32 %v5295, %v5696
        %v5809 = vadd.f32 %v5300, %v5701
        %v5810 = vadd.f32 %v5303, %v5704
        %v5811 = vadd.f32 %v5308, %v5709
        %v5812 = vadd.f32 %v5311, %v5712
        %v5813 = vadd.f32 %v5316, %v5717
        %v5814 = vadd.f32 %v5319, %v5720
        %v5815 = vadd.f32 %v5324, %v5725
        %v5816 = vadd.f32 %v5327, %v5728
        %v5817 = vadd.f32 %v5332, %v5733
        %v5818 = vadd.f32 %v5335, %v5736
        %v5819 = vadd.f32 %v5340, %v5741
        %v5820 = vadd.f32 %v5343, %v5744
        %v5821 = vadd.f32 %v5348, %v5749
        %v5822 = vadd.f32 %v5351, %v5752
        %v5823 = vadd.f32 %v5356, %v5757
        %v5824 = vadd.f32 %v5359, %v5760
        %v5825 = vadd.f32 %v5364, %v5765
        %v5826 = vadd.f32 %v5367, %v5768
        %v5827 = vadd.f32 %v5372, %v5773
        %v5828 = vadd.f32 %v5375, %v5776
        %v5829 = vadd.f32 %v5380, %v5781
        %v5830 = vadd.f32 %v5383, %v5784
        %v5831 = vadd.f32 %v5388, %v5789
        %v5832 = vadd.f32 %v5391, %v5792
        %v5833 = vadd.f32 %v5396, %v5797
        %v5834 = vadd.f32 %v5399, %v5800
        %v5835 = vld [vmem:[%s3 + $0x30] sm:$0xf]
        %v5836 = vld [vmem:[%s3 + $0x34] sm:$0xf]
        %v5837 = vld [vmem:[%s3 + $0x38] sm:$0xf]
        %v5838 = vld [vmem:[%s3 + $0x3c] sm:$0xf]
        %v5841 = vunpack.c.l.b16 %v4433
        %v5842 = vunpack.c.l.b16 %v4434
        %v5843 = vpack.c.b16 %v5842, %v5841
        %v5848 = vunpack.c.l.b16 %v5835
        %v5849 = vunpack.c.l.b16 %v5836
        %v5850 = vunpack.c.l.b16 %v5837
        %v5851 = vunpack.c.l.b16 %v5838
        %v5852 = vpack.c.b16 %v5849, %v5848
        %v5853 = vpack.c.b16 %v5851, %v5850
        %v5857 = vsel %vm4891, %v5843, 0
        %5859 = vmatprep.subr.bf16.mxu0 0
        %5860 = vmatpush1.bf16.msra.mxu0 0
        %5861 = vmatprep.subr.bf16.mxu0 0
        %5862 = vmatpush1.bf16.msra.mxu0 0
        %5863 = vmatprep.subr.bf16.mxu0 0
        %5864 = vmatpush1.bf16.msra.mxu0 0
        %5865 = vmatprep.subr.bf16.mxu0 0
        %5866 = vmatpush1.bf16.msra.mxu0 0
        %5867 = vmatprep.subr.bf16.mxu0 0
        %5868 = vmatpush1.bf16.msra.mxu0 0
        %5869 = vmatprep.subr.bf16.mxu0 0
        %5870 = vmatpush1.bf16.msra.mxu0 0
        %5871 = vmatprep.subr.bf16.mxu0 0
        %5872 = vmatpush1.bf16.msra.mxu0 %v5853
        %5873 = vmatprep.subr.bf16.mxu0 0
        %5874 = vmatpush1.bf16.msra.mxu0 %v5852
        %5875 = vmatprep.subr.bf16.mxu0 0
        %5876 = vmatpush2.bf16.msra.mxu0 0
        %5877 = vmatprep.subr.bf16.mxu0 0
        %5878 = vmatpush2.bf16.msra.mxu0 0
        %5879 = vmatprep.subr.bf16.mxu0 0
        %5880 = vmatpush2.bf16.msra.mxu0 0
        %5881 = vmatprep.subr.bf16.mxu0 0
        %5882 = vmatpush2.bf16.msra.mxu0 0
        %5883 = vmatprep.subr.bf16.mxu0 0
        %5884 = vmatpush2.bf16.msra.mxu0 0
        %5885 = vmatprep.subr.bf16.mxu0 0
        %5886 = vmatpush2.bf16.msra.mxu0 0
        %5887 = vmatprep.subr.bf16.mxu0 0
        %5888 = vmatpush2.bf16.msra.mxu0 0
        %5889 = vmatprep.subr.bf16.mxu0 0
        %5890 = vmatpush2.bf16.msra.mxu0 0
        %5891 = vmatprep.mubr.bf16.mxu0 0
        %5892 = vmatmul.mubr.bf16.gmra.mxu0 %v5197
        %v5893 = vpop.f32.mrf.mxu0
        %v5894 = vadd.f32 0.0, %v5893
        %v5895 = vpop.f32.mrf.mxu0
        %v5896 = vpop.f32.mrf.mxu0
        %v5897 = vadd.f32 0.0, %v5896
        %v5898 = vpop.f32.mrf.mxu0
        %5899 = vmatprep.mubr.bf16.mxu0 0
        %5900 = vmatmul.mubr.bf16.gmra.mxu0 %v5200
        %v5901 = vpop.f32.mrf.mxu0
        %v5902 = vadd.f32 0.0, %v5901
        %v5903 = vpop.f32.mrf.mxu0
        %v5904 = vpop.f32.mrf.mxu0
        %v5905 = vadd.f32 0.0, %v5904
        %v5906 = vpop.f32.mrf.mxu0
        %5907 = vmatprep.mubr.bf16.mxu0 0
        %5908 = vmatmul.mubr.bf16.gmra.mxu0 %v5203
        %v5909 = vpop.f32.mrf.mxu0
        %v5910 = vadd.f32 0.0, %v5909
        %v5911 = vpop.f32.mrf.mxu0
        %v5912 = vpop.f32.mrf.mxu0
        %v5913 = vadd.f32 0.0, %v5912
        %v5914 = vpop.f32.mrf.mxu0
        %5915 = vmatprep.mubr.bf16.mxu0 0
        %5916 = vmatmul.mubr.bf16.gmra.mxu0 %v5206
        %v5917 = vpop.f32.mrf.mxu0
        %v5918 = vadd.f32 0.0, %v5917
        %v5919 = vpop.f32.mrf.mxu0
        %v5920 = vpop.f32.mrf.mxu0
        %v5921 = vadd.f32 0.0, %v5920
        %v5922 = vpop.f32.mrf.mxu0
        %5923 = vmatprep.mubr.bf16.mxu0 0
        %5924 = vmatmul.mubr.bf16.gmra.mxu0 %v5209
        %v5925 = vpop.f32.mrf.mxu0
        %v5926 = vadd.f32 0.0, %v5925
        %v5927 = vpop.f32.mrf.mxu0
        %v5928 = vpop.f32.mrf.mxu0
        %v5929 = vadd.f32 0.0, %v5928
        %v5930 = vpop.f32.mrf.mxu0
        %5931 = vmatprep.mubr.bf16.mxu0 0
        %5932 = vmatmul.mubr.bf16.gmra.mxu0 %v5212
        %v5933 = vpop.f32.mrf.mxu0
        %v5934 = vadd.f32 0.0, %v5933
        %v5935 = vpop.f32.mrf.mxu0
        %v5936 = vpop.f32.mrf.mxu0
        %v5937 = vadd.f32 0.0, %v5936
        %v5938 = vpop.f32.mrf.mxu0
        %5939 = vmatprep.mubr.bf16.mxu0 0
        %5940 = vmatmul.mubr.bf16.gmra.mxu0 %v5215
        %v5941 = vpop.f32.mrf.mxu0
        %v5942 = vadd.f32 0.0, %v5941
        %v5943 = vpop.f32.mrf.mxu0
        %v5944 = vpop.f32.mrf.mxu0
        %v5945 = vadd.f32 0.0, %v5944
        %v5946 = vpop.f32.mrf.mxu0
        %5947 = vmatprep.mubr.bf16.mxu0 0
        %5948 = vmatmul.mubr.bf16.gmra.mxu0 %v5218
        %v5949 = vpop.f32.mrf.mxu0
        %v5950 = vadd.f32 0.0, %v5949
        %v5951 = vpop.f32.mrf.mxu0
        %v5952 = vpop.f32.mrf.mxu0
        %v5953 = vadd.f32 0.0, %v5952
        %v5954 = vpop.f32.mrf.mxu0
        %5955 = vmatprep.mubr.bf16.mxu0 0
        %5956 = vmatmul.mubr.bf16.gmra.mxu0 %v5221
        %v5957 = vpop.f32.mrf.mxu0
        %v5958 = vadd.f32 0.0, %v5957
        %v5959 = vpop.f32.mrf.mxu0
        %v5960 = vpop.f32.mrf.mxu0
        %v5961 = vadd.f32 0.0, %v5960
        %v5962 = vpop.f32.mrf.mxu0
        %5963 = vmatprep.mubr.bf16.mxu0 0
        %5964 = vmatmul.mubr.bf16.gmra.mxu0 %v5224
        %v5965 = vpop.f32.mrf.mxu0
        %v5966 = vadd.f32 0.0, %v5965
        %v5967 = vpop.f32.mrf.mxu0
        %v5968 = vpop.f32.mrf.mxu0
        %v5969 = vadd.f32 0.0, %v5968
        %v5970 = vpop.f32.mrf.mxu0
        %5971 = vmatprep.mubr.bf16.mxu0 0
        %5972 = vmatmul.mubr.bf16.gmra.mxu0 %v5227
        %v5973 = vpop.f32.mrf.mxu0
        %v5974 = vadd.f32 0.0, %v5973
        %v5975 = vpop.f32.mrf.mxu0
        %v5976 = vpop.f32.mrf.mxu0
        %v5977 = vadd.f32 0.0, %v5976
        %v5978 = vpop.f32.mrf.mxu0
        %5979 = vmatprep.mubr.bf16.mxu0 0
        %5980 = vmatmul.mubr.bf16.gmra.mxu0 %v5230
        %v5981 = vpop.f32.mrf.mxu0
        %v5982 = vadd.f32 0.0, %v5981
        %v5983 = vpop.f32.mrf.mxu0
        %v5984 = vpop.f32.mrf.mxu0
        %v5985 = vadd.f32 0.0, %v5984
        %v5986 = vpop.f32.mrf.mxu0
        %5987 = vmatprep.mubr.bf16.mxu0 0
        %5988 = vmatmul.mubr.bf16.gmra.mxu0 %v5233
        %v5989 = vpop.f32.mrf.mxu0
        %v5990 = vadd.f32 0.0, %v5989
        %v5991 = vpop.f32.mrf.mxu0
        %v5992 = vpop.f32.mrf.mxu0
        %v5993 = vadd.f32 0.0, %v5992
        %v5994 = vpop.f32.mrf.mxu0
        %5995 = vmatprep.mubr.bf16.mxu0 0
        %5996 = vmatmul.mubr.bf16.gmra.mxu0 %v5236
        %v5997 = vpop.f32.mrf.mxu0
        %v5998 = vadd.f32 0.0, %v5997
        %v5999 = vpop.f32.mrf.mxu0
        %v6000 = vpop.f32.mrf.mxu0
        %v6001 = vadd.f32 0.0, %v6000
        %v6002 = vpop.f32.mrf.mxu0
        %6003 = vmatprep.mubr.bf16.mxu0 0
        %6004 = vmatmul.mubr.bf16.gmra.mxu0 %v5239
        %v6005 = vpop.f32.mrf.mxu0
        %v6006 = vadd.f32 0.0, %v6005
        %v6007 = vpop.f32.mrf.mxu0
        %v6008 = vpop.f32.mrf.mxu0
        %v6009 = vadd.f32 0.0, %v6008
        %v6010 = vpop.f32.mrf.mxu0
        %6011 = vmatprep.mubr.bf16.mxu0 0
        %6012 = vmatmul.mubr.bf16.gmra.mxu0 %v5857
        %v6013 = vpop.f32.mrf.mxu0
        %v6014 = vadd.f32 0.0, %v6013
        %v6015 = vpop.f32.mrf.mxu0
        %v6016 = vpop.f32.mrf.mxu0
        %v6017 = vadd.f32 0.0, %v6016
        %v6018 = vpop.f32.mrf.mxu0
        %6019 = vdwg.mxu0
        %v6020 = vadd.f32 %v5803, %v5894
        %v6021 = vadd.f32 %v5804, %v5897
        %v6022 = vadd.f32 %v5805, %v5902
        %v6023 = vadd.f32 %v5806, %v5905
        %v6024 = vadd.f32 %v5807, %v5910
        %v6025 = vadd.f32 %v5808, %v5913
        %v6026 = vadd.f32 %v5809, %v5918
        %v6027 = vadd.f32 %v5810, %v5921
        %v6028 = vadd.f32 %v5811, %v5926
        %v6029 = vadd.f32 %v5812, %v5929
        %v6030 = vadd.f32 %v5813, %v5934
        %v6031 = vadd.f32 %v5814, %v5937
        %v6032 = vadd.f32 %v5815, %v5942
        %v6033 = vadd.f32 %v5816, %v5945
        %v6034 = vadd.f32 %v5817, %v5950
        %v6035 = vadd.f32 %v5818, %v5953
        %v6036 = vadd.f32 %v5819, %v5958
        %v6037 = vadd.f32 %v5820, %v5961
        %v6038 = vadd.f32 %v5821, %v5966
        %v6039 = vadd.f32 %v5822, %v5969
        %v6040 = vadd.f32 %v5823, %v5974
        %v6041 = vadd.f32 %v5824, %v5977
        %v6042 = vadd.f32 %v5825, %v5982
        %v6043 = vadd.f32 %v5826, %v5985
        %v6044 = vadd.f32 %v5827, %v5990
        %v6045 = vadd.f32 %v5828, %v5993
        %v6046 = vadd.f32 %v5829, %v5998
        %v6047 = vadd.f32 %v5830, %v6001
        %v6048 = vadd.f32 %v5831, %v6006
        %v6049 = vadd.f32 %v5832, %v6009
        %v6050 = vadd.f32 %v5833, %v6014
        %v6051 = vadd.f32 %v5834, %v6017
        %v6053 = vshrl.u32 %v4433, 16
        %v6055 = vrot.slane %v6053, 4
        %v6056 = vshll.u32 %v4433, 16
        %v6058 = vrot.slane %v6056, 5
        %v6059 = vor.u32 %v6055, %v6058
        %v6060 = vrot.slane %v6059, 4
        %v6062 = vshll.u32 %v4434, 16
        %v6064 = vrot.slane %v6062, 5
        %v6065 = vsel %vm1118, %v6060, %v6064
        %v6066 = vshrl.u32 %v4434, 16
        %v6068 = vrot.slane %v6066, 4
        %v6069 = vor.u32 %v6068, %v6064
        %v6070 = vrot.slane %v6069, 4
        %v6072 = vshll.u32 %v4435, 16
        %v6074 = vrot.slane %v6072, 5
        %v6075 = vsel %vm1118, %v6070, %v6074
        %v6076 = vld [vmem:[%s3 + $0x40] sm:$0xf]
        %v6077 = vld [vmem:[%s3 + $0x44] sm:$0xf]
        %v6078 = vld [vmem:[%s3 + $0x48] sm:$0xf]
        %v6079 = vld [vmem:[%s3 + $0x4c] sm:$0xf]
        %v6080 = vunpack.c.l.b16 %v6065
        %v6081 = vunpack.c.l.b16 %v6075
        %v6082 = vpack.c.b16 %v6081, %v6080
        %v6087 = vunpack.c.l.b16 %v6076
        %v6088 = vunpack.c.l.b16 %v6077
        %v6089 = vunpack.c.l.b16 %v6078
        %v6090 = vunpack.c.l.b16 %v6079
        %v6091 = vpack.c.b16 %v6088, %v6087
        %v6092 = vpack.c.b16 %v6090, %v6089
        %v6096 = vsel %vm4891, %v6082, 0
        %6098 = vmatprep.subr.bf16.mxu0 0
        %6099 = vmatpush1.bf16.msra.mxu0 0
        %6100 = vmatprep.subr.bf16.mxu0 0
        %6101 = vmatpush1.bf16.msra.mxu0 0
        %6102 = vmatprep.subr.bf16.mxu0 0
        %6103 = vmatpush1.bf16.msra.mxu0 0
        %6104 = vmatprep.subr.bf16.mxu0 0
        %6105 = vmatpush1.bf16.msra.mxu0 0
        %6106 = vmatprep.subr.bf16.mxu0 0
        %6107 = vmatpush1.bf16.msra.mxu0 0
        %6108 = vmatprep.subr.bf16.mxu0 0
        %6109 = vmatpush1.bf16.msra.mxu0 0
        %6110 = vmatprep.subr.bf16.mxu0 0
        %6111 = vmatpush1.bf16.msra.mxu0 %v6092
        %6112 = vmatprep.subr.bf16.mxu0 0
        %6113 = vmatpush1.bf16.msra.mxu0 %v6091
        %6114 = vmatprep.subr.bf16.mxu0 0
        %6115 = vmatpush2.bf16.msra.mxu0 0
        %6116 = vmatprep.subr.bf16.mxu0 0
        %6117 = vmatpush2.bf16.msra.mxu0 0
        %6118 = vmatprep.subr.bf16.mxu0 0
        %6119 = vmatpush2.bf16.msra.mxu0 0
        %6120 = vmatprep.subr.bf16.mxu0 0
        %6121 = vmatpush2.bf16.msra.mxu0 0
        %6122 = vmatprep.subr.bf16.mxu0 0
        %6123 = vmatpush2.bf16.msra.mxu0 0
        %6124 = vmatprep.subr.bf16.mxu0 0
        %6125 = vmatpush2.bf16.msra.mxu0 0
        %6126 = vmatprep.subr.bf16.mxu0 0
        %6127 = vmatpush2.bf16.msra.mxu0 0
        %6128 = vmatprep.subr.bf16.mxu0 0
        %6129 = vmatpush2.bf16.msra.mxu0 0
        %6130 = vmatprep.mubr.bf16.mxu0 0
        %6131 = vmatmul.mubr.bf16.gmra.mxu0 %v4896
        %v6132 = vpop.f32.mrf.mxu0
        %v6133 = vadd.f32 0.0, %v6132
        %v6134 = vpop.f32.mrf.mxu0
        %v6135 = vpop.f32.mrf.mxu0
        %v6136 = vadd.f32 0.0, %v6135
        %v6137 = vpop.f32.mrf.mxu0
        %6138 = vmatprep.mubr.bf16.mxu0 0
        %6139 = vmatmul.mubr.bf16.gmra.mxu0 %v4899
        %v6140 = vpop.f32.mrf.mxu0
        %v6141 = vadd.f32 0.0, %v6140
        %v6142 = vpop.f32.mrf.mxu0
        %v6143 = vpop.f32.mrf.mxu0
        %v6144 = vadd.f32 0.0, %v6143
        %v6145 = vpop.f32.mrf.mxu0
        %6146 = vmatprep.mubr.bf16.mxu0 0
        %6147 = vmatmul.mubr.bf16.gmra.mxu0 %v4902
        %v6148 = vpop.f32.mrf.mxu0
        %v6149 = vadd.f32 0.0, %v6148
        %v6150 = vpop.f32.mrf.mxu0
        %v6151 = vpop.f32.mrf.mxu0
        %v6152 = vadd.f32 0.0, %v6151
        %v6153 = vpop.f32.mrf.mxu0
        %6154 = vmatprep.mubr.bf16.mxu0 0
        %6155 = vmatmul.mubr.bf16.gmra.mxu0 %v4905
        %v6156 = vpop.f32.mrf.mxu0
        %v6157 = vadd.f32 0.0, %v6156
        %v6158 = vpop.f32.mrf.mxu0
        %v6159 = vpop.f32.mrf.mxu0
        %v6160 = vadd.f32 0.0, %v6159
        %v6161 = vpop.f32.mrf.mxu0
        %6162 = vmatprep.mubr.bf16.mxu0 0
        %6163 = vmatmul.mubr.bf16.gmra.mxu0 %v4908
        %v6164 = vpop.f32.mrf.mxu0
        %v6165 = vadd.f32 0.0, %v6164
        %v6166 = vpop.f32.mrf.mxu0
        %v6167 = vpop.f32.mrf.mxu0
        %v6168 = vadd.f32 0.0, %v6167
        %v6169 = vpop.f32.mrf.mxu0
        %6170 = vmatprep.mubr.bf16.mxu0 0
        %6171 = vmatmul.mubr.bf16.gmra.mxu0 %v4911
        %v6172 = vpop.f32.mrf.mxu0
        %v6173 = vadd.f32 0.0, %v6172
        %v6174 = vpop.f32.mrf.mxu0
        %v6175 = vpop.f32.mrf.mxu0
        %v6176 = vadd.f32 0.0, %v6175
        %v6177 = vpop.f32.mrf.mxu0
        %6178 = vmatprep.mubr.bf16.mxu0 0
        %6179 = vmatmul.mubr.bf16.gmra.mxu0 %v4914
        %v6180 = vpop.f32.mrf.mxu0
        %v6181 = vadd.f32 0.0, %v6180
        %v6182 = vpop.f32.mrf.mxu0
        %v6183 = vpop.f32.mrf.mxu0
        %v6184 = vadd.f32 0.0, %v6183
        %v6185 = vpop.f32.mrf.mxu0
        %6186 = vmatprep.mubr.bf16.mxu0 0
        %6187 = vmatmul.mubr.bf16.gmra.mxu0 %v4917
        %v6188 = vpop.f32.mrf.mxu0
        %v6189 = vadd.f32 0.0, %v6188
        %v6190 = vpop.f32.mrf.mxu0
        %v6191 = vpop.f32.mrf.mxu0
        %v6192 = vadd.f32 0.0, %v6191
        %v6193 = vpop.f32.mrf.mxu0
        %6194 = vmatprep.mubr.bf16.mxu0 0
        %6195 = vmatmul.mubr.bf16.gmra.mxu0 %v4920
        %v6196 = vpop.f32.mrf.mxu0
        %v6197 = vadd.f32 0.0, %v6196
        %v6198 = vpop.f32.mrf.mxu0
        %v6199 = vpop.f32.mrf.mxu0
        %v6200 = vadd.f32 0.0, %v6199
        %v6201 = vpop.f32.mrf.mxu0
        %6202 = vmatprep.mubr.bf16.mxu0 0
        %6203 = vmatmul.mubr.bf16.gmra.mxu0 %v4923
        %v6204 = vpop.f32.mrf.mxu0
        %v6205 = vadd.f32 0.0, %v6204
        %v6206 = vpop.f32.mrf.mxu0
        %v6207 = vpop.f32.mrf.mxu0
        %v6208 = vadd.f32 0.0, %v6207
        %v6209 = vpop.f32.mrf.mxu0
        %6210 = vmatprep.mubr.bf16.mxu0 0
        %6211 = vmatmul.mubr.bf16.gmra.mxu0 %v4926
        %v6212 = vpop.f32.mrf.mxu0
        %v6213 = vadd.f32 0.0, %v6212
        %v6214 = vpop.f32.mrf.mxu0
        %v6215 = vpop.f32.mrf.mxu0
        %v6216 = vadd.f32 0.0, %v6215
        %v6217 = vpop.f32.mrf.mxu0
        %6218 = vmatprep.mubr.bf16.mxu0 0
        %6219 = vmatmul.mubr.bf16.gmra.mxu0 %v4929
        %v6220 = vpop.f32.mrf.mxu0
        %v6221 = vadd.f32 0.0, %v6220
        %v6222 = vpop.f32.mrf.mxu0
        %v6223 = vpop.f32.mrf.mxu0
        %v6224 = vadd.f32 0.0, %v6223
        %v6225 = vpop.f32.mrf.mxu0
        %6226 = vmatprep.mubr.bf16.mxu0 0
        %6227 = vmatmul.mubr.bf16.gmra.mxu0 %v4932
        %v6228 = vpop.f32.mrf.mxu0
        %v6229 = vadd.f32 0.0, %v6228
        %v6230 = vpop.f32.mrf.mxu0
        %v6231 = vpop.f32.mrf.mxu0
        %v6232 = vadd.f32 0.0, %v6231
        %v6233 = vpop.f32.mrf.mxu0
        %6234 = vmatprep.mubr.bf16.mxu0 0
        %6235 = vmatmul.mubr.bf16.gmra.mxu0 %v4935
        %v6236 = vpop.f32.mrf.mxu0
        %v6237 = vadd.f32 0.0, %v6236
        %v6238 = vpop.f32.mrf.mxu0
        %v6239 = vpop.f32.mrf.mxu0
        %v6240 = vadd.f32 0.0, %v6239
        %v6241 = vpop.f32.mrf.mxu0
        %6242 = vmatprep.mubr.bf16.mxu0 0
        %6243 = vmatmul.mubr.bf16.gmra.mxu0 %v4938
        %v6244 = vpop.f32.mrf.mxu0
        %v6245 = vadd.f32 0.0, %v6244
        %v6246 = vpop.f32.mrf.mxu0
        %v6247 = vpop.f32.mrf.mxu0
        %v6248 = vadd.f32 0.0, %v6247
        %v6249 = vpop.f32.mrf.mxu0
        %6250 = vmatprep.mubr.bf16.mxu0 0
        %6251 = vmatmul.mubr.bf16.gmra.mxu0 %v6096
        %v6252 = vpop.f32.mrf.mxu0
        %v6253 = vadd.f32 0.0, %v6252
        %v6254 = vpop.f32.mrf.mxu0
        %v6255 = vpop.f32.mrf.mxu0
        %v6256 = vadd.f32 0.0, %v6255
        %v6257 = vpop.f32.mrf.mxu0
        %6258 = vdwg.mxu0
        %v6259 = vadd.f32 %v6020, %v6133
        %v6260 = vadd.f32 %v6021, %v6136
        %v6261 = vadd.f32 %v6022, %v6141
        %v6262 = vadd.f32 %v6023, %v6144
        %v6263 = vadd.f32 %v6024, %v6149
        %v6264 = vadd.f32 %v6025, %v6152
        %v6265 = vadd.f32 %v6026, %v6157
        %v6266 = vadd.f32 %v6027, %v6160
        %v6267 = vadd.f32 %v6028, %v6165
        %v6268 = vadd.f32 %v6029, %v6168
        %v6269 = vadd.f32 %v6030, %v6173
        %v6270 = vadd.f32 %v6031, %v6176
        %v6271 = vadd.f32 %v6032, %v6181
        %v6272 = vadd.f32 %v6033, %v6184
        %v6273 = vadd.f32 %v6034, %v6189
        %v6274 = vadd.f32 %v6035, %v6192
        %v6275 = vadd.f32 %v6036, %v6197
        %v6276 = vadd.f32 %v6037, %v6200
        %v6277 = vadd.f32 %v6038, %v6205
        %v6278 = vadd.f32 %v6039, %v6208
        %v6279 = vadd.f32 %v6040, %v6213
        %v6280 = vadd.f32 %v6041, %v6216
        %v6281 = vadd.f32 %v6042, %v6221
        %v6282 = vadd.f32 %v6043, %v6224
        %v6283 = vadd.f32 %v6044, %v6229
        %v6284 = vadd.f32 %v6045, %v6232
        %v6285 = vadd.f32 %v6046, %v6237
        %v6286 = vadd.f32 %v6047, %v6240
        %v6287 = vadd.f32 %v6048, %v6245
        %v6288 = vadd.f32 %v6049, %v6248
        %v6289 = vadd.f32 %v6050, %v6253
        %v6290 = vadd.f32 %v6051, %v6256
        %v6292 = vrot.slane %v4433, 5
        %v6293 = vrot.slane %v6292, 4
        %v6294 = vrot.slane %v4434, 5
        %v6295 = vsel %vm2080, %v6293, %v6294
        %v6296 = vrot.slane %v6294, 4
        %v6297 = vrot.slane %v4435, 5
        %v6298 = vsel %vm2080, %v6296, %v6297
        %v6299 = vld [vmem:[%s3 + $0x50] sm:$0xf]
        %v6300 = vld [vmem:[%s3 + $0x54] sm:$0xf]
        %v6301 = vld [vmem:[%s3 + $0x58] sm:$0xf]
        %v6302 = vld [vmem:[%s3 + $0x5c] sm:$0xf]
        %v6303 = vunpack.c.l.b16 %v6295
        %v6304 = vunpack.c.l.b16 %v6298
        %v6305 = vpack.c.b16 %v6304, %v6303
        %v6310 = vunpack.c.l.b16 %v6299
        %v6311 = vunpack.c.l.b16 %v6300
        %v6312 = vunpack.c.l.b16 %v6301
        %v6313 = vunpack.c.l.b16 %v6302
        %v6314 = vpack.c.b16 %v6311, %v6310
        %v6315 = vpack.c.b16 %v6313, %v6312
        %v6319 = vsel %vm4891, %v6305, 0
        %6321 = vmatprep.subr.bf16.mxu0 0
        %6322 = vmatpush1.bf16.msra.mxu0 0
        %6323 = vmatprep.subr.bf16.mxu0 0
        %6324 = vmatpush1.bf16.msra.mxu0 0
        %6325 = vmatprep.subr.bf16.mxu0 0
        %6326 = vmatpush1.bf16.msra.mxu0 0
        %6327 = vmatprep.subr.bf16.mxu0 0
        %6328 = vmatpush1.bf16.msra.mxu0 0
        %6329 = vmatprep.subr.bf16.mxu0 0
        %6330 = vmatpush1.bf16.msra.mxu0 0
        %6331 = vmatprep.subr.bf16.mxu0 0
        %6332 = vmatpush1.bf16.msra.mxu0 0
        %6333 = vmatprep.subr.bf16.mxu0 0
        %6334 = vmatpush1.bf16.msra.mxu0 %v6315
        %6335 = vmatprep.subr.bf16.mxu0 0
        %6336 = vmatpush1.bf16.msra.mxu0 %v6314
        %6337 = vmatprep.subr.bf16.mxu0 0
        %6338 = vmatpush2.bf16.msra.mxu0 0
        %6339 = vmatprep.subr.bf16.mxu0 0
        %6340 = vmatpush2.bf16.msra.mxu0 0
        %6341 = vmatprep.subr.bf16.mxu0 0
        %6342 = vmatpush2.bf16.msra.mxu0 0
        %6343 = vmatprep.subr.bf16.mxu0 0
        %6344 = vmatpush2.bf16.msra.mxu0 0
        %6345 = vmatprep.subr.bf16.mxu0 0
        %6346 = vmatpush2.bf16.msra.mxu0 0
        %6347 = vmatprep.subr.bf16.mxu0 0
        %6348 = vmatpush2.bf16.msra.mxu0 0
        %6349 = vmatprep.subr.bf16.mxu0 0
        %6350 = vmatpush2.bf16.msra.mxu0 0
        %6351 = vmatprep.subr.bf16.mxu0 0
        %6352 = vmatpush2.bf16.msra.mxu0 0
        %6353 = vmatprep.mubr.bf16.mxu0 0
        %6354 = vmatmul.mubr.bf16.gmra.mxu0 %v5598
        %v6355 = vpop.f32.mrf.mxu0
        %v6356 = vadd.f32 0.0, %v6355
        %v6357 = vpop.f32.mrf.mxu0
        %v6358 = vpop.f32.mrf.mxu0
        %v6359 = vadd.f32 0.0, %v6358
        %v6360 = vpop.f32.mrf.mxu0
        %6361 = vmatprep.mubr.bf16.mxu0 0
        %6362 = vmatmul.mubr.bf16.gmra.mxu0 %v5601
        %v6363 = vpop.f32.mrf.mxu0
        %v6364 = vadd.f32 0.0, %v6363
        %v6365 = vpop.f32.mrf.mxu0
        %v6366 = vpop.f32.mrf.mxu0
        %v6367 = vadd.f32 0.0, %v6366
        %v6368 = vpop.f32.mrf.mxu0
        %6369 = vmatprep.mubr.bf16.mxu0 0
        %6370 = vmatmul.mubr.bf16.gmra.mxu0 %v5604
        %v6371 = vpop.f32.mrf.mxu0
        %v6372 = vadd.f32 0.0, %v6371
        %v6373 = vpop.f32.mrf.mxu0
        %v6374 = vpop.f32.mrf.mxu0
        %v6375 = vadd.f32 0.0, %v6374
        %v6376 = vpop.f32.mrf.mxu0
        %6377 = vmatprep.mubr.bf16.mxu0 0
        %6378 = vmatmul.mubr.bf16.gmra.mxu0 %v5607
        %v6379 = vpop.f32.mrf.mxu0
        %v6380 = vadd.f32 0.0, %v6379
        %v6381 = vpop.f32.mrf.mxu0
        %v6382 = vpop.f32.mrf.mxu0
        %v6383 = vadd.f32 0.0, %v6382
        %v6384 = vpop.f32.mrf.mxu0
        %6385 = vmatprep.mubr.bf16.mxu0 0
        %6386 = vmatmul.mubr.bf16.gmra.mxu0 %v5610
        %v6387 = vpop.f32.mrf.mxu0
        %v6388 = vadd.f32 0.0, %v6387
        %v6389 = vpop.f32.mrf.mxu0
        %v6390 = vpop.f32.mrf.mxu0
        %v6391 = vadd.f32 0.0, %v6390
        %v6392 = vpop.f32.mrf.mxu0
        %6393 = vmatprep.mubr.bf16.mxu0 0
        %6394 = vmatmul.mubr.bf16.gmra.mxu0 %v5613
        %v6395 = vpop.f32.mrf.mxu0
        %v6396 = vadd.f32 0.0, %v6395
        %v6397 = vpop.f32.mrf.mxu0
        %v6398 = vpop.f32.mrf.mxu0
        %v6399 = vadd.f32 0.0, %v6398
        %v6400 = vpop.f32.mrf.mxu0
        %6401 = vmatprep.mubr.bf16.mxu0 0
        %6402 = vmatmul.mubr.bf16.gmra.mxu0 %v5616
        %v6403 = vpop.f32.mrf.mxu0
        %v6404 = vadd.f32 0.0, %v6403
        %v6405 = vpop.f32.mrf.mxu0
        %v6406 = vpop.f32.mrf.mxu0
        %v6407 = vadd.f32 0.0, %v6406
        %v6408 = vpop.f32.mrf.mxu0
        %6409 = vmatprep.mubr.bf16.mxu0 0
        %6410 = vmatmul.mubr.bf16.gmra.mxu0 %v5619
        %v6411 = vpop.f32.mrf.mxu0
        %v6412 = vadd.f32 0.0, %v6411
        %v6413 = vpop.f32.mrf.mxu0
        %v6414 = vpop.f32.mrf.mxu0
        %v6415 = vadd.f32 0.0, %v6414
        %v6416 = vpop.f32.mrf.mxu0
        %6417 = vmatprep.mubr.bf16.mxu0 0
        %6418 = vmatmul.mubr.bf16.gmra.mxu0 %v5622
        %v6419 = vpop.f32.mrf.mxu0
        %v6420 = vadd.f32 0.0, %v6419
        %v6421 = vpop.f32.mrf.mxu0
        %v6422 = vpop.f32.mrf.mxu0
        %v6423 = vadd.f32 0.0, %v6422
        %v6424 = vpop.f32.mrf.mxu0
        %6425 = vmatprep.mubr.bf16.mxu0 0
        %6426 = vmatmul.mubr.bf16.gmra.mxu0 %v5625
        %v6427 = vpop.f32.mrf.mxu0
        %v6428 = vadd.f32 0.0, %v6427
        %v6429 = vpop.f32.mrf.mxu0
        %v6430 = vpop.f32.mrf.mxu0
        %v6431 = vadd.f32 0.0, %v6430
        %v6432 = vpop.f32.mrf.mxu0
        %6433 = vmatprep.mubr.bf16.mxu0 0
        %6434 = vmatmul.mubr.bf16.gmra.mxu0 %v5628
        %v6435 = vpop.f32.mrf.mxu0
        %v6436 = vadd.f32 0.0, %v6435
        %v6437 = vpop.f32.mrf.mxu0
        %v6438 = vpop.f32.mrf.mxu0
        %v6439 = vadd.f32 0.0, %v6438
        %v6440 = vpop.f32.mrf.mxu0
        %6441 = vmatprep.mubr.bf16.mxu0 0
        %6442 = vmatmul.mubr.bf16.gmra.mxu0 %v5631
        %v6443 = vpop.f32.mrf.mxu0
        %v6444 = vadd.f32 0.0, %v6443
        %v6445 = vpop.f32.mrf.mxu0
        %v6446 = vpop.f32.mrf.mxu0
        %v6447 = vadd.f32 0.0, %v6446
        %v6448 = vpop.f32.mrf.mxu0
        %6449 = vmatprep.mubr.bf16.mxu0 0
        %6450 = vmatmul.mubr.bf16.gmra.mxu0 %v5634
        %v6451 = vpop.f32.mrf.mxu0
        %v6452 = vadd.f32 0.0, %v6451
        %v6453 = vpop.f32.mrf.mxu0
        %v6454 = vpop.f32.mrf.mxu0
        %v6455 = vadd.f32 0.0, %v6454
        %v6456 = vpop.f32.mrf.mxu0
        %6457 = vmatprep.mubr.bf16.mxu0 0
        %6458 = vmatmul.mubr.bf16.gmra.mxu0 %v5637
        %v6459 = vpop.f32.mrf.mxu0
        %v6460 = vadd.f32 0.0, %v6459
        %v6461 = vpop.f32.mrf.mxu0
        %v6462 = vpop.f32.mrf.mxu0
        %v6463 = vadd.f32 0.0, %v6462
        %v6464 = vpop.f32.mrf.mxu0
        %6465 = vmatprep.mubr.bf16.mxu0 0
        %6466 = vmatmul.mubr.bf16.gmra.mxu0 %v5640
        %v6467 = vpop.f32.mrf.mxu0
        %v6468 = vadd.f32 0.0, %v6467
        %v6469 = vpop.f32.mrf.mxu0
        %v6470 = vpop.f32.mrf.mxu0
        %v6471 = vadd.f32 0.0, %v6470
        %v6472 = vpop.f32.mrf.mxu0
        %6473 = vmatprep.mubr.bf16.mxu0 0
        %6474 = vmatmul.mubr.bf16.gmra.mxu0 %v6319
        %v6475 = vpop.f32.mrf.mxu0
        %v6476 = vadd.f32 0.0, %v6475
        %v6477 = vpop.f32.mrf.mxu0
        %v6478 = vpop.f32.mrf.mxu0
        %v6479 = vadd.f32 0.0, %v6478
        %v6480 = vpop.f32.mrf.mxu0
        %6481 = vdwg.mxu0
        %v6482 = vadd.f32 %v6259, %v6356
        %v6483 = vadd.f32 %v6260, %v6359
        %v6484 = vadd.f32 %v6261, %v6364
        %v6485 = vadd.f32 %v6262, %v6367
        %v6486 = vadd.f32 %v6263, %v6372
        %v6487 = vadd.f32 %v6264, %v6375
        %v6488 = vadd.f32 %v6265, %v6380
        %v6489 = vadd.f32 %v6266, %v6383
        %v6490 = vadd.f32 %v6267, %v6388
        %v6491 = vadd.f32 %v6268, %v6391
        %v6492 = vadd.f32 %v6269, %v6396
        %v6493 = vadd.f32 %v6270, %v6399
        %v6494 = vadd.f32 %v6271, %v6404
        %v6495 = vadd.f32 %v6272, %v6407
        %v6496 = vadd.f32 %v6273, %v6412
        %v6497 = vadd.f32 %v6274, %v6415
        %v6498 = vadd.f32 %v6275, %v6420
        %v6499 = vadd.f32 %v6276, %v6423
        %v6500 = vadd.f32 %v6277, %v6428
        %v6501 = vadd.f32 %v6278, %v6431
        %v6502 = vadd.f32 %v6279, %v6436
        %v6503 = vadd.f32 %v6280, %v6439
        %v6504 = vadd.f32 %v6281, %v6444
        %v6505 = vadd.f32 %v6282, %v6447
        %v6506 = vadd.f32 %v6283, %v6452
        %v6507 = vadd.f32 %v6284, %v6455
        %v6508 = vadd.f32 %v6285, %v6460
        %v6509 = vadd.f32 %v6286, %v6463
        %v6510 = vadd.f32 %v6287, %v6468
        %v6511 = vadd.f32 %v6288, %v6471
        %v6512 = vadd.f32 %v6289, %v6476
        %v6513 = vadd.f32 %v6290, %v6479
        %v6514 = vld [vmem:[%s3 + $0x60] sm:$0xf]
        %v6515 = vld [vmem:[%s3 + $0x64] sm:$0xf]
        %v6516 = vld [vmem:[%s3 + $0x68] sm:$0xf]
        %v6517 = vld [vmem:[%s3 + $0x6c] sm:$0xf]
        %v6520 = vunpack.c.l.b16 %v4436
        %v6521 = vunpack.c.l.b16 %v4437
        %v6522 = vpack.c.b16 %v6521, %v6520
        %v6527 = vunpack.c.l.b16 %v6514
        %v6528 = vunpack.c.l.b16 %v6515
        %v6529 = vunpack.c.l.b16 %v6516
        %v6530 = vunpack.c.l.b16 %v6517
        %v6531 = vpack.c.b16 %v6528, %v6527
        %v6532 = vpack.c.b16 %v6530, %v6529
        %v6536 = vsel %vm4891, %v6522, 0
        %6538 = vmatprep.subr.bf16.mxu0 0
        %6539 = vmatpush1.bf16.msra.mxu0 0
        %6540 = vmatprep.subr.bf16.mxu0 0
        %6541 = vmatpush1.bf16.msra.mxu0 0
        %6542 = vmatprep.subr.bf16.mxu0 0
        %6543 = vmatpush1.bf16.msra.mxu0 0
        %6544 = vmatprep.subr.bf16.mxu0 0
        %6545 = vmatpush1.bf16.msra.mxu0 0
        %6546 = vmatprep.subr.bf16.mxu0 0
        %6547 = vmatpush1.bf16.msra.mxu0 0
        %6548 = vmatprep.subr.bf16.mxu0 0
        %6549 = vmatpush1.bf16.msra.mxu0 0
        %6550 = vmatprep.subr.bf16.mxu0 0
        %6551 = vmatpush1.bf16.msra.mxu0 %v6532
        %6552 = vmatprep.subr.bf16.mxu0 0
        %6553 = vmatpush1.bf16.msra.mxu0 %v6531
        %6554 = vmatprep.subr.bf16.mxu0 0
        %6555 = vmatpush2.bf16.msra.mxu0 0
        %6556 = vmatprep.subr.bf16.mxu0 0
        %6557 = vmatpush2.bf16.msra.mxu0 0
        %6558 = vmatprep.subr.bf16.mxu0 0
        %6559 = vmatpush2.bf16.msra.mxu0 0
        %6560 = vmatprep.subr.bf16.mxu0 0
        %6561 = vmatpush2.bf16.msra.mxu0 0
        %6562 = vmatprep.subr.bf16.mxu0 0
        %6563 = vmatpush2.bf16.msra.mxu0 0
        %6564 = vmatprep.subr.bf16.mxu0 0
        %6565 = vmatpush2.bf16.msra.mxu0 0
        %6566 = vmatprep.subr.bf16.mxu0 0
        %6567 = vmatpush2.bf16.msra.mxu0 0
        %6568 = vmatprep.subr.bf16.mxu0 0
        %6569 = vmatpush2.bf16.msra.mxu0 0
        %6570 = vmatprep.mubr.bf16.mxu0 0
        %6571 = vmatmul.mubr.bf16.gmra.mxu0 %v5200
        %v6572 = vpop.f32.mrf.mxu0
        %v6573 = vadd.f32 0.0, %v6572
        %v6574 = vpop.f32.mrf.mxu0
        %v6575 = vpop.f32.mrf.mxu0
        %v6576 = vadd.f32 0.0, %v6575
        %v6577 = vpop.f32.mrf.mxu0
        %6578 = vmatprep.mubr.bf16.mxu0 0
        %6579 = vmatmul.mubr.bf16.gmra.mxu0 %v5203
        %v6580 = vpop.f32.mrf.mxu0
        %v6581 = vadd.f32 0.0, %v6580
        %v6582 = vpop.f32.mrf.mxu0
        %v6583 = vpop.f32.mrf.mxu0
        %v6584 = vadd.f32 0.0, %v6583
        %v6585 = vpop.f32.mrf.mxu0
        %6586 = vmatprep.mubr.bf16.mxu0 0
        %6587 = vmatmul.mubr.bf16.gmra.mxu0 %v5206
        %v6588 = vpop.f32.mrf.mxu0
        %v6589 = vadd.f32 0.0, %v6588
        %v6590 = vpop.f32.mrf.mxu0
        %v6591 = vpop.f32.mrf.mxu0
        %v6592 = vadd.f32 0.0, %v6591
        %v6593 = vpop.f32.mrf.mxu0
        %6594 = vmatprep.mubr.bf16.mxu0 0
        %6595 = vmatmul.mubr.bf16.gmra.mxu0 %v5209
        %v6596 = vpop.f32.mrf.mxu0
        %v6597 = vadd.f32 0.0, %v6596
        %v6598 = vpop.f32.mrf.mxu0
        %v6599 = vpop.f32.mrf.mxu0
        %v6600 = vadd.f32 0.0, %v6599
        %v6601 = vpop.f32.mrf.mxu0
        %6602 = vmatprep.mubr.bf16.mxu0 0
        %6603 = vmatmul.mubr.bf16.gmra.mxu0 %v5212
        %v6604 = vpop.f32.mrf.mxu0
        %v6605 = vadd.f32 0.0, %v6604
        %v6606 = vpop.f32.mrf.mxu0
        %v6607 = vpop.f32.mrf.mxu0
        %v6608 = vadd.f32 0.0, %v6607
        %v6609 = vpop.f32.mrf.mxu0
        %6610 = vmatprep.mubr.bf16.mxu0 0
        %6611 = vmatmul.mubr.bf16.gmra.mxu0 %v5215
        %v6612 = vpop.f32.mrf.mxu0
        %v6613 = vadd.f32 0.0, %v6612
        %v6614 = vpop.f32.mrf.mxu0
        %v6615 = vpop.f32.mrf.mxu0
        %v6616 = vadd.f32 0.0, %v6615
        %v6617 = vpop.f32.mrf.mxu0
        %6618 = vmatprep.mubr.bf16.mxu0 0
        %6619 = vmatmul.mubr.bf16.gmra.mxu0 %v5218
        %v6620 = vpop.f32.mrf.mxu0
        %v6621 = vadd.f32 0.0, %v6620
        %v6622 = vpop.f32.mrf.mxu0
        %v6623 = vpop.f32.mrf.mxu0
        %v6624 = vadd.f32 0.0, %v6623
        %v6625 = vpop.f32.mrf.mxu0
        %6626 = vmatprep.mubr.bf16.mxu0 0
        %6627 = vmatmul.mubr.bf16.gmra.mxu0 %v5221
        %v6628 = vpop.f32.mrf.mxu0
        %v6629 = vadd.f32 0.0, %v6628
        %v6630 = vpop.f32.mrf.mxu0
        %v6631 = vpop.f32.mrf.mxu0
        %v6632 = vadd.f32 0.0, %v6631
        %v6633 = vpop.f32.mrf.mxu0
        %6634 = vmatprep.mubr.bf16.mxu0 0
        %6635 = vmatmul.mubr.bf16.gmra.mxu0 %v5224
        %v6636 = vpop.f32.mrf.mxu0
        %v6637 = vadd.f32 0.0, %v6636
        %v6638 = vpop.f32.mrf.mxu0
        %v6639 = vpop.f32.mrf.mxu0
        %v6640 = vadd.f32 0.0, %v6639
        %v6641 = vpop.f32.mrf.mxu0
        %6642 = vmatprep.mubr.bf16.mxu0 0
        %6643 = vmatmul.mubr.bf16.gmra.mxu0 %v5227
        %v6644 = vpop.f32.mrf.mxu0
        %v6645 = vadd.f32 0.0, %v6644
        %v6646 = vpop.f32.mrf.mxu0
        %v6647 = vpop.f32.mrf.mxu0
        %v6648 = vadd.f32 0.0, %v6647
        %v6649 = vpop.f32.mrf.mxu0
        %6650 = vmatprep.mubr.bf16.mxu0 0
        %6651 = vmatmul.mubr.bf16.gmra.mxu0 %v5230
        %v6652 = vpop.f32.mrf.mxu0
        %v6653 = vadd.f32 0.0, %v6652
        %v6654 = vpop.f32.mrf.mxu0
        %v6655 = vpop.f32.mrf.mxu0
        %v6656 = vadd.f32 0.0, %v6655
        %v6657 = vpop.f32.mrf.mxu0
        %6658 = vmatprep.mubr.bf16.mxu0 0
        %6659 = vmatmul.mubr.bf16.gmra.mxu0 %v5233
        %v6660 = vpop.f32.mrf.mxu0
        %v6661 = vadd.f32 0.0, %v6660
        %v6662 = vpop.f32.mrf.mxu0
        %v6663 = vpop.f32.mrf.mxu0
        %v6664 = vadd.f32 0.0, %v6663
        %v6665 = vpop.f32.mrf.mxu0
        %6666 = vmatprep.mubr.bf16.mxu0 0
        %6667 = vmatmul.mubr.bf16.gmra.mxu0 %v5236
        %v6668 = vpop.f32.mrf.mxu0
        %v6669 = vadd.f32 0.0, %v6668
        %v6670 = vpop.f32.mrf.mxu0
        %v6671 = vpop.f32.mrf.mxu0
        %v6672 = vadd.f32 0.0, %v6671
        %v6673 = vpop.f32.mrf.mxu0
        %6674 = vmatprep.mubr.bf16.mxu0 0
        %6675 = vmatmul.mubr.bf16.gmra.mxu0 %v5239
        %v6676 = vpop.f32.mrf.mxu0
        %v6677 = vadd.f32 0.0, %v6676
        %v6678 = vpop.f32.mrf.mxu0
        %v6679 = vpop.f32.mrf.mxu0
        %v6680 = vadd.f32 0.0, %v6679
        %v6681 = vpop.f32.mrf.mxu0
        %6682 = vmatprep.mubr.bf16.mxu0 0
        %6683 = vmatmul.mubr.bf16.gmra.mxu0 %v5857
        %v6684 = vpop.f32.mrf.mxu0
        %v6685 = vadd.f32 0.0, %v6684
        %v6686 = vpop.f32.mrf.mxu0
        %v6687 = vpop.f32.mrf.mxu0
        %v6688 = vadd.f32 0.0, %v6687
        %v6689 = vpop.f32.mrf.mxu0
        %6690 = vmatprep.mubr.bf16.mxu0 0
        %6691 = vmatmul.mubr.bf16.gmra.mxu0 %v6536
        %v6692 = vpop.f32.mrf.mxu0
        %v6693 = vadd.f32 0.0, %v6692
        %v6694 = vpop.f32.mrf.mxu0
        %v6695 = vpop.f32.mrf.mxu0
        %v6696 = vadd.f32 0.0, %v6695
        %v6697 = vpop.f32.mrf.mxu0
        %6698 = vdwg.mxu0
        %v6699 = vadd.f32 %v6482, %v6573
        %v6700 = vadd.f32 %v6483, %v6576
        %v6701 = vadd.f32 %v6484, %v6581
        %v6702 = vadd.f32 %v6485, %v6584
        %v6703 = vadd.f32 %v6486, %v6589
        %v6704 = vadd.f32 %v6487, %v6592
        %v6705 = vadd.f32 %v6488, %v6597
        %v6706 = vadd.f32 %v6489, %v6600
        %v6707 = vadd.f32 %v6490, %v6605
        %v6708 = vadd.f32 %v6491, %v6608
        %v6709 = vadd.f32 %v6492, %v6613
        %v6710 = vadd.f32 %v6493, %v6616
        %v6711 = vadd.f32 %v6494, %v6621
        %v6712 = vadd.f32 %v6495, %v6624
        %v6713 = vadd.f32 %v6496, %v6629
        %v6714 = vadd.f32 %v6497, %v6632
        %v6715 = vadd.f32 %v6498, %v6637
        %v6716 = vadd.f32 %v6499, %v6640
        %v6717 = vadd.f32 %v6500, %v6645
        %v6718 = vadd.f32 %v6501, %v6648
        %v6719 = vadd.f32 %v6502, %v6653
        %v6720 = vadd.f32 %v6503, %v6656
        %v6721 = vadd.f32 %v6504, %v6661
        %v6722 = vadd.f32 %v6505, %v6664
        %v6723 = vadd.f32 %v6506, %v6669
        %v6724 = vadd.f32 %v6507, %v6672
        %v6725 = vadd.f32 %v6508, %v6677
        %v6726 = vadd.f32 %v6509, %v6680
        %v6727 = vadd.f32 %v6510, %v6685
        %v6728 = vadd.f32 %v6511, %v6688
        %v6729 = vadd.f32 %v6512, %v6693
        %v6730 = vadd.f32 %v6513, %v6696
        %v6732 = vshrl.u32 %v4436, 16
        %v6734 = vrot.slane %v6732, 4
        %v6735 = vshll.u32 %v4436, 16
        %v6737 = vrot.slane %v6735, 5
        %v6738 = vor.u32 %v6734, %v6737
        %v6739 = vrot.slane %v6738, 4
        %v6741 = vshll.u32 %v4437, 16
        %v6743 = vrot.slane %v6741, 5
        %v6744 = vsel %vm1118, %v6739, %v6743
        %v6745 = vshrl.u32 %v4437, 16
        %v6747 = vrot.slane %v6745, 4
        %v6748 = vor.u32 %v6747, %v6743
        %v6749 = vrot.slane %v6748, 4
        %v6751 = vshll.u32 %v4438, 16
        %v6753 = vrot.slane %v6751, 5
        %v6754 = vsel %vm1118, %v6749, %v6753
        %v6755 = vld [vmem:[%s3 + $0x70] sm:$0xf]
        %v6756 = vld [vmem:[%s3 + $0x74] sm:$0xf]
        %v6757 = vld [vmem:[%s3 + $0x78] sm:$0xf]
        %v6758 = vld [vmem:[%s3 + $0x7c] sm:$0xf]
        %v6759 = vunpack.c.l.b16 %v6744
        %v6760 = vunpack.c.l.b16 %v6754
        %v6761 = vpack.c.b16 %v6760, %v6759
        %v6766 = vunpack.c.l.b16 %v6755
        %v6767 = vunpack.c.l.b16 %v6756
        %v6768 = vunpack.c.l.b16 %v6757
        %v6769 = vunpack.c.l.b16 %v6758
        %v6770 = vpack.c.b16 %v6767, %v6766
        %v6771 = vpack.c.b16 %v6769, %v6768
        %v6775 = vsel %vm4891, %v6761, 0
        %6777 = vmatprep.subr.bf16.mxu0 0
        %6778 = vmatpush1.bf16.msra.mxu0 0
        %6779 = vmatprep.subr.bf16.mxu0 0
        %6780 = vmatpush1.bf16.msra.mxu0 0
        %6781 = vmatprep.subr.bf16.mxu0 0
        %6782 = vmatpush1.bf16.msra.mxu0 0
        %6783 = vmatprep.subr.bf16.mxu0 0
        %6784 = vmatpush1.bf16.msra.mxu0 0
        %6785 = vmatprep.subr.bf16.mxu0 0
        %6786 = vmatpush1.bf16.msra.mxu0 0
        %6787 = vmatprep.subr.bf16.mxu0 0
        %6788 = vmatpush1.bf16.msra.mxu0 0
        %6789 = vmatprep.subr.bf16.mxu0 0
        %6790 = vmatpush1.bf16.msra.mxu0 %v6771
        %6791 = vmatprep.subr.bf16.mxu0 0
        %6792 = vmatpush1.bf16.msra.mxu0 %v6770
        %6793 = vmatprep.subr.bf16.mxu0 0
        %6794 = vmatpush2.bf16.msra.mxu0 0
        %6795 = vmatprep.subr.bf16.mxu0 0
        %6796 = vmatpush2.bf16.msra.mxu0 0
        %6797 = vmatprep.subr.bf16.mxu0 0
        %6798 = vmatpush2.bf16.msra.mxu0 0
        %6799 = vmatprep.subr.bf16.mxu0 0
        %6800 = vmatpush2.bf16.msra.mxu0 0
        %6801 = vmatprep.subr.bf16.mxu0 0
        %6802 = vmatpush2.bf16.msra.mxu0 0
        %6803 = vmatprep.subr.bf16.mxu0 0
        %6804 = vmatpush2.bf16.msra.mxu0 0
        %6805 = vmatprep.subr.bf16.mxu0 0
        %6806 = vmatpush2.bf16.msra.mxu0 0
        %6807 = vmatprep.subr.bf16.mxu0 0
        %6808 = vmatpush2.bf16.msra.mxu0 0
        %6809 = vmatprep.mubr.bf16.mxu0 0
        %6810 = vmatmul.mubr.bf16.gmra.mxu0 %v4899
        %v6811 = vpop.f32.mrf.mxu0
        %v6812 = vadd.f32 0.0, %v6811
        %v6813 = vpop.f32.mrf.mxu0
        %v6814 = vpop.f32.mrf.mxu0
        %v6815 = vadd.f32 0.0, %v6814
        %v6816 = vpop.f32.mrf.mxu0
        %6817 = vmatprep.mubr.bf16.mxu0 0
        %6818 = vmatmul.mubr.bf16.gmra.mxu0 %v4902
        %v6819 = vpop.f32.mrf.mxu0
        %v6820 = vadd.f32 0.0, %v6819
        %v6821 = vpop.f32.mrf.mxu0
        %v6822 = vpop.f32.mrf.mxu0
        %v6823 = vadd.f32 0.0, %v6822
        %v6824 = vpop.f32.mrf.mxu0
        %6825 = vmatprep.mubr.bf16.mxu0 0
        %6826 = vmatmul.mubr.bf16.gmra.mxu0 %v4905
        %v6827 = vpop.f32.mrf.mxu0
        %v6828 = vadd.f32 0.0, %v6827
        %v6829 = vpop.f32.mrf.mxu0
        %v6830 = vpop.f32.mrf.mxu0
        %v6831 = vadd.f32 0.0, %v6830
        %v6832 = vpop.f32.mrf.mxu0
        %6833 = vmatprep.mubr.bf16.mxu0 0
        %6834 = vmatmul.mubr.bf16.gmra.mxu0 %v4908
        %v6835 = vpop.f32.mrf.mxu0
        %v6836 = vadd.f32 0.0, %v6835
        %v6837 = vpop.f32.mrf.mxu0
        %v6838 = vpop.f32.mrf.mxu0
        %v6839 = vadd.f32 0.0, %v6838
        %v6840 = vpop.f32.mrf.mxu0
        %6841 = vmatprep.mubr.bf16.mxu0 0
        %6842 = vmatmul.mubr.bf16.gmra.mxu0 %v4911
        %v6843 = vpop.f32.mrf.mxu0
        %v6844 = vadd.f32 0.0, %v6843
        %v6845 = vpop.f32.mrf.mxu0
        %v6846 = vpop.f32.mrf.mxu0
        %v6847 = vadd.f32 0.0, %v6846
        %v6848 = vpop.f32.mrf.mxu0
        %6849 = vmatprep.mubr.bf16.mxu0 0
        %6850 = vmatmul.mubr.bf16.gmra.mxu0 %v4914
        %v6851 = vpop.f32.mrf.mxu0
        %v6852 = vadd.f32 0.0, %v6851
        %v6853 = vpop.f32.mrf.mxu0
        %v6854 = vpop.f32.mrf.mxu0
        %v6855 = vadd.f32 0.0, %v6854
        %v6856 = vpop.f32.mrf.mxu0
        %6857 = vmatprep.mubr.bf16.mxu0 0
        %6858 = vmatmul.mubr.bf16.gmra.mxu0 %v4917
        %v6859 = vpop.f32.mrf.mxu0
        %v6860 = vadd.f32 0.0, %v6859
        %v6861 = vpop.f32.mrf.mxu0
        %v6862 = vpop.f32.mrf.mxu0
        %v6863 = vadd.f32 0.0, %v6862
        %v6864 = vpop.f32.mrf.mxu0
        %6865 = vmatprep.mubr.bf16.mxu0 0
        %6866 = vmatmul.mubr.bf16.gmra.mxu0 %v4920
        %v6867 = vpop.f32.mrf.mxu0
        %v6868 = vadd.f32 0.0, %v6867
        %v6869 = vpop.f32.mrf.mxu0
        %v6870 = vpop.f32.mrf.mxu0
        %v6871 = vadd.f32 0.0, %v6870
        %v6872 = vpop.f32.mrf.mxu0
        %6873 = vmatprep.mubr.bf16.mxu0 0
        %6874 = vmatmul.mubr.bf16.gmra.mxu0 %v4923
        %v6875 = vpop.f32.mrf.mxu0
        %v6876 = vadd.f32 0.0, %v6875
        %v6877 = vpop.f32.mrf.mxu0
        %v6878 = vpop.f32.mrf.mxu0
        %v6879 = vadd.f32 0.0, %v6878
        %v6880 = vpop.f32.mrf.mxu0
        %6881 = vmatprep.mubr.bf16.mxu0 0
        %6882 = vmatmul.mubr.bf16.gmra.mxu0 %v4926
        %v6883 = vpop.f32.mrf.mxu0
        %v6884 = vadd.f32 0.0, %v6883
        %v6885 = vpop.f32.mrf.mxu0
        %v6886 = vpop.f32.mrf.mxu0
        %v6887 = vadd.f32 0.0, %v6886
        %v6888 = vpop.f32.mrf.mxu0
        %6889 = vmatprep.mubr.bf16.mxu0 0
        %6890 = vmatmul.mubr.bf16.gmra.mxu0 %v4929
        %v6891 = vpop.f32.mrf.mxu0
        %v6892 = vadd.f32 0.0, %v6891
        %v6893 = vpop.f32.mrf.mxu0
        %v6894 = vpop.f32.mrf.mxu0
        %v6895 = vadd.f32 0.0, %v6894
        %v6896 = vpop.f32.mrf.mxu0
        %6897 = vmatprep.mubr.bf16.mxu0 0
        %6898 = vmatmul.mubr.bf16.gmra.mxu0 %v4932
        %v6899 = vpop.f32.mrf.mxu0
        %v6900 = vadd.f32 0.0, %v6899
        %v6901 = vpop.f32.mrf.mxu0
        %v6902 = vpop.f32.mrf.mxu0
        %v6903 = vadd.f32 0.0, %v6902
        %v6904 = vpop.f32.mrf.mxu0
        %6905 = vmatprep.mubr.bf16.mxu0 0
        %6906 = vmatmul.mubr.bf16.gmra.mxu0 %v4935
        %v6907 = vpop.f32.mrf.mxu0
        %v6908 = vadd.f32 0.0, %v6907
        %v6909 = vpop.f32.mrf.mxu0
        %v6910 = vpop.f32.mrf.mxu0
        %v6911 = vadd.f32 0.0, %v6910
        %v6912 = vpop.f32.mrf.mxu0
        %6913 = vmatprep.mubr.bf16.mxu0 0
        %6914 = vmatmul.mubr.bf16.gmra.mxu0 %v4938
        %v6915 = vpop.f32.mrf.mxu0
        %v6916 = vadd.f32 0.0, %v6915
        %v6917 = vpop.f32.mrf.mxu0
        %v6918 = vpop.f32.mrf.mxu0
        %v6919 = vadd.f32 0.0, %v6918
        %v6920 = vpop.f32.mrf.mxu0
        %6921 = vmatprep.mubr.bf16.mxu0 0
        %6922 = vmatmul.mubr.bf16.gmra.mxu0 %v6096
        %v6923 = vpop.f32.mrf.mxu0
        %v6924 = vadd.f32 0.0, %v6923
        %v6925 = vpop.f32.mrf.mxu0
        %v6926 = vpop.f32.mrf.mxu0
        %v6927 = vadd.f32 0.0, %v6926
        %v6928 = vpop.f32.mrf.mxu0
        %6929 = vmatprep.mubr.bf16.mxu0 0
        %6930 = vmatmul.mubr.bf16.gmra.mxu0 %v6775
        %v6931 = vpop.f32.mrf.mxu0
        %v6932 = vadd.f32 0.0, %v6931
        %v6933 = vpop.f32.mrf.mxu0
        %v6934 = vpop.f32.mrf.mxu0
        %v6935 = vadd.f32 0.0, %v6934
        %v6936 = vpop.f32.mrf.mxu0
        %6937 = vdwg.mxu0
        %v6938 = vadd.f32 %v6699, %v6812
        %v6939 = vadd.f32 %v6700, %v6815
        %v6940 = vadd.f32 %v6701, %v6820
        %v6941 = vadd.f32 %v6702, %v6823
        %v6942 = vadd.f32 %v6703, %v6828
        %v6943 = vadd.f32 %v6704, %v6831
        %v6944 = vadd.f32 %v6705, %v6836
        %v6945 = vadd.f32 %v6706, %v6839
        %v6946 = vadd.f32 %v6707, %v6844
        %v6947 = vadd.f32 %v6708, %v6847
        %v6948 = vadd.f32 %v6709, %v6852
        %v6949 = vadd.f32 %v6710, %v6855
        %v6950 = vadd.f32 %v6711, %v6860
        %v6951 = vadd.f32 %v6712, %v6863
        %v6952 = vadd.f32 %v6713, %v6868
        %v6953 = vadd.f32 %v6714, %v6871
        %v6954 = vadd.f32 %v6715, %v6876
        %v6955 = vadd.f32 %v6716, %v6879
        %v6956 = vadd.f32 %v6717, %v6884
        %v6957 = vadd.f32 %v6718, %v6887
        %v6958 = vadd.f32 %v6719, %v6892
        %v6959 = vadd.f32 %v6720, %v6895
        %v6960 = vadd.f32 %v6721, %v6900
        %v6961 = vadd.f32 %v6722, %v6903
        %v6962 = vadd.f32 %v6723, %v6908
        %v6963 = vadd.f32 %v6724, %v6911
        %v6964 = vadd.f32 %v6725, %v6916
        %v6965 = vadd.f32 %v6726, %v6919
        %v6966 = vadd.f32 %v6727, %v6924
        %v6967 = vadd.f32 %v6728, %v6927
        %v6968 = vadd.f32 %v6729, %v6932
        %v6969 = vadd.f32 %v6730, %v6935
        %v6971 = vrot.slane %v4436, 5
        %v6972 = vrot.slane %v6971, 4
        %v6973 = vrot.slane %v4437, 5
        %v6974 = vsel %vm2080, %v6972, %v6973
        %v6975 = vrot.slane %v6973, 4
        %v6976 = vrot.slane %v4438, 5
        %v6977 = vsel %vm2080, %v6975, %v6976
        %v6978 = vld [vmem:[%s3 + $0x80] sm:$0xf]
        %v6979 = vld [vmem:[%s3 + $0x84] sm:$0xf]
        %v6980 = vld [vmem:[%s3 + $0x88] sm:$0xf]
        %v6981 = vld [vmem:[%s3 + $0x8c] sm:$0xf]
        %v6982 = vunpack.c.l.b16 %v6974
        %v6983 = vunpack.c.l.b16 %v6977
        %v6984 = vpack.c.b16 %v6983, %v6982
        %v6989 = vunpack.c.l.b16 %v6978
        %v6990 = vunpack.c.l.b16 %v6979
        %v6991 = vunpack.c.l.b16 %v6980
        %v6992 = vunpack.c.l.b16 %v6981
        %v6993 = vpack.c.b16 %v6990, %v6989
        %v6994 = vpack.c.b16 %v6992, %v6991
        %v6998 = vsel %vm4891, %v6984, 0
        %7000 = vmatprep.subr.bf16.mxu0 0
        %7001 = vmatpush1.bf16.msra.mxu0 0
        %7002 = vmatprep.subr.bf16.mxu0 0
        %7003 = vmatpush1.bf16.msra.mxu0 0
        %7004 = vmatprep.subr.bf16.mxu0 0
        %7005 = vmatpush1.bf16.msra.mxu0 0
        %7006 = vmatprep.subr.bf16.mxu0 0
        %7007 = vmatpush1.bf16.msra.mxu0 0
        %7008 = vmatprep.subr.bf16.mxu0 0
        %7009 = vmatpush1.bf16.msra.mxu0 0
        %7010 = vmatprep.subr.bf16.mxu0 0
        %7011 = vmatpush1.bf16.msra.mxu0 0
        %7012 = vmatprep.subr.bf16.mxu0 0
        %7013 = vmatpush1.bf16.msra.mxu0 %v6994
        %7014 = vmatprep.subr.bf16.mxu0 0
        %7015 = vmatpush1.bf16.msra.mxu0 %v6993
        %7016 = vmatprep.subr.bf16.mxu0 0
        %7017 = vmatpush2.bf16.msra.mxu0 0
        %7018 = vmatprep.subr.bf16.mxu0 0
        %7019 = vmatpush2.bf16.msra.mxu0 0
        %7020 = vmatprep.subr.bf16.mxu0 0
        %7021 = vmatpush2.bf16.msra.mxu0 0
        %7022 = vmatprep.subr.bf16.mxu0 0
        %7023 = vmatpush2.bf16.msra.mxu0 0
        %7024 = vmatprep.subr.bf16.mxu0 0
        %7025 = vmatpush2.bf16.msra.mxu0 0
        %7026 = vmatprep.subr.bf16.mxu0 0
        %7027 = vmatpush2.bf16.msra.mxu0 0
        %7028 = vmatprep.subr.bf16.mxu0 0
        %7029 = vmatpush2.bf16.msra.mxu0 0
        %7030 = vmatprep.subr.bf16.mxu0 0
        %7031 = vmatpush2.bf16.msra.mxu0 0
        %7032 = vmatprep.mubr.bf16.mxu0 0
        %7033 = vmatmul.mubr.bf16.gmra.mxu0 %v5601
        %v7034 = vpop.f32.mrf.mxu0
        %v7035 = vadd.f32 0.0, %v7034
        %v7036 = vpop.f32.mrf.mxu0
        %v7037 = vpop.f32.mrf.mxu0
        %v7038 = vadd.f32 0.0, %v7037
        %v7039 = vpop.f32.mrf.mxu0
        %7040 = vmatprep.mubr.bf16.mxu0 0
        %7041 = vmatmul.mubr.bf16.gmra.mxu0 %v5604
        %v7042 = vpop.f32.mrf.mxu0
        %v7043 = vadd.f32 0.0, %v7042
        %v7044 = vpop.f32.mrf.mxu0
        %v7045 = vpop.f32.mrf.mxu0
        %v7046 = vadd.f32 0.0, %v7045
        %v7047 = vpop.f32.mrf.mxu0
        %7048 = vmatprep.mubr.bf16.mxu0 0
        %7049 = vmatmul.mubr.bf16.gmra.mxu0 %v5607
        %v7050 = vpop.f32.mrf.mxu0
        %v7051 = vadd.f32 0.0, %v7050
        %v7052 = vpop.f32.mrf.mxu0
        %v7053 = vpop.f32.mrf.mxu0
        %v7054 = vadd.f32 0.0, %v7053
        %v7055 = vpop.f32.mrf.mxu0
        %7056 = vmatprep.mubr.bf16.mxu0 0
        %7057 = vmatmul.mubr.bf16.gmra.mxu0 %v5610
        %v7058 = vpop.f32.mrf.mxu0
        %v7059 = vadd.f32 0.0, %v7058
        %v7060 = vpop.f32.mrf.mxu0
        %v7061 = vpop.f32.mrf.mxu0
        %v7062 = vadd.f32 0.0, %v7061
        %v7063 = vpop.f32.mrf.mxu0
        %7064 = vmatprep.mubr.bf16.mxu0 0
        %7065 = vmatmul.mubr.bf16.gmra.mxu0 %v5613
        %v7066 = vpop.f32.mrf.mxu0
        %v7067 = vadd.f32 0.0, %v7066
        %v7068 = vpop.f32.mrf.mxu0
        %v7069 = vpop.f32.mrf.mxu0
        %v7070 = vadd.f32 0.0, %v7069
        %v7071 = vpop.f32.mrf.mxu0
        %7072 = vmatprep.mubr.bf16.mxu0 0
        %7073 = vmatmul.mubr.bf16.gmra.mxu0 %v5616
        %v7074 = vpop.f32.mrf.mxu0
        %v7075 = vadd.f32 0.0, %v7074
        %v7076 = vpop.f32.mrf.mxu0
        %v7077 = vpop.f32.mrf.mxu0
        %v7078 = vadd.f32 0.0, %v7077
        %v7079 = vpop.f32.mrf.mxu0
        %7080 = vmatprep.mubr.bf16.mxu0 0
        %7081 = vmatmul.mubr.bf16.gmra.mxu0 %v5619
        %v7082 = vpop.f32.mrf.mxu0
        %v7083 = vadd.f32 0.0, %v7082
        %v7084 = vpop.f32.mrf.mxu0
        %v7085 = vpop.f32.mrf.mxu0
        %v7086 = vadd.f32 0.0, %v7085
        %v7087 = vpop.f32.mrf.mxu0
        %7088 = vmatprep.mubr.bf16.mxu0 0
        %7089 = vmatmul.mubr.bf16.gmra.mxu0 %v5622
        %v7090 = vpop.f32.mrf.mxu0
        %v7091 = vadd.f32 0.0, %v7090
        %v7092 = vpop.f32.mrf.mxu0
        %v7093 = vpop.f32.mrf.mxu0
        %v7094 = vadd.f32 0.0, %v7093
        %v7095 = vpop.f32.mrf.mxu0
        %7096 = vmatprep.mubr.bf16.mxu0 0
        %7097 = vmatmul.mubr.bf16.gmra.mxu0 %v5625
        %v7098 = vpop.f32.mrf.mxu0
        %v7099 = vadd.f32 0.0, %v7098
        %v7100 = vpop.f32.mrf.mxu0
        %v7101 = vpop.f32.mrf.mxu0
        %v7102 = vadd.f32 0.0, %v7101
        %v7103 = vpop.f32.mrf.mxu0
        %7104 = vmatprep.mubr.bf16.mxu0 0
        %7105 = vmatmul.mubr.bf16.gmra.mxu0 %v5628
        %v7106 = vpop.f32.mrf.mxu0
        %v7107 = vadd.f32 0.0, %v7106
        %v7108 = vpop.f32.mrf.mxu0
        %v7109 = vpop.f32.mrf.mxu0
        %v7110 = vadd.f32 0.0, %v7109
        %v7111 = vpop.f32.mrf.mxu0
        %7112 = vmatprep.mubr.bf16.mxu0 0
        %7113 = vmatmul.mubr.bf16.gmra.mxu0 %v5631
        %v7114 = vpop.f32.mrf.mxu0
        %v7115 = vadd.f32 0.0, %v7114
        %v7116 = vpop.f32.mrf.mxu0
        %v7117 = vpop.f32.mrf.mxu0
        %v7118 = vadd.f32 0.0, %v7117
        %v7119 = vpop.f32.mrf.mxu0
        %7120 = vmatprep.mubr.bf16.mxu0 0
        %7121 = vmatmul.mubr.bf16.gmra.mxu0 %v5634
        %v7122 = vpop.f32.mrf.mxu0
        %v7123 = vadd.f32 0.0, %v7122
        %v7124 = vpop.f32.mrf.mxu0
        %v7125 = vpop.f32.mrf.mxu0
        %v7126 = vadd.f32 0.0, %v7125
        %v7127 = vpop.f32.mrf.mxu0
        %7128 = vmatprep.mubr.bf16.mxu0 0
        %7129 = vmatmul.mubr.bf16.gmra.mxu0 %v5637
        %v7130 = vpop.f32.mrf.mxu0
        %v7131 = vadd.f32 0.0, %v7130
        %v7132 = vpop.f32.mrf.mxu0
        %v7133 = vpop.f32.mrf.mxu0
        %v7134 = vadd.f32 0.0, %v7133
        %v7135 = vpop.f32.mrf.mxu0
        %7136 = vmatprep.mubr.bf16.mxu0 0
        %7137 = vmatmul.mubr.bf16.gmra.mxu0 %v5640
        %v7138 = vpop.f32.mrf.mxu0
        %v7139 = vadd.f32 0.0, %v7138
        %v7140 = vpop.f32.mrf.mxu0
        %v7141 = vpop.f32.mrf.mxu0
        %v7142 = vadd.f32 0.0, %v7141
        %v7143 = vpop.f32.mrf.mxu0
        %7144 = vmatprep.mubr.bf16.mxu0 0
        %7145 = vmatmul.mubr.bf16.gmra.mxu0 %v6319
        %v7146 = vpop.f32.mrf.mxu0
        %v7147 = vadd.f32 0.0, %v7146
        %v7148 = vpop.f32.mrf.mxu0
        %v7149 = vpop.f32.mrf.mxu0
        %v7150 = vadd.f32 0.0, %v7149
        %v7151 = vpop.f32.mrf.mxu0
        %7152 = vmatprep.mubr.bf16.mxu0 0
        %7153 = vmatmul.mubr.bf16.gmra.mxu0 %v6998
        %v7154 = vpop.f32.mrf.mxu0
        %v7155 = vadd.f32 0.0, %v7154
        %v7156 = vpop.f32.mrf.mxu0
        %v7157 = vpop.f32.mrf.mxu0
        %v7158 = vadd.f32 0.0, %v7157
        %v7159 = vpop.f32.mrf.mxu0
        %7160 = vdwg.mxu0
        %v7161 = vadd.f32 %v6938, %v7035
        %v7162 = vadd.f32 %v6939, %v7038
        %v7163 = vadd.f32 %v6940, %v7043
        %v7164 = vadd.f32 %v6941, %v7046
        %v7165 = vadd.f32 %v6942, %v7051
        %v7166 = vadd.f32 %v6943, %v7054
        %v7167 = vadd.f32 %v6944, %v7059
        %v7168 = vadd.f32 %v6945, %v7062
        %v7169 = vadd.f32 %v6946, %v7067
        %v7170 = vadd.f32 %v6947, %v7070
        %v7171 = vadd.f32 %v6948, %v7075
        %v7172 = vadd.f32 %v6949, %v7078
        %v7173 = vadd.f32 %v6950, %v7083
        %v7174 = vadd.f32 %v6951, %v7086
        %v7175 = vadd.f32 %v6952, %v7091
        %v7176 = vadd.f32 %v6953, %v7094
        %v7177 = vadd.f32 %v6954, %v7099
        %v7178 = vadd.f32 %v6955, %v7102
        %v7179 = vadd.f32 %v6956, %v7107
        %v7180 = vadd.f32 %v6957, %v7110
        %v7181 = vadd.f32 %v6958, %v7115
        %v7182 = vadd.f32 %v6959, %v7118
        %v7183 = vadd.f32 %v6960, %v7123
        %v7184 = vadd.f32 %v6961, %v7126
        %v7185 = vadd.f32 %v6962, %v7131
        %v7186 = vadd.f32 %v6963, %v7134
        %v7187 = vadd.f32 %v6964, %v7139
        %v7188 = vadd.f32 %v6965, %v7142
        %v7189 = vadd.f32 %v6966, %v7147
        %v7190 = vadd.f32 %v6967, %v7150
        %v7191 = vadd.f32 %v6968, %v7155
        %v7192 = vadd.f32 %v6969, %v7158
        %v7194 = vlaneseq
        %v7195 = vshrl.u32 %v7194, 7
        %v7196 = vsub.s32 0, %v7195
        %v7197 = vrot.slane %v4384, %v7196
        %v7199 = vadd.f32 %v7161, %v7197
        %v7200 = vadd.f32 %v7162, %v7197
        %v7201 = vadd.f32 %v7163, %v7197
        %v7202 = vadd.f32 %v7164, %v7197
        %v7203 = vadd.f32 %v7165, %v7197
        %v7204 = vadd.f32 %v7166, %v7197
        %v7205 = vadd.f32 %v7167, %v7197
        %v7206 = vadd.f32 %v7168, %v7197
        %v7207 = vadd.f32 %v7169, %v7197
        %v7208 = vadd.f32 %v7170, %v7197
        %v7209 = vadd.f32 %v7171, %v7197
        %v7210 = vadd.f32 %v7172, %v7197
        %v7211 = vadd.f32 %v7173, %v7197
        %v7212 = vadd.f32 %v7174, %v7197
        %v7213 = vadd.f32 %v7175, %v7197
        %v7214 = vadd.f32 %v7176, %v7197
        %v7215 = vadd.f32 %v7177, %v7197
        %v7216 = vadd.f32 %v7178, %v7197
        %v7217 = vadd.f32 %v7179, %v7197
        %v7218 = vadd.f32 %v7180, %v7197
        %v7219 = vadd.f32 %v7181, %v7197
        %v7220 = vadd.f32 %v7182, %v7197
        %v7221 = vadd.f32 %v7183, %v7197
        %v7222 = vadd.f32 %v7184, %v7197
        %v7223 = vadd.f32 %v7185, %v7197
        %v7224 = vadd.f32 %v7186, %v7197
        %v7225 = vadd.f32 %v7187, %v7197
        %v7226 = vadd.f32 %v7188, %v7197
        %v7227 = vadd.f32 %v7189, %v7197
        %v7228 = vadd.f32 %v7190, %v7197
        %v7229 = vadd.f32 %v7191, %v7197
        %v7230 = vadd.f32 %v7192, %v7197
        %v7231 = vmax.f32 %v7199, 0.0
        %v7232 = vmax.f32 %v7200, 0.0
        %v7233 = vmax.f32 %v7201, 0.0
        %v7234 = vmax.f32 %v7202, 0.0
        %v7235 = vmax.f32 %v7203, 0.0
        %v7236 = vmax.f32 %v7204, 0.0
        %v7237 = vmax.f32 %v7205, 0.0
        %v7238 = vmax.f32 %v7206, 0.0
        %v7239 = vmax.f32 %v7207, 0.0
        %v7240 = vmax.f32 %v7208, 0.0
        %v7241 = vmax.f32 %v7209, 0.0
        %v7242 = vmax.f32 %v7210, 0.0
        %v7243 = vmax.f32 %v7211, 0.0
        %v7244 = vmax.f32 %v7212, 0.0
        %v7245 = vmax.f32 %v7213, 0.0
        %v7246 = vmax.f32 %v7214, 0.0
        %v7247 = vmax.f32 %v7215, 0.0
        %v7248 = vmax.f32 %v7216, 0.0
        %v7249 = vmax.f32 %v7217, 0.0
        %v7250 = vmax.f32 %v7218, 0.0
        %v7251 = vmax.f32 %v7219, 0.0
        %v7252 = vmax.f32 %v7220, 0.0
        %v7253 = vmax.f32 %v7221, 0.0
        %v7254 = vmax.f32 %v7222, 0.0
        %v7255 = vmax.f32 %v7223, 0.0
        %v7256 = vmax.f32 %v7224, 0.0
        %v7257 = vmax.f32 %v7225, 0.0
        %v7258 = vmax.f32 %v7226, 0.0
        %v7259 = vmax.f32 %v7227, 0.0
        %v7260 = vmax.f32 %v7228, 0.0
        %v7261 = vmax.f32 %v7229, 0.0
        %v7262 = vmax.f32 %v7230, 0.0
        %v7263 = vpack.c.bf16 %v7232, %v7231
        %v7264 = vpack.c.bf16 %v7234, %v7233
        %v7265 = vpack.c.bf16 %v7236, %v7235
        %v7266 = vpack.c.bf16 %v7238, %v7237
        %v7267 = vpack.c.bf16 %v7240, %v7239
        %v7268 = vpack.c.bf16 %v7242, %v7241
        %v7269 = vpack.c.bf16 %v7244, %v7243
        %v7270 = vpack.c.bf16 %v7246, %v7245
        %v7271 = vpack.c.bf16 %v7248, %v7247
        %v7272 = vpack.c.bf16 %v7250, %v7249
        %v7273 = vpack.c.bf16 %v7252, %v7251
        %v7274 = vpack.c.bf16 %v7254, %v7253
        %v7275 = vpack.c.bf16 %v7256, %v7255
        %v7276 = vpack.c.bf16 %v7258, %v7257
        %v7277 = vpack.c.bf16 %v7260, %v7259
        %v7278 = vpack.c.bf16 %v7262, %v7261
        %v7295 = vunpack.c.l.b16 %v7263
        %v7296 = vunpack.c.h.b16 %v7263
        %v7297 = vunpack.c.l.b16 %v7264
        %v7298 = vunpack.c.h.b16 %v7264
        %v7299 = vunpack.c.l.b16 %v7265
        %v7300 = vunpack.c.h.b16 %v7265
        %v7301 = vunpack.c.l.b16 %v7266
        %v7302 = vunpack.c.h.b16 %v7266
        %v7303 = vunpack.c.l.b16 %v7267
        %v7304 = vunpack.c.h.b16 %v7267
        %v7305 = vunpack.c.l.b16 %v7268
        %v7306 = vunpack.c.h.b16 %v7268
        %v7307 = vunpack.c.l.b16 %v7269
        %v7308 = vunpack.c.h.b16 %v7269
        %v7309 = vunpack.c.l.b16 %v7270
        %v7310 = vunpack.c.h.b16 %v7270
        %v7311 = vunpack.c.l.b16 %v7271
        %v7312 = vunpack.c.h.b16 %v7271
        %v7313 = vunpack.c.l.b16 %v7272
        %v7314 = vunpack.c.h.b16 %v7272
        %v7315 = vunpack.c.l.b16 %v7273
        %v7316 = vunpack.c.h.b16 %v7273
        %v7317 = vunpack.c.l.b16 %v7274
        %v7318 = vunpack.c.h.b16 %v7274
        %v7319 = vunpack.c.l.b16 %v7275
        %v7320 = vunpack.c.h.b16 %v7275
        %v7321 = vunpack.c.l.b16 %v7276
        %v7322 = vunpack.c.h.b16 %v7276
        %v7323 = vunpack.c.l.b16 %v7277
        %v7324 = vunpack.c.h.b16 %v7277
        %v7325 = vunpack.c.l.b16 %v7278
        %v7326 = vunpack.c.h.b16 %v7278
        %v7327 = vpack.c.b16 %v7295, %v7295
        %v7328 = vpack.c.b16 %v7296, %v7296
        %v7329 = vpack.c.b16 %v7297, %v7297
        %v7330 = vpack.c.b16 %v7298, %v7298
        %v7331 = vpack.c.b16 %v7299, %v7299
        %v7332 = vpack.c.b16 %v7300, %v7300
        %v7333 = vpack.c.b16 %v7301, %v7301
        %v7334 = vpack.c.b16 %v7302, %v7302
        %v7335 = vpack.c.b16 %v7303, %v7303
        %v7336 = vpack.c.b16 %v7304, %v7304
        %v7337 = vpack.c.b16 %v7305, %v7305
        %v7338 = vpack.c.b16 %v7306, %v7306
        %v7339 = vpack.c.b16 %v7307, %v7307
        %v7340 = vpack.c.b16 %v7308, %v7308
        %v7341 = vpack.c.b16 %v7309, %v7309
        %v7342 = vpack.c.b16 %v7310, %v7310
        %v7343 = vpack.c.b16 %v7311, %v7311
        %v7344 = vpack.c.b16 %v7312, %v7312
        %v7345 = vpack.c.b16 %v7313, %v7313
        %v7346 = vpack.c.b16 %v7314, %v7314
        %v7347 = vpack.c.b16 %v7315, %v7315
        %v7348 = vpack.c.b16 %v7316, %v7316
        %v7349 = vpack.c.b16 %v7317, %v7317
        %v7350 = vpack.c.b16 %v7318, %v7318
        %v7351 = vpack.c.b16 %v7319, %v7319
        %v7352 = vpack.c.b16 %v7320, %v7320
        %v7353 = vpack.c.b16 %v7321, %v7321
        %v7354 = vpack.c.b16 %v7322, %v7322
        %v7355 = vpack.c.b16 %v7323, %v7323
        %v7356 = vpack.c.b16 %v7324, %v7324
        %v7357 = vpack.c.b16 %v7325, %v7325
        %v7358 = vpack.c.b16 %v7326, %v7326
        %v7360 = vshrl.u32 %v7327, 16
        %v7362 = vrot.slane %v7360, 7
        %v7363 = vshll.u32 %v7327, 16
        %v7365 = vor.u32 %v7362, %v7363
        %v7366 = vrot.slane %v7362, 4
        %v7368 = vshrl.u32 %v7328, 16
        %v7370 = vrot.slane %v7368, 7
        %v7371 = vshll.u32 %v7328, 16
        %v7373 = vor.u32 %v7370, %v7371
        %v7374 = vsel %vm621, %v7366, %v7373
        %v7375 = vrot.slane %v7370, 4
        %v7377 = vshrl.u32 %v7329, 16
        %v7379 = vrot.slane %v7377, 7
        %v7380 = vshll.u32 %v7329, 16
        %v7382 = vor.u32 %v7379, %v7380
        %v7383 = vrot.slane %v7379, 4
        %v7385 = vshrl.u32 %v7330, 16
        %v7387 = vrot.slane %v7385, 7
        %v7388 = vshll.u32 %v7330, 16
        %v7390 = vor.u32 %v7387, %v7388
        %v7391 = vsel %vm621, %v7383, %v7390
        %v7392 = vrot.slane %v7387, 4
        %v7394 = vshrl.u32 %v7331, 16
        %v7396 = vrot.slane %v7394, 7
        %v7397 = vshll.u32 %v7331, 16
        %v7399 = vor.u32 %v7396, %v7397
        %v7400 = vrot.slane %v7396, 4
        %v7402 = vshrl.u32 %v7332, 16
        %v7404 = vrot.slane %v7402, 7
        %v7405 = vshll.u32 %v7332, 16
        %v7407 = vor.u32 %v7404, %v7405
        %v7408 = vsel %vm621, %v7400, %v7407
        %v7409 = vrot.slane %v7404, 4
        %v7411 = vshrl.u32 %v7333, 16
        %v7413 = vrot.slane %v7411, 7
        %v7414 = vshll.u32 %v7333, 16
        %v7416 = vor.u32 %v7413, %v7414
        %v7417 = vrot.slane %v7413, 4
        %v7419 = vshrl.u32 %v7334, 16
        %v7421 = vrot.slane %v7419, 7
        %v7422 = vshll.u32 %v7334, 16
        %v7424 = vor.u32 %v7421, %v7422
        %v7425 = vsel %vm621, %v7417, %v7424
        %v7426 = vrot.slane %v7421, 4
        %v7428 = vshrl.u32 %v7335, 16
        %v7430 = vrot.slane %v7428, 7
        %v7431 = vshll.u32 %v7335, 16
        %v7433 = vor.u32 %v7430, %v7431
        %v7434 = vrot.slane %v7430, 4
        %v7436 = vshrl.u32 %v7336, 16
        %v7438 = vrot.slane %v7436, 7
        %v7439 = vshll.u32 %v7336, 16
        %v7441 = vor.u32 %v7438, %v7439
        %v7442 = vsel %vm621, %v7434, %v7441
        %v7443 = vrot.slane %v7438, 4
        %v7445 = vshrl.u32 %v7337, 16
        %v7447 = vrot.slane %v7445, 7
        %v7448 = vshll.u32 %v7337, 16
        %v7450 = vor.u32 %v7447, %v7448
        %v7451 = vrot.slane %v7447, 4
        %v7453 = vshrl.u32 %v7338, 16
        %v7455 = vrot.slane %v7453, 7
        %v7456 = vshll.u32 %v7338, 16
        %v7458 = vor.u32 %v7455, %v7456
        %v7459 = vsel %vm621, %v7451, %v7458
        %v7460 = vrot.slane %v7455, 4
        %v7462 = vshrl.u32 %v7339, 16
        %v7464 = vrot.slane %v7462, 7
        %v7465 = vshll.u32 %v7339, 16
        %v7467 = vor.u32 %v7464, %v7465
        %v7468 = vrot.slane %v7464, 4
        %v7470 = vshrl.u32 %v7340, 16
        %v7472 = vrot.slane %v7470, 7
        %v7473 = vshll.u32 %v7340, 16
        %v7475 = vor.u32 %v7472, %v7473
        %v7476 = vsel %vm621, %v7468, %v7475
        %v7477 = vrot.slane %v7472, 4
        %v7479 = vshrl.u32 %v7341, 16
        %v7481 = vrot.slane %v7479, 7
        %v7482 = vshll.u32 %v7341, 16
        %v7484 = vor.u32 %v7481, %v7482
        %v7485 = vrot.slane %v7481, 4
        %v7487 = vshrl.u32 %v7342, 16
        %v7489 = vrot.slane %v7487, 7
        %v7490 = vshll.u32 %v7342, 16
        %v7492 = vor.u32 %v7489, %v7490
        %v7493 = vsel %vm621, %v7485, %v7492
        %v7494 = vrot.slane %v7489, 4
        %v7496 = vshrl.u32 %v7343, 16
        %v7498 = vrot.slane %v7496, 7
        %v7499 = vshll.u32 %v7343, 16
        %v7501 = vor.u32 %v7498, %v7499
        %v7502 = vrot.slane %v7498, 4
        %v7504 = vshrl.u32 %v7344, 16
        %v7506 = vrot.slane %v7504, 7
        %v7507 = vshll.u32 %v7344, 16
        %v7509 = vor.u32 %v7506, %v7507
        %v7510 = vsel %vm621, %v7502, %v7509
        %v7511 = vrot.slane %v7506, 4
        %v7513 = vshrl.u32 %v7345, 16
        %v7515 = vrot.slane %v7513, 7
        %v7516 = vshll.u32 %v7345, 16
        %v7518 = vor.u32 %v7515, %v7516
        %v7519 = vrot.slane %v7515, 4
        %v7521 = vshrl.u32 %v7346, 16
        %v7523 = vrot.slane %v7521, 7
        %v7524 = vshll.u32 %v7346, 16
        %v7526 = vor.u32 %v7523, %v7524
        %v7527 = vsel %vm621, %v7519, %v7526
        %v7528 = vrot.slane %v7523, 4
        %v7530 = vshrl.u32 %v7347, 16
        %v7532 = vrot.slane %v7530, 7
        %v7533 = vshll.u32 %v7347, 16
        %v7535 = vor.u32 %v7532, %v7533
        %v7536 = vrot.slane %v7532, 4
        %v7538 = vshrl.u32 %v7348, 16
        %v7540 = vrot.slane %v7538, 7
        %v7541 = vshll.u32 %v7348, 16
        %v7543 = vor.u32 %v7540, %v7541
        %v7544 = vsel %vm621, %v7536, %v7543
        %v7545 = vrot.slane %v7540, 4
        %v7547 = vshrl.u32 %v7349, 16
        %v7549 = vrot.slane %v7547, 7
        %v7550 = vshll.u32 %v7349, 16
        %v7552 = vor.u32 %v7549, %v7550
        %v7553 = vrot.slane %v7549, 4
        %v7555 = vshrl.u32 %v7350, 16
        %v7557 = vrot.slane %v7555, 7
        %v7558 = vshll.u32 %v7350, 16
        %v7560 = vor.u32 %v7557, %v7558
        %v7561 = vsel %vm621, %v7553, %v7560
        %v7562 = vrot.slane %v7557, 4
        %v7564 = vshrl.u32 %v7351, 16
        %v7566 = vrot.slane %v7564, 7
        %v7567 = vshll.u32 %v7351, 16
        %v7569 = vor.u32 %v7566, %v7567
        %v7570 = vrot.slane %v7566, 4
        %v7572 = vshrl.u32 %v7352, 16
        %v7574 = vrot.slane %v7572, 7
        %v7575 = vshll.u32 %v7352, 16
        %v7577 = vor.u32 %v7574, %v7575
        %v7578 = vsel %vm621, %v7570, %v7577
        %v7579 = vrot.slane %v7574, 4
        %v7581 = vshrl.u32 %v7353, 16
        %v7583 = vrot.slane %v7581, 7
        %v7584 = vshll.u32 %v7353, 16
        %v7586 = vor.u32 %v7583, %v7584
        %v7587 = vrot.slane %v7583, 4
        %v7589 = vshrl.u32 %v7354, 16
        %v7591 = vrot.slane %v7589, 7
        %v7592 = vshll.u32 %v7354, 16
        %v7594 = vor.u32 %v7591, %v7592
        %v7595 = vsel %vm621, %v7587, %v7594
        %v7596 = vrot.slane %v7591, 4
        %v7598 = vshrl.u32 %v7355, 16
        %v7600 = vrot.slane %v7598, 7
        %v7601 = vshll.u32 %v7355, 16
        %v7603 = vor.u32 %v7600, %v7601
        %v7604 = vrot.slane %v7600, 4
        %v7606 = vshrl.u32 %v7356, 16
        %v7608 = vrot.slane %v7606, 7
        %v7609 = vshll.u32 %v7356, 16
        %v7611 = vor.u32 %v7608, %v7609
        %v7612 = vsel %vm621, %v7604, %v7611
        %v7613 = vrot.slane %v7608, 4
        %v7615 = vshrl.u32 %v7357, 16
        %v7617 = vrot.slane %v7615, 7
        %v7618 = vshll.u32 %v7357, 16
        %v7620 = vor.u32 %v7617, %v7618
        %v7621 = vrot.slane %v7617, 4
        %v7623 = vshrl.u32 %v7358, 16
        %v7625 = vrot.slane %v7623, 7
        %v7626 = vshll.u32 %v7358, 16
        %v7628 = vor.u32 %v7625, %v7626
        %v7629 = vsel %vm621, %v7621, %v7628
        %v7630 = vrot.slane %v7625, 4
        %v7679 = vld [vmem:[%s942] sm:$0xf]
        %v7680 = vsel %vm4271, %v7365, %v7679
        %7681 = vst [vmem:[%s942] sm:$0xf] %v7680
        %7682 = vst.msk [vmem:[%s942 + $0x4] sm:$0xf] %vm370, %v7374
        %v7683 = vld [vmem:[%s942 + $0x8] sm:$0x1]
        %v7684 = vsel %vm381, %v7375, %v7683
        %7685 = vst [vmem:[%s942 + $0x8] sm:$0x1] %v7684
        %v7686 = vld [vmem:[%s942 + $0xc] sm:$0xf]
        %v7687 = vsel %vm4271, %v7382, %v7686
        %7688 = vst [vmem:[%s942 + $0xc] sm:$0xf] %v7687
        %7689 = vst.msk [vmem:[%s942 + $0x10] sm:$0xf] %vm370, %v7391
        %v7690 = vld [vmem:[%s942 + $0x14] sm:$0x1]
        %v7691 = vsel %vm381, %v7392, %v7690
        %7692 = vst [vmem:[%s942 + $0x14] sm:$0x1] %v7691
        %v7693 = vld [vmem:[%s942 + $0x18] sm:$0xf]
        %v7694 = vsel %vm4271, %v7399, %v7693
        %7695 = vst [vmem:[%s942 + $0x18] sm:$0xf] %v7694
        %7696 = vst.msk [vmem:[%s942 + $0x1c] sm:$0xf] %vm370, %v7408
        %v7697 = vld [vmem:[%s942 + $0x20] sm:$0x1]
        %v7698 = vsel %vm381, %v7409, %v7697
        %7699 = vst [vmem:[%s942 + $0x20] sm:$0x1] %v7698
        %v7700 = vld [vmem:[%s942 + $0x24] sm:$0xf]
        %v7701 = vsel %vm4271, %v7416, %v7700
        %7702 = vst [vmem:[%s942 + $0x24] sm:$0xf] %v7701
        %7703 = vst.msk [vmem:[%s942 + $0x28] sm:$0xf] %vm370, %v7425
        %v7704 = vld [vmem:[%s942 + $0x2c] sm:$0x1]
        %v7705 = vsel %vm381, %v7426, %v7704
        %7706 = vst [vmem:[%s942 + $0x2c] sm:$0x1] %v7705
        %v7707 = vld [vmem:[%s942 + $0x30] sm:$0xf]
        %v7708 = vsel %vm4271, %v7433, %v7707
        %7709 = vst [vmem:[%s942 + $0x30] sm:$0xf] %v7708
        %7710 = vst.msk [vmem:[%s942 + $0x34] sm:$0xf] %vm370, %v7442
        %v7711 = vld [vmem:[%s942 + $0x38] sm:$0x1]
        %v7712 = vsel %vm381, %v7443, %v7711
        %7713 = vst [vmem:[%s942 + $0x38] sm:$0x1] %v7712
        %v7714 = vld [vmem:[%s942 + $0x3c] sm:$0xf]
        %v7715 = vsel %vm4271, %v7450, %v7714
        %7716 = vst [vmem:[%s942 + $0x3c] sm:$0xf] %v7715
        %7717 = vst.msk [vmem:[%s942 + $0x40] sm:$0xf] %vm370, %v7459
        %v7718 = vld [vmem:[%s942 + $0x44] sm:$0x1]
        %v7719 = vsel %vm381, %v7460, %v7718
        %7720 = vst [vmem:[%s942 + $0x44] sm:$0x1] %v7719
        %v7721 = vld [vmem:[%s942 + $0x48] sm:$0xf]
        %v7722 = vsel %vm4271, %v7467, %v7721
        %7723 = vst [vmem:[%s942 + $0x48] sm:$0xf] %v7722
        %7724 = vst.msk [vmem:[%s942 + $0x4c] sm:$0xf] %vm370, %v7476
        %v7725 = vld [vmem:[%s942 + $0x50] sm:$0x1]
        %v7726 = vsel %vm381, %v7477, %v7725
        %7727 = vst [vmem:[%s942 + $0x50] sm:$0x1] %v7726
        %v7728 = vld [vmem:[%s942 + $0x54] sm:$0xf]
        %v7729 = vsel %vm4271, %v7484, %v7728
        %7730 = vst [vmem:[%s942 + $0x54] sm:$0xf] %v7729
        %7731 = vst.msk [vmem:[%s942 + $0x58] sm:$0xf] %vm370, %v7493
        %v7732 = vld [vmem:[%s942 + $0x5c] sm:$0x1]
        %v7733 = vsel %vm381, %v7494, %v7732
        %7734 = vst [vmem:[%s942 + $0x5c] sm:$0x1] %v7733
        %v7735 = vld [vmem:[%s942 + $0x60] sm:$0xf]
        %v7736 = vsel %vm4271, %v7501, %v7735
        %7737 = vst [vmem:[%s942 + $0x60] sm:$0xf] %v7736
        %7738 = vst.msk [vmem:[%s942 + $0x64] sm:$0xf] %vm370, %v7510
        %v7739 = vld [vmem:[%s942 + $0x68] sm:$0x1]
        %v7740 = vsel %vm381, %v7511, %v7739
        %7741 = vst [vmem:[%s942 + $0x68] sm:$0x1] %v7740
        %v7742 = vld [vmem:[%s942 + $0x6c] sm:$0xf]
        %v7743 = vsel %vm4271, %v7518, %v7742
        %7744 = vst [vmem:[%s942 + $0x6c] sm:$0xf] %v7743
        %7745 = vst.msk [vmem:[%s942 + $0x70] sm:$0xf] %vm370, %v7527
        %v7746 = vld [vmem:[%s942 + $0x74] sm:$0x1]
        %v7747 = vsel %vm381, %v7528, %v7746
        %7748 = vst [vmem:[%s942 + $0x74] sm:$0x1] %v7747
        %v7749 = vld [vmem:[%s942 + $0x78] sm:$0xf]
        %v7750 = vsel %vm4271, %v7535, %v7749
        %7751 = vst [vmem:[%s942 + $0x78] sm:$0xf] %v7750
        %7752 = vst.msk [vmem:[%s942 + $0x7c] sm:$0xf] %vm370, %v7544
        %v7753 = vld [vmem:[%s942 + $0x80] sm:$0x1]
        %v7754 = vsel %vm381, %v7545, %v7753
        %7755 = vst [vmem:[%s942 + $0x80] sm:$0x1] %v7754
        %v7756 = vld [vmem:[%s942 + $0x84] sm:$0xf]
        %v7757 = vsel %vm4271, %v7552, %v7756
        %7758 = vst [vmem:[%s942 + $0x84] sm:$0xf] %v7757
        %7759 = vst.msk [vmem:[%s942 + $0x88] sm:$0xf] %vm370, %v7561
        %v7760 = vld [vmem:[%s942 + $0x8c] sm:$0x1]
        %v7761 = vsel %vm381, %v7562, %v7760
        %7762 = vst [vmem:[%s942 + $0x8c] sm:$0x1] %v7761
        %v7763 = vld [vmem:[%s942 + $0x90] sm:$0xf]
        %v7764 = vsel %vm4271, %v7569, %v7763
        %7765 = vst [vmem:[%s942 + $0x90] sm:$0xf] %v7764
        %7766 = vst.msk [vmem:[%s942 + $0x94] sm:$0xf] %vm370, %v7578
        %v7767 = vld [vmem:[%s942 + $0x98] sm:$0x1]
        %v7768 = vsel %vm381, %v7579, %v7767
        %7769 = vst [vmem:[%s942 + $0x98] sm:$0x1] %v7768
        %v7770 = vld [vmem:[%s942 + $0x9c] sm:$0xf]
        %v7771 = vsel %vm4271, %v7586, %v7770
        %7772 = vst [vmem:[%s942 + $0x9c] sm:$0xf] %v7771
        %7773 = vst.msk [vmem:[%s942 + $0xa0] sm:$0xf] %vm370, %v7595
        %v7774 = vld [vmem:[%s942 + $0xa4] sm:$0x1]
        %v7775 = vsel %vm381, %v7596, %v7774
        %7776 = vst [vmem:[%s942 + $0xa4] sm:$0x1] %v7775
        %v7777 = vld [vmem:[%s942 + $0xa8] sm:$0xf]
        %v7778 = vsel %vm4271, %v7603, %v7777
        %7779 = vst [vmem:[%s942 + $0xa8] sm:$0xf] %v7778
        %7780 = vst.msk [vmem:[%s942 + $0xac] sm:$0xf] %vm370, %v7612
        %v7781 = vld [vmem:[%s942 + $0xb0] sm:$0x1]
        %v7782 = vsel %vm381, %v7613, %v7781
        %7783 = vst [vmem:[%s942 + $0xb0] sm:$0x1] %v7782
        %v7784 = vld [vmem:[%s942 + $0xb4] sm:$0xf]
        %v7785 = vsel %vm4271, %v7620, %v7784
        %7786 = vst [vmem:[%s942 + $0xb4] sm:$0xf] %v7785
        %7787 = vst.msk [vmem:[%s942 + $0xb8] sm:$0xf] %vm370, %v7629
        %v7788 = vld [vmem:[%s942 + $0xbc] sm:$0x1]
        %v7789 = vsel %vm381, %v7630, %v7788
        %7790 = vst [vmem:[%s942 + $0xbc] sm:$0x1] %v7789
        %v7791 = vld [vmem:[#allocation2] sm:$0xf]
        %v7792 = vld [vmem:[#allocation2 + $0x4] sm:$0xf]
        %v7793 = vld [vmem:[#allocation2 + $0x8] sm:$0x1]
        %v7794 = vld [vmem:[#allocation2 + $0xc] sm:$0xf]
        %v7795 = vld [vmem:[#allocation2 + $0x10] sm:$0xf]
        %v7796 = vld [vmem:[#allocation2 + $0x14] sm:$0x1]
        %v7797 = vld [vmem:[#allocation2 + $0x18] sm:$0xf]
        %v7798 = vld [vmem:[#allocation2 + $0x1c] sm:$0xf]
        %v7799 = vld [vmem:[#allocation2 + $0x20] sm:$0x1]
        %v7800 = vld [vmem:[#allocation2 + $0x24] sm:$0xf]
        %v7801 = vld [vmem:[#allocation2 + $0x28] sm:$0xf]
        %v7802 = vld [vmem:[#allocation2 + $0x2c] sm:$0x1]
        %v7803 = vld [vmem:[#allocation2 + $0x30] sm:$0xf]
        %v7804 = vld [vmem:[#allocation2 + $0x34] sm:$0xf]
        %v7805 = vld [vmem:[#allocation2 + $0x38] sm:$0x1]
        %v7806 = vld [vmem:[#allocation2 + $0x3c] sm:$0xf]
        %v7807 = vld [vmem:[#allocation2 + $0x40] sm:$0xf]
        %v7808 = vld [vmem:[#allocation2 + $0x44] sm:$0x1]
        %v7809 = vld [vmem:[#allocation2 + $0x48] sm:$0xf]
        %v7810 = vld [vmem:[#allocation2 + $0x4c] sm:$0xf]
        %v7811 = vld [vmem:[#allocation2 + $0x50] sm:$0x1]
        %v7812 = vld [vmem:[#allocation2 + $0x54] sm:$0xf]
        %v7813 = vld [vmem:[#allocation2 + $0x58] sm:$0xf]
        %v7814 = vld [vmem:[#allocation2 + $0x5c] sm:$0x1]
        %v7815 = vld [vmem:[#allocation2 + $0x60] sm:$0xf]
        %v7816 = vld [vmem:[#allocation2 + $0x64] sm:$0xf]
        %v7817 = vld [vmem:[#allocation2 + $0x68] sm:$0x1]
        %v7818 = vld [vmem:[#allocation2 + $0x6c] sm:$0xf]
        %v7819 = vld [vmem:[#allocation2 + $0x70] sm:$0xf]
        %v7820 = vld [vmem:[#allocation2 + $0x74] sm:$0x1]
        %v7821 = vld [vmem:[#allocation2 + $0x78] sm:$0xf]
        %v7822 = vld [vmem:[#allocation2 + $0x7c] sm:$0xf]
        %v7823 = vld [vmem:[#allocation2 + $0x80] sm:$0x1]
        %v7824 = vld [vmem:[#allocation2 + $0x84] sm:$0xf]
        %v7825 = vld [vmem:[#allocation2 + $0x88] sm:$0xf]
        %v7826 = vld [vmem:[#allocation2 + $0x8c] sm:$0x1]
        %v7827 = vld [vmem:[#allocation2 + $0x90] sm:$0xf]
        %v7828 = vld [vmem:[#allocation2 + $0x94] sm:$0xf]
        %v7829 = vld [vmem:[#allocation2 + $0x98] sm:$0x1]
        %v7830 = vld [vmem:[#allocation2 + $0x9c] sm:$0xf]
        %v7831 = vld [vmem:[#allocation2 + $0xa0] sm:$0xf]
        %v7832 = vld [vmem:[#allocation2 + $0xa4] sm:$0x1]
        %v7833 = vld [vmem:[#allocation2 + $0xa8] sm:$0xf]
        %v7834 = vld [vmem:[#allocation2 + $0xac] sm:$0xf]
        %v7835 = vld [vmem:[#allocation2 + $0xb0] sm:$0x1]
        %v7836 = vld [vmem:[#allocation2 + $0xb4] sm:$0xf]
        %v7837 = vld [vmem:[#allocation2 + $0xb8] sm:$0xf]
        %v7838 = vld [vmem:[#allocation2 + $0xbc] sm:$0x1]
        %v7839 = vld [vmem:[#allocation2 + $0xc0] sm:$0xf]
        %v7840 = vld [vmem:[#allocation2 + $0xc4] sm:$0xf]
        %v7841 = vld [vmem:[#allocation2 + $0xc8] sm:$0x1]
        %v7842 = vld [vmem:[#allocation2 + $0xcc] sm:$0xf]
        %v7843 = vld [vmem:[#allocation2 + $0xd0] sm:$0xf]
        %v7844 = vld [vmem:[#allocation2 + $0xd4] sm:$0x1]
        %v7845 = vld [vmem:[%s5] sm:$0xf]
        %v7846 = vld [vmem:[%s5 + $0x4] sm:$0xf]
        %v7847 = vld [vmem:[%s5 + $0x8] sm:$0xf]
        %v7848 = vld [vmem:[%s5 + $0xc] sm:$0xf]
        %v7850 = vshrl.u32 %v7791, 16
        %v7852 = vrot.slane %v7850, 4
        %v7853 = vshll.u32 %v7791, 16
        %v7855 = vrot.slane %v7853, 5
        %v7856 = vor.u32 %v7852, %v7855
        %v7857 = vrot.slane %v7856, 4
        %v7859 = vshll.u32 %v7792, 16
        %v7861 = vrot.slane %v7859, 5
        %v7862 = vsel %vm1118, %v7857, %v7861
        %v7863 = vshrl.u32 %v7792, 16
        %v7865 = vrot.slane %v7863, 4
        %v7866 = vor.u32 %v7865, %v7861
        %v7867 = vrot.slane %v7866, 4
        %v7869 = vshll.u32 %v7793, 16
        %v7871 = vrot.slane %v7869, 5
        %v7872 = vsel %vm1118, %v7867, %v7871
        %v7874 = vshrl.u32 %v7794, 16
        %v7876 = vrot.slane %v7874, 4
        %v7877 = vshll.u32 %v7794, 16
        %v7879 = vrot.slane %v7877, 5
        %v7880 = vor.u32 %v7876, %v7879
        %v7881 = vrot.slane %v7880, 4
        %v7883 = vshll.u32 %v7795, 16
        %v7885 = vrot.slane %v7883, 5
        %v7886 = vsel %vm1118, %v7881, %v7885
        %v7887 = vshrl.u32 %v7795, 16
        %v7889 = vrot.slane %v7887, 4
        %v7890 = vor.u32 %v7889, %v7885
        %v7891 = vrot.slane %v7890, 4
        %v7893 = vshll.u32 %v7796, 16
        %v7895 = vrot.slane %v7893, 5
        %v7896 = vsel %vm1118, %v7891, %v7895
        %v7898 = vshrl.u32 %v7797, 16
        %v7900 = vrot.slane %v7898, 4
        %v7901 = vshll.u32 %v7797, 16
        %v7903 = vrot.slane %v7901, 5
        %v7904 = vor.u32 %v7900, %v7903
        %v7905 = vrot.slane %v7904, 4
        %v7907 = vshll.u32 %v7798, 16
        %v7909 = vrot.slane %v7907, 5
        %v7910 = vsel %vm1118, %v7905, %v7909
        %v7911 = vshrl.u32 %v7798, 16
        %v7913 = vrot.slane %v7911, 4
        %v7914 = vor.u32 %v7913, %v7909
        %v7915 = vrot.slane %v7914, 4
        %v7917 = vshll.u32 %v7799, 16
        %v7919 = vrot.slane %v7917, 5
        %v7920 = vsel %vm1118, %v7915, %v7919
        %v7922 = vshrl.u32 %v7800, 16
        %v7924 = vrot.slane %v7922, 4
        %v7925 = vshll.u32 %v7800, 16
        %v7927 = vrot.slane %v7925, 5
        %v7928 = vor.u32 %v7924, %v7927
        %v7929 = vrot.slane %v7928, 4
        %v7931 = vshll.u32 %v7801, 16
        %v7933 = vrot.slane %v7931, 5
        %v7934 = vsel %vm1118, %v7929, %v7933
        %v7935 = vshrl.u32 %v7801, 16
        %v7937 = vrot.slane %v7935, 4
        %v7938 = vor.u32 %v7937, %v7933
        %v7939 = vrot.slane %v7938, 4
        %v7941 = vshll.u32 %v7802, 16
        %v7943 = vrot.slane %v7941, 5
        %v7944 = vsel %vm1118, %v7939, %v7943
        %v7946 = vshrl.u32 %v7803, 16
        %v7948 = vrot.slane %v7946, 4
        %v7949 = vshll.u32 %v7803, 16
        %v7951 = vrot.slane %v7949, 5
        %v7952 = vor.u32 %v7948, %v7951
        %v7953 = vrot.slane %v7952, 4
        %v7955 = vshll.u32 %v7804, 16
        %v7957 = vrot.slane %v7955, 5
        %v7958 = vsel %vm1118, %v7953, %v7957
        %v7959 = vshrl.u32 %v7804, 16
        %v7961 = vrot.slane %v7959, 4
        %v7962 = vor.u32 %v7961, %v7957
        %v7963 = vrot.slane %v7962, 4
        %v7965 = vshll.u32 %v7805, 16
        %v7967 = vrot.slane %v7965, 5
        %v7968 = vsel %vm1118, %v7963, %v7967
        %v7970 = vshrl.u32 %v7806, 16
        %v7972 = vrot.slane %v7970, 4
        %v7973 = vshll.u32 %v7806, 16
        %v7975 = vrot.slane %v7973, 5
        %v7976 = vor.u32 %v7972, %v7975
        %v7977 = vrot.slane %v7976, 4
        %v7979 = vshll.u32 %v7807, 16
        %v7981 = vrot.slane %v7979, 5
        %v7982 = vsel %vm1118, %v7977, %v7981
        %v7983 = vshrl.u32 %v7807, 16
        %v7985 = vrot.slane %v7983, 4
        %v7986 = vor.u32 %v7985, %v7981
        %v7987 = vrot.slane %v7986, 4
        %v7989 = vshll.u32 %v7808, 16
        %v7991 = vrot.slane %v7989, 5
        %v7992 = vsel %vm1118, %v7987, %v7991
        %v7994 = vshrl.u32 %v7809, 16
        %v7996 = vrot.slane %v7994, 4
        %v7997 = vshll.u32 %v7809, 16
        %v7999 = vrot.slane %v7997, 5
        %v8000 = vor.u32 %v7996, %v7999
        %v8001 = vrot.slane %v8000, 4
        %v8003 = vshll.u32 %v7810, 16
        %v8005 = vrot.slane %v8003, 5
        %v8006 = vsel %vm1118, %v8001, %v8005
        %v8007 = vshrl.u32 %v7810, 16
        %v8009 = vrot.slane %v8007, 4
        %v8010 = vor.u32 %v8009, %v8005
        %v8011 = vrot.slane %v8010, 4
        %v8013 = vshll.u32 %v7811, 16
        %v8015 = vrot.slane %v8013, 5
        %v8016 = vsel %vm1118, %v8011, %v8015
        %v8018 = vshrl.u32 %v7812, 16
        %v8020 = vrot.slane %v8018, 4
        %v8021 = vshll.u32 %v7812, 16
        %v8023 = vrot.slane %v8021, 5
        %v8024 = vor.u32 %v8020, %v8023
        %v8025 = vrot.slane %v8024, 4
        %v8027 = vshll.u32 %v7813, 16
        %v8029 = vrot.slane %v8027, 5
        %v8030 = vsel %vm1118, %v8025, %v8029
        %v8031 = vshrl.u32 %v7813, 16
        %v8033 = vrot.slane %v8031, 4
        %v8034 = vor.u32 %v8033, %v8029
        %v8035 = vrot.slane %v8034, 4
        %v8037 = vshll.u32 %v7814, 16
        %v8039 = vrot.slane %v8037, 5
        %v8040 = vsel %vm1118, %v8035, %v8039
        %v8042 = vshrl.u32 %v7815, 16
        %v8044 = vrot.slane %v8042, 4
        %v8045 = vshll.u32 %v7815, 16
        %v8047 = vrot.slane %v8045, 5
        %v8048 = vor.u32 %v8044, %v8047
        %v8049 = vrot.slane %v8048, 4
        %v8051 = vshll.u32 %v7816, 16
        %v8053 = vrot.slane %v8051, 5
        %v8054 = vsel %vm1118, %v8049, %v8053
        %v8055 = vshrl.u32 %v7816, 16
        %v8057 = vrot.slane %v8055, 4
        %v8058 = vor.u32 %v8057, %v8053
        %v8059 = vrot.slane %v8058, 4
        %v8061 = vshll.u32 %v7817, 16
        %v8063 = vrot.slane %v8061, 5
        %v8064 = vsel %vm1118, %v8059, %v8063
        %v8066 = vshrl.u32 %v7818, 16
        %v8068 = vrot.slane %v8066, 4
        %v8069 = vshll.u32 %v7818, 16
        %v8071 = vrot.slane %v8069, 5
        %v8072 = vor.u32 %v8068, %v8071
        %v8073 = vrot.slane %v8072, 4
        %v8075 = vshll.u32 %v7819, 16
        %v8077 = vrot.slane %v8075, 5
        %v8078 = vsel %vm1118, %v8073, %v8077
        %v8079 = vshrl.u32 %v7819, 16
        %v8081 = vrot.slane %v8079, 4
        %v8082 = vor.u32 %v8081, %v8077
        %v8083 = vrot.slane %v8082, 4
        %v8085 = vshll.u32 %v7820, 16
        %v8087 = vrot.slane %v8085, 5
        %v8088 = vsel %vm1118, %v8083, %v8087
        %v8090 = vshrl.u32 %v7821, 16
        %v8092 = vrot.slane %v8090, 4
        %v8093 = vshll.u32 %v7821, 16
        %v8095 = vrot.slane %v8093, 5
        %v8096 = vor.u32 %v8092, %v8095
        %v8097 = vrot.slane %v8096, 4
        %v8099 = vshll.u32 %v7822, 16
        %v8101 = vrot.slane %v8099, 5
        %v8102 = vsel %vm1118, %v8097, %v8101
        %v8103 = vshrl.u32 %v7822, 16
        %v8105 = vrot.slane %v8103, 4
        %v8106 = vor.u32 %v8105, %v8101
        %v8107 = vrot.slane %v8106, 4
        %v8109 = vshll.u32 %v7823, 16
        %v8111 = vrot.slane %v8109, 5
        %v8112 = vsel %vm1118, %v8107, %v8111
        %v8114 = vshrl.u32 %v7824, 16
        %v8116 = vrot.slane %v8114, 4
        %v8117 = vshll.u32 %v7824, 16
        %v8119 = vrot.slane %v8117, 5
        %v8120 = vor.u32 %v8116, %v8119
        %v8121 = vrot.slane %v8120, 4
        %v8123 = vshll.u32 %v7825, 16
        %v8125 = vrot.slane %v8123, 5
        %v8126 = vsel %vm1118, %v8121, %v8125
        %v8127 = vshrl.u32 %v7825, 16
        %v8129 = vrot.slane %v8127, 4
        %v8130 = vor.u32 %v8129, %v8125
        %v8131 = vrot.slane %v8130, 4
        %v8133 = vshll.u32 %v7826, 16
        %v8135 = vrot.slane %v8133, 5
        %v8136 = vsel %vm1118, %v8131, %v8135
        %v8138 = vshrl.u32 %v7827, 16
        %v8140 = vrot.slane %v8138, 4
        %v8141 = vshll.u32 %v7827, 16
        %v8143 = vrot.slane %v8141, 5
        %v8144 = vor.u32 %v8140, %v8143
        %v8145 = vrot.slane %v8144, 4
        %v8147 = vshll.u32 %v7828, 16
        %v8149 = vrot.slane %v8147, 5
        %v8150 = vsel %vm1118, %v8145, %v8149
        %v8151 = vshrl.u32 %v7828, 16
        %v8153 = vrot.slane %v8151, 4
        %v8154 = vor.u32 %v8153, %v8149
        %v8155 = vrot.slane %v8154, 4
        %v8157 = vshll.u32 %v7829, 16
        %v8159 = vrot.slane %v8157, 5
        %v8160 = vsel %vm1118, %v8155, %v8159
        %v8162 = vshrl.u32 %v7830, 16
        %v8164 = vrot.slane %v8162, 4
        %v8165 = vshll.u32 %v7830, 16
        %v8167 = vrot.slane %v8165, 5
        %v8168 = vor.u32 %v8164, %v8167
        %v8169 = vrot.slane %v8168, 4
        %v8171 = vshll.u32 %v7831, 16
        %v8173 = vrot.slane %v8171, 5
        %v8174 = vsel %vm1118, %v8169, %v8173
        %v8175 = vshrl.u32 %v7831, 16
        %v8177 = vrot.slane %v8175, 4
        %v8178 = vor.u32 %v8177, %v8173
        %v8179 = vrot.slane %v8178, 4
        %v8181 = vshll.u32 %v7832, 16
        %v8183 = vrot.slane %v8181, 5
        %v8184 = vsel %vm1118, %v8179, %v8183
        %v8186 = vshrl.u32 %v7833, 16
        %v8188 = vrot.slane %v8186, 4
        %v8189 = vshll.u32 %v7833, 16
        %v8191 = vrot.slane %v8189, 5
        %v8192 = vor.u32 %v8188, %v8191
        %v8193 = vrot.slane %v8192, 4
        %v8195 = vshll.u32 %v7834, 16
        %v8197 = vrot.slane %v8195, 5
        %v8198 = vsel %vm1118, %v8193, %v8197
        %v8199 = vshrl.u32 %v7834, 16
        %v8201 = vrot.slane %v8199, 4
        %v8202 = vor.u32 %v8201, %v8197
        %v8203 = vrot.slane %v8202, 4
        %v8205 = vshll.u32 %v7835, 16
        %v8207 = vrot.slane %v8205, 5
        %v8208 = vsel %vm1118, %v8203, %v8207
        %v8210 = vshrl.u32 %v7836, 16
        %v8212 = vrot.slane %v8210, 4
        %v8213 = vshll.u32 %v7836, 16
        %v8215 = vrot.slane %v8213, 5
        %v8216 = vor.u32 %v8212, %v8215
        %v8217 = vrot.slane %v8216, 4
        %v8219 = vshll.u32 %v7837, 16
        %v8221 = vrot.slane %v8219, 5
        %v8222 = vsel %vm1118, %v8217, %v8221
        %v8223 = vshrl.u32 %v7837, 16
        %v8225 = vrot.slane %v8223, 4
        %v8226 = vor.u32 %v8225, %v8221
        %v8227 = vrot.slane %v8226, 4
        %v8229 = vshll.u32 %v7838, 16
        %v8231 = vrot.slane %v8229, 5
        %v8232 = vsel %vm1118, %v8227, %v8231
        %v8233 = vld [vmem:[%s5 + $0x10] sm:$0xf]
        %v8234 = vld [vmem:[%s5 + $0x14] sm:$0xf]
        %v8235 = vld [vmem:[%s5 + $0x18] sm:$0xf]
        %v8236 = vld [vmem:[%s5 + $0x1c] sm:$0xf]
        %v8237 = vunpack.c.l.b16 %v7862
        %v8238 = vunpack.c.l.b16 %v7872
        %v8239 = vunpack.c.l.b16 %v7886
        %v8240 = vunpack.c.l.b16 %v7896
        %v8241 = vunpack.c.l.b16 %v7910
        %v8242 = vunpack.c.l.b16 %v7920
        %v8243 = vunpack.c.l.b16 %v7934
        %v8244 = vunpack.c.l.b16 %v7944
        %v8245 = vunpack.c.l.b16 %v7958
        %v8246 = vunpack.c.l.b16 %v7968
        %v8247 = vunpack.c.l.b16 %v7982
        %v8248 = vunpack.c.l.b16 %v7992
        %v8249 = vunpack.c.l.b16 %v8006
        %v8250 = vunpack.c.l.b16 %v8016
        %v8251 = vunpack.c.l.b16 %v8030
        %v8252 = vunpack.c.l.b16 %v8040
        %v8253 = vunpack.c.l.b16 %v8054
        %v8254 = vunpack.c.l.b16 %v8064
        %v8255 = vunpack.c.l.b16 %v8078
        %v8256 = vunpack.c.l.b16 %v8088
        %v8257 = vunpack.c.l.b16 %v8102
        %v8258 = vunpack.c.l.b16 %v8112
        %v8259 = vunpack.c.l.b16 %v8126
        %v8260 = vunpack.c.l.b16 %v8136
        %v8261 = vunpack.c.l.b16 %v8150
        %v8262 = vunpack.c.l.b16 %v8160
        %v8263 = vunpack.c.l.b16 %v8174
        %v8264 = vunpack.c.l.b16 %v8184
        %v8265 = vunpack.c.l.b16 %v8198
        %v8266 = vunpack.c.l.b16 %v8208
        %v8267 = vunpack.c.l.b16 %v8222
        %v8268 = vunpack.c.l.b16 %v8232
        %v8269 = vpack.c.b16 %v8238, %v8237
        %v8270 = vpack.c.b16 %v8240, %v8239
        %v8271 = vpack.c.b16 %v8242, %v8241
        %v8272 = vpack.c.b16 %v8244, %v8243
        %v8273 = vpack.c.b16 %v8246, %v8245
        %v8274 = vpack.c.b16 %v8248, %v8247
        %v8275 = vpack.c.b16 %v8250, %v8249
        %v8276 = vpack.c.b16 %v8252, %v8251
        %v8277 = vpack.c.b16 %v8254, %v8253
        %v8278 = vpack.c.b16 %v8256, %v8255
        %v8279 = vpack.c.b16 %v8258, %v8257
        %v8280 = vpack.c.b16 %v8260, %v8259
        %v8281 = vpack.c.b16 %v8262, %v8261
        %v8282 = vpack.c.b16 %v8264, %v8263
        %v8283 = vpack.c.b16 %v8266, %v8265
        %v8284 = vpack.c.b16 %v8268, %v8267
        %v8289 = vunpack.c.l.b16 %v8233
        %v8290 = vunpack.c.l.b16 %v8234
        %v8291 = vunpack.c.l.b16 %v8235
        %v8292 = vunpack.c.l.b16 %v8236
        %v8293 = vpack.c.b16 %v8290, %v8289
        %v8294 = vpack.c.b16 %v8292, %v8291
        %v8298 = vsel %vm4891, %v8269, 0
        %v8301 = vsel %vm4891, %v8270, 0
        %v8304 = vsel %vm4891, %v8271, 0
        %v8307 = vsel %vm4891, %v8272, 0
        %v8310 = vsel %vm4891, %v8273, 0
        %v8313 = vsel %vm4891, %v8274, 0
        %v8316 = vsel %vm4891, %v8275, 0
        %v8319 = vsel %vm4891, %v8276, 0
        %v8322 = vsel %vm4891, %v8277, 0
        %v8325 = vsel %vm4891, %v8278, 0
        %v8328 = vsel %vm4891, %v8279, 0
        %v8331 = vsel %vm4891, %v8280, 0
        %v8334 = vsel %vm4891, %v8281, 0
        %v8337 = vsel %vm4891, %v8282, 0
        %v8340 = vsel %vm4891, %v8283, 0
        %v8343 = vsel %vm4891, %v8284, 0
        %8345 = vmatprep.subr.bf16.mxu0 0
        %8346 = vmatpush1.bf16.msra.mxu0 0
        %8347 = vmatprep.subr.bf16.mxu0 0
        %8348 = vmatpush1.bf16.msra.mxu0 0
        %8349 = vmatprep.subr.bf16.mxu0 0
        %8350 = vmatpush1.bf16.msra.mxu0 0
        %8351 = vmatprep.subr.bf16.mxu0 0
        %8352 = vmatpush1.bf16.msra.mxu0 0
        %8353 = vmatprep.subr.bf16.mxu0 0
        %8354 = vmatpush1.bf16.msra.mxu0 0
        %8355 = vmatprep.subr.bf16.mxu0 0
        %8356 = vmatpush1.bf16.msra.mxu0 0
        %8357 = vmatprep.subr.bf16.mxu0 0
        %8358 = vmatpush1.bf16.msra.mxu0 %v8294
        %8359 = vmatprep.subr.bf16.mxu0 0
        %8360 = vmatpush1.bf16.msra.mxu0 %v8293
        %8361 = vmatprep.subr.bf16.mxu0 0
        %8362 = vmatpush2.bf16.msra.mxu0 0
        %8363 = vmatprep.subr.bf16.mxu0 0
        %8364 = vmatpush2.bf16.msra.mxu0 0
        %8365 = vmatprep.subr.bf16.mxu0 0
        %8366 = vmatpush2.bf16.msra.mxu0 0
        %8367 = vmatprep.subr.bf16.mxu0 0
        %8368 = vmatpush2.bf16.msra.mxu0 0
        %8369 = vmatprep.subr.bf16.mxu0 0
        %8370 = vmatpush2.bf16.msra.mxu0 0
        %8371 = vmatprep.subr.bf16.mxu0 0
        %8372 = vmatpush2.bf16.msra.mxu0 0
        %8373 = vmatprep.subr.bf16.mxu0 0
        %8374 = vmatpush2.bf16.msra.mxu0 0
        %8375 = vmatprep.subr.bf16.mxu0 0
        %8376 = vmatpush2.bf16.msra.mxu0 0
        %8377 = vmatprep.mubr.bf16.mxu0 0
        %8378 = vmatmul.mubr.bf16.gmra.mxu0 %v8298
        %v8379 = vpop.f32.mrf.mxu0
        %v8380 = vadd.f32 0.0, %v8379
        %v8381 = vpop.f32.mrf.mxu0
        %v8382 = vpop.f32.mrf.mxu0
        %v8383 = vadd.f32 0.0, %v8382
        %v8384 = vpop.f32.mrf.mxu0
        %8385 = vmatprep.mubr.bf16.mxu0 0
        %8386 = vmatmul.mubr.bf16.gmra.mxu0 %v8301
        %v8387 = vpop.f32.mrf.mxu0
        %v8388 = vadd.f32 0.0, %v8387
        %v8389 = vpop.f32.mrf.mxu0
        %v8390 = vpop.f32.mrf.mxu0
        %v8391 = vadd.f32 0.0, %v8390
        %v8392 = vpop.f32.mrf.mxu0
        %8393 = vmatprep.mubr.bf16.mxu0 0
        %8394 = vmatmul.mubr.bf16.gmra.mxu0 %v8304
        %v8395 = vpop.f32.mrf.mxu0
        %v8396 = vadd.f32 0.0, %v8395
        %v8397 = vpop.f32.mrf.mxu0
        %v8398 = vpop.f32.mrf.mxu0
        %v8399 = vadd.f32 0.0, %v8398
        %v8400 = vpop.f32.mrf.mxu0
        %8401 = vmatprep.mubr.bf16.mxu0 0
        %8402 = vmatmul.mubr.bf16.gmra.mxu0 %v8307
        %v8403 = vpop.f32.mrf.mxu0
        %v8404 = vadd.f32 0.0, %v8403
        %v8405 = vpop.f32.mrf.mxu0
        %v8406 = vpop.f32.mrf.mxu0
        %v8407 = vadd.f32 0.0, %v8406
        %v8408 = vpop.f32.mrf.mxu0
        %8409 = vmatprep.mubr.bf16.mxu0 0
        %8410 = vmatmul.mubr.bf16.gmra.mxu0 %v8310
        %v8411 = vpop.f32.mrf.mxu0
        %v8412 = vadd.f32 0.0, %v8411
        %v8413 = vpop.f32.mrf.mxu0
        %v8414 = vpop.f32.mrf.mxu0
        %v8415 = vadd.f32 0.0, %v8414
        %v8416 = vpop.f32.mrf.mxu0
        %8417 = vmatprep.mubr.bf16.mxu0 0
        %8418 = vmatmul.mubr.bf16.gmra.mxu0 %v8313
        %v8419 = vpop.f32.mrf.mxu0
        %v8420 = vadd.f32 0.0, %v8419
        %v8421 = vpop.f32.mrf.mxu0
        %v8422 = vpop.f32.mrf.mxu0
        %v8423 = vadd.f32 0.0, %v8422
        %v8424 = vpop.f32.mrf.mxu0
        %8425 = vmatprep.mubr.bf16.mxu0 0
        %8426 = vmatmul.mubr.bf16.gmra.mxu0 %v8316
        %v8427 = vpop.f32.mrf.mxu0
        %v8428 = vadd.f32 0.0, %v8427
        %v8429 = vpop.f32.mrf.mxu0
        %v8430 = vpop.f32.mrf.mxu0
        %v8431 = vadd.f32 0.0, %v8430
        %v8432 = vpop.f32.mrf.mxu0
        %8433 = vmatprep.mubr.bf16.mxu0 0
        %8434 = vmatmul.mubr.bf16.gmra.mxu0 %v8319
        %v8435 = vpop.f32.mrf.mxu0
        %v8436 = vadd.f32 0.0, %v8435
        %v8437 = vpop.f32.mrf.mxu0
        %v8438 = vpop.f32.mrf.mxu0
        %v8439 = vadd.f32 0.0, %v8438
        %v8440 = vpop.f32.mrf.mxu0
        %8441 = vmatprep.mubr.bf16.mxu0 0
        %8442 = vmatmul.mubr.bf16.gmra.mxu0 %v8322
        %v8443 = vpop.f32.mrf.mxu0
        %v8444 = vadd.f32 0.0, %v8443
        %v8445 = vpop.f32.mrf.mxu0
        %v8446 = vpop.f32.mrf.mxu0
        %v8447 = vadd.f32 0.0, %v8446
        %v8448 = vpop.f32.mrf.mxu0
        %8449 = vmatprep.mubr.bf16.mxu0 0
        %8450 = vmatmul.mubr.bf16.gmra.mxu0 %v8325
        %v8451 = vpop.f32.mrf.mxu0
        %v8452 = vadd.f32 0.0, %v8451
        %v8453 = vpop.f32.mrf.mxu0
        %v8454 = vpop.f32.mrf.mxu0
        %v8455 = vadd.f32 0.0, %v8454
        %v8456 = vpop.f32.mrf.mxu0
        %8457 = vmatprep.mubr.bf16.mxu0 0
        %8458 = vmatmul.mubr.bf16.gmra.mxu0 %v8328
        %v8459 = vpop.f32.mrf.mxu0
        %v8460 = vadd.f32 0.0, %v8459
        %v8461 = vpop.f32.mrf.mxu0
        %v8462 = vpop.f32.mrf.mxu0
        %v8463 = vadd.f32 0.0, %v8462
        %v8464 = vpop.f32.mrf.mxu0
        %8465 = vmatprep.mubr.bf16.mxu0 0
        %8466 = vmatmul.mubr.bf16.gmra.mxu0 %v8331
        %v8467 = vpop.f32.mrf.mxu0
        %v8468 = vadd.f32 0.0, %v8467
        %v8469 = vpop.f32.mrf.mxu0
        %v8470 = vpop.f32.mrf.mxu0
        %v8471 = vadd.f32 0.0, %v8470
        %v8472 = vpop.f32.mrf.mxu0
        %8473 = vmatprep.mubr.bf16.mxu0 0
        %8474 = vmatmul.mubr.bf16.gmra.mxu0 %v8334
        %v8475 = vpop.f32.mrf.mxu0
        %v8476 = vadd.f32 0.0, %v8475
        %v8477 = vpop.f32.mrf.mxu0
        %v8478 = vpop.f32.mrf.mxu0
        %v8479 = vadd.f32 0.0, %v8478
        %v8480 = vpop.f32.mrf.mxu0
        %8481 = vmatprep.mubr.bf16.mxu0 0
        %8482 = vmatmul.mubr.bf16.gmra.mxu0 %v8337
        %v8483 = vpop.f32.mrf.mxu0
        %v8484 = vadd.f32 0.0, %v8483
        %v8485 = vpop.f32.mrf.mxu0
        %v8486 = vpop.f32.mrf.mxu0
        %v8487 = vadd.f32 0.0, %v8486
        %v8488 = vpop.f32.mrf.mxu0
        %8489 = vmatprep.mubr.bf16.mxu0 0
        %8490 = vmatmul.mubr.bf16.gmra.mxu0 %v8340
        %v8491 = vpop.f32.mrf.mxu0
        %v8492 = vadd.f32 0.0, %v8491
        %v8493 = vpop.f32.mrf.mxu0
        %v8494 = vpop.f32.mrf.mxu0
        %v8495 = vadd.f32 0.0, %v8494
        %v8496 = vpop.f32.mrf.mxu0
        %8497 = vmatprep.mubr.bf16.mxu0 0
        %8498 = vmatmul.mubr.bf16.gmra.mxu0 %v8343
        %v8499 = vpop.f32.mrf.mxu0
        %v8500 = vadd.f32 0.0, %v8499
        %v8501 = vpop.f32.mrf.mxu0
        %v8502 = vpop.f32.mrf.mxu0
        %v8503 = vadd.f32 0.0, %v8502
        %v8504 = vpop.f32.mrf.mxu0
        %8505 = vdwg.mxu0
        %v8538 = vunpack.c.l.b16 %v7791
        %v8539 = vunpack.c.l.b16 %v7792
        %v8540 = vunpack.c.l.b16 %v7794
        %v8541 = vunpack.c.l.b16 %v7795
        %v8542 = vunpack.c.l.b16 %v7797
        %v8543 = vunpack.c.l.b16 %v7798
        %v8544 = vunpack.c.l.b16 %v7800
        %v8545 = vunpack.c.l.b16 %v7801
        %v8546 = vunpack.c.l.b16 %v7803
        %v8547 = vunpack.c.l.b16 %v7804
        %v8548 = vunpack.c.l.b16 %v7806
        %v8549 = vunpack.c.l.b16 %v7807
        %v8550 = vunpack.c.l.b16 %v7809
        %v8551 = vunpack.c.l.b16 %v7810
        %v8552 = vunpack.c.l.b16 %v7812
        %v8553 = vunpack.c.l.b16 %v7813
        %v8554 = vunpack.c.l.b16 %v7815
        %v8555 = vunpack.c.l.b16 %v7816
        %v8556 = vunpack.c.l.b16 %v7818
        %v8557 = vunpack.c.l.b16 %v7819
        %v8558 = vunpack.c.l.b16 %v7821
        %v8559 = vunpack.c.l.b16 %v7822
        %v8560 = vunpack.c.l.b16 %v7824
        %v8561 = vunpack.c.l.b16 %v7825
        %v8562 = vunpack.c.l.b16 %v7827
        %v8563 = vunpack.c.l.b16 %v7828
        %v8564 = vunpack.c.l.b16 %v7830
        %v8565 = vunpack.c.l.b16 %v7831
        %v8566 = vunpack.c.l.b16 %v7833
        %v8567 = vunpack.c.l.b16 %v7834
        %v8568 = vunpack.c.l.b16 %v7836
        %v8569 = vunpack.c.l.b16 %v7837
        %v8570 = vpack.c.b16 %v8539, %v8538
        %v8571 = vpack.c.b16 %v8541, %v8540
        %v8572 = vpack.c.b16 %v8543, %v8542
        %v8573 = vpack.c.b16 %v8545, %v8544
        %v8574 = vpack.c.b16 %v8547, %v8546
        %v8575 = vpack.c.b16 %v8549, %v8548
        %v8576 = vpack.c.b16 %v8551, %v8550
        %v8577 = vpack.c.b16 %v8553, %v8552
        %v8578 = vpack.c.b16 %v8555, %v8554
        %v8579 = vpack.c.b16 %v8557, %v8556
        %v8580 = vpack.c.b16 %v8559, %v8558
        %v8581 = vpack.c.b16 %v8561, %v8560
        %v8582 = vpack.c.b16 %v8563, %v8562
        %v8583 = vpack.c.b16 %v8565, %v8564
        %v8584 = vpack.c.b16 %v8567, %v8566
        %v8585 = vpack.c.b16 %v8569, %v8568
        %v8590 = vunpack.c.l.b16 %v7845
        %v8591 = vunpack.c.l.b16 %v7846
        %v8592 = vunpack.c.l.b16 %v7847
        %v8593 = vunpack.c.l.b16 %v7848
        %v8594 = vpack.c.b16 %v8591, %v8590
        %v8595 = vpack.c.b16 %v8593, %v8592
        %v8599 = vsel %vm4891, %v8570, 0
        %v8602 = vsel %vm4891, %v8571, 0
        %v8605 = vsel %vm4891, %v8572, 0
        %v8608 = vsel %vm4891, %v8573, 0
        %v8611 = vsel %vm4891, %v8574, 0
        %v8614 = vsel %vm4891, %v8575, 0
        %v8617 = vsel %vm4891, %v8576, 0
        %v8620 = vsel %vm4891, %v8577, 0
        %v8623 = vsel %vm4891, %v8578, 0
        %v8626 = vsel %vm4891, %v8579, 0
        %v8629 = vsel %vm4891, %v8580, 0
        %v8632 = vsel %vm4891, %v8581, 0
        %v8635 = vsel %vm4891, %v8582, 0
        %v8638 = vsel %vm4891, %v8583, 0
        %v8641 = vsel %vm4891, %v8584, 0
        %v8644 = vsel %vm4891, %v8585, 0
        %8646 = vmatprep.subr.bf16.mxu0 0
        %8647 = vmatpush1.bf16.msra.mxu0 0
        %8648 = vmatprep.subr.bf16.mxu0 0
        %8649 = vmatpush1.bf16.msra.mxu0 0
        %8650 = vmatprep.subr.bf16.mxu0 0
        %8651 = vmatpush1.bf16.msra.mxu0 0
        %8652 = vmatprep.subr.bf16.mxu0 0
        %8653 = vmatpush1.bf16.msra.mxu0 0
        %8654 = vmatprep.subr.bf16.mxu0 0
        %8655 = vmatpush1.bf16.msra.mxu0 0
        %8656 = vmatprep.subr.bf16.mxu0 0
        %8657 = vmatpush1.bf16.msra.mxu0 0
        %8658 = vmatprep.subr.bf16.mxu0 0
        %8659 = vmatpush1.bf16.msra.mxu0 %v8595
        %8660 = vmatprep.subr.bf16.mxu0 0
        %8661 = vmatpush1.bf16.msra.mxu0 %v8594
        %8662 = vmatprep.subr.bf16.mxu0 0
        %8663 = vmatpush2.bf16.msra.mxu0 0
        %8664 = vmatprep.subr.bf16.mxu0 0
        %8665 = vmatpush2.bf16.msra.mxu0 0
        %8666 = vmatprep.subr.bf16.mxu0 0
        %8667 = vmatpush2.bf16.msra.mxu0 0
        %8668 = vmatprep.subr.bf16.mxu0 0
        %8669 = vmatpush2.bf16.msra.mxu0 0
        %8670 = vmatprep.subr.bf16.mxu0 0
        %8671 = vmatpush2.bf16.msra.mxu0 0
        %8672 = vmatprep.subr.bf16.mxu0 0
        %8673 = vmatpush2.bf16.msra.mxu0 0
        %8674 = vmatprep.subr.bf16.mxu0 0
        %8675 = vmatpush2.bf16.msra.mxu0 0
        %8676 = vmatprep.subr.bf16.mxu0 0
        %8677 = vmatpush2.bf16.msra.mxu0 0
        %8678 = vmatprep.mubr.bf16.mxu0 0
        %8679 = vmatmul.mubr.bf16.gmra.mxu0 %v8599
        %v8680 = vpop.f32.mrf.mxu0
        %v8681 = vadd.f32 %v8380, %v8680
        %v8682 = vpop.f32.mrf.mxu0
        %v8683 = vpop.f32.mrf.mxu0
        %v8684 = vadd.f32 %v8383, %v8683
        %v8685 = vpop.f32.mrf.mxu0
        %8686 = vmatprep.mubr.bf16.mxu0 0
        %8687 = vmatmul.mubr.bf16.gmra.mxu0 %v8602
        %v8688 = vpop.f32.mrf.mxu0
        %v8689 = vadd.f32 %v8388, %v8688
        %v8690 = vpop.f32.mrf.mxu0
        %v8691 = vpop.f32.mrf.mxu0
        %v8692 = vadd.f32 %v8391, %v8691
        %v8693 = vpop.f32.mrf.mxu0
        %8694 = vmatprep.mubr.bf16.mxu0 0
        %8695 = vmatmul.mubr.bf16.gmra.mxu0 %v8605
        %v8696 = vpop.f32.mrf.mxu0
        %v8697 = vadd.f32 %v8396, %v8696
        %v8698 = vpop.f32.mrf.mxu0
        %v8699 = vpop.f32.mrf.mxu0
        %v8700 = vadd.f32 %v8399, %v8699
        %v8701 = vpop.f32.mrf.mxu0
        %8702 = vmatprep.mubr.bf16.mxu0 0
        %8703 = vmatmul.mubr.bf16.gmra.mxu0 %v8608
        %v8704 = vpop.f32.mrf.mxu0
        %v8705 = vadd.f32 %v8404, %v8704
        %v8706 = vpop.f32.mrf.mxu0
        %v8707 = vpop.f32.mrf.mxu0
        %v8708 = vadd.f32 %v8407, %v8707
        %v8709 = vpop.f32.mrf.mxu0
        %8710 = vmatprep.mubr.bf16.mxu0 0
        %8711 = vmatmul.mubr.bf16.gmra.mxu0 %v8611
        %v8712 = vpop.f32.mrf.mxu0
        %v8713 = vadd.f32 %v8412, %v8712
        %v8714 = vpop.f32.mrf.mxu0
        %v8715 = vpop.f32.mrf.mxu0
        %v8716 = vadd.f32 %v8415, %v8715
        %v8717 = vpop.f32.mrf.mxu0
        %8718 = vmatprep.mubr.bf16.mxu0 0
        %8719 = vmatmul.mubr.bf16.gmra.mxu0 %v8614
        %v8720 = vpop.f32.mrf.mxu0
        %v8721 = vadd.f32 %v8420, %v8720
        %v8722 = vpop.f32.mrf.mxu0
        %v8723 = vpop.f32.mrf.mxu0
        %v8724 = vadd.f32 %v8423, %v8723
        %v8725 = vpop.f32.mrf.mxu0
        %8726 = vmatprep.mubr.bf16.mxu0 0
        %8727 = vmatmul.mubr.bf16.gmra.mxu0 %v8617
        %v8728 = vpop.f32.mrf.mxu0
        %v8729 = vadd.f32 %v8428, %v8728
        %v8730 = vpop.f32.mrf.mxu0
        %v8731 = vpop.f32.mrf.mxu0
        %v8732 = vadd.f32 %v8431, %v8731
        %v8733 = vpop.f32.mrf.mxu0
        %8734 = vmatprep.mubr.bf16.mxu0 0
        %8735 = vmatmul.mubr.bf16.gmra.mxu0 %v8620
        %v8736 = vpop.f32.mrf.mxu0
        %v8737 = vadd.f32 %v8436, %v8736
        %v8738 = vpop.f32.mrf.mxu0
        %v8739 = vpop.f32.mrf.mxu0
        %v8740 = vadd.f32 %v8439, %v8739
        %v8741 = vpop.f32.mrf.mxu0
        %8742 = vmatprep.mubr.bf16.mxu0 0
        %8743 = vmatmul.mubr.bf16.gmra.mxu0 %v8623
        %v8744 = vpop.f32.mrf.mxu0
        %v8745 = vadd.f32 %v8444, %v8744
        %v8746 = vpop.f32.mrf.mxu0
        %v8747 = vpop.f32.mrf.mxu0
        %v8748 = vadd.f32 %v8447, %v8747
        %v8749 = vpop.f32.mrf.mxu0
        %8750 = vmatprep.mubr.bf16.mxu0 0
        %8751 = vmatmul.mubr.bf16.gmra.mxu0 %v8626
        %v8752 = vpop.f32.mrf.mxu0
        %v8753 = vadd.f32 %v8452, %v8752
        %v8754 = vpop.f32.mrf.mxu0
        %v8755 = vpop.f32.mrf.mxu0
        %v8756 = vadd.f32 %v8455, %v8755
        %v8757 = vpop.f32.mrf.mxu0
        %8758 = vmatprep.mubr.bf16.mxu0 0
        %8759 = vmatmul.mubr.bf16.gmra.mxu0 %v8629
        %v8760 = vpop.f32.mrf.mxu0
        %v8761 = vadd.f32 %v8460, %v8760
        %v8762 = vpop.f32.mrf.mxu0
        %v8763 = vpop.f32.mrf.mxu0
        %v8764 = vadd.f32 %v8463, %v8763
        %v8765 = vpop.f32.mrf.mxu0
        %8766 = vmatprep.mubr.bf16.mxu0 0
        %8767 = vmatmul.mubr.bf16.gmra.mxu0 %v8632
        %v8768 = vpop.f32.mrf.mxu0
        %v8769 = vadd.f32 %v8468, %v8768
        %v8770 = vpop.f32.mrf.mxu0
        %v8771 = vpop.f32.mrf.mxu0
        %v8772 = vadd.f32 %v8471, %v8771
        %v8773 = vpop.f32.mrf.mxu0
        %8774 = vmatprep.mubr.bf16.mxu0 0
        %8775 = vmatmul.mubr.bf16.gmra.mxu0 %v8635
        %v8776 = vpop.f32.mrf.mxu0
        %v8777 = vadd.f32 %v8476, %v8776
        %v8778 = vpop.f32.mrf.mxu0
        %v8779 = vpop.f32.mrf.mxu0
        %v8780 = vadd.f32 %v8479, %v8779
        %v8781 = vpop.f32.mrf.mxu0
        %8782 = vmatprep.mubr.bf16.mxu0 0
        %8783 = vmatmul.mubr.bf16.gmra.mxu0 %v8638
        %v8784 = vpop.f32.mrf.mxu0
        %v8785 = vadd.f32 %v8484, %v8784
        %v8786 = vpop.f32.mrf.mxu0
        %v8787 = vpop.f32.mrf.mxu0
        %v8788 = vadd.f32 %v8487, %v8787
        %v8789 = vpop.f32.mrf.mxu0
        %8790 = vmatprep.mubr.bf16.mxu0 0
        %8791 = vmatmul.mubr.bf16.gmra.mxu0 %v8641
        %v8792 = vpop.f32.mrf.mxu0
        %v8793 = vadd.f32 %v8492, %v8792
        %v8794 = vpop.f32.mrf.mxu0
        %v8795 = vpop.f32.mrf.mxu0
        %v8796 = vadd.f32 %v8495, %v8795
        %v8797 = vpop.f32.mrf.mxu0
        %8798 = vmatprep.mubr.bf16.mxu0 0
        %8799 = vmatmul.mubr.bf16.gmra.mxu0 %v8644
        %v8800 = vpop.f32.mrf.mxu0
        %v8801 = vadd.f32 %v8500, %v8800
        %v8802 = vpop.f32.mrf.mxu0
        %v8803 = vpop.f32.mrf.mxu0
        %v8804 = vadd.f32 %v8503, %v8803
        %v8805 = vpop.f32.mrf.mxu0
        %8806 = vdwg.mxu0
        %v8823 = vrot.slane %v7791, 5
        %v8824 = vrot.slane %v8823, 4
        %v8825 = vrot.slane %v7792, 5
        %v8826 = vsel %vm2080, %v8824, %v8825
        %v8827 = vrot.slane %v8825, 4
        %v8828 = vrot.slane %v7793, 5
        %v8829 = vsel %vm2080, %v8827, %v8828
        %v8830 = vrot.slane %v7794, 5
        %v8831 = vrot.slane %v8830, 4
        %v8832 = vrot.slane %v7795, 5
        %v8833 = vsel %vm2080, %v8831, %v8832
        %v8834 = vrot.slane %v8832, 4
        %v8835 = vrot.slane %v7796, 5
        %v8836 = vsel %vm2080, %v8834, %v8835
        %v8837 = vrot.slane %v7797, 5
        %v8838 = vrot.slane %v8837, 4
        %v8839 = vrot.slane %v7798, 5
        %v8840 = vsel %vm2080, %v8838, %v8839
        %v8841 = vrot.slane %v8839, 4
        %v8842 = vrot.slane %v7799, 5
        %v8843 = vsel %vm2080, %v8841, %v8842
        %v8844 = vrot.slane %v7800, 5
        %v8845 = vrot.slane %v8844, 4
        %v8846 = vrot.slane %v7801, 5
        %v8847 = vsel %vm2080, %v8845, %v8846
        %v8848 = vrot.slane %v8846, 4
        %v8849 = vrot.slane %v7802, 5
        %v8850 = vsel %vm2080, %v8848, %v8849
        %v8851 = vrot.slane %v7803, 5
        %v8852 = vrot.slane %v8851, 4
        %v8853 = vrot.slane %v7804, 5
        %v8854 = vsel %vm2080, %v8852, %v8853
        %v8855 = vrot.slane %v8853, 4
        %v8856 = vrot.slane %v7805, 5
        %v8857 = vsel %vm2080, %v8855, %v8856
        %v8858 = vrot.slane %v7806, 5
        %v8859 = vrot.slane %v8858, 4
        %v8860 = vrot.slane %v7807, 5
        %v8861 = vsel %vm2080, %v8859, %v8860
        %v8862 = vrot.slane %v8860, 4
        %v8863 = vrot.slane %v7808, 5
        %v8864 = vsel %vm2080, %v8862, %v8863
        %v8865 = vrot.slane %v7809, 5
        %v8866 = vrot.slane %v8865, 4
        %v8867 = vrot.slane %v7810, 5
        %v8868 = vsel %vm2080, %v8866, %v8867
        %v8869 = vrot.slane %v8867, 4
        %v8870 = vrot.slane %v7811, 5
        %v8871 = vsel %vm2080, %v8869, %v8870
        %v8872 = vrot.slane %v7812, 5
        %v8873 = vrot.slane %v8872, 4
        %v8874 = vrot.slane %v7813, 5
        %v8875 = vsel %vm2080, %v8873, %v8874
        %v8876 = vrot.slane %v8874, 4
        %v8877 = vrot.slane %v7814, 5
        %v8878 = vsel %vm2080, %v8876, %v8877
        %v8879 = vrot.slane %v7815, 5
        %v8880 = vrot.slane %v8879, 4
        %v8881 = vrot.slane %v7816, 5
        %v8882 = vsel %vm2080, %v8880, %v8881
        %v8883 = vrot.slane %v8881, 4
        %v8884 = vrot.slane %v7817, 5
        %v8885 = vsel %vm2080, %v8883, %v8884
        %v8886 = vrot.slane %v7818, 5
        %v8887 = vrot.slane %v8886, 4
        %v8888 = vrot.slane %v7819, 5
        %v8889 = vsel %vm2080, %v8887, %v8888
        %v8890 = vrot.slane %v8888, 4
        %v8891 = vrot.slane %v7820, 5
        %v8892 = vsel %vm2080, %v8890, %v8891
        %v8893 = vrot.slane %v7821, 5
        %v8894 = vrot.slane %v8893, 4
        %v8895 = vrot.slane %v7822, 5
        %v8896 = vsel %vm2080, %v8894, %v8895
        %v8897 = vrot.slane %v8895, 4
        %v8898 = vrot.slane %v7823, 5
        %v8899 = vsel %vm2080, %v8897, %v8898
        %v8900 = vrot.slane %v7824, 5
        %v8901 = vrot.slane %v8900, 4
        %v8902 = vrot.slane %v7825, 5
        %v8903 = vsel %vm2080, %v8901, %v8902
        %v8904 = vrot.slane %v8902, 4
        %v8905 = vrot.slane %v7826, 5
        %v8906 = vsel %vm2080, %v8904, %v8905
        %v8907 = vrot.slane %v7827, 5
        %v8908 = vrot.slane %v8907, 4
        %v8909 = vrot.slane %v7828, 5
        %v8910 = vsel %vm2080, %v8908, %v8909
        %v8911 = vrot.slane %v8909, 4
        %v8912 = vrot.slane %v7829, 5
        %v8913 = vsel %vm2080, %v8911, %v8912
        %v8914 = vrot.slane %v7830, 5
        %v8915 = vrot.slane %v8914, 4
        %v8916 = vrot.slane %v7831, 5
        %v8917 = vsel %vm2080, %v8915, %v8916
        %v8918 = vrot.slane %v8916, 4
        %v8919 = vrot.slane %v7832, 5
        %v8920 = vsel %vm2080, %v8918, %v8919
        %v8921 = vrot.slane %v7833, 5
        %v8922 = vrot.slane %v8921, 4
        %v8923 = vrot.slane %v7834, 5
        %v8924 = vsel %vm2080, %v8922, %v8923
        %v8925 = vrot.slane %v8923, 4
        %v8926 = vrot.slane %v7835, 5
        %v8927 = vsel %vm2080, %v8925, %v8926
        %v8928 = vrot.slane %v7836, 5
        %v8929 = vrot.slane %v8928, 4
        %v8930 = vrot.slane %v7837, 5
        %v8931 = vsel %vm2080, %v8929, %v8930
        %v8932 = vrot.slane %v8930, 4
        %v8933 = vrot.slane %v7838, 5
        %v8934 = vsel %vm2080, %v8932, %v8933
        %v8935 = vld [vmem:[%s5 + $0x20] sm:$0xf]
        %v8936 = vld [vmem:[%s5 + $0x24] sm:$0xf]
        %v8937 = vld [vmem:[%s5 + $0x28] sm:$0xf]
        %v8938 = vld [vmem:[%s5 + $0x2c] sm:$0xf]
        %v8939 = vunpack.c.l.b16 %v8826
        %v8940 = vunpack.c.l.b16 %v8829
        %v8941 = vunpack.c.l.b16 %v8833
        %v8942 = vunpack.c.l.b16 %v8836
        %v8943 = vunpack.c.l.b16 %v8840
        %v8944 = vunpack.c.l.b16 %v8843
        %v8945 = vunpack.c.l.b16 %v8847
        %v8946 = vunpack.c.l.b16 %v8850
        %v8947 = vunpack.c.l.b16 %v8854
        %v8948 = vunpack.c.l.b16 %v8857
        %v8949 = vunpack.c.l.b16 %v8861
        %v8950 = vunpack.c.l.b16 %v8864
        %v8951 = vunpack.c.l.b16 %v8868
        %v8952 = vunpack.c.l.b16 %v8871
        %v8953 = vunpack.c.l.b16 %v8875
        %v8954 = vunpack.c.l.b16 %v8878
        %v8955 = vunpack.c.l.b16 %v8882
        %v8956 = vunpack.c.l.b16 %v8885
        %v8957 = vunpack.c.l.b16 %v8889
        %v8958 = vunpack.c.l.b16 %v8892
        %v8959 = vunpack.c.l.b16 %v8896
        %v8960 = vunpack.c.l.b16 %v8899
        %v8961 = vunpack.c.l.b16 %v8903
        %v8962 = vunpack.c.l.b16 %v8906
        %v8963 = vunpack.c.l.b16 %v8910
        %v8964 = vunpack.c.l.b16 %v8913
        %v8965 = vunpack.c.l.b16 %v8917
        %v8966 = vunpack.c.l.b16 %v8920
        %v8967 = vunpack.c.l.b16 %v8924
        %v8968 = vunpack.c.l.b16 %v8927
        %v8969 = vunpack.c.l.b16 %v8931
        %v8970 = vunpack.c.l.b16 %v8934
        %v8971 = vpack.c.b16 %v8940, %v8939
        %v8972 = vpack.c.b16 %v8942, %v8941
        %v8973 = vpack.c.b16 %v8944, %v8943
        %v8974 = vpack.c.b16 %v8946, %v8945
        %v8975 = vpack.c.b16 %v8948, %v8947
        %v8976 = vpack.c.b16 %v8950, %v8949
        %v8977 = vpack.c.b16 %v8952, %v8951
        %v8978 = vpack.c.b16 %v8954, %v8953
        %v8979 = vpack.c.b16 %v8956, %v8955
        %v8980 = vpack.c.b16 %v8958, %v8957
        %v8981 = vpack.c.b16 %v8960, %v8959
        %v8982 = vpack.c.b16 %v8962, %v8961
        %v8983 = vpack.c.b16 %v8964, %v8963
        %v8984 = vpack.c.b16 %v8966, %v8965
        %v8985 = vpack.c.b16 %v8968, %v8967
        %v8986 = vpack.c.b16 %v8970, %v8969
        %v8991 = vunpack.c.l.b16 %v8935
        %v8992 = vunpack.c.l.b16 %v8936
        %v8993 = vunpack.c.l.b16 %v8937
        %v8994 = vunpack.c.l.b16 %v8938
        %v8995 = vpack.c.b16 %v8992, %v8991
        %v8996 = vpack.c.b16 %v8994, %v8993
        %v9000 = vsel %vm4891, %v8971, 0
        %v9003 = vsel %vm4891, %v8972, 0
        %v9006 = vsel %vm4891, %v8973, 0
        %v9009 = vsel %vm4891, %v8974, 0
        %v9012 = vsel %vm4891, %v8975, 0
        %v9015 = vsel %vm4891, %v8976, 0
        %v9018 = vsel %vm4891, %v8977, 0
        %v9021 = vsel %vm4891, %v8978, 0
        %v9024 = vsel %vm4891, %v8979, 0
        %v9027 = vsel %vm4891, %v8980, 0
        %v9030 = vsel %vm4891, %v8981, 0
        %v9033 = vsel %vm4891, %v8982, 0
        %v9036 = vsel %vm4891, %v8983, 0
        %v9039 = vsel %vm4891, %v8984, 0
        %v9042 = vsel %vm4891, %v8985, 0
        %v9045 = vsel %vm4891, %v8986, 0
        %9047 = vmatprep.subr.bf16.mxu0 0
        %9048 = vmatpush1.bf16.msra.mxu0 0
        %9049 = vmatprep.subr.bf16.mxu0 0
        %9050 = vmatpush1.bf16.msra.mxu0 0
        %9051 = vmatprep.subr.bf16.mxu0 0
        %9052 = vmatpush1.bf16.msra.mxu0 0
        %9053 = vmatprep.subr.bf16.mxu0 0
        %9054 = vmatpush1.bf16.msra.mxu0 0
        %9055 = vmatprep.subr.bf16.mxu0 0
        %9056 = vmatpush1.bf16.msra.mxu0 0
        %9057 = vmatprep.subr.bf16.mxu0 0
        %9058 = vmatpush1.bf16.msra.mxu0 0
        %9059 = vmatprep.subr.bf16.mxu0 0
        %9060 = vmatpush1.bf16.msra.mxu0 %v8996
        %9061 = vmatprep.subr.bf16.mxu0 0
        %9062 = vmatpush1.bf16.msra.mxu0 %v8995
        %9063 = vmatprep.subr.bf16.mxu0 0
        %9064 = vmatpush2.bf16.msra.mxu0 0
        %9065 = vmatprep.subr.bf16.mxu0 0
        %9066 = vmatpush2.bf16.msra.mxu0 0
        %9067 = vmatprep.subr.bf16.mxu0 0
        %9068 = vmatpush2.bf16.msra.mxu0 0
        %9069 = vmatprep.subr.bf16.mxu0 0
        %9070 = vmatpush2.bf16.msra.mxu0 0
        %9071 = vmatprep.subr.bf16.mxu0 0
        %9072 = vmatpush2.bf16.msra.mxu0 0
        %9073 = vmatprep.subr.bf16.mxu0 0
        %9074 = vmatpush2.bf16.msra.mxu0 0
        %9075 = vmatprep.subr.bf16.mxu0 0
        %9076 = vmatpush2.bf16.msra.mxu0 0
        %9077 = vmatprep.subr.bf16.mxu0 0
        %9078 = vmatpush2.bf16.msra.mxu0 0
        %9079 = vmatprep.mubr.bf16.mxu0 0
        %9080 = vmatmul.mubr.bf16.gmra.mxu0 %v9000
        %v9081 = vpop.f32.mrf.mxu0
        %v9082 = vadd.f32 0.0, %v9081
        %v9083 = vpop.f32.mrf.mxu0
        %v9084 = vpop.f32.mrf.mxu0
        %v9085 = vadd.f32 0.0, %v9084
        %v9086 = vpop.f32.mrf.mxu0
        %9087 = vmatprep.mubr.bf16.mxu0 0
        %9088 = vmatmul.mubr.bf16.gmra.mxu0 %v9003
        %v9089 = vpop.f32.mrf.mxu0
        %v9090 = vadd.f32 0.0, %v9089
        %v9091 = vpop.f32.mrf.mxu0
        %v9092 = vpop.f32.mrf.mxu0
        %v9093 = vadd.f32 0.0, %v9092
        %v9094 = vpop.f32.mrf.mxu0
        %9095 = vmatprep.mubr.bf16.mxu0 0
        %9096 = vmatmul.mubr.bf16.gmra.mxu0 %v9006
        %v9097 = vpop.f32.mrf.mxu0
        %v9098 = vadd.f32 0.0, %v9097
        %v9099 = vpop.f32.mrf.mxu0
        %v9100 = vpop.f32.mrf.mxu0
        %v9101 = vadd.f32 0.0, %v9100
        %v9102 = vpop.f32.mrf.mxu0
        %9103 = vmatprep.mubr.bf16.mxu0 0
        %9104 = vmatmul.mubr.bf16.gmra.mxu0 %v9009
        %v9105 = vpop.f32.mrf.mxu0
        %v9106 = vadd.f32 0.0, %v9105
        %v9107 = vpop.f32.mrf.mxu0
        %v9108 = vpop.f32.mrf.mxu0
        %v9109 = vadd.f32 0.0, %v9108
        %v9110 = vpop.f32.mrf.mxu0
        %9111 = vmatprep.mubr.bf16.mxu0 0
        %9112 = vmatmul.mubr.bf16.gmra.mxu0 %v9012
        %v9113 = vpop.f32.mrf.mxu0
        %v9114 = vadd.f32 0.0, %v9113
        %v9115 = vpop.f32.mrf.mxu0
        %v9116 = vpop.f32.mrf.mxu0
        %v9117 = vadd.f32 0.0, %v9116
        %v9118 = vpop.f32.mrf.mxu0
        %9119 = vmatprep.mubr.bf16.mxu0 0
        %9120 = vmatmul.mubr.bf16.gmra.mxu0 %v9015
        %v9121 = vpop.f32.mrf.mxu0
        %v9122 = vadd.f32 0.0, %v9121
        %v9123 = vpop.f32.mrf.mxu0
        %v9124 = vpop.f32.mrf.mxu0
        %v9125 = vadd.f32 0.0, %v9124
        %v9126 = vpop.f32.mrf.mxu0
        %9127 = vmatprep.mubr.bf16.mxu0 0
        %9128 = vmatmul.mubr.bf16.gmra.mxu0 %v9018
        %v9129 = vpop.f32.mrf.mxu0
        %v9130 = vadd.f32 0.0, %v9129
        %v9131 = vpop.f32.mrf.mxu0
        %v9132 = vpop.f32.mrf.mxu0
        %v9133 = vadd.f32 0.0, %v9132
        %v9134 = vpop.f32.mrf.mxu0
        %9135 = vmatprep.mubr.bf16.mxu0 0
        %9136 = vmatmul.mubr.bf16.gmra.mxu0 %v9021
        %v9137 = vpop.f32.mrf.mxu0
        %v9138 = vadd.f32 0.0, %v9137
        %v9139 = vpop.f32.mrf.mxu0
        %v9140 = vpop.f32.mrf.mxu0
        %v9141 = vadd.f32 0.0, %v9140
        %v9142 = vpop.f32.mrf.mxu0
        %9143 = vmatprep.mubr.bf16.mxu0 0
        %9144 = vmatmul.mubr.bf16.gmra.mxu0 %v9024
        %v9145 = vpop.f32.mrf.mxu0
        %v9146 = vadd.f32 0.0, %v9145
        %v9147 = vpop.f32.mrf.mxu0
        %v9148 = vpop.f32.mrf.mxu0
        %v9149 = vadd.f32 0.0, %v9148
        %v9150 = vpop.f32.mrf.mxu0
        %9151 = vmatprep.mubr.bf16.mxu0 0
        %9152 = vmatmul.mubr.bf16.gmra.mxu0 %v9027
        %v9153 = vpop.f32.mrf.mxu0
        %v9154 = vadd.f32 0.0, %v9153
        %v9155 = vpop.f32.mrf.mxu0
        %v9156 = vpop.f32.mrf.mxu0
        %v9157 = vadd.f32 0.0, %v9156
        %v9158 = vpop.f32.mrf.mxu0
        %9159 = vmatprep.mubr.bf16.mxu0 0
        %9160 = vmatmul.mubr.bf16.gmra.mxu0 %v9030
        %v9161 = vpop.f32.mrf.mxu0
        %v9162 = vadd.f32 0.0, %v9161
        %v9163 = vpop.f32.mrf.mxu0
        %v9164 = vpop.f32.mrf.mxu0
        %v9165 = vadd.f32 0.0, %v9164
        %v9166 = vpop.f32.mrf.mxu0
        %9167 = vmatprep.mubr.bf16.mxu0 0
        %9168 = vmatmul.mubr.bf16.gmra.mxu0 %v9033
        %v9169 = vpop.f32.mrf.mxu0
        %v9170 = vadd.f32 0.0, %v9169
        %v9171 = vpop.f32.mrf.mxu0
        %v9172 = vpop.f32.mrf.mxu0
        %v9173 = vadd.f32 0.0, %v9172
        %v9174 = vpop.f32.mrf.mxu0
        %9175 = vmatprep.mubr.bf16.mxu0 0
        %9176 = vmatmul.mubr.bf16.gmra.mxu0 %v9036
        %v9177 = vpop.f32.mrf.mxu0
        %v9178 = vadd.f32 0.0, %v9177
        %v9179 = vpop.f32.mrf.mxu0
        %v9180 = vpop.f32.mrf.mxu0
        %v9181 = vadd.f32 0.0, %v9180
        %v9182 = vpop.f32.mrf.mxu0
        %9183 = vmatprep.mubr.bf16.mxu0 0
        %9184 = vmatmul.mubr.bf16.gmra.mxu0 %v9039
        %v9185 = vpop.f32.mrf.mxu0
        %v9186 = vadd.f32 0.0, %v9185
        %v9187 = vpop.f32.mrf.mxu0
        %v9188 = vpop.f32.mrf.mxu0
        %v9189 = vadd.f32 0.0, %v9188
        %v9190 = vpop.f32.mrf.mxu0
        %9191 = vmatprep.mubr.bf16.mxu0 0
        %9192 = vmatmul.mubr.bf16.gmra.mxu0 %v9042
        %v9193 = vpop.f32.mrf.mxu0
        %v9194 = vadd.f32 0.0, %v9193
        %v9195 = vpop.f32.mrf.mxu0
        %v9196 = vpop.f32.mrf.mxu0
        %v9197 = vadd.f32 0.0, %v9196
        %v9198 = vpop.f32.mrf.mxu0
        %9199 = vmatprep.mubr.bf16.mxu0 0
        %9200 = vmatmul.mubr.bf16.gmra.mxu0 %v9045
        %v9201 = vpop.f32.mrf.mxu0
        %v9202 = vadd.f32 0.0, %v9201
        %v9203 = vpop.f32.mrf.mxu0
        %v9204 = vpop.f32.mrf.mxu0
        %v9205 = vadd.f32 0.0, %v9204
        %v9206 = vpop.f32.mrf.mxu0
        %9207 = vdwg.mxu0
        %v9208 = vadd.f32 %v8681, %v9082
        %v9209 = vadd.f32 %v8684, %v9085
        %v9210 = vadd.f32 %v8689, %v9090
        %v9211 = vadd.f32 %v8692, %v9093
        %v9212 = vadd.f32 %v8697, %v9098
        %v9213 = vadd.f32 %v8700, %v9101
        %v9214 = vadd.f32 %v8705, %v9106
        %v9215 = vadd.f32 %v8708, %v9109
        %v9216 = vadd.f32 %v8713, %v9114
        %v9217 = vadd.f32 %v8716, %v9117
        %v9218 = vadd.f32 %v8721, %v9122
        %v9219 = vadd.f32 %v8724, %v9125
        %v9220 = vadd.f32 %v8729, %v9130
        %v9221 = vadd.f32 %v8732, %v9133
        %v9222 = vadd.f32 %v8737, %v9138
        %v9223 = vadd.f32 %v8740, %v9141
        %v9224 = vadd.f32 %v8745, %v9146
        %v9225 = vadd.f32 %v8748, %v9149
        %v9226 = vadd.f32 %v8753, %v9154
        %v9227 = vadd.f32 %v8756, %v9157
        %v9228 = vadd.f32 %v8761, %v9162
        %v9229 = vadd.f32 %v8764, %v9165
        %v9230 = vadd.f32 %v8769, %v9170
        %v9231 = vadd.f32 %v8772, %v9173
        %v9232 = vadd.f32 %v8777, %v9178
        %v9233 = vadd.f32 %v8780, %v9181
        %v9234 = vadd.f32 %v8785, %v9186
        %v9235 = vadd.f32 %v8788, %v9189
        %v9236 = vadd.f32 %v8793, %v9194
        %v9237 = vadd.f32 %v8796, %v9197
        %v9238 = vadd.f32 %v8801, %v9202
        %v9239 = vadd.f32 %v8804, %v9205
        %v9240 = vld [vmem:[%s5 + $0x30] sm:$0xf]
        %v9241 = vld [vmem:[%s5 + $0x34] sm:$0xf]
        %v9242 = vld [vmem:[%s5 + $0x38] sm:$0xf]
        %v9243 = vld [vmem:[%s5 + $0x3c] sm:$0xf]
        %v9246 = vunpack.c.l.b16 %v7839
        %v9247 = vunpack.c.l.b16 %v7840
        %v9248 = vpack.c.b16 %v9247, %v9246
        %v9253 = vunpack.c.l.b16 %v9240
        %v9254 = vunpack.c.l.b16 %v9241
        %v9255 = vunpack.c.l.b16 %v9242
        %v9256 = vunpack.c.l.b16 %v9243
        %v9257 = vpack.c.b16 %v9254, %v9253
        %v9258 = vpack.c.b16 %v9256, %v9255
        %v9262 = vsel %vm4891, %v9248, 0
        %9264 = vmatprep.subr.bf16.mxu0 0
        %9265 = vmatpush1.bf16.msra.mxu0 0
        %9266 = vmatprep.subr.bf16.mxu0 0
        %9267 = vmatpush1.bf16.msra.mxu0 0
        %9268 = vmatprep.subr.bf16.mxu0 0
        %9269 = vmatpush1.bf16.msra.mxu0 0
        %9270 = vmatprep.subr.bf16.mxu0 0
        %9271 = vmatpush1.bf16.msra.mxu0 0
        %9272 = vmatprep.subr.bf16.mxu0 0
        %9273 = vmatpush1.bf16.msra.mxu0 0
        %9274 = vmatprep.subr.bf16.mxu0 0
        %9275 = vmatpush1.bf16.msra.mxu0 0
        %9276 = vmatprep.subr.bf16.mxu0 0
        %9277 = vmatpush1.bf16.msra.mxu0 %v9258
        %9278 = vmatprep.subr.bf16.mxu0 0
        %9279 = vmatpush1.bf16.msra.mxu0 %v9257
        %9280 = vmatprep.subr.bf16.mxu0 0
        %9281 = vmatpush2.bf16.msra.mxu0 0
        %9282 = vmatprep.subr.bf16.mxu0 0
        %9283 = vmatpush2.bf16.msra.mxu0 0
        %9284 = vmatprep.subr.bf16.mxu0 0
        %9285 = vmatpush2.bf16.msra.mxu0 0
        %9286 = vmatprep.subr.bf16.mxu0 0
        %9287 = vmatpush2.bf16.msra.mxu0 0
        %9288 = vmatprep.subr.bf16.mxu0 0
        %9289 = vmatpush2.bf16.msra.mxu0 0
        %9290 = vmatprep.subr.bf16.mxu0 0
        %9291 = vmatpush2.bf16.msra.mxu0 0
        %9292 = vmatprep.subr.bf16.mxu0 0
        %9293 = vmatpush2.bf16.msra.mxu0 0
        %9294 = vmatprep.subr.bf16.mxu0 0
        %9295 = vmatpush2.bf16.msra.mxu0 0
        %9296 = vmatprep.mubr.bf16.mxu0 0
        %9297 = vmatmul.mubr.bf16.gmra.mxu0 %v8602
        %v9298 = vpop.f32.mrf.mxu0
        %v9299 = vadd.f32 0.0, %v9298
        %v9300 = vpop.f32.mrf.mxu0
        %v9301 = vpop.f32.mrf.mxu0
        %v9302 = vadd.f32 0.0, %v9301
        %v9303 = vpop.f32.mrf.mxu0
        %9304 = vmatprep.mubr.bf16.mxu0 0
        %9305 = vmatmul.mubr.bf16.gmra.mxu0 %v8605
        %v9306 = vpop.f32.mrf.mxu0
        %v9307 = vadd.f32 0.0, %v9306
        %v9308 = vpop.f32.mrf.mxu0
        %v9309 = vpop.f32.mrf.mxu0
        %v9310 = vadd.f32 0.0, %v9309
        %v9311 = vpop.f32.mrf.mxu0
        %9312 = vmatprep.mubr.bf16.mxu0 0
        %9313 = vmatmul.mubr.bf16.gmra.mxu0 %v8608
        %v9314 = vpop.f32.mrf.mxu0
        %v9315 = vadd.f32 0.0, %v9314
        %v9316 = vpop.f32.mrf.mxu0
        %v9317 = vpop.f32.mrf.mxu0
        %v9318 = vadd.f32 0.0, %v9317
        %v9319 = vpop.f32.mrf.mxu0
        %9320 = vmatprep.mubr.bf16.mxu0 0
        %9321 = vmatmul.mubr.bf16.gmra.mxu0 %v8611
        %v9322 = vpop.f32.mrf.mxu0
        %v9323 = vadd.f32 0.0, %v9322
        %v9324 = vpop.f32.mrf.mxu0
        %v9325 = vpop.f32.mrf.mxu0
        %v9326 = vadd.f32 0.0, %v9325
        %v9327 = vpop.f32.mrf.mxu0
        %9328 = vmatprep.mubr.bf16.mxu0 0
        %9329 = vmatmul.mubr.bf16.gmra.mxu0 %v8614
        %v9330 = vpop.f32.mrf.mxu0
        %v9331 = vadd.f32 0.0, %v9330
        %v9332 = vpop.f32.mrf.mxu0
        %v9333 = vpop.f32.mrf.mxu0
        %v9334 = vadd.f32 0.0, %v9333
        %v9335 = vpop.f32.mrf.mxu0
        %9336 = vmatprep.mubr.bf16.mxu0 0
        %9337 = vmatmul.mubr.bf16.gmra.mxu0 %v8617
        %v9338 = vpop.f32.mrf.mxu0
        %v9339 = vadd.f32 0.0, %v9338
        %v9340 = vpop.f32.mrf.mxu0
        %v9341 = vpop.f32.mrf.mxu0
        %v9342 = vadd.f32 0.0, %v9341
        %v9343 = vpop.f32.mrf.mxu0
        %9344 = vmatprep.mubr.bf16.mxu0 0
        %9345 = vmatmul.mubr.bf16.gmra.mxu0 %v8620
        %v9346 = vpop.f32.mrf.mxu0
        %v9347 = vadd.f32 0.0, %v9346
        %v9348 = vpop.f32.mrf.mxu0
        %v9349 = vpop.f32.mrf.mxu0
        %v9350 = vadd.f32 0.0, %v9349
        %v9351 = vpop.f32.mrf.mxu0
        %9352 = vmatprep.mubr.bf16.mxu0 0
        %9353 = vmatmul.mubr.bf16.gmra.mxu0 %v8623
        %v9354 = vpop.f32.mrf.mxu0
        %v9355 = vadd.f32 0.0, %v9354
        %v9356 = vpop.f32.mrf.mxu0
        %v9357 = vpop.f32.mrf.mxu0
        %v9358 = vadd.f32 0.0, %v9357
        %v9359 = vpop.f32.mrf.mxu0
        %9360 = vmatprep.mubr.bf16.mxu0 0
        %9361 = vmatmul.mubr.bf16.gmra.mxu0 %v8626
        %v9362 = vpop.f32.mrf.mxu0
        %v9363 = vadd.f32 0.0, %v9362
        %v9364 = vpop.f32.mrf.mxu0
        %v9365 = vpop.f32.mrf.mxu0
        %v9366 = vadd.f32 0.0, %v9365
        %v9367 = vpop.f32.mrf.mxu0
        %9368 = vmatprep.mubr.bf16.mxu0 0
        %9369 = vmatmul.mubr.bf16.gmra.mxu0 %v8629
        %v9370 = vpop.f32.mrf.mxu0
        %v9371 = vadd.f32 0.0, %v9370
        %v9372 = vpop.f32.mrf.mxu0
        %v9373 = vpop.f32.mrf.mxu0
        %v9374 = vadd.f32 0.0, %v9373
        %v9375 = vpop.f32.mrf.mxu0
        %9376 = vmatprep.mubr.bf16.mxu0 0
        %9377 = vmatmul.mubr.bf16.gmra.mxu0 %v8632
        %v9378 = vpop.f32.mrf.mxu0
        %v9379 = vadd.f32 0.0, %v9378
        %v9380 = vpop.f32.mrf.mxu0
        %v9381 = vpop.f32.mrf.mxu0
        %v9382 = vadd.f32 0.0, %v9381
        %v9383 = vpop.f32.mrf.mxu0
        %9384 = vmatprep.mubr.bf16.mxu0 0
        %9385 = vmatmul.mubr.bf16.gmra.mxu0 %v8635
        %v9386 = vpop.f32.mrf.mxu0
        %v9387 = vadd.f32 0.0, %v9386
        %v9388 = vpop.f32.mrf.mxu0
        %v9389 = vpop.f32.mrf.mxu0
        %v9390 = vadd.f32 0.0, %v9389
        %v9391 = vpop.f32.mrf.mxu0
        %9392 = vmatprep.mubr.bf16.mxu0 0
        %9393 = vmatmul.mubr.bf16.gmra.mxu0 %v8638
        %v9394 = vpop.f32.mrf.mxu0
        %v9395 = vadd.f32 0.0, %v9394
        %v9396 = vpop.f32.mrf.mxu0
        %v9397 = vpop.f32.mrf.mxu0
        %v9398 = vadd.f32 0.0, %v9397
        %v9399 = vpop.f32.mrf.mxu0
        %9400 = vmatprep.mubr.bf16.mxu0 0
        %9401 = vmatmul.mubr.bf16.gmra.mxu0 %v8641
        %v9402 = vpop.f32.mrf.mxu0
        %v9403 = vadd.f32 0.0, %v9402
        %v9404 = vpop.f32.mrf.mxu0
        %v9405 = vpop.f32.mrf.mxu0
        %v9406 = vadd.f32 0.0, %v9405
        %v9407 = vpop.f32.mrf.mxu0
        %9408 = vmatprep.mubr.bf16.mxu0 0
        %9409 = vmatmul.mubr.bf16.gmra.mxu0 %v8644
        %v9410 = vpop.f32.mrf.mxu0
        %v9411 = vadd.f32 0.0, %v9410
        %v9412 = vpop.f32.mrf.mxu0
        %v9413 = vpop.f32.mrf.mxu0
        %v9414 = vadd.f32 0.0, %v9413
        %v9415 = vpop.f32.mrf.mxu0
        %9416 = vmatprep.mubr.bf16.mxu0 0
        %9417 = vmatmul.mubr.bf16.gmra.mxu0 %v9262
        %v9418 = vpop.f32.mrf.mxu0
        %v9419 = vadd.f32 0.0, %v9418
        %v9420 = vpop.f32.mrf.mxu0
        %v9421 = vpop.f32.mrf.mxu0
        %v9422 = vadd.f32 0.0, %v9421
        %v9423 = vpop.f32.mrf.mxu0
        %9424 = vdwg.mxu0
        %v9425 = vadd.f32 %v9208, %v9299
        %v9426 = vadd.f32 %v9209, %v9302
        %v9427 = vadd.f32 %v9210, %v9307
        %v9428 = vadd.f32 %v9211, %v9310
        %v9429 = vadd.f32 %v9212, %v9315
        %v9430 = vadd.f32 %v9213, %v9318
        %v9431 = vadd.f32 %v9214, %v9323
        %v9432 = vadd.f32 %v9215, %v9326
        %v9433 = vadd.f32 %v9216, %v9331
        %v9434 = vadd.f32 %v9217, %v9334
        %v9435 = vadd.f32 %v9218, %v9339
        %v9436 = vadd.f32 %v9219, %v9342
        %v9437 = vadd.f32 %v9220, %v9347
        %v9438 = vadd.f32 %v9221, %v9350
        %v9439 = vadd.f32 %v9222, %v9355
        %v9440 = vadd.f32 %v9223, %v9358
        %v9441 = vadd.f32 %v9224, %v9363
        %v9442 = vadd.f32 %v9225, %v9366
        %v9443 = vadd.f32 %v9226, %v9371
        %v9444 = vadd.f32 %v9227, %v9374
        %v9445 = vadd.f32 %v9228, %v9379
        %v9446 = vadd.f32 %v9229, %v9382
        %v9447 = vadd.f32 %v9230, %v9387
        %v9448 = vadd.f32 %v9231, %v9390
        %v9449 = vadd.f32 %v9232, %v9395
        %v9450 = vadd.f32 %v9233, %v9398
        %v9451 = vadd.f32 %v9234, %v9403
        %v9452 = vadd.f32 %v9235, %v9406
        %v9453 = vadd.f32 %v9236, %v9411
        %v9454 = vadd.f32 %v9237, %v9414
        %v9455 = vadd.f32 %v9238, %v9419
        %v9456 = vadd.f32 %v9239, %v9422
        %v9458 = vshrl.u32 %v7839, 16
        %v9460 = vrot.slane %v9458, 4
        %v9461 = vshll.u32 %v7839, 16
        %v9463 = vrot.slane %v9461, 5
        %v9464 = vor.u32 %v9460, %v9463
        %v9465 = vrot.slane %v9464, 4
        %v9467 = vshll.u32 %v7840, 16
        %v9469 = vrot.slane %v9467, 5
        %v9470 = vsel %vm1118, %v9465, %v9469
        %v9471 = vshrl.u32 %v7840, 16
        %v9473 = vrot.slane %v9471, 4
        %v9474 = vor.u32 %v9473, %v9469
        %v9475 = vrot.slane %v9474, 4
        %v9477 = vshll.u32 %v7841, 16
        %v9479 = vrot.slane %v9477, 5
        %v9480 = vsel %vm1118, %v9475, %v9479
        %v9481 = vld [vmem:[%s5 + $0x40] sm:$0xf]
        %v9482 = vld [vmem:[%s5 + $0x44] sm:$0xf]
        %v9483 = vld [vmem:[%s5 + $0x48] sm:$0xf]
        %v9484 = vld [vmem:[%s5 + $0x4c] sm:$0xf]
        %v9485 = vunpack.c.l.b16 %v9470
        %v9486 = vunpack.c.l.b16 %v9480
        %v9487 = vpack.c.b16 %v9486, %v9485
        %v9492 = vunpack.c.l.b16 %v9481
        %v9493 = vunpack.c.l.b16 %v9482
        %v9494 = vunpack.c.l.b16 %v9483
        %v9495 = vunpack.c.l.b16 %v9484
        %v9496 = vpack.c.b16 %v9493, %v9492
        %v9497 = vpack.c.b16 %v9495, %v9494
        %v9501 = vsel %vm4891, %v9487, 0
        %9503 = vmatprep.subr.bf16.mxu0 0
        %9504 = vmatpush1.bf16.msra.mxu0 0
        %9505 = vmatprep.subr.bf16.mxu0 0
        %9506 = vmatpush1.bf16.msra.mxu0 0
        %9507 = vmatprep.subr.bf16.mxu0 0
        %9508 = vmatpush1.bf16.msra.mxu0 0
        %9509 = vmatprep.subr.bf16.mxu0 0
        %9510 = vmatpush1.bf16.msra.mxu0 0
        %9511 = vmatprep.subr.bf16.mxu0 0
        %9512 = vmatpush1.bf16.msra.mxu0 0
        %9513 = vmatprep.subr.bf16.mxu0 0
        %9514 = vmatpush1.bf16.msra.mxu0 0
        %9515 = vmatprep.subr.bf16.mxu0 0
        %9516 = vmatpush1.bf16.msra.mxu0 %v9497
        %9517 = vmatprep.subr.bf16.mxu0 0
        %9518 = vmatpush1.bf16.msra.mxu0 %v9496
        %9519 = vmatprep.subr.bf16.mxu0 0
        %9520 = vmatpush2.bf16.msra.mxu0 0
        %9521 = vmatprep.subr.bf16.mxu0 0
        %9522 = vmatpush2.bf16.msra.mxu0 0
        %9523 = vmatprep.subr.bf16.mxu0 0
        %9524 = vmatpush2.bf16.msra.mxu0 0
        %9525 = vmatprep.subr.bf16.mxu0 0
        %9526 = vmatpush2.bf16.msra.mxu0 0
        %9527 = vmatprep.subr.bf16.mxu0 0
        %9528 = vmatpush2.bf16.msra.mxu0 0
        %9529 = vmatprep.subr.bf16.mxu0 0
        %9530 = vmatpush2.bf16.msra.mxu0 0
        %9531 = vmatprep.subr.bf16.mxu0 0
        %9532 = vmatpush2.bf16.msra.mxu0 0
        %9533 = vmatprep.subr.bf16.mxu0 0
        %9534 = vmatpush2.bf16.msra.mxu0 0
        %9535 = vmatprep.mubr.bf16.mxu0 0
        %9536 = vmatmul.mubr.bf16.gmra.mxu0 %v8301
        %v9537 = vpop.f32.mrf.mxu0
        %v9538 = vadd.f32 0.0, %v9537
        %v9539 = vpop.f32.mrf.mxu0
        %v9540 = vpop.f32.mrf.mxu0
        %v9541 = vadd.f32 0.0, %v9540
        %v9542 = vpop.f32.mrf.mxu0
        %9543 = vmatprep.mubr.bf16.mxu0 0
        %9544 = vmatmul.mubr.bf16.gmra.mxu0 %v8304
        %v9545 = vpop.f32.mrf.mxu0
        %v9546 = vadd.f32 0.0, %v9545
        %v9547 = vpop.f32.mrf.mxu0
        %v9548 = vpop.f32.mrf.mxu0
        %v9549 = vadd.f32 0.0, %v9548
        %v9550 = vpop.f32.mrf.mxu0
        %9551 = vmatprep.mubr.bf16.mxu0 0
        %9552 = vmatmul.mubr.bf16.gmra.mxu0 %v8307
        %v9553 = vpop.f32.mrf.mxu0
        %v9554 = vadd.f32 0.0, %v9553
        %v9555 = vpop.f32.mrf.mxu0
        %v9556 = vpop.f32.mrf.mxu0
        %v9557 = vadd.f32 0.0, %v9556
        %v9558 = vpop.f32.mrf.mxu0
        %9559 = vmatprep.mubr.bf16.mxu0 0
        %9560 = vmatmul.mubr.bf16.gmra.mxu0 %v8310
        %v9561 = vpop.f32.mrf.mxu0
        %v9562 = vadd.f32 0.0, %v9561
        %v9563 = vpop.f32.mrf.mxu0
        %v9564 = vpop.f32.mrf.mxu0
        %v9565 = vadd.f32 0.0, %v9564
        %v9566 = vpop.f32.mrf.mxu0
        %9567 = vmatprep.mubr.bf16.mxu0 0
        %9568 = vmatmul.mubr.bf16.gmra.mxu0 %v8313
        %v9569 = vpop.f32.mrf.mxu0
        %v9570 = vadd.f32 0.0, %v9569
        %v9571 = vpop.f32.mrf.mxu0
        %v9572 = vpop.f32.mrf.mxu0
        %v9573 = vadd.f32 0.0, %v9572
        %v9574 = vpop.f32.mrf.mxu0
        %9575 = vmatprep.mubr.bf16.mxu0 0
        %9576 = vmatmul.mubr.bf16.gmra.mxu0 %v8316
        %v9577 = vpop.f32.mrf.mxu0
        %v9578 = vadd.f32 0.0, %v9577
        %v9579 = vpop.f32.mrf.mxu0
        %v9580 = vpop.f32.mrf.mxu0
        %v9581 = vadd.f32 0.0, %v9580
        %v9582 = vpop.f32.mrf.mxu0
        %9583 = vmatprep.mubr.bf16.mxu0 0
        %9584 = vmatmul.mubr.bf16.gmra.mxu0 %v8319
        %v9585 = vpop.f32.mrf.mxu0
        %v9586 = vadd.f32 0.0, %v9585
        %v9587 = vpop.f32.mrf.mxu0
        %v9588 = vpop.f32.mrf.mxu0
        %v9589 = vadd.f32 0.0, %v9588
        %v9590 = vpop.f32.mrf.mxu0
        %9591 = vmatprep.mubr.bf16.mxu0 0
        %9592 = vmatmul.mubr.bf16.gmra.mxu0 %v8322
        %v9593 = vpop.f32.mrf.mxu0
        %v9594 = vadd.f32 0.0, %v9593
        %v9595 = vpop.f32.mrf.mxu0
        %v9596 = vpop.f32.mrf.mxu0
        %v9597 = vadd.f32 0.0, %v9596
        %v9598 = vpop.f32.mrf.mxu0
        %9599 = vmatprep.mubr.bf16.mxu0 0
        %9600 = vmatmul.mubr.bf16.gmra.mxu0 %v8325
        %v9601 = vpop.f32.mrf.mxu0
        %v9602 = vadd.f32 0.0, %v9601
        %v9603 = vpop.f32.mrf.mxu0
        %v9604 = vpop.f32.mrf.mxu0
        %v9605 = vadd.f32 0.0, %v9604
        %v9606 = vpop.f32.mrf.mxu0
        %9607 = vmatprep.mubr.bf16.mxu0 0
        %9608 = vmatmul.mubr.bf16.gmra.mxu0 %v8328
        %v9609 = vpop.f32.mrf.mxu0
        %v9610 = vadd.f32 0.0, %v9609
        %v9611 = vpop.f32.mrf.mxu0
        %v9612 = vpop.f32.mrf.mxu0
        %v9613 = vadd.f32 0.0, %v9612
        %v9614 = vpop.f32.mrf.mxu0
        %9615 = vmatprep.mubr.bf16.mxu0 0
        %9616 = vmatmul.mubr.bf16.gmra.mxu0 %v8331
        %v9617 = vpop.f32.mrf.mxu0
        %v9618 = vadd.f32 0.0, %v9617
        %v9619 = vpop.f32.mrf.mxu0
        %v9620 = vpop.f32.mrf.mxu0
        %v9621 = vadd.f32 0.0, %v9620
        %v9622 = vpop.f32.mrf.mxu0
        %9623 = vmatprep.mubr.bf16.mxu0 0
        %9624 = vmatmul.mubr.bf16.gmra.mxu0 %v8334
        %v9625 = vpop.f32.mrf.mxu0
        %v9626 = vadd.f32 0.0, %v9625
        %v9627 = vpop.f32.mrf.mxu0
        %v9628 = vpop.f32.mrf.mxu0
        %v9629 = vadd.f32 0.0, %v9628
        %v9630 = vpop.f32.mrf.mxu0
        %9631 = vmatprep.mubr.bf16.mxu0 0
        %9632 = vmatmul.mubr.bf16.gmra.mxu0 %v8337
        %v9633 = vpop.f32.mrf.mxu0
        %v9634 = vadd.f32 0.0, %v9633
        %v9635 = vpop.f32.mrf.mxu0
        %v9636 = vpop.f32.mrf.mxu0
        %v9637 = vadd.f32 0.0, %v9636
        %v9638 = vpop.f32.mrf.mxu0
        %9639 = vmatprep.mubr.bf16.mxu0 0
        %9640 = vmatmul.mubr.bf16.gmra.mxu0 %v8340
        %v9641 = vpop.f32.mrf.mxu0
        %v9642 = vadd.f32 0.0, %v9641
        %v9643 = vpop.f32.mrf.mxu0
        %v9644 = vpop.f32.mrf.mxu0
        %v9645 = vadd.f32 0.0, %v9644
        %v9646 = vpop.f32.mrf.mxu0
        %9647 = vmatprep.mubr.bf16.mxu0 0
        %9648 = vmatmul.mubr.bf16.gmra.mxu0 %v8343
        %v9649 = vpop.f32.mrf.mxu0
        %v9650 = vadd.f32 0.0, %v9649
        %v9651 = vpop.f32.mrf.mxu0
        %v9652 = vpop.f32.mrf.mxu0
        %v9653 = vadd.f32 0.0, %v9652
        %v9654 = vpop.f32.mrf.mxu0
        %9655 = vmatprep.mubr.bf16.mxu0 0
        %9656 = vmatmul.mubr.bf16.gmra.mxu0 %v9501
        %v9657 = vpop.f32.mrf.mxu0
        %v9658 = vadd.f32 0.0, %v9657
        %v9659 = vpop.f32.mrf.mxu0
        %v9660 = vpop.f32.mrf.mxu0
        %v9661 = vadd.f32 0.0, %v9660
        %v9662 = vpop.f32.mrf.mxu0
        %9663 = vdwg.mxu0
        %v9664 = vadd.f32 %v9425, %v9538
        %v9665 = vadd.f32 %v9426, %v9541
        %v9666 = vadd.f32 %v9427, %v9546
        %v9667 = vadd.f32 %v9428, %v9549
        %v9668 = vadd.f32 %v9429, %v9554
        %v9669 = vadd.f32 %v9430, %v9557
        %v9670 = vadd.f32 %v9431, %v9562
        %v9671 = vadd.f32 %v9432, %v9565
        %v9672 = vadd.f32 %v9433, %v9570
        %v9673 = vadd.f32 %v9434, %v9573
        %v9674 = vadd.f32 %v9435, %v9578
        %v9675 = vadd.f32 %v9436, %v9581
        %v9676 = vadd.f32 %v9437, %v9586
        %v9677 = vadd.f32 %v9438, %v9589
        %v9678 = vadd.f32 %v9439, %v9594
        %v9679 = vadd.f32 %v9440, %v9597
        %v9680 = vadd.f32 %v9441, %v9602
        %v9681 = vadd.f32 %v9442, %v9605
        %v9682 = vadd.f32 %v9443, %v9610
        %v9683 = vadd.f32 %v9444, %v9613
        %v9684 = vadd.f32 %v9445, %v9618
        %v9685 = vadd.f32 %v9446, %v9621
        %v9686 = vadd.f32 %v9447, %v9626
        %v9687 = vadd.f32 %v9448, %v9629
        %v9688 = vadd.f32 %v9449, %v9634
        %v9689 = vadd.f32 %v9450, %v9637
        %v9690 = vadd.f32 %v9451, %v9642
        %v9691 = vadd.f32 %v9452, %v9645
        %v9692 = vadd.f32 %v9453, %v9650
        %v9693 = vadd.f32 %v9454, %v9653
        %v9694 = vadd.f32 %v9455, %v9658
        %v9695 = vadd.f32 %v9456, %v9661
        %v9697 = vrot.slane %v7839, 5
        %v9698 = vrot.slane %v9697, 4
        %v9699 = vrot.slane %v7840, 5
        %v9700 = vsel %vm2080, %v9698, %v9699
        %v9701 = vrot.slane %v9699, 4
        %v9702 = vrot.slane %v7841, 5
        %v9703 = vsel %vm2080, %v9701, %v9702
        %v9704 = vld [vmem:[%s5 + $0x50] sm:$0xf]
        %v9705 = vld [vmem:[%s5 + $0x54] sm:$0xf]
        %v9706 = vld [vmem:[%s5 + $0x58] sm:$0xf]
        %v9707 = vld [vmem:[%s5 + $0x5c] sm:$0xf]
        %v9708 = vunpack.c.l.b16 %v9700
        %v9709 = vunpack.c.l.b16 %v9703
        %v9710 = vpack.c.b16 %v9709, %v9708
        %v9715 = vunpack.c.l.b16 %v9704
        %v9716 = vunpack.c.l.b16 %v9705
        %v9717 = vunpack.c.l.b16 %v9706
        %v9718 = vunpack.c.l.b16 %v9707
        %v9719 = vpack.c.b16 %v9716, %v9715
        %v9720 = vpack.c.b16 %v9718, %v9717
        %v9724 = vsel %vm4891, %v9710, 0
        %9726 = vmatprep.subr.bf16.mxu0 0
        %9727 = vmatpush1.bf16.msra.mxu0 0
        %9728 = vmatprep.subr.bf16.mxu0 0
        %9729 = vmatpush1.bf16.msra.mxu0 0
        %9730 = vmatprep.subr.bf16.mxu0 0
        %9731 = vmatpush1.bf16.msra.mxu0 0
        %9732 = vmatprep.subr.bf16.mxu0 0
        %9733 = vmatpush1.bf16.msra.mxu0 0
        %9734 = vmatprep.subr.bf16.mxu0 0
        %9735 = vmatpush1.bf16.msra.mxu0 0
        %9736 = vmatprep.subr.bf16.mxu0 0
        %9737 = vmatpush1.bf16.msra.mxu0 0
        %9738 = vmatprep.subr.bf16.mxu0 0
        %9739 = vmatpush1.bf16.msra.mxu0 %v9720
        %9740 = vmatprep.subr.bf16.mxu0 0
        %9741 = vmatpush1.bf16.msra.mxu0 %v9719
        %9742 = vmatprep.subr.bf16.mxu0 0
        %9743 = vmatpush2.bf16.msra.mxu0 0
        %9744 = vmatprep.subr.bf16.mxu0 0
        %9745 = vmatpush2.bf16.msra.mxu0 0
        %9746 = vmatprep.subr.bf16.mxu0 0
        %9747 = vmatpush2.bf16.msra.mxu0 0
        %9748 = vmatprep.subr.bf16.mxu0 0
        %9749 = vmatpush2.bf16.msra.mxu0 0
        %9750 = vmatprep.subr.bf16.mxu0 0
        %9751 = vmatpush2.bf16.msra.mxu0 0
        %9752 = vmatprep.subr.bf16.mxu0 0
        %9753 = vmatpush2.bf16.msra.mxu0 0
        %9754 = vmatprep.subr.bf16.mxu0 0
        %9755 = vmatpush2.bf16.msra.mxu0 0
        %9756 = vmatprep.subr.bf16.mxu0 0
        %9757 = vmatpush2.bf16.msra.mxu0 0
        %9758 = vmatprep.mubr.bf16.mxu0 0
        %9759 = vmatmul.mubr.bf16.gmra.mxu0 %v9003
        %v9760 = vpop.f32.mrf.mxu0
        %v9761 = vadd.f32 0.0, %v9760
        %v9762 = vpop.f32.mrf.mxu0
        %v9763 = vpop.f32.mrf.mxu0
        %v9764 = vadd.f32 0.0, %v9763
        %v9765 = vpop.f32.mrf.mxu0
        %9766 = vmatprep.mubr.bf16.mxu0 0
        %9767 = vmatmul.mubr.bf16.gmra.mxu0 %v9006
        %v9768 = vpop.f32.mrf.mxu0
        %v9769 = vadd.f32 0.0, %v9768
        %v9770 = vpop.f32.mrf.mxu0
        %v9771 = vpop.f32.mrf.mxu0
        %v9772 = vadd.f32 0.0, %v9771
        %v9773 = vpop.f32.mrf.mxu0
        %9774 = vmatprep.mubr.bf16.mxu0 0
        %9775 = vmatmul.mubr.bf16.gmra.mxu0 %v9009
        %v9776 = vpop.f32.mrf.mxu0
        %v9777 = vadd.f32 0.0, %v9776
        %v9778 = vpop.f32.mrf.mxu0
        %v9779 = vpop.f32.mrf.mxu0
        %v9780 = vadd.f32 0.0, %v9779
        %v9781 = vpop.f32.mrf.mxu0
        %9782 = vmatprep.mubr.bf16.mxu0 0
        %9783 = vmatmul.mubr.bf16.gmra.mxu0 %v9012
        %v9784 = vpop.f32.mrf.mxu0
        %v9785 = vadd.f32 0.0, %v9784
        %v9786 = vpop.f32.mrf.mxu0
        %v9787 = vpop.f32.mrf.mxu0
        %v9788 = vadd.f32 0.0, %v9787
        %v9789 = vpop.f32.mrf.mxu0
        %9790 = vmatprep.mubr.bf16.mxu0 0
        %9791 = vmatmul.mubr.bf16.gmra.mxu0 %v9015
        %v9792 = vpop.f32.mrf.mxu0
        %v9793 = vadd.f32 0.0, %v9792
        %v9794 = vpop.f32.mrf.mxu0
        %v9795 = vpop.f32.mrf.mxu0
        %v9796 = vadd.f32 0.0, %v9795
        %v9797 = vpop.f32.mrf.mxu0
        %9798 = vmatprep.mubr.bf16.mxu0 0
        %9799 = vmatmul.mubr.bf16.gmra.mxu0 %v9018
        %v9800 = vpop.f32.mrf.mxu0
        %v9801 = vadd.f32 0.0, %v9800
        %v9802 = vpop.f32.mrf.mxu0
        %v9803 = vpop.f32.mrf.mxu0
        %v9804 = vadd.f32 0.0, %v9803
        %v9805 = vpop.f32.mrf.mxu0
        %9806 = vmatprep.mubr.bf16.mxu0 0
        %9807 = vmatmul.mubr.bf16.gmra.mxu0 %v9021
        %v9808 = vpop.f32.mrf.mxu0
        %v9809 = vadd.f32 0.0, %v9808
        %v9810 = vpop.f32.mrf.mxu0
        %v9811 = vpop.f32.mrf.mxu0
        %v9812 = vadd.f32 0.0, %v9811
        %v9813 = vpop.f32.mrf.mxu0
        %9814 = vmatprep.mubr.bf16.mxu0 0
        %9815 = vmatmul.mubr.bf16.gmra.mxu0 %v9024
        %v9816 = vpop.f32.mrf.mxu0
        %v9817 = vadd.f32 0.0, %v9816
        %v9818 = vpop.f32.mrf.mxu0
        %v9819 = vpop.f32.mrf.mxu0
        %v9820 = vadd.f32 0.0, %v9819
        %v9821 = vpop.f32.mrf.mxu0
        %9822 = vmatprep.mubr.bf16.mxu0 0
        %9823 = vmatmul.mubr.bf16.gmra.mxu0 %v9027
        %v9824 = vpop.f32.mrf.mxu0
        %v9825 = vadd.f32 0.0, %v9824
        %v9826 = vpop.f32.mrf.mxu0
        %v9827 = vpop.f32.mrf.mxu0
        %v9828 = vadd.f32 0.0, %v9827
        %v9829 = vpop.f32.mrf.mxu0
        %9830 = vmatprep.mubr.bf16.mxu0 0
        %9831 = vmatmul.mubr.bf16.gmra.mxu0 %v9030
        %v9832 = vpop.f32.mrf.mxu0
        %v9833 = vadd.f32 0.0, %v9832
        %v9834 = vpop.f32.mrf.mxu0
        %v9835 = vpop.f32.mrf.mxu0
        %v9836 = vadd.f32 0.0, %v9835
        %v9837 = vpop.f32.mrf.mxu0
        %9838 = vmatprep.mubr.bf16.mxu0 0
        %9839 = vmatmul.mubr.bf16.gmra.mxu0 %v9033
        %v9840 = vpop.f32.mrf.mxu0
        %v9841 = vadd.f32 0.0, %v9840
        %v9842 = vpop.f32.mrf.mxu0
        %v9843 = vpop.f32.mrf.mxu0
        %v9844 = vadd.f32 0.0, %v9843
        %v9845 = vpop.f32.mrf.mxu0
        %9846 = vmatprep.mubr.bf16.mxu0 0
        %9847 = vmatmul.mubr.bf16.gmra.mxu0 %v9036
        %v9848 = vpop.f32.mrf.mxu0
        %v9849 = vadd.f32 0.0, %v9848
        %v9850 = vpop.f32.mrf.mxu0
        %v9851 = vpop.f32.mrf.mxu0
        %v9852 = vadd.f32 0.0, %v9851
        %v9853 = vpop.f32.mrf.mxu0
        %9854 = vmatprep.mubr.bf16.mxu0 0
        %9855 = vmatmul.mubr.bf16.gmra.mxu0 %v9039
        %v9856 = vpop.f32.mrf.mxu0
        %v9857 = vadd.f32 0.0, %v9856
        %v9858 = vpop.f32.mrf.mxu0
        %v9859 = vpop.f32.mrf.mxu0
        %v9860 = vadd.f32 0.0, %v9859
        %v9861 = vpop.f32.mrf.mxu0
        %9862 = vmatprep.mubr.bf16.mxu0 0
        %9863 = vmatmul.mubr.bf16.gmra.mxu0 %v9042
        %v9864 = vpop.f32.mrf.mxu0
        %v9865 = vadd.f32 0.0, %v9864
        %v9866 = vpop.f32.mrf.mxu0
        %v9867 = vpop.f32.mrf.mxu0
        %v9868 = vadd.f32 0.0, %v9867
        %v9869 = vpop.f32.mrf.mxu0
        %9870 = vmatprep.mubr.bf16.mxu0 0
        %9871 = vmatmul.mubr.bf16.gmra.mxu0 %v9045
        %v9872 = vpop.f32.mrf.mxu0
        %v9873 = vadd.f32 0.0, %v9872
        %v9874 = vpop.f32.mrf.mxu0
        %v9875 = vpop.f32.mrf.mxu0
        %v9876 = vadd.f32 0.0, %v9875
        %v9877 = vpop.f32.mrf.mxu0
        %9878 = vmatprep.mubr.bf16.mxu0 0
        %9879 = vmatmul.mubr.bf16.gmra.mxu0 %v9724
        %v9880 = vpop.f32.mrf.mxu0
        %v9881 = vadd.f32 0.0, %v9880
        %v9882 = vpop.f32.mrf.mxu0
        %v9883 = vpop.f32.mrf.mxu0
        %v9884 = vadd.f32 0.0, %v9883
        %v9885 = vpop.f32.mrf.mxu0
        %9886 = vdwg.mxu0
        %v9887 = vadd.f32 %v9664, %v9761
        %v9888 = vadd.f32 %v9665, %v9764
        %v9889 = vadd.f32 %v9666, %v9769
        %v9890 = vadd.f32 %v9667, %v9772
        %v9891 = vadd.f32 %v9668, %v9777
        %v9892 = vadd.f32 %v9669, %v9780
        %v9893 = vadd.f32 %v9670, %v9785
        %v9894 = vadd.f32 %v9671, %v9788
        %v9895 = vadd.f32 %v9672, %v9793
        %v9896 = vadd.f32 %v9673, %v9796
        %v9897 = vadd.f32 %v9674, %v9801
        %v9898 = vadd.f32 %v9675, %v9804
        %v9899 = vadd.f32 %v9676, %v9809
        %v9900 = vadd.f32 %v9677, %v9812
        %v9901 = vadd.f32 %v9678, %v9817
        %v9902 = vadd.f32 %v9679, %v9820
        %v9903 = vadd.f32 %v9680, %v9825
        %v9904 = vadd.f32 %v9681, %v9828
        %v9905 = vadd.f32 %v9682, %v9833
        %v9906 = vadd.f32 %v9683, %v9836
        %v9907 = vadd.f32 %v9684, %v9841
        %v9908 = vadd.f32 %v9685, %v9844
        %v9909 = vadd.f32 %v9686, %v9849
        %v9910 = vadd.f32 %v9687, %v9852
        %v9911 = vadd.f32 %v9688, %v9857
        %v9912 = vadd.f32 %v9689, %v9860
        %v9913 = vadd.f32 %v9690, %v9865
        %v9914 = vadd.f32 %v9691, %v9868
        %v9915 = vadd.f32 %v9692, %v9873
        %v9916 = vadd.f32 %v9693, %v9876
        %v9917 = vadd.f32 %v9694, %v9881
        %v9918 = vadd.f32 %v9695, %v9884
        %v9919 = vld [vmem:[%s5 + $0x60] sm:$0xf]
        %v9920 = vld [vmem:[%s5 + $0x64] sm:$0xf]
        %v9921 = vld [vmem:[%s5 + $0x68] sm:$0xf]
        %v9922 = vld [vmem:[%s5 + $0x6c] sm:$0xf]
        %v9925 = vunpack.c.l.b16 %v7842
        %v9926 = vunpack.c.l.b16 %v7843
        %v9927 = vpack.c.b16 %v9926, %v9925
        %v9932 = vunpack.c.l.b16 %v9919
        %v9933 = vunpack.c.l.b16 %v9920
        %v9934 = vunpack.c.l.b16 %v9921
        %v9935 = vunpack.c.l.b16 %v9922
        %v9936 = vpack.c.b16 %v9933, %v9932
        %v9937 = vpack.c.b16 %v9935, %v9934
        %v9941 = vsel %vm4891, %v9927, 0
        %9943 = vmatprep.subr.bf16.mxu0 0
        %9944 = vmatpush1.bf16.msra.mxu0 0
        %9945 = vmatprep.subr.bf16.mxu0 0
        %9946 = vmatpush1.bf16.msra.mxu0 0
        %9947 = vmatprep.subr.bf16.mxu0 0
        %9948 = vmatpush1.bf16.msra.mxu0 0
        %9949 = vmatprep.subr.bf16.mxu0 0
        %9950 = vmatpush1.bf16.msra.mxu0 0
        %9951 = vmatprep.subr.bf16.mxu0 0
        %9952 = vmatpush1.bf16.msra.mxu0 0
        %9953 = vmatprep.subr.bf16.mxu0 0
        %9954 = vmatpush1.bf16.msra.mxu0 0
        %9955 = vmatprep.subr.bf16.mxu0 0
        %9956 = vmatpush1.bf16.msra.mxu0 %v9937
        %9957 = vmatprep.subr.bf16.mxu0 0
        %9958 = vmatpush1.bf16.msra.mxu0 %v9936
        %9959 = vmatprep.subr.bf16.mxu0 0
        %9960 = vmatpush2.bf16.msra.mxu0 0
        %9961 = vmatprep.subr.bf16.mxu0 0
        %9962 = vmatpush2.bf16.msra.mxu0 0
        %9963 = vmatprep.subr.bf16.mxu0 0
        %9964 = vmatpush2.bf16.msra.mxu0 0
        %9965 = vmatprep.subr.bf16.mxu0 0
        %9966 = vmatpush2.bf16.msra.mxu0 0
        %9967 = vmatprep.subr.bf16.mxu0 0
        %9968 = vmatpush2.bf16.msra.mxu0 0
        %9969 = vmatprep.subr.bf16.mxu0 0
        %9970 = vmatpush2.bf16.msra.mxu0 0
        %9971 = vmatprep.subr.bf16.mxu0 0
        %9972 = vmatpush2.bf16.msra.mxu0 0
        %9973 = vmatprep.subr.bf16.mxu0 0
        %9974 = vmatpush2.bf16.msra.mxu0 0
        %9975 = vmatprep.mubr.bf16.mxu0 0
        %9976 = vmatmul.mubr.bf16.gmra.mxu0 %v8605
        %v9977 = vpop.f32.mrf.mxu0
        %v9978 = vadd.f32 0.0, %v9977
        %v9979 = vpop.f32.mrf.mxu0
        %v9980 = vpop.f32.mrf.mxu0
        %v9981 = vadd.f32 0.0, %v9980
        %v9982 = vpop.f32.mrf.mxu0
        %9983 = vmatprep.mubr.bf16.mxu0 0
        %9984 = vmatmul.mubr.bf16.gmra.mxu0 %v8608
        %v9985 = vpop.f32.mrf.mxu0
        %v9986 = vadd.f32 0.0, %v9985
        %v9987 = vpop.f32.mrf.mxu0
        %v9988 = vpop.f32.mrf.mxu0
        %v9989 = vadd.f32 0.0, %v9988
        %v9990 = vpop.f32.mrf.mxu0
        %9991 = vmatprep.mubr.bf16.mxu0 0
        %9992 = vmatmul.mubr.bf16.gmra.mxu0 %v8611
        %v9993 = vpop.f32.mrf.mxu0
        %v9994 = vadd.f32 0.0, %v9993
        %v9995 = vpop.f32.mrf.mxu0
        %v9996 = vpop.f32.mrf.mxu0
        %v9997 = vadd.f32 0.0, %v9996
        %v9998 = vpop.f32.mrf.mxu0
        %9999 = vmatprep.mubr.bf16.mxu0 0
        %10000 = vmatmul.mubr.bf16.gmra.mxu0 %v8614
        %v10001 = vpop.f32.mrf.mxu0
        %v10002 = vadd.f32 0.0, %v10001
        %v10003 = vpop.f32.mrf.mxu0
        %v10004 = vpop.f32.mrf.mxu0
        %v10005 = vadd.f32 0.0, %v10004
        %v10006 = vpop.f32.mrf.mxu0
        %10007 = vmatprep.mubr.bf16.mxu0 0
        %10008 = vmatmul.mubr.bf16.gmra.mxu0 %v8617
        %v10009 = vpop.f32.mrf.mxu0
        %v10010 = vadd.f32 0.0, %v10009
        %v10011 = vpop.f32.mrf.mxu0
        %v10012 = vpop.f32.mrf.mxu0
        %v10013 = vadd.f32 0.0, %v10012
        %v10014 = vpop.f32.mrf.mxu0
        %10015 = vmatprep.mubr.bf16.mxu0 0
        %10016 = vmatmul.mubr.bf16.gmra.mxu0 %v8620
        %v10017 = vpop.f32.mrf.mxu0
        %v10018 = vadd.f32 0.0, %v10017
        %v10019 = vpop.f32.mrf.mxu0
        %v10020 = vpop.f32.mrf.mxu0
        %v10021 = vadd.f32 0.0, %v10020
        %v10022 = vpop.f32.mrf.mxu0
        %10023 = vmatprep.mubr.bf16.mxu0 0
        %10024 = vmatmul.mubr.bf16.gmra.mxu0 %v8623
        %v10025 = vpop.f32.mrf.mxu0
        %v10026 = vadd.f32 0.0, %v10025
        %v10027 = vpop.f32.mrf.mxu0
        %v10028 = vpop.f32.mrf.mxu0
        %v10029 = vadd.f32 0.0, %v10028
        %v10030 = vpop.f32.mrf.mxu0
        %10031 = vmatprep.mubr.bf16.mxu0 0
        %10032 = vmatmul.mubr.bf16.gmra.mxu0 %v8626
        %v10033 = vpop.f32.mrf.mxu0
        %v10034 = vadd.f32 0.0, %v10033
        %v10035 = vpop.f32.mrf.mxu0
        %v10036 = vpop.f32.mrf.mxu0
        %v10037 = vadd.f32 0.0, %v10036
        %v10038 = vpop.f32.mrf.mxu0
        %10039 = vmatprep.mubr.bf16.mxu0 0
        %10040 = vmatmul.mubr.bf16.gmra.mxu0 %v8629
        %v10041 = vpop.f32.mrf.mxu0
        %v10042 = vadd.f32 0.0, %v10041
        %v10043 = vpop.f32.mrf.mxu0
        %v10044 = vpop.f32.mrf.mxu0
        %v10045 = vadd.f32 0.0, %v10044
        %v10046 = vpop.f32.mrf.mxu0
        %10047 = vmatprep.mubr.bf16.mxu0 0
        %10048 = vmatmul.mubr.bf16.gmra.mxu0 %v8632
        %v10049 = vpop.f32.mrf.mxu0
        %v10050 = vadd.f32 0.0, %v10049
        %v10051 = vpop.f32.mrf.mxu0
        %v10052 = vpop.f32.mrf.mxu0
        %v10053 = vadd.f32 0.0, %v10052
        %v10054 = vpop.f32.mrf.mxu0
        %10055 = vmatprep.mubr.bf16.mxu0 0
        %10056 = vmatmul.mubr.bf16.gmra.mxu0 %v8635
        %v10057 = vpop.f32.mrf.mxu0
        %v10058 = vadd.f32 0.0, %v10057
        %v10059 = vpop.f32.mrf.mxu0
        %v10060 = vpop.f32.mrf.mxu0
        %v10061 = vadd.f32 0.0, %v10060
        %v10062 = vpop.f32.mrf.mxu0
        %10063 = vmatprep.mubr.bf16.mxu0 0
        %10064 = vmatmul.mubr.bf16.gmra.mxu0 %v8638
        %v10065 = vpop.f32.mrf.mxu0
        %v10066 = vadd.f32 0.0, %v10065
        %v10067 = vpop.f32.mrf.mxu0
        %v10068 = vpop.f32.mrf.mxu0
        %v10069 = vadd.f32 0.0, %v10068
        %v10070 = vpop.f32.mrf.mxu0
        %10071 = vmatprep.mubr.bf16.mxu0 0
        %10072 = vmatmul.mubr.bf16.gmra.mxu0 %v8641
        %v10073 = vpop.f32.mrf.mxu0
        %v10074 = vadd.f32 0.0, %v10073
        %v10075 = vpop.f32.mrf.mxu0
        %v10076 = vpop.f32.mrf.mxu0
        %v10077 = vadd.f32 0.0, %v10076
        %v10078 = vpop.f32.mrf.mxu0
        %10079 = vmatprep.mubr.bf16.mxu0 0
        %10080 = vmatmul.mubr.bf16.gmra.mxu0 %v8644
        %v10081 = vpop.f32.mrf.mxu0
        %v10082 = vadd.f32 0.0, %v10081
        %v10083 = vpop.f32.mrf.mxu0
        %v10084 = vpop.f32.mrf.mxu0
        %v10085 = vadd.f32 0.0, %v10084
        %v10086 = vpop.f32.mrf.mxu0
        %10087 = vmatprep.mubr.bf16.mxu0 0
        %10088 = vmatmul.mubr.bf16.gmra.mxu0 %v9262
        %v10089 = vpop.f32.mrf.mxu0
        %v10090 = vadd.f32 0.0, %v10089
        %v10091 = vpop.f32.mrf.mxu0
        %v10092 = vpop.f32.mrf.mxu0
        %v10093 = vadd.f32 0.0, %v10092
        %v10094 = vpop.f32.mrf.mxu0
        %10095 = vmatprep.mubr.bf16.mxu0 0
        %10096 = vmatmul.mubr.bf16.gmra.mxu0 %v9941
        %v10097 = vpop.f32.mrf.mxu0
        %v10098 = vadd.f32 0.0, %v10097
        %v10099 = vpop.f32.mrf.mxu0
        %v10100 = vpop.f32.mrf.mxu0
        %v10101 = vadd.f32 0.0, %v10100
        %v10102 = vpop.f32.mrf.mxu0
        %10103 = vdwg.mxu0
        %v10104 = vadd.f32 %v9887, %v9978
        %v10105 = vadd.f32 %v9888, %v9981
        %v10106 = vadd.f32 %v9889, %v9986
        %v10107 = vadd.f32 %v9890, %v9989
        %v10108 = vadd.f32 %v9891, %v9994
        %v10109 = vadd.f32 %v9892, %v9997
        %v10110 = vadd.f32 %v9893, %v10002
        %v10111 = vadd.f32 %v9894, %v10005
        %v10112 = vadd.f32 %v9895, %v10010
        %v10113 = vadd.f32 %v9896, %v10013
        %v10114 = vadd.f32 %v9897, %v10018
        %v10115 = vadd.f32 %v9898, %v10021
        %v10116 = vadd.f32 %v9899, %v10026
        %v10117 = vadd.f32 %v9900, %v10029
        %v10118 = vadd.f32 %v9901, %v10034
        %v10119 = vadd.f32 %v9902, %v10037
        %v10120 = vadd.f32 %v9903, %v10042
        %v10121 = vadd.f32 %v9904, %v10045
        %v10122 = vadd.f32 %v9905, %v10050
        %v10123 = vadd.f32 %v9906, %v10053
        %v10124 = vadd.f32 %v9907, %v10058
        %v10125 = vadd.f32 %v9908, %v10061
        %v10126 = vadd.f32 %v9909, %v10066
        %v10127 = vadd.f32 %v9910, %v10069
        %v10128 = vadd.f32 %v9911, %v10074
        %v10129 = vadd.f32 %v9912, %v10077
        %v10130 = vadd.f32 %v9913, %v10082
        %v10131 = vadd.f32 %v9914, %v10085
        %v10132 = vadd.f32 %v9915, %v10090
        %v10133 = vadd.f32 %v9916, %v10093
        %v10134 = vadd.f32 %v9917, %v10098
        %v10135 = vadd.f32 %v9918, %v10101
        %v10137 = vshrl.u32 %v7842, 16
        %v10139 = vrot.slane %v10137, 4
        %v10140 = vshll.u32 %v7842, 16
        %v10142 = vrot.slane %v10140, 5
        %v10143 = vor.u32 %v10139, %v10142
        %v10144 = vrot.slane %v10143, 4
        %v10146 = vshll.u32 %v7843, 16
        %v10148 = vrot.slane %v10146, 5
        %v10149 = vsel %vm1118, %v10144, %v10148
        %v10150 = vshrl.u32 %v7843, 16
        %v10152 = vrot.slane %v10150, 4
        %v10153 = vor.u32 %v10152, %v10148
        %v10154 = vrot.slane %v10153, 4
        %v10156 = vshll.u32 %v7844, 16
        %v10158 = vrot.slane %v10156, 5
        %v10159 = vsel %vm1118, %v10154, %v10158
        %v10160 = vld [vmem:[%s5 + $0x70] sm:$0xf]
        %v10161 = vld [vmem:[%s5 + $0x74] sm:$0xf]
        %v10162 = vld [vmem:[%s5 + $0x78] sm:$0xf]
        %v10163 = vld [vmem:[%s5 + $0x7c] sm:$0xf]
        %v10164 = vunpack.c.l.b16 %v10149
        %v10165 = vunpack.c.l.b16 %v10159
        %v10166 = vpack.c.b16 %v10165, %v10164
        %v10171 = vunpack.c.l.b16 %v10160
        %v10172 = vunpack.c.l.b16 %v10161
        %v10173 = vunpack.c.l.b16 %v10162
        %v10174 = vunpack.c.l.b16 %v10163
        %v10175 = vpack.c.b16 %v10172, %v10171
        %v10176 = vpack.c.b16 %v10174, %v10173
        %v10180 = vsel %vm4891, %v10166, 0
        %10182 = vmatprep.subr.bf16.mxu0 0
        %10183 = vmatpush1.bf16.msra.mxu0 0
        %10184 = vmatprep.subr.bf16.mxu0 0
        %10185 = vmatpush1.bf16.msra.mxu0 0
        %10186 = vmatprep.subr.bf16.mxu0 0
        %10187 = vmatpush1.bf16.msra.mxu0 0
        %10188 = vmatprep.subr.bf16.mxu0 0
        %10189 = vmatpush1.bf16.msra.mxu0 0
        %10190 = vmatprep.subr.bf16.mxu0 0
        %10191 = vmatpush1.bf16.msra.mxu0 0
        %10192 = vmatprep.subr.bf16.mxu0 0
        %10193 = vmatpush1.bf16.msra.mxu0 0
        %10194 = vmatprep.subr.bf16.mxu0 0
        %10195 = vmatpush1.bf16.msra.mxu0 %v10176
        %10196 = vmatprep.subr.bf16.mxu0 0
        %10197 = vmatpush1.bf16.msra.mxu0 %v10175
        %10198 = vmatprep.subr.bf16.mxu0 0
        %10199 = vmatpush2.bf16.msra.mxu0 0
        %10200 = vmatprep.subr.bf16.mxu0 0
        %10201 = vmatpush2.bf16.msra.mxu0 0
        %10202 = vmatprep.subr.bf16.mxu0 0
        %10203 = vmatpush2.bf16.msra.mxu0 0
        %10204 = vmatprep.subr.bf16.mxu0 0
        %10205 = vmatpush2.bf16.msra.mxu0 0
        %10206 = vmatprep.subr.bf16.mxu0 0
        %10207 = vmatpush2.bf16.msra.mxu0 0
        %10208 = vmatprep.subr.bf16.mxu0 0
        %10209 = vmatpush2.bf16.msra.mxu0 0
        %10210 = vmatprep.subr.bf16.mxu0 0
        %10211 = vmatpush2.bf16.msra.mxu0 0
        %10212 = vmatprep.subr.bf16.mxu0 0
        %10213 = vmatpush2.bf16.msra.mxu0 0
        %10214 = vmatprep.mubr.bf16.mxu0 0
        %10215 = vmatmul.mubr.bf16.gmra.mxu0 %v8304
        %v10216 = vpop.f32.mrf.mxu0
        %v10217 = vadd.f32 0.0, %v10216
        %v10218 = vpop.f32.mrf.mxu0
        %v10219 = vpop.f32.mrf.mxu0
        %v10220 = vadd.f32 0.0, %v10219
        %v10221 = vpop.f32.mrf.mxu0
        %10222 = vmatprep.mubr.bf16.mxu0 0
        %10223 = vmatmul.mubr.bf16.gmra.mxu0 %v8307
        %v10224 = vpop.f32.mrf.mxu0
        %v10225 = vadd.f32 0.0, %v10224
        %v10226 = vpop.f32.mrf.mxu0
        %v10227 = vpop.f32.mrf.mxu0
        %v10228 = vadd.f32 0.0, %v10227
        %v10229 = vpop.f32.mrf.mxu0
        %10230 = vmatprep.mubr.bf16.mxu0 0
        %10231 = vmatmul.mubr.bf16.gmra.mxu0 %v8310
        %v10232 = vpop.f32.mrf.mxu0
        %v10233 = vadd.f32 0.0, %v10232
        %v10234 = vpop.f32.mrf.mxu0
        %v10235 = vpop.f32.mrf.mxu0
        %v10236 = vadd.f32 0.0, %v10235
        %v10237 = vpop.f32.mrf.mxu0
        %10238 = vmatprep.mubr.bf16.mxu0 0
        %10239 = vmatmul.mubr.bf16.gmra.mxu0 %v8313
        %v10240 = vpop.f32.mrf.mxu0
        %v10241 = vadd.f32 0.0, %v10240
        %v10242 = vpop.f32.mrf.mxu0
        %v10243 = vpop.f32.mrf.mxu0
        %v10244 = vadd.f32 0.0, %v10243
        %v10245 = vpop.f32.mrf.mxu0
        %10246 = vmatprep.mubr.bf16.mxu0 0
        %10247 = vmatmul.mubr.bf16.gmra.mxu0 %v8316
        %v10248 = vpop.f32.mrf.mxu0
        %v10249 = vadd.f32 0.0, %v10248
        %v10250 = vpop.f32.mrf.mxu0
        %v10251 = vpop.f32.mrf.mxu0
        %v10252 = vadd.f32 0.0, %v10251
        %v10253 = vpop.f32.mrf.mxu0
        %10254 = vmatprep.mubr.bf16.mxu0 0
        %10255 = vmatmul.mubr.bf16.gmra.mxu0 %v8319
        %v10256 = vpop.f32.mrf.mxu0
        %v10257 = vadd.f32 0.0, %v10256
        %v10258 = vpop.f32.mrf.mxu0
        %v10259 = vpop.f32.mrf.mxu0
        %v10260 = vadd.f32 0.0, %v10259
        %v10261 = vpop.f32.mrf.mxu0
        %10262 = vmatprep.mubr.bf16.mxu0 0
        %10263 = vmatmul.mubr.bf16.gmra.mxu0 %v8322
        %v10264 = vpop.f32.mrf.mxu0
        %v10265 = vadd.f32 0.0, %v10264
        %v10266 = vpop.f32.mrf.mxu0
        %v10267 = vpop.f32.mrf.mxu0
        %v10268 = vadd.f32 0.0, %v10267
        %v10269 = vpop.f32.mrf.mxu0
        %10270 = vmatprep.mubr.bf16.mxu0 0
        %10271 = vmatmul.mubr.bf16.gmra.mxu0 %v8325
        %v10272 = vpop.f32.mrf.mxu0
        %v10273 = vadd.f32 0.0, %v10272
        %v10274 = vpop.f32.mrf.mxu0
        %v10275 = vpop.f32.mrf.mxu0
        %v10276 = vadd.f32 0.0, %v10275
        %v10277 = vpop.f32.mrf.mxu0
        %10278 = vmatprep.mubr.bf16.mxu0 0
        %10279 = vmatmul.mubr.bf16.gmra.mxu0 %v8328
        %v10280 = vpop.f32.mrf.mxu0
        %v10281 = vadd.f32 0.0, %v10280
        %v10282 = vpop.f32.mrf.mxu0
        %v10283 = vpop.f32.mrf.mxu0
        %v10284 = vadd.f32 0.0, %v10283
        %v10285 = vpop.f32.mrf.mxu0
        %10286 = vmatprep.mubr.bf16.mxu0 0
        %10287 = vmatmul.mubr.bf16.gmra.mxu0 %v8331
        %v10288 = vpop.f32.mrf.mxu0
        %v10289 = vadd.f32 0.0, %v10288
        %v10290 = vpop.f32.mrf.mxu0
        %v10291 = vpop.f32.mrf.mxu0
        %v10292 = vadd.f32 0.0, %v10291
        %v10293 = vpop.f32.mrf.mxu0
        %10294 = vmatprep.mubr.bf16.mxu0 0
        %10295 = vmatmul.mubr.bf16.gmra.mxu0 %v8334
        %v10296 = vpop.f32.mrf.mxu0
        %v10297 = vadd.f32 0.0, %v10296
        %v10298 = vpop.f32.mrf.mxu0
        %v10299 = vpop.f32.mrf.mxu0
        %v10300 = vadd.f32 0.0, %v10299
        %v10301 = vpop.f32.mrf.mxu0
        %10302 = vmatprep.mubr.bf16.mxu0 0
        %10303 = vmatmul.mubr.bf16.gmra.mxu0 %v8337
        %v10304 = vpop.f32.mrf.mxu0
        %v10305 = vadd.f32 0.0, %v10304
        %v10306 = vpop.f32.mrf.mxu0
        %v10307 = vpop.f32.mrf.mxu0
        %v10308 = vadd.f32 0.0, %v10307
        %v10309 = vpop.f32.mrf.mxu0
        %10310 = vmatprep.mubr.bf16.mxu0 0
        %10311 = vmatmul.mubr.bf16.gmra.mxu0 %v8340
        %v10312 = vpop.f32.mrf.mxu0
        %v10313 = vadd.f32 0.0, %v10312
        %v10314 = vpop.f32.mrf.mxu0
        %v10315 = vpop.f32.mrf.mxu0
        %v10316 = vadd.f32 0.0, %v10315
        %v10317 = vpop.f32.mrf.mxu0
        %10318 = vmatprep.mubr.bf16.mxu0 0
        %10319 = vmatmul.mubr.bf16.gmra.mxu0 %v8343
        %v10320 = vpop.f32.mrf.mxu0
        %v10321 = vadd.f32 0.0, %v10320
        %v10322 = vpop.f32.mrf.mxu0
        %v10323 = vpop.f32.mrf.mxu0
        %v10324 = vadd.f32 0.0, %v10323
        %v10325 = vpop.f32.mrf.mxu0
        %10326 = vmatprep.mubr.bf16.mxu0 0
        %10327 = vmatmul.mubr.bf16.gmra.mxu0 %v9501
        %v10328 = vpop.f32.mrf.mxu0
        %v10329 = vadd.f32 0.0, %v10328
        %v10330 = vpop.f32.mrf.mxu0
        %v10331 = vpop.f32.mrf.mxu0
        %v10332 = vadd.f32 0.0, %v10331
        %v10333 = vpop.f32.mrf.mxu0
        %10334 = vmatprep.mubr.bf16.mxu0 0
        %10335 = vmatmul.mubr.bf16.gmra.mxu0 %v10180
        %v10336 = vpop.f32.mrf.mxu0
        %v10337 = vadd.f32 0.0, %v10336
        %v10338 = vpop.f32.mrf.mxu0
        %v10339 = vpop.f32.mrf.mxu0
        %v10340 = vadd.f32 0.0, %v10339
        %v10341 = vpop.f32.mrf.mxu0
        %10342 = vdwg.mxu0
        %v10343 = vadd.f32 %v10104, %v10217
        %v10344 = vadd.f32 %v10105, %v10220
        %v10345 = vadd.f32 %v10106, %v10225
        %v10346 = vadd.f32 %v10107, %v10228
        %v10347 = vadd.f32 %v10108, %v10233
        %v10348 = vadd.f32 %v10109, %v10236
        %v10349 = vadd.f32 %v10110, %v10241
        %v10350 = vadd.f32 %v10111, %v10244
        %v10351 = vadd.f32 %v10112, %v10249
        %v10352 = vadd.f32 %v10113, %v10252
        %v10353 = vadd.f32 %v10114, %v10257
        %v10354 = vadd.f32 %v10115, %v10260
        %v10355 = vadd.f32 %v10116, %v10265
        %v10356 = vadd.f32 %v10117, %v10268
        %v10357 = vadd.f32 %v10118, %v10273
        %v10358 = vadd.f32 %v10119, %v10276
        %v10359 = vadd.f32 %v10120, %v10281
        %v10360 = vadd.f32 %v10121, %v10284
        %v10361 = vadd.f32 %v10122, %v10289
        %v10362 = vadd.f32 %v10123, %v10292
        %v10363 = vadd.f32 %v10124, %v10297
        %v10364 = vadd.f32 %v10125, %v10300
        %v10365 = vadd.f32 %v10126, %v10305
        %v10366 = vadd.f32 %v10127, %v10308
        %v10367 = vadd.f32 %v10128, %v10313
        %v10368 = vadd.f32 %v10129, %v10316
        %v10369 = vadd.f32 %v10130, %v10321
        %v10370 = vadd.f32 %v10131, %v10324
        %v10371 = vadd.f32 %v10132, %v10329
        %v10372 = vadd.f32 %v10133, %v10332
        %v10373 = vadd.f32 %v10134, %v10337
        %v10374 = vadd.f32 %v10135, %v10340
        %v10376 = vrot.slane %v7842, 5
        %v10377 = vrot.slane %v10376, 4
        %v10378 = vrot.slane %v7843, 5
        %v10379 = vsel %vm2080, %v10377, %v10378
        %v10380 = vrot.slane %v10378, 4
        %v10381 = vrot.slane %v7844, 5
        %v10382 = vsel %vm2080, %v10380, %v10381
        %v10383 = vld [vmem:[%s5 + $0x80] sm:$0xf]
        %v10384 = vld [vmem:[%s5 + $0x84] sm:$0xf]
        %v10385 = vld [vmem:[%s5 + $0x88] sm:$0xf]
        %v10386 = vld [vmem:[%s5 + $0x8c] sm:$0xf]
        %v10387 = vunpack.c.l.b16 %v10379
        %v10388 = vunpack.c.l.b16 %v10382
        %v10389 = vpack.c.b16 %v10388, %v10387
        %v10394 = vunpack.c.l.b16 %v10383
        %v10395 = vunpack.c.l.b16 %v10384
        %v10396 = vunpack.c.l.b16 %v10385
        %v10397 = vunpack.c.l.b16 %v10386
        %v10398 = vpack.c.b16 %v10395, %v10394
        %v10399 = vpack.c.b16 %v10397, %v10396
        %v10403 = vsel %vm4891, %v10389, 0
        %10405 = vmatprep.subr.bf16.mxu0 0
        %10406 = vmatpush1.bf16.msra.mxu0 0
        %10407 = vmatprep.subr.bf16.mxu0 0
        %10408 = vmatpush1.bf16.msra.mxu0 0
        %10409 = vmatprep.subr.bf16.mxu0 0
        %10410 = vmatpush1.bf16.msra.mxu0 0
        %10411 = vmatprep.subr.bf16.mxu0 0
        %10412 = vmatpush1.bf16.msra.mxu0 0
        %10413 = vmatprep.subr.bf16.mxu0 0
        %10414 = vmatpush1.bf16.msra.mxu0 0
        %10415 = vmatprep.subr.bf16.mxu0 0
        %10416 = vmatpush1.bf16.msra.mxu0 0
        %10417 = vmatprep.subr.bf16.mxu0 0
        %10418 = vmatpush1.bf16.msra.mxu0 %v10399
        %10419 = vmatprep.subr.bf16.mxu0 0
        %10420 = vmatpush1.bf16.msra.mxu0 %v10398
        %10421 = vmatprep.subr.bf16.mxu0 0
        %10422 = vmatpush2.bf16.msra.mxu0 0
        %10423 = vmatprep.subr.bf16.mxu0 0
        %10424 = vmatpush2.bf16.msra.mxu0 0
        %10425 = vmatprep.subr.bf16.mxu0 0
        %10426 = vmatpush2.bf16.msra.mxu0 0
        %10427 = vmatprep.subr.bf16.mxu0 0
        %10428 = vmatpush2.bf16.msra.mxu0 0
        %10429 = vmatprep.subr.bf16.mxu0 0
        %10430 = vmatpush2.bf16.msra.mxu0 0
        %10431 = vmatprep.subr.bf16.mxu0 0
        %10432 = vmatpush2.bf16.msra.mxu0 0
        %10433 = vmatprep.subr.bf16.mxu0 0
        %10434 = vmatpush2.bf16.msra.mxu0 0
        %10435 = vmatprep.subr.bf16.mxu0 0
        %10436 = vmatpush2.bf16.msra.mxu0 0
        %10437 = vmatprep.mubr.bf16.mxu0 0
        %10438 = vmatmul.mubr.bf16.gmra.mxu0 %v9006
        %v10439 = vpop.f32.mrf.mxu0
        %v10440 = vadd.f32 0.0, %v10439
        %v10441 = vpop.f32.mrf.mxu0
        %v10442 = vpop.f32.mrf.mxu0
        %v10443 = vadd.f32 0.0, %v10442
        %v10444 = vpop.f32.mrf.mxu0
        %10445 = vmatprep.mubr.bf16.mxu0 0
        %10446 = vmatmul.mubr.bf16.gmra.mxu0 %v9009
        %v10447 = vpop.f32.mrf.mxu0
        %v10448 = vadd.f32 0.0, %v10447
        %v10449 = vpop.f32.mrf.mxu0
        %v10450 = vpop.f32.mrf.mxu0
        %v10451 = vadd.f32 0.0, %v10450
        %v10452 = vpop.f32.mrf.mxu0
        %10453 = vmatprep.mubr.bf16.mxu0 0
        %10454 = vmatmul.mubr.bf16.gmra.mxu0 %v9012
        %v10455 = vpop.f32.mrf.mxu0
        %v10456 = vadd.f32 0.0, %v10455
        %v10457 = vpop.f32.mrf.mxu0
        %v10458 = vpop.f32.mrf.mxu0
        %v10459 = vadd.f32 0.0, %v10458
        %v10460 = vpop.f32.mrf.mxu0
        %10461 = vmatprep.mubr.bf16.mxu0 0
        %10462 = vmatmul.mubr.bf16.gmra.mxu0 %v9015
        %v10463 = vpop.f32.mrf.mxu0
        %v10464 = vadd.f32 0.0, %v10463
        %v10465 = vpop.f32.mrf.mxu0
        %v10466 = vpop.f32.mrf.mxu0
        %v10467 = vadd.f32 0.0, %v10466
        %v10468 = vpop.f32.mrf.mxu0
        %10469 = vmatprep.mubr.bf16.mxu0 0
        %10470 = vmatmul.mubr.bf16.gmra.mxu0 %v9018
        %v10471 = vpop.f32.mrf.mxu0
        %v10472 = vadd.f32 0.0, %v10471
        %v10473 = vpop.f32.mrf.mxu0
        %v10474 = vpop.f32.mrf.mxu0
        %v10475 = vadd.f32 0.0, %v10474
        %v10476 = vpop.f32.mrf.mxu0
        %10477 = vmatprep.mubr.bf16.mxu0 0
        %10478 = vmatmul.mubr.bf16.gmra.mxu0 %v9021
        %v10479 = vpop.f32.mrf.mxu0
        %v10480 = vadd.f32 0.0, %v10479
        %v10481 = vpop.f32.mrf.mxu0
        %v10482 = vpop.f32.mrf.mxu0
        %v10483 = vadd.f32 0.0, %v10482
        %v10484 = vpop.f32.mrf.mxu0
        %10485 = vmatprep.mubr.bf16.mxu0 0
        %10486 = vmatmul.mubr.bf16.gmra.mxu0 %v9024
        %v10487 = vpop.f32.mrf.mxu0
        %v10488 = vadd.f32 0.0, %v10487
        %v10489 = vpop.f32.mrf.mxu0
        %v10490 = vpop.f32.mrf.mxu0
        %v10491 = vadd.f32 0.0, %v10490
        %v10492 = vpop.f32.mrf.mxu0
        %10493 = vmatprep.mubr.bf16.mxu0 0
        %10494 = vmatmul.mubr.bf16.gmra.mxu0 %v9027
        %v10495 = vpop.f32.mrf.mxu0
        %v10496 = vadd.f32 0.0, %v10495
        %v10497 = vpop.f32.mrf.mxu0
        %v10498 = vpop.f32.mrf.mxu0
        %v10499 = vadd.f32 0.0, %v10498
        %v10500 = vpop.f32.mrf.mxu0
        %10501 = vmatprep.mubr.bf16.mxu0 0
        %10502 = vmatmul.mubr.bf16.gmra.mxu0 %v9030
        %v10503 = vpop.f32.mrf.mxu0
        %v10504 = vadd.f32 0.0, %v10503
        %v10505 = vpop.f32.mrf.mxu0
        %v10506 = vpop.f32.mrf.mxu0
        %v10507 = vadd.f32 0.0, %v10506
        %v10508 = vpop.f32.mrf.mxu0
        %10509 = vmatprep.mubr.bf16.mxu0 0
        %10510 = vmatmul.mubr.bf16.gmra.mxu0 %v9033
        %v10511 = vpop.f32.mrf.mxu0
        %v10512 = vadd.f32 0.0, %v10511
        %v10513 = vpop.f32.mrf.mxu0
        %v10514 = vpop.f32.mrf.mxu0
        %v10515 = vadd.f32 0.0, %v10514
        %v10516 = vpop.f32.mrf.mxu0
        %10517 = vmatprep.mubr.bf16.mxu0 0
        %10518 = vmatmul.mubr.bf16.gmra.mxu0 %v9036
        %v10519 = vpop.f32.mrf.mxu0
        %v10520 = vadd.f32 0.0, %v10519
        %v10521 = vpop.f32.mrf.mxu0
        %v10522 = vpop.f32.mrf.mxu0
        %v10523 = vadd.f32 0.0, %v10522
        %v10524 = vpop.f32.mrf.mxu0
        %10525 = vmatprep.mubr.bf16.mxu0 0
        %10526 = vmatmul.mubr.bf16.gmra.mxu0 %v9039
        %v10527 = vpop.f32.mrf.mxu0
        %v10528 = vadd.f32 0.0, %v10527
        %v10529 = vpop.f32.mrf.mxu0
        %v10530 = vpop.f32.mrf.mxu0
        %v10531 = vadd.f32 0.0, %v10530
        %v10532 = vpop.f32.mrf.mxu0
        %10533 = vmatprep.mubr.bf16.mxu0 0
        %10534 = vmatmul.mubr.bf16.gmra.mxu0 %v9042
        %v10535 = vpop.f32.mrf.mxu0
        %v10536 = vadd.f32 0.0, %v10535
        %v10537 = vpop.f32.mrf.mxu0
        %v10538 = vpop.f32.mrf.mxu0
        %v10539 = vadd.f32 0.0, %v10538
        %v10540 = vpop.f32.mrf.mxu0
        %10541 = vmatprep.mubr.bf16.mxu0 0
        %10542 = vmatmul.mubr.bf16.gmra.mxu0 %v9045
        %v10543 = vpop.f32.mrf.mxu0
        %v10544 = vadd.f32 0.0, %v10543
        %v10545 = vpop.f32.mrf.mxu0
        %v10546 = vpop.f32.mrf.mxu0
        %v10547 = vadd.f32 0.0, %v10546
        %v10548 = vpop.f32.mrf.mxu0
        %10549 = vmatprep.mubr.bf16.mxu0 0
        %10550 = vmatmul.mubr.bf16.gmra.mxu0 %v9724
        %v10551 = vpop.f32.mrf.mxu0
        %v10552 = vadd.f32 0.0, %v10551
        %v10553 = vpop.f32.mrf.mxu0
        %v10554 = vpop.f32.mrf.mxu0
        %v10555 = vadd.f32 0.0, %v10554
        %v10556 = vpop.f32.mrf.mxu0
        %10557 = vmatprep.mubr.bf16.mxu0 0
        %10558 = vmatmul.mubr.bf16.gmra.mxu0 %v10403
        %v10559 = vpop.f32.mrf.mxu0
        %v10560 = vadd.f32 0.0, %v10559
        %v10561 = vpop.f32.mrf.mxu0
        %v10562 = vpop.f32.mrf.mxu0
        %v10563 = vadd.f32 0.0, %v10562
        %v10564 = vpop.f32.mrf.mxu0
        %10565 = vdwg.mxu0
        %v10566 = vadd.f32 %v10343, %v10440
        %v10567 = vadd.f32 %v10344, %v10443
        %v10568 = vadd.f32 %v10345, %v10448
        %v10569 = vadd.f32 %v10346, %v10451
        %v10570 = vadd.f32 %v10347, %v10456
        %v10571 = vadd.f32 %v10348, %v10459
        %v10572 = vadd.f32 %v10349, %v10464
        %v10573 = vadd.f32 %v10350, %v10467
        %v10574 = vadd.f32 %v10351, %v10472
        %v10575 = vadd.f32 %v10352, %v10475
        %v10576 = vadd.f32 %v10353, %v10480
        %v10577 = vadd.f32 %v10354, %v10483
        %v10578 = vadd.f32 %v10355, %v10488
        %v10579 = vadd.f32 %v10356, %v10491
        %v10580 = vadd.f32 %v10357, %v10496
        %v10581 = vadd.f32 %v10358, %v10499
        %v10582 = vadd.f32 %v10359, %v10504
        %v10583 = vadd.f32 %v10360, %v10507
        %v10584 = vadd.f32 %v10361, %v10512
        %v10585 = vadd.f32 %v10362, %v10515
        %v10586 = vadd.f32 %v10363, %v10520
        %v10587 = vadd.f32 %v10364, %v10523
        %v10588 = vadd.f32 %v10365, %v10528
        %v10589 = vadd.f32 %v10366, %v10531
        %v10590 = vadd.f32 %v10367, %v10536
        %v10591 = vadd.f32 %v10368, %v10539
        %v10592 = vadd.f32 %v10369, %v10544
        %v10593 = vadd.f32 %v10370, %v10547
        %v10594 = vadd.f32 %v10371, %v10552
        %v10595 = vadd.f32 %v10372, %v10555
        %v10596 = vadd.f32 %v10373, %v10560
        %v10597 = vadd.f32 %v10374, %v10563
        %v10598 = vld [vmem:[%s6] sm:$0x1]
        %v10600 = vlaneseq
        %v10601 = vshrl.u32 %v10600, 7
        %v10602 = vsub.s32 0, %v10601
        %v10603 = vrot.slane %v10598, %v10602
        %v10605 = vadd.f32 %v10566, %v10603
        %v10606 = vadd.f32 %v10567, %v10603
        %v10607 = vadd.f32 %v10568, %v10603
        %v10608 = vadd.f32 %v10569, %v10603
        %v10609 = vadd.f32 %v10570, %v10603
        %v10610 = vadd.f32 %v10571, %v10603
        %v10611 = vadd.f32 %v10572, %v10603
        %v10612 = vadd.f32 %v10573, %v10603
        %v10613 = vadd.f32 %v10574, %v10603
        %v10614 = vadd.f32 %v10575, %v10603
        %v10615 = vadd.f32 %v10576, %v10603
        %v10616 = vadd.f32 %v10577, %v10603
        %v10617 = vadd.f32 %v10578, %v10603
        %v10618 = vadd.f32 %v10579, %v10603
        %v10619 = vadd.f32 %v10580, %v10603
        %v10620 = vadd.f32 %v10581, %v10603
        %v10621 = vadd.f32 %v10582, %v10603
        %v10622 = vadd.f32 %v10583, %v10603
        %v10623 = vadd.f32 %v10584, %v10603
        %v10624 = vadd.f32 %v10585, %v10603
        %v10625 = vadd.f32 %v10586, %v10603
        %v10626 = vadd.f32 %v10587, %v10603
        %v10627 = vadd.f32 %v10588, %v10603
        %v10628 = vadd.f32 %v10589, %v10603
        %v10629 = vadd.f32 %v10590, %v10603
        %v10630 = vadd.f32 %v10591, %v10603
        %v10631 = vadd.f32 %v10592, %v10603
        %v10632 = vadd.f32 %v10593, %v10603
        %v10633 = vadd.f32 %v10594, %v10603
        %v10634 = vadd.f32 %v10595, %v10603
        %v10635 = vadd.f32 %v10596, %v10603
        %v10636 = vadd.f32 %v10597, %v10603
        %10637 = vxpose.xlu0.b32.start [1/16] %v10605, 128
        %10638 = vxpose.xlu0.b32.cont [2/16] %v10606, 128
        %10639 = vxpose.xlu0.b32.cont [3/16] %v10607, 128
        %10640 = vxpose.xlu0.b32.cont [4/16] %v10608, 128
        %10641 = vxpose.xlu0.b32.cont [5/16] %v10609, 128
        %10642 = vxpose.xlu0.b32.cont [6/16] %v10610, 128
        %10643 = vxpose.xlu0.b32.cont [7/16] %v10611, 128
        %10644 = vxpose.xlu0.b32.cont [8/16] %v10612, 128
        %10645 = vxpose.xlu0.b32.cont [9/16] %v10613, 128
        %10646 = vxpose.xlu0.b32.cont [10/16] %v10614, 128
        %10647 = vxpose.xlu0.b32.cont [11/16] %v10615, 128
        %10648 = vxpose.xlu0.b32.cont [12/16] %v10616, 128
        %10649 = vxpose.xlu0.b32.cont [13/16] %v10617, 128
        %10650 = vxpose.xlu0.b32.cont [14/16] %v10618, 128
        %10651 = vxpose.xlu0.b32.cont [15/16] %v10619, 128
        %10652 = vxpose.xlu0.b32.end [16/16] %v10620, 128
        %v10653 = vpop.trf.xlu0
        %v10654 = vpop.trf.xlu0
        %v10655 = vpop.trf.xlu0
        %v10656 = vpop.trf.xlu0
        %v10657 = vpop.trf.xlu0
        %v10658 = vpop.trf.xlu0
        %v10659 = vpop.trf.xlu0
        %v10660 = vpop.trf.xlu0
        %v10661 = vpop.trf.xlu0
        %v10662 = vpop.trf.xlu0
        %v10663 = vpop.trf.xlu0
        %v10664 = vpop.trf.xlu0
        %v10665 = vpop.trf.xlu0
        %v10666 = vpop.trf.xlu0
        %v10667 = vpop.trf.xlu0
        %v10668 = vpop.trf.xlu0
        %10669 = vxpose.xlu0.b32.start [1/16] %v10621, 128
        %10670 = vxpose.xlu0.b32.cont [2/16] %v10622, 128
        %10671 = vxpose.xlu0.b32.cont [3/16] %v10623, 128
        %10672 = vxpose.xlu0.b32.cont [4/16] %v10624, 128
        %10673 = vxpose.xlu0.b32.cont [5/16] %v10625, 128
        %10674 = vxpose.xlu0.b32.cont [6/16] %v10626, 128
        %10675 = vxpose.xlu0.b32.cont [7/16] %v10627, 128
        %10676 = vxpose.xlu0.b32.cont [8/16] %v10628, 128
        %10677 = vxpose.xlu0.b32.cont [9/16] %v10629, 128
        %10678 = vxpose.xlu0.b32.cont [10/16] %v10630, 128
        %10679 = vxpose.xlu0.b32.cont [11/16] %v10631, 128
        %10680 = vxpose.xlu0.b32.cont [12/16] %v10632, 128
        %10681 = vxpose.xlu0.b32.cont [13/16] %v10633, 128
        %10682 = vxpose.xlu0.b32.cont [14/16] %v10634, 128
        %10683 = vxpose.xlu0.b32.cont [15/16] %v10635, 128
        %10684 = vxpose.xlu0.b32.end [16/16] %v10636, 128
        %v10685 = vpop.trf.xlu0
        %v10686 = vpop.trf.xlu0
        %v10687 = vpop.trf.xlu0
        %v10688 = vpop.trf.xlu0
        %v10689 = vpop.trf.xlu0
        %v10690 = vpop.trf.xlu0
        %v10691 = vpop.trf.xlu0
        %v10692 = vpop.trf.xlu0
        %v10693 = vpop.trf.xlu0
        %v10694 = vpop.trf.xlu0
        %v10695 = vpop.trf.xlu0
        %v10696 = vpop.trf.xlu0
        %v10697 = vpop.trf.xlu0
        %v10698 = vpop.trf.xlu0
        %v10699 = vpop.trf.xlu0
        %v10700 = vpop.trf.xlu0
        %10701 = vst [vmem:[%s356] sm:$0xff] %v10653
        %10702 = vst [vmem:[%s356 + $0x8] sm:$0xff] %v10685
        %v10703 = vsub.f32 0.0, %v10653
        %v10704 = vsub.f32 0.0, %v10685
        %v10705 = vmul.f32 %v10703, 1.442695
        %v10706 = vpow.pop %v10705
        %v10707 = vmul.f32 %v10704, 1.442695
        %v10708 = vpow.pop %v10707
        %v10709 = vadd.f32 %v10706, 1.0
        %v10710 = vadd.f32 %v10708, 1.0
        %v10711 = vrcp.pop %v10709
        %v10712 = vrcp.pop %v10710
        %v10713 = vadd.f32 %v10711, %v10712
        %10714 = vadd.xlane.f32.xlu0 %v10713
        %v10715 = vpop.xlane.xlu0 %10714
        %v10716 = vmax.f32 %v10715, 1e-06
        %v10717 = vrcp.pop %v10716
        %v10718 = vpack.c.bf16 %v10711, %v10711
        %v10719 = vpack.c.bf16 %v10712, %v10712
        %10720 = vmatprep.subr.bf16.mxu0 0
        %10721 = vmatpush1.bf16.msra.mxu0 %v7270
        %10722 = vmatprep.subr.bf16.mxu0 0
        %10723 = vmatpush1.bf16.msra.mxu0 %v7269
        %10724 = vmatprep.subr.bf16.mxu0 0
        %10725 = vmatpush1.bf16.msra.mxu0 %v7268
        %10726 = vmatprep.subr.bf16.mxu0 0
        %10727 = vmatpush1.bf16.msra.mxu0 %v7267
        %10728 = vmatprep.subr.bf16.mxu0 0
        %10729 = vmatpush1.bf16.msra.mxu0 %v7266
        %10730 = vmatprep.subr.bf16.mxu0 0
        %10731 = vmatpush1.bf16.msra.mxu0 %v7265
        %10732 = vmatprep.subr.bf16.mxu0 0
        %10733 = vmatpush1.bf16.msra.mxu0 %v7264
        %10734 = vmatprep.subr.bf16.mxu0 0
        %10735 = vmatpush1.bf16.msra.mxu0 %v7263
        %10736 = vmatprep.subr.bf16.mxu0 0
        %10737 = vmatpush2.bf16.msra.mxu0 %v7278
        %10738 = vmatprep.subr.bf16.mxu0 0
        %10739 = vmatpush2.bf16.msra.mxu0 %v7277
        %10740 = vmatprep.subr.bf16.mxu0 0
        %10741 = vmatpush2.bf16.msra.mxu0 %v7276
        %10742 = vmatprep.subr.bf16.mxu0 0
        %10743 = vmatpush2.bf16.msra.mxu0 %v7275
        %10744 = vmatprep.subr.bf16.mxu0 0
        %10745 = vmatpush2.bf16.msra.mxu0 %v7274
        %10746 = vmatprep.subr.bf16.mxu0 0
        %10747 = vmatpush2.bf16.msra.mxu0 %v7273
        %10748 = vmatprep.subr.bf16.mxu0 0
        %10749 = vmatpush2.bf16.msra.mxu0 %v7272
        %10750 = vmatprep.subr.bf16.mxu0 0
        %10751 = vmatpush2.bf16.msra.mxu0 %v7271
        %10752 = vmatprep.mubr.bf16.mxu0 %v10719
        %10753 = vmatmul.mubr.bf16.gmra.mxu0 %v10718
        %v10754 = vpop.f32.mrf.mxu0
        %v10755 = vadd.f32 0.0, %v10754
        %v10756 = vpop.f32.mrf.mxu0
        %v10757 = vpop.f32.mrf.mxu0
        %v10758 = vpop.f32.mrf.mxu0
        %10759 = vdwg.mxu0
        %v10760 = vmul.f32 %v10755, %v10717
        %v10761 = vpack.c.bf16 %v10760, %v10760
        %v10762 = vld [vmem:[%s7] sm:$0xf]
        %v10763 = vld [vmem:[%s7 + $0x4] sm:$0xf]
        %v10764 = vld [vmem:[%s7 + $0x8] sm:$0xf]
        %v10765 = vld [vmem:[%s7 + $0xc] sm:$0xf]
        %v10766 = vld [vmem:[%s8] sm:$0x1]
        %v10768 = vlaneseq
        %v10769 = vshrl.u32 %v10768, 7
        %v10770 = vsub.s32 0, %v10769
        %v10771 = vrot.slane %v10766, %v10770
        %v10777 = vunpack.c.l.b16 %v10762
        %v10778 = vunpack.c.l.b16 %v10763
        %v10779 = vunpack.c.l.b16 %v10764
        %v10780 = vunpack.c.l.b16 %v10765
        %v10781 = vpack.c.b16 %v10778, %v10777
        %v10782 = vpack.c.b16 %v10780, %v10779
        %v10786 = vsel %vm4891, %v10761, 0
        %10788 = vmatprep.subr.bf16.mxu0 0
        %10789 = vmatpush1.bf16.msra.mxu0 0
        %10790 = vmatprep.subr.bf16.mxu0 0
        %10791 = vmatpush1.bf16.msra.mxu0 0
        %10792 = vmatprep.subr.bf16.mxu0 0
        %10793 = vmatpush1.bf16.msra.mxu0 0
        %10794 = vmatprep.subr.bf16.mxu0 0
        %10795 = vmatpush1.bf16.msra.mxu0 0
        %10796 = vmatprep.subr.bf16.mxu0 0
        %10797 = vmatpush1.bf16.msra.mxu0 0
        %10798 = vmatprep.subr.bf16.mxu0 0
        %10799 = vmatpush1.bf16.msra.mxu0 0
        %10800 = vmatprep.subr.bf16.mxu0 0
        %10801 = vmatpush1.bf16.msra.mxu0 %v10782
        %10802 = vmatprep.subr.bf16.mxu0 0
        %10803 = vmatpush1.bf16.msra.mxu0 %v10781
        %10804 = vmatprep.subr.bf16.mxu0 0
        %10805 = vmatpush2.bf16.msra.mxu0 0
        %10806 = vmatprep.subr.bf16.mxu0 0
        %10807 = vmatpush2.bf16.msra.mxu0 0
        %10808 = vmatprep.subr.bf16.mxu0 0
        %10809 = vmatpush2.bf16.msra.mxu0 0
        %10810 = vmatprep.subr.bf16.mxu0 0
        %10811 = vmatpush2.bf16.msra.mxu0 0
        %10812 = vmatprep.subr.bf16.mxu0 0
        %10813 = vmatpush2.bf16.msra.mxu0 0
        %10814 = vmatprep.subr.bf16.mxu0 0
        %10815 = vmatpush2.bf16.msra.mxu0 0
        %10816 = vmatprep.subr.bf16.mxu0 0
        %10817 = vmatpush2.bf16.msra.mxu0 0
        %10818 = vmatprep.subr.bf16.mxu0 0
        %10819 = vmatpush2.bf16.msra.mxu0 0
        %10820 = vmatprep.mubr.bf16.mxu0 0
        %10821 = vmatmul.mubr.bf16.gmra.mxu0 %v10786
        %v10822 = vpop.f32.mrf.mxu0
        %v10823 = vadd.f32 %v10771, %v10822
        %v10824 = vpop.f32.mrf.mxu0
        %v10825 = vpop.f32.mrf.mxu0
        %v10826 = vpop.f32.mrf.mxu0
        %10827 = vdwg.mxu0
        %10828 = vst [vmem:[%s363] sm:$0xff] %v10823
        %s10829 = sand.u32 %s230, 1
        %s10830 = scalar_lea.sflag [#allocation4], %s10829
        %s10831 = sand.u32 %s230, 1
        %s10832 = smul.addr %s10831, 16
        %s10833 = scalar_lea.vmem [#allocation3], %s10832
        %s10834 = sand.u32 %s256, 1
        %s10835 = scalar_lea.sflag [#allocation6], %s10834
        %s10836 = sand.u32 %s256, 1
        %s10837 = smul.addr %s10836, 8
        %s10838 = scalar_lea.vmem [#allocation5], %s10837
        // Predicated region
        $region57: #{tpu_custom_call.1} parent=55 // pred_check
          %p10839 = pneg %p240
        $region58: #{tpu_custom_call.1} parent=55 // pred_check_branch
          %10841 = sbr.rel (%p10839) target = $region60
        $region59: #{tpu_custom_call.1} parent=55 // pred_region
          %s10843 = ssub.s32 256, 256
          %10844 = vsyncadd %s10830, %s10843
          %s10845 = smul.addr %s28, 2
          %s10846 = smul.addr %s10845, 128
          %s10847 = scalar_lea.hbm %s9, %s10846
          %s10849 = sshll.u32 %s10833, 4
          %s10850 = int_to_ptr.vmem [resolvable:$true] %s10849
          %10852 = dma.vmem_to_hbm [thread:$0]  %s10850, 256, %s10847, %s10830
        $region60: #{tpu_custom_call.1} parent=55 // pred_fallthru
          _
        // Predicated region
        $region61: #{tpu_custom_call.1} parent=55 // pred_check
          %p10853 = pneg %p266
        $region62: #{tpu_custom_call.1} parent=55 // pred_check_branch
          %10855 = sbr.rel (%p10853) target = $region64
        $region63: #{tpu_custom_call.1} parent=55 // pred_region
          %s10857 = ssub.s32 128, 128
          %10858 = vsyncadd %s10835, %s10857
          %s10859 = smul.addr %s28, 128
          %s10860 = scalar_lea.hbm %s10, %s10859
          %s10862 = sshll.u32 %s10838, 4
          %s10863 = int_to_ptr.vmem [resolvable:$true] %s10862
          %10865 = dma.vmem_to_hbm [thread:$0]  %s10863, 128, %s10860, %s10835
        $region64: #{tpu_custom_call.1} parent=55 // pred_fallthru
          _
      $region56: #{tpu_custom_call.1} parent=5 // pred_fallthru
        _
      %p10866 = scmp.le.s32.totalorder 2, %s23
      // Predicated region
      $region65: #{tpu_custom_call.1} parent=5 // pred_check
        %p10867 = pneg %p10866
      $region66: #{tpu_custom_call.1} parent=5 // pred_check_branch
        %10869 = sbr.rel (%p10867) target = $region68
      $region67: #{tpu_custom_call.1} parent=5 // pred_region
        %s10870 = ssub.s32 %s23, 2
        // Predicated region
        $region69: #{tpu_custom_call.1} parent=67 // pred_check
          %p10871 = pneg %p246
        $region70: #{tpu_custom_call.1} parent=67 // pred_check_branch
          %10873 = sbr.rel (%p10871) target = $region72
        $region71: #{tpu_custom_call.1} parent=67 // pred_region
          %s10874 = sand.u32 %s231, 1
          %s10875 = scalar_lea.sflag [#allocation4], %s10874
          %s10876 = sand.u32 %s231, 1
          %s10877 = smul.addr %s10876, 16
          %s10878 = scalar_lea.vmem [#allocation3], %s10877
          %10879 = dma.done %s10875, 256
        $region72: #{tpu_custom_call.1} parent=67 // pred_fallthru
          _
        // Predicated region
        $region73: #{tpu_custom_call.1} parent=67 // pred_check
          %p10880 = pneg %p272
        $region74: #{tpu_custom_call.1} parent=67 // pred_check_branch
          %10882 = sbr.rel (%p10880) target = $region76
        $region75: #{tpu_custom_call.1} parent=67 // pred_region
          %s10883 = sand.u32 %s257, 1
          %s10884 = scalar_lea.sflag [#allocation6], %s10883
          %s10885 = sand.u32 %s257, 1
          %s10886 = smul.addr %s10885, 8
          %s10887 = scalar_lea.vmem [#allocation5], %s10886
          %10888 = dma.done %s10884, 128
        $region76: #{tpu_custom_call.1} parent=67 // pred_fallthru
          _
      $region68: #{tpu_custom_call.1} parent=5 // pred_fallthru
        _
    $region6: #{tpu_custom_call.1} parent=1 // loop_footer
      %s27 = sadd.s32 1, %s23
    $region7: #{tpu_custom_call.1} parent=1 // loop_footer_branch
      %22 = sbr.rel target = $region3
    $region8: #{tpu_custom_call.1} parent=1 // loop_exit
      _
    %10889 = vsyncpa [#allocation4], 1
    %s10890 = scalar_lea.sflag [#allocation4], 1
    %10891 = vsyncpa %s10890, 1
    %10892 = vsyncpa [#allocation6], 1
    %s10893 = scalar_lea.sflag [#allocation6], 1
    %10894 = vsyncpa %s10893, 1

</llo_original>
